<compile_context>
chip_gen: v7x
topology: tpu7x:2x2x1
jax: 0.10.0
libtpu: 0.0.40
codegen_flags: <defaults>
</compile_context>

<pallas_src>
import jax
import jax.numpy as jnp
import numpy as np
from jax import lax
from jax.experimental import pallas as pl
from jax.experimental.pallas import tpu as pltpu

NT = 8            # images per grid step (interleaved on sublanes)
H_IN = W_IN = 64  # required by nn.Linear(2048, 1): 32 ch * 8 * 8 after 3 pools


# ----------------------------- kernel helpers ------------------------------ #
def _shift_rows_down(x, s):
    """y[r] = x[r + s] with zero fill past the end (static s > 0)."""
    _, c = x.shape
    z = jnp.zeros((s, c), x.dtype)
    return jnp.concatenate([x[s:, :], z], axis=0)


def _conv3x3_relu(x, g_ref, b_ref):
    """x: (H*NT, Cin*W), row = h*NT + n, lane = ci*W + w.
    Returns ReLU(conv) with parity-permuted output lanes
    (H*NT, 2*Cout*(W//2)): first half = even-w columns, second half = odd-w."""
    r, l = x.shape
    zpad = jnp.zeros((NT, l), x.dtype)
    xp = jnp.concatenate([zpad, x, zpad], axis=0)       # zero pad in h
    acc = b_ref[...] + jnp.dot(x, g_ref[1],             # vertical tap dy = 0
                               preferred_element_type=jnp.float32)
    acc = acc + jnp.dot(xp[:r, :], g_ref[0],            # rows h-1 (dy = -1)
                        preferred_element_type=jnp.float32)
    acc = acc + jnp.dot(xp[2 * NT:, :], g_ref[2],       # rows h+1 (dy = +1)
                        preferred_element_type=jnp.float32)
    return jnp.maximum(acc, 0.0)


def _maxpool2x2(y):
    """y: parity-permuted conv output (H*NT, 2*C*Wh).  Returns the 2x2/stride-2
    max pool (H//2*NT, C*Wh) with row = h2*NT + n, lane = c*Wh + w2."""
    r, l = y.shape
    nh = l // 2
    zh = jnp.maximum(y[:, :nh], y[:, nh:])              # horizontal pair max
    mv = jnp.maximum(zh, _shift_rows_down(zh, NT))      # vertical pair max
    h2 = r // (2 * NT)
    return mv.reshape(h2, 2 * NT, nh)[:, :NT, :].reshape(h2 * NT, nh)


def fid_kernel(x_ref, g1_ref, b1_ref, g2_ref, b2_ref, g3_ref, b3_ref,
               e_ref, sel_ref, bd_ref, o_ref):
    x0 = x_ref[...].reshape(H_IN * NT, W_IN)            # (512, 64)
    h = _maxpool2x2(_conv3x3_relu(x0, g1_ref, b1_ref))  # (256, 256)  8ch 32x32
    h = _maxpool2x2(_conv3x3_relu(h, g2_ref, b2_ref))   # (128, 256) 16ch 16x16
    h = _maxpool2x2(_conv3x3_relu(h, g3_ref, b3_ref))   # ( 64, 256) 32ch  8x8
    prod = h * e_ref[...]                               # dense weight, pre-laid-out
    per_img = jnp.dot(sel_ref[...], prod,               # (NT, 256): gather rows of image n
                      preferred_element_type=jnp.float32)
    o_ref[...] = jnp.sum(per_img, axis=1, keepdims=True) + bd_ref[0, 0]


# ------------------------- wrapper-side weight prep ------------------------ #
def _band(width):
    v = np.arange(width)[:, None]
    w = np.arange(width)[None, :]
    b = np.stack([(v == w + d - 1) for d in range(3)], 0).astype(np.float32)
    return jnp.asarray(b)                               # (3, W, W)


def _conv_mats(k, width):
    """PyTorch (Cout, Cin, 3, 3) conv weight -> (3, Cin*W, 2*Cout*(W//2)) banded
    matmul matrices (one per vertical tap); output columns parity-permuted."""
    cout, cin = int(k.shape[0]), int(k.shape[1])
    wh = width // 2
    band = _band(width)
    mats = []
    for ky in range(3):
        g4 = jnp.einsum('oid,dvw->ivow', k[:, :, ky, :], band)  # (Cin, W, Cout, W)
        g5 = g4.reshape(cin, width, cout, wh, 2).transpose(0, 1, 4, 2, 3)
        mats.append(g5.reshape(cin * width, 2 * cout * wh))
    return jnp.stack(mats, 0)


def _bias_row(b, width):
    cout = b.shape[0]
    wh = width // 2
    return jnp.broadcast_to(b[None, :, None], (2, cout, wh)).reshape(1, 2 * cout * wh)


@jax.jit
def fid_forward(x, w1, b1, w2, b2, w3, b3, wd, bd):
    B = x.shape[0]
    g1, g2, g3 = _conv_mats(w1, 64), _conv_mats(w2, 32), _conv_mats(w3, 16)
    b1r, b2r, b3r = _bias_row(b1, 64), _bias_row(b2, 32), _bias_row(b3, 16)
    # dense weight in the kernel's (h3*NT + n, c*8 + w3) activation layout
    e = jnp.repeat(wd[0].reshape(32, 8, 8).transpose(1, 0, 2).reshape(8, 256),
                   NT, axis=0)                                     # (NT*8, 256)
    sel = jnp.asarray((np.arange(NT * 8)[None, :] % NT
                       == np.arange(NT)[:, None]).astype(np.float32))  # (NT, NT*8)
    bdr = bd.reshape(1, 1)

    bp = ((B + NT - 1) // NT) * NT                      # pad batch to a tile multiple
    xk = jnp.transpose(x[:, 0], (1, 0, 2))              # (64, B, 64) = (h, image, w)
    if bp != B:
        xk = jnp.pad(xk, ((0, 0), (0, bp - B), (0, 0)))

    out = pl.pallas_call(
        fid_kernel,
        out_shape=jax.ShapeDtypeStruct((bp, 1), jnp.float32),
        grid=(bp // NT,),
        in_specs=[
            pl.BlockSpec((64, NT, 64), lambda t: (0, t, 0)),    # x tile
            pl.BlockSpec((3, 64, 512), lambda t: (0, 0, 0)),    # conv1 banded mats
            pl.BlockSpec((1, 512), lambda t: (0, 0)),           # conv1 bias row
            pl.BlockSpec((3, 256, 512), lambda t: (0, 0, 0)),   # conv2 banded mats
            pl.BlockSpec((1, 512), lambda t: (0, 0)),           # conv2 bias row
            pl.BlockSpec((3, 256, 512), lambda t: (0, 0, 0)),   # conv3 banded mats
            pl.BlockSpec((1, 512), lambda t: (0, 0)),           # conv3 bias row
            pl.BlockSpec((NT * 8, 256), lambda t: (0, 0)),      # dense weight plane
            pl.BlockSpec((NT, NT * 8), lambda t: (0, 0)),       # per-image row selector
            pl.BlockSpec((1, 1), lambda t: (0, 0)),             # dense bias
        ],
        out_specs=pl.BlockSpec((NT, 1), lambda t: (t, 0)),
        compiler_params=pltpu.CompilerParams(
            dimension_semantics=("parallel",),
            vmem_limit_bytes=32 * 1024 * 1024),
    )(xk, g1, b1r, g2, b2r, g3, b3r, e, sel, bdr)
    return out[:B]


# ------------------------------- reference --------------------------------- #
def ref_forward(x, params):
    """Plain-JAX reference replicating the PyTorch forward (NCHW)."""
    w1, b1, w2, b2, w3, b3, wd, bd = params

    def conv(h, w, b):
        y = lax.conv_general_dilated(
            h, w, (1, 1), ((1, 1), (1, 1)),
            dimension_numbers=("NCHW", "OIHW", "NCHW"),
            precision=lax.Precision.HIGHEST)
        return jax.nn.relu(y + b.reshape(1, -1, 1, 1))

    def pool(h):
        return lax.reduce_window(h, -jnp.inf, lax.max,
                                 (1, 1, 2, 2), (1, 1, 2, 2), "VALID")

    h = pool(conv(x, w1, b1))
    h = pool(conv(h, w2, b2))
    h = pool(conv(h, w3, b3))
    hf = h.reshape(x.shape[0], -1)
    return hf @ wd.T + bd


if __name__ == "__main__":
    B = 12  # exercises both padding (12 -> 16) and a 2-step grid
    key = jax.random.PRNGKey(0)
    ks = jax.random.split(key, 9)

    def init(k, shape, fan_in):
        bound = 1.0 / np.sqrt(fan_in)
        return jax.random.uniform(k, shape, jnp.float32, -bound, bound)

    # deterministic synthetic parameters (PyTorch-style uniform(+-1/sqrt(fan_in)))
    w1 = init(ks[0], (8, 1, 3, 3), 9);      b1 = init(ks[1], (8,), 9)
    w2 = init(ks[2], (16, 8, 3, 3), 72);    b2 = init(ks[3], (16,), 72)
    w3 = init(ks[4], (32, 16, 3, 3), 144);  b3 = init(ks[5], (32,), 144)
    wd = init(ks[6], (1, 2048), 2048);      bd = init(ks[7], (1,), 2048)
    x = jax.random.normal(ks[8], (B, 1, H_IN, W_IN), jnp.float32)

    out = jax.block_until_ready(fid_forward(x, w1, b1, w2, b2, w3, b3, wd, bd))
    assert out.shape == (B, 1), out.shape

    ref = ref_forward(x, (w1, b1, w2, b2, w3, b3, wd, bd))
    if not np.allclose(np.asarray(out), np.asarray(ref), rtol=2e-2, atol=2e-2):
        raise AssertionError(f"mismatch: kernel={np.asarray(out)} ref={np.asarray(ref)}")

    print("KERNEL_OK")
</pallas_src>

<mosaic_0001>
module attributes {stable_mosaic.version = 11 : i64} {
  func.func @fid_kernel(%arg0: i32, %arg1: memref<64x8x64xf32, #tpu.memory_space<vmem>>, %arg2: memref<3x64x512xf32, #tpu.memory_space<vmem>>, %arg3: memref<1x512xf32, #tpu.memory_space<vmem>>, %arg4: memref<3x256x512xf32, #tpu.memory_space<vmem>>, %arg5: memref<1x512xf32, #tpu.memory_space<vmem>>, %arg6: memref<3x256x512xf32, #tpu.memory_space<vmem>>, %arg7: memref<1x512xf32, #tpu.memory_space<vmem>>, %arg8: memref<64x256xf32, #tpu.memory_space<vmem>>, %arg9: memref<8x64xf32, #tpu.memory_space<vmem>>, %arg10: memref<1x1xf32, #tpu.memory_space<vmem>>, %arg11: memref<8x1xf32, #tpu.memory_space<vmem>>) attributes {dimension_semantics = [#tpu.dimension_semantics<parallel>], iteration_bounds = array<i64: 2>, scalar_prefetch = 0 : i64, scratch_operands = 0 : i64, tpu.core_type = #tpu.core_type<tc>, window_params = [{transform_indices = @transform_0, window_bounds = array<i64: 64, 8, 64>}, {pipeline_mode = #tpu.pipeline_mode<synchronous>, transform_indices = @transform_1, window_bounds = array<i64: 3, 64, 512>}, {pipeline_mode = #tpu.pipeline_mode<synchronous>, transform_indices = @transform_2, window_bounds = array<i64: 1, 512>}, {pipeline_mode = #tpu.pipeline_mode<synchronous>, transform_indices = @transform_3, window_bounds = array<i64: 3, 256, 512>}, {pipeline_mode = #tpu.pipeline_mode<synchronous>, transform_indices = @transform_4, window_bounds = array<i64: 1, 512>}, {pipeline_mode = #tpu.pipeline_mode<synchronous>, transform_indices = @transform_5, window_bounds = array<i64: 3, 256, 512>}, {pipeline_mode = #tpu.pipeline_mode<synchronous>, transform_indices = @transform_6, window_bounds = array<i64: 1, 512>}, {pipeline_mode = #tpu.pipeline_mode<synchronous>, transform_indices = @transform_7, window_bounds = array<i64: 64, 256>}, {pipeline_mode = #tpu.pipeline_mode<synchronous>, transform_indices = @transform_8, window_bounds = array<i64: 8, 64>}, {pipeline_mode = #tpu.pipeline_mode<synchronous>, transform_indices = @transform_9, window_bounds = array<i64: 1, 1>}, {transform_indices = @transform_10, window_bounds = array<i64: 8, 1>}]} {
    %c0 = arith.constant 0 : index
    %c0_0 = arith.constant 0 : index
    %c0_1 = arith.constant 0 : index
    %0 = vector.load %arg1[%c0, %c0_0, %c0_1] : memref<64x8x64xf32, #tpu.memory_space<vmem>>, vector<64x8x64xf32>
    %1 = vector.shape_cast %0 : vector<64x8x64xf32> to vector<512x64xf32>
    %cst = arith.constant 0.000000e+00 : f32
    %2 = vector.broadcast %cst : f32 to vector<8x64xf32>
    %3 = tpu.concatenate %2, %1, %2 in 0 : vector<8x64xf32>, vector<512x64xf32>, vector<8x64xf32> -> vector<528x64xf32>
    %c0_2 = arith.constant 0 : index
    %c0_3 = arith.constant 0 : index
    %4 = vector.load %arg3[%c0_2, %c0_3] : memref<1x512xf32, #tpu.memory_space<vmem>>, vector<1x512xf32>
    %c1 = arith.constant 1 : index
    %c0_4 = arith.constant 0 : index
    %c0_5 = arith.constant 0 : index
    %5 = vector.load %arg2[%c1, %c0_4, %c0_5] : memref<3x64x512xf32, #tpu.memory_space<vmem>>, vector<1x64x512xf32>
    %6 = vector.shape_cast %5 : vector<1x64x512xf32> to vector<64x512xf32>
    %cst_6 = arith.constant dense<0.000000e+00> : vector<512x512xf32>
    %7 = tpu.matmul %1, %6, %cst_6 {dimension_numbers = #tpu.dot_dimension_numbers<[1], [0], [0], [1], [0, 0, 1, 1], [], []>} : vector<512x64xf32>, vector<64x512xf32>, vector<512x512xf32> -> vector<512x512xf32>
    %8 = vector.broadcast %4 : vector<1x512xf32> to vector<512x512xf32>
    %9 = arith.addf %8, %7 : vector<512x512xf32>
    %10 = vector.extract_strided_slice %3 {offsets = [0, 0], sizes = [512, 64], strides = [1, 1]} : vector<528x64xf32> to vector<512x64xf32>
    %c0_7 = arith.constant 0 : index
    %c0_8 = arith.constant 0 : index
    %c0_9 = arith.constant 0 : index
    %11 = vector.load %arg2[%c0_7, %c0_8, %c0_9] : memref<3x64x512xf32, #tpu.memory_space<vmem>>, vector<1x64x512xf32>
    %12 = vector.shape_cast %11 : vector<1x64x512xf32> to vector<64x512xf32>
    %cst_10 = arith.constant dense<0.000000e+00> : vector<512x512xf32>
    %13 = tpu.matmul %10, %12, %cst_10 {dimension_numbers = #tpu.dot_dimension_numbers<[1], [0], [0], [1], [0, 0, 1, 1], [], []>} : vector<512x64xf32>, vector<64x512xf32>, vector<512x512xf32> -> vector<512x512xf32>
    %14 = arith.addf %9, %13 : vector<512x512xf32>
    %15 = vector.extract_strided_slice %3 {offsets = [16, 0], sizes = [512, 64], strides = [1, 1]} : vector<528x64xf32> to vector<512x64xf32>
    %c2 = arith.constant 2 : index
    %c0_11 = arith.constant 0 : index
    %c0_12 = arith.constant 0 : index
    %16 = vector.load %arg2[%c2, %c0_11, %c0_12] : memref<3x64x512xf32, #tpu.memory_space<vmem>>, vector<1x64x512xf32>
    %17 = vector.shape_cast %16 : vector<1x64x512xf32> to vector<64x512xf32>
    %cst_13 = arith.constant dense<0.000000e+00> : vector<512x512xf32>
    %18 = tpu.matmul %15, %17, %cst_13 {dimension_numbers = #tpu.dot_dimension_numbers<[1], [0], [0], [1], [0, 0, 1, 1], [], []>} : vector<512x64xf32>, vector<64x512xf32>, vector<512x512xf32> -> vector<512x512xf32>
    %19 = arith.addf %14, %18 : vector<512x512xf32>
    %cst_14 = arith.constant 0.000000e+00 : f32
    %20 = vector.broadcast %cst_14 : f32 to vector<512x512xf32>
    %21 = arith.maximumf %19, %20 : vector<512x512xf32>
    %22 = vector.extract_strided_slice %21 {offsets = [0, 0], sizes = [512, 256], strides = [1, 1]} : vector<512x512xf32> to vector<512x256xf32>
    %23 = vector.extract_strided_slice %21 {offsets = [0, 256], sizes = [512, 256], strides = [1, 1]} : vector<512x512xf32> to vector<512x256xf32>
    %24 = arith.maximumf %22, %23 : vector<512x256xf32>
    %cst_15 = arith.constant 0.000000e+00 : f32
    %25 = vector.broadcast %cst_15 : f32 to vector<8x256xf32>
    %26 = vector.extract_strided_slice %24 {offsets = [8, 0], sizes = [504, 256], strides = [1, 1]} : vector<512x256xf32> to vector<504x256xf32>
    %27 = tpu.concatenate %26, %25 in 0 : vector<504x256xf32>, vector<8x256xf32> -> vector<512x256xf32>
    %28 = arith.maximumf %24, %27 : vector<512x256xf32>
    %29 = vector.shape_cast %28 : vector<512x256xf32> to vector<32x16x256xf32>
    %30 = vector.extract_strided_slice %29 {offsets = [0, 0, 0], sizes = [32, 8, 256], strides = [1, 1, 1]} : vector<32x16x256xf32> to vector<32x8x256xf32>
    %31 = vector.shape_cast %30 : vector<32x8x256xf32> to vector<256x256xf32>
    %cst_16 = arith.constant 0.000000e+00 : f32
    %32 = vector.broadcast %cst_16 : f32 to vector<8x256xf32>
    %33 = tpu.concatenate %32, %31, %32 in 0 : vector<8x256xf32>, vector<256x256xf32>, vector<8x256xf32> -> vector<272x256xf32>
    %c0_17 = arith.constant 0 : index
    %c0_18 = arith.constant 0 : index
    %34 = vector.load %arg5[%c0_17, %c0_18] : memref<1x512xf32, #tpu.memory_space<vmem>>, vector<1x512xf32>
    %c1_19 = arith.constant 1 : index
    %c0_20 = arith.constant 0 : index
    %c0_21 = arith.constant 0 : index
    %35 = vector.load %arg4[%c1_19, %c0_20, %c0_21] : memref<3x256x512xf32, #tpu.memory_space<vmem>>, vector<1x256x512xf32>
    %36 = vector.shape_cast %35 : vector<1x256x512xf32> to vector<256x512xf32>
    %cst_22 = arith.constant dense<0.000000e+00> : vector<256x512xf32>
    %37 = tpu.matmul %31, %36, %cst_22 {dimension_numbers = #tpu.dot_dimension_numbers<[1], [0], [0], [1], [0, 0, 1, 1], [], []>} : vector<256x256xf32>, vector<256x512xf32>, vector<256x512xf32> -> vector<256x512xf32>
    %38 = vector.broadcast %34 : vector<1x512xf32> to vector<256x512xf32>
    %39 = arith.addf %38, %37 : vector<256x512xf32>
    %40 = vector.extract_strided_slice %33 {offsets = [0, 0], sizes = [256, 256], strides = [1, 1]} : vector<272x256xf32> to vector<256x256xf32>
    %c0_23 = arith.constant 0 : index
    %c0_24 = arith.constant 0 : index
    %c0_25 = arith.constant 0 : index
    %41 = vector.load %arg4[%c0_23, %c0_24, %c0_25] : memref<3x256x512xf32, #tpu.memory_space<vmem>>, vector<1x256x512xf32>
    %42 = vector.shape_cast %41 : vector<1x256x512xf32> to vector<256x512xf32>
    %cst_26 = arith.constant dense<0.000000e+00> : vector<256x512xf32>
    %43 = tpu.matmul %40, %42, %cst_26 {dimension_numbers = #tpu.dot_dimension_numbers<[1], [0], [0], [1], [0, 0, 1, 1], [], []>} : vector<256x256xf32>, vector<256x512xf32>, vector<256x512xf32> -> vector<256x512xf32>
    %44 = arith.addf %39, %43 : vector<256x512xf32>
    %45 = vector.extract_strided_slice %33 {offsets = [16, 0], sizes = [256, 256], strides = [1, 1]} : vector<272x256xf32> to vector<256x256xf32>
    %c2_27 = arith.constant 2 : index
    %c0_28 = arith.constant 0 : index
    %c0_29 = arith.constant 0 : index
    %46 = vector.load %arg4[%c2_27, %c0_28, %c0_29] : memref<3x256x512xf32, #tpu.memory_space<vmem>>, vector<1x256x512xf32>
    %47 = vector.shape_cast %46 : vector<1x256x512xf32> to vector<256x512xf32>
    %cst_30 = arith.constant dense<0.000000e+00> : vector<256x512xf32>
    %48 = tpu.matmul %45, %47, %cst_30 {dimension_numbers = #tpu.dot_dimension_numbers<[1], [0], [0], [1], [0, 0, 1, 1], [], []>} : vector<256x256xf32>, vector<256x512xf32>, vector<256x512xf32> -> vector<256x512xf32>
    %49 = arith.addf %44, %48 : vector<256x512xf32>
    %cst_31 = arith.constant 0.000000e+00 : f32
    %50 = vector.broadcast %cst_31 : f32 to vector<256x512xf32>
    %51 = arith.maximumf %49, %50 : vector<256x512xf32>
    %52 = vector.extract_strided_slice %51 {offsets = [0, 0], sizes = [256, 256], strides = [1, 1]} : vector<256x512xf32> to vector<256x256xf32>
    %53 = vector.extract_strided_slice %51 {offsets = [0, 256], sizes = [256, 256], strides = [1, 1]} : vector<256x512xf32> to vector<256x256xf32>
    %54 = arith.maximumf %52, %53 : vector<256x256xf32>
    %cst_32 = arith.constant 0.000000e+00 : f32
    %55 = vector.broadcast %cst_32 : f32 to vector<8x256xf32>
    %56 = vector.extract_strided_slice %54 {offsets = [8, 0], sizes = [248, 256], strides = [1, 1]} : vector<256x256xf32> to vector<248x256xf32>
    %57 = tpu.concatenate %56, %55 in 0 : vector<248x256xf32>, vector<8x256xf32> -> vector<256x256xf32>
    %58 = arith.maximumf %54, %57 : vector<256x256xf32>
    %59 = vector.shape_cast %58 : vector<256x256xf32> to vector<16x16x256xf32>
    %60 = vector.extract_strided_slice %59 {offsets = [0, 0, 0], sizes = [16, 8, 256], strides = [1, 1, 1]} : vector<16x16x256xf32> to vector<16x8x256xf32>
    %61 = vector.shape_cast %60 : vector<16x8x256xf32> to vector<128x256xf32>
    %cst_33 = arith.constant 0.000000e+00 : f32
    %62 = vector.broadcast %cst_33 : f32 to vector<8x256xf32>
    %63 = tpu.concatenate %62, %61, %62 in 0 : vector<8x256xf32>, vector<128x256xf32>, vector<8x256xf32> -> vector<144x256xf32>
    %c0_34 = arith.constant 0 : index
    %c0_35 = arith.constant 0 : index
    %64 = vector.load %arg7[%c0_34, %c0_35] : memref<1x512xf32, #tpu.memory_space<vmem>>, vector<1x512xf32>
    %c1_36 = arith.constant 1 : index
    %c0_37 = arith.constant 0 : index
    %c0_38 = arith.constant 0 : index
    %65 = vector.load %arg6[%c1_36, %c0_37, %c0_38] : memref<3x256x512xf32, #tpu.memory_space<vmem>>, vector<1x256x512xf32>
    %66 = vector.shape_cast %65 : vector<1x256x512xf32> to vector<256x512xf32>
    %cst_39 = arith.constant dense<0.000000e+00> : vector<128x512xf32>
    %67 = tpu.matmul %61, %66, %cst_39 {dimension_numbers = #tpu.dot_dimension_numbers<[1], [0], [0], [1], [0, 0, 1, 1], [], []>} : vector<128x256xf32>, vector<256x512xf32>, vector<128x512xf32> -> vector<128x512xf32>
    %68 = vector.broadcast %64 : vector<1x512xf32> to vector<128x512xf32>
    %69 = arith.addf %68, %67 : vector<128x512xf32>
    %70 = vector.extract_strided_slice %63 {offsets = [0, 0], sizes = [128, 256], strides = [1, 1]} : vector<144x256xf32> to vector<128x256xf32>
    %c0_40 = arith.constant 0 : index
    %c0_41 = arith.constant 0 : index
    %c0_42 = arith.constant 0 : index
    %71 = vector.load %arg6[%c0_40, %c0_41, %c0_42] : memref<3x256x512xf32, #tpu.memory_space<vmem>>, vector<1x256x512xf32>
    %72 = vector.shape_cast %71 : vector<1x256x512xf32> to vector<256x512xf32>
    %cst_43 = arith.constant dense<0.000000e+00> : vector<128x512xf32>
    %73 = tpu.matmul %70, %72, %cst_43 {dimension_numbers = #tpu.dot_dimension_numbers<[1], [0], [0], [1], [0, 0, 1, 1], [], []>} : vector<128x256xf32>, vector<256x512xf32>, vector<128x512xf32> -> vector<128x512xf32>
    %74 = arith.addf %69, %73 : vector<128x512xf32>
    %75 = vector.extract_strided_slice %63 {offsets = [16, 0], sizes = [128, 256], strides = [1, 1]} : vector<144x256xf32> to vector<128x256xf32>
    %c2_44 = arith.constant 2 : index
    %c0_45 = arith.constant 0 : index
    %c0_46 = arith.constant 0 : index
    %76 = vector.load %arg6[%c2_44, %c0_45, %c0_46] : memref<3x256x512xf32, #tpu.memory_space<vmem>>, vector<1x256x512xf32>
    %77 = vector.shape_cast %76 : vector<1x256x512xf32> to vector<256x512xf32>
    %cst_47 = arith.constant dense<0.000000e+00> : vector<128x512xf32>
    %78 = tpu.matmul %75, %77, %cst_47 {dimension_numbers = #tpu.dot_dimension_numbers<[1], [0], [0], [1], [0, 0, 1, 1], [], []>} : vector<128x256xf32>, vector<256x512xf32>, vector<128x512xf32> -> vector<128x512xf32>
    %79 = arith.addf %74, %78 : vector<128x512xf32>
    %cst_48 = arith.constant 0.000000e+00 : f32
    %80 = vector.broadcast %cst_48 : f32 to vector<128x512xf32>
    %81 = arith.maximumf %79, %80 : vector<128x512xf32>
    %82 = vector.extract_strided_slice %81 {offsets = [0, 0], sizes = [128, 256], strides = [1, 1]} : vector<128x512xf32> to vector<128x256xf32>
    %83 = vector.extract_strided_slice %81 {offsets = [0, 256], sizes = [128, 256], strides = [1, 1]} : vector<128x512xf32> to vector<128x256xf32>
    %84 = arith.maximumf %82, %83 : vector<128x256xf32>
    %cst_49 = arith.constant 0.000000e+00 : f32
    %85 = vector.broadcast %cst_49 : f32 to vector<8x256xf32>
    %86 = vector.extract_strided_slice %84 {offsets = [8, 0], sizes = [120, 256], strides = [1, 1]} : vector<128x256xf32> to vector<120x256xf32>
    %87 = tpu.concatenate %86, %85 in 0 : vector<120x256xf32>, vector<8x256xf32> -> vector<128x256xf32>
    %88 = arith.maximumf %84, %87 : vector<128x256xf32>
    %89 = vector.shape_cast %88 : vector<128x256xf32> to vector<8x16x256xf32>
    %90 = vector.extract_strided_slice %89 {offsets = [0, 0, 0], sizes = [8, 8, 256], strides = [1, 1, 1]} : vector<8x16x256xf32> to vector<8x8x256xf32>
    %91 = vector.shape_cast %90 : vector<8x8x256xf32> to vector<64x256xf32>
    %c0_50 = arith.constant 0 : index
    %c0_51 = arith.constant 0 : index
    %92 = vector.load %arg8[%c0_50, %c0_51] : memref<64x256xf32, #tpu.memory_space<vmem>>, vector<64x256xf32>
    %93 = arith.mulf %91, %92 : vector<64x256xf32>
    %c0_52 = arith.constant 0 : index
    %c0_53 = arith.constant 0 : index
    %94 = vector.load %arg9[%c0_52, %c0_53] : memref<8x64xf32, #tpu.memory_space<vmem>>, vector<8x64xf32>
    %cst_54 = arith.constant dense<0.000000e+00> : vector<8x256xf32>
    %95 = tpu.matmul %94, %93, %cst_54 {dimension_numbers = #tpu.dot_dimension_numbers<[1], [0], [0], [1], [0, 0, 1, 1], [], []>} : vector<8x64xf32>, vector<64x256xf32>, vector<8x256xf32> -> vector<8x256xf32>
    %cst_55 = arith.constant dense<0.000000e+00> : vector<8xf32>
    %96 = vector.multi_reduction <add>, %95, %cst_55 [1] : vector<8x256xf32> to vector<8xf32>
    %97 = vector.shape_cast %96 : vector<8xf32> to vector<8x1xf32>
    %c0_56 = arith.constant 0 : index
    %c0_57 = arith.constant 0 : index
    %98 = vector.load %arg10[%c0_56, %c0_57] : memref<1x1xf32, #tpu.memory_space<vmem>>, vector<1x1xf32>
    %99 = vector.extract %98[0, 0] : f32 from vector<1x1xf32>
    %100 = vector.broadcast %99 : f32 to vector<8x1xf32>
    %101 = arith.addf %97, %100 : vector<8x1xf32>
    %c0_58 = arith.constant 0 : index
    %c0_59 = arith.constant 0 : index
    %102 = vector.load %arg11[%c0_58, %c0_59] : memref<8x1xf32, #tpu.memory_space<vmem>>, vector<8x1xf32>
    tpu.vector_store %arg11[%c0_58, %c0_59], %101 {strides = array<i32>} : memref<8x1xf32, #tpu.memory_space<vmem>>, vector<8x1xf32>,
    return
  }
  func.func @transform_0(%arg0: i32) -> (i32, i32, i32) {
    %c0_i32 = arith.constant 0 : i32
    %c0_i32_0 = arith.constant 0 : i32
    %c0_i32_1 = arith.constant 0 : i32
    return %c0_i32, %arg0, %c0_i32_0 : i32, i32, i32
  }
  func.func @transform_1(%arg0: i32) -> (i32, i32, i32) {
    %c0_i32 = arith.constant 0 : i32
    %c0_i32_0 = arith.constant 0 : i32
    %c0_i32_1 = arith.constant 0 : i32
    %c0_i32_2 = arith.constant 0 : i32
    return %c0_i32, %c0_i32_0, %c0_i32_1 : i32, i32, i32
  }
  func.func @transform_2(%arg0: i32) -> (i32, i32) {
    %c0_i32 = arith.constant 0 : i32
    %c0_i32_0 = arith.constant 0 : i32
    %c0_i32_1 = arith.constant 0 : i32
    return %c0_i32, %c0_i32_0 : i32, i32
  }
  func.func @transform_3(%arg0: i32) -> (i32, i32, i32) {
    %c0_i32 = arith.constant 0 : i32
    %c0_i32_0 = arith.constant 0 : i32
    %c0_i32_1 = arith.constant 0 : i32
    %c0_i32_2 = arith.constant 0 : i32
    return %c0_i32, %c0_i32_0, %c0_i32_1 : i32, i32, i32
  }
  func.func @transform_4(%arg0: i32) -> (i32, i32) {
    %c0_i32 = arith.constant 0 : i32
    %c0_i32_0 = arith.constant 0 : i32
    %c0_i32_1 = arith.constant 0 : i32
    return %c0_i32, %c0_i32_0 : i32, i32
  }
  func.func @transform_5(%arg0: i32) -> (i32, i32, i32) {
    %c0_i32 = arith.constant 0 : i32
    %c0_i32_0 = arith.constant 0 : i32
    %c0_i32_1 = arith.constant 0 : i32
    %c0_i32_2 = arith.constant 0 : i32
    return %c0_i32, %c0_i32_0, %c0_i32_1 : i32, i32, i32
  }
  func.func @transform_6(%arg0: i32) -> (i32, i32) {
    %c0_i32 = arith.constant 0 : i32
    %c0_i32_0 = arith.constant 0 : i32
    %c0_i32_1 = arith.constant 0 : i32
    return %c0_i32, %c0_i32_0 : i32, i32
  }
  func.func @transform_7(%arg0: i32) -> (i32, i32) {
    %c0_i32 = arith.constant 0 : i32
    %c0_i32_0 = arith.constant 0 : i32
    %c0_i32_1 = arith.constant 0 : i32
    return %c0_i32, %c0_i32_0 : i32, i32
  }
  func.func @transform_8(%arg0: i32) -> (i32, i32) {
    %c0_i32 = arith.constant 0 : i32
    %c0_i32_0 = arith.constant 0 : i32
    %c0_i32_1 = arith.constant 0 : i32
    return %c0_i32, %c0_i32_0 : i32, i32
  }
  func.func @transform_9(%arg0: i32) -> (i32, i32) {
    %c0_i32 = arith.constant 0 : i32
    %c0_i32_0 = arith.constant 0 : i32
    %c0_i32_1 = arith.constant 0 : i32
    return %c0_i32, %c0_i32_0 : i32, i32
  }
  func.func @transform_10(%arg0: i32) -> (i32, i32) {
    %c0_i32 = arith.constant 0 : i32
    %c0_i32_0 = arith.constant 0 : i32
    return %arg0, %c0_i32 : i32, i32
  }
}

</mosaic_0001>

<llo_original>
// kernel: squeeze.20
$region0: #{squeeze.20}
  %s0 = inlined_call_operand.vmem [shape: f32[2048], index: 0, kind: input, shape index: {}]
  %s1 = inlined_call_operand.vmem [shape: f32[32,8,8], index: 1, kind: output, shape index: {}]
  %v2 = vld [vmem:[%s0] sm:$0xff]
  %vm3 = vcmask 64512
  %4 = vst.msk [vmem:[%s1] ss:$16 sm:$0x3] %vm3, %v2
  %5 = vst.msk [vmem:[%s1] ss:$16 sm:$0xc] %vm3, %v2
  %6 = vst.msk [vmem:[%s1] ss:$16 sm:$0x30] %vm3, %v2
  %7 = vst.msk [vmem:[%s1] ss:$16 sm:$0xc0] %vm3, %v2
  %s8 = scalar_lea.vmem %s0, 8
  %v9 = vld [vmem:[%s8] sm:$0xff]
  %vm10 = vcmask 64512
  %s11 = scalar_lea.vmem %s1, 128
  %12 = vst.msk [vmem:[%s11] ss:$16 sm:$0x3] %vm10, %v9
  %s13 = scalar_lea.vmem %s1, 128
  %14 = vst.msk [vmem:[%s13] ss:$16 sm:$0xc] %vm10, %v9
  %s15 = scalar_lea.vmem %s1, 128
  %16 = vst.msk [vmem:[%s15] ss:$16 sm:$0x30] %vm10, %v9
  %s17 = scalar_lea.vmem %s1, 128
  %18 = vst.msk [vmem:[%s17] ss:$16 sm:$0xc0] %vm10, %v9
  %v19 = vld [vmem:[%s0] sm:$0xff]
  %20 = vrot.lane.b32.xlu0 %v19, 120
  %v21 = vpop.permute.xlu0 %20
  %vm22 = vcmask 64512
  %s23 = scalar_lea.vmem %s1, 1
  %24 = vst.msk [vmem:[%s23] ss:$16 sm:$0x3] %vm22, %v21
  %s25 = scalar_lea.vmem %s1, 1
  %26 = vst.msk [vmem:[%s25] ss:$16 sm:$0xc] %vm22, %v21
  %s27 = scalar_lea.vmem %s1, 1
  %28 = vst.msk [vmem:[%s27] ss:$16 sm:$0x30] %vm22, %v21
  %s29 = scalar_lea.vmem %s1, 1
  %30 = vst.msk [vmem:[%s29] ss:$16 sm:$0xc0] %vm22, %v21
  %s31 = scalar_lea.vmem %s0, 8
  %v32 = vld [vmem:[%s31] sm:$0xff]
  %33 = vrot.lane.b32.xlu0 %v32, 120
  %v34 = vpop.permute.xlu0 %33
  %vm35 = vcmask 64512
  %s36 = scalar_lea.vmem %s1, 129
  %37 = vst.msk [vmem:[%s36] ss:$16 sm:$0x3] %vm35, %v34
  %s38 = scalar_lea.vmem %s1, 129
  %39 = vst.msk [vmem:[%s38] ss:$16 sm:$0xc] %vm35, %v34
  %s40 = scalar_lea.vmem %s1, 129
  %41 = vst.msk [vmem:[%s40] ss:$16 sm:$0x30] %vm35, %v34
  %s42 = scalar_lea.vmem %s1, 129
  %43 = vst.msk [vmem:[%s42] ss:$16 sm:$0xc0] %vm35, %v34
  %v44 = vld [vmem:[%s0] sm:$0xff]
  %45 = vrot.lane.b32.xlu0 %v44, 112
  %v46 = vpop.permute.xlu0 %45
  %vm47 = vcmask 64512
  %s48 = scalar_lea.vmem %s1, 2
  %49 = vst.msk [vmem:[%s48] ss:$16 sm:$0x3] %vm47, %v46
  %s50 = scalar_lea.vmem %s1, 2
  %51 = vst.msk [vmem:[%s50] ss:$16 sm:$0xc] %vm47, %v46
  %s52 = scalar_lea.vmem %s1, 2
  %53 = vst.msk [vmem:[%s52] ss:$16 sm:$0x30] %vm47, %v46
  %s54 = scalar_lea.vmem %s1, 2
  %55 = vst.msk [vmem:[%s54] ss:$16 sm:$0xc0] %vm47, %v46
  %s56 = scalar_lea.vmem %s0, 8
  %v57 = vld [vmem:[%s56] sm:$0xff]
  %58 = vrot.lane.b32.xlu0 %v57, 112
  %v59 = vpop.permute.xlu0 %58
  %vm60 = vcmask 64512
  %s61 = scalar_lea.vmem %s1, 130
  %62 = vst.msk [vmem:[%s61] ss:$16 sm:$0x3] %vm60, %v59
  %s63 = scalar_lea.vmem %s1, 130
  %64 = vst.msk [vmem:[%s63] ss:$16 sm:$0xc] %vm60, %v59
  %s65 = scalar_lea.vmem %s1, 130
  %66 = vst.msk [vmem:[%s65] ss:$16 sm:$0x30] %vm60, %v59
  %s67 = scalar_lea.vmem %s1, 130
  %68 = vst.msk [vmem:[%s67] ss:$16 sm:$0xc0] %vm60, %v59
  %v69 = vld [vmem:[%s0] sm:$0xff]
  %70 = vrot.lane.b32.xlu0 %v69, 104
  %v71 = vpop.permute.xlu0 %70
  %vm72 = vcmask 64512
  %s73 = scalar_lea.vmem %s1, 3
  %74 = vst.msk [vmem:[%s73] ss:$16 sm:$0x3] %vm72, %v71
  %s75 = scalar_lea.vmem %s1, 3
  %76 = vst.msk [vmem:[%s75] ss:$16 sm:$0xc] %vm72, %v71
  %s77 = scalar_lea.vmem %s1, 3
  %78 = vst.msk [vmem:[%s77] ss:$16 sm:$0x30] %vm72, %v71
  %s79 = scalar_lea.vmem %s1, 3
  %80 = vst.msk [vmem:[%s79] ss:$16 sm:$0xc0] %vm72, %v71
  %s81 = scalar_lea.vmem %s0, 8
  %v82 = vld [vmem:[%s81] sm:$0xff]
  %83 = vrot.lane.b32.xlu0 %v82, 104
  %v84 = vpop.permute.xlu0 %83
  %vm85 = vcmask 64512
  %s86 = scalar_lea.vmem %s1, 131
  %87 = vst.msk [vmem:[%s86] ss:$16 sm:$0x3] %vm85, %v84
  %s88 = scalar_lea.vmem %s1, 131
  %89 = vst.msk [vmem:[%s88] ss:$16 sm:$0xc] %vm85, %v84
  %s90 = scalar_lea.vmem %s1, 131
  %91 = vst.msk [vmem:[%s90] ss:$16 sm:$0x30] %vm85, %v84
  %s92 = scalar_lea.vmem %s1, 131
  %93 = vst.msk [vmem:[%s92] ss:$16 sm:$0xc0] %vm85, %v84
  %v94 = vld [vmem:[%s0] sm:$0xff]
  %95 = vrot.lane.b32.xlu0 %v94, 96
  %v96 = vpop.permute.xlu0 %95
  %vm97 = vcmask 64512
  %s98 = scalar_lea.vmem %s1, 4
  %99 = vst.msk [vmem:[%s98] ss:$16 sm:$0x3] %vm97, %v96
  %s100 = scalar_lea.vmem %s1, 4
  %101 = vst.msk [vmem:[%s100] ss:$16 sm:$0xc] %vm97, %v96
  %s102 = scalar_lea.vmem %s1, 4
  %103 = vst.msk [vmem:[%s102] ss:$16 sm:$0x30] %vm97, %v96
  %s104 = scalar_lea.vmem %s1, 4
  %105 = vst.msk [vmem:[%s104] ss:$16 sm:$0xc0] %vm97, %v96
  %s106 = scalar_lea.vmem %s0, 8
  %v107 = vld [vmem:[%s106] sm:$0xff]
  %108 = vrot.lane.b32.xlu0 %v107, 96
  %v109 = vpop.permute.xlu0 %108
  %vm110 = vcmask 64512
  %s111 = scalar_lea.vmem %s1, 132
  %112 = vst.msk [vmem:[%s111] ss:$16 sm:$0x3] %vm110, %v109
  %s113 = scalar_lea.vmem %s1, 132
  %114 = vst.msk [vmem:[%s113] ss:$16 sm:$0xc] %vm110, %v109
  %s115 = scalar_lea.vmem %s1, 132
  %116 = vst.msk [vmem:[%s115] ss:$16 sm:$0x30] %vm110, %v109
  %s117 = scalar_lea.vmem %s1, 132
  %118 = vst.msk [vmem:[%s117] ss:$16 sm:$0xc0] %vm110, %v109
  %v119 = vld [vmem:[%s0] sm:$0xff]
  %120 = vrot.lane.b32.xlu0 %v119, 88
  %v121 = vpop.permute.xlu0 %120
  %vm122 = vcmask 64512
  %s123 = scalar_lea.vmem %s1, 5
  %124 = vst.msk [vmem:[%s123] ss:$16 sm:$0x3] %vm122, %v121
  %s125 = scalar_lea.vmem %s1, 5
  %126 = vst.msk [vmem:[%s125] ss:$16 sm:$0xc] %vm122, %v121
  %s127 = scalar_lea.vmem %s1, 5
  %128 = vst.msk [vmem:[%s127] ss:$16 sm:$0x30] %vm122, %v121
  %s129 = scalar_lea.vmem %s1, 5
  %130 = vst.msk [vmem:[%s129] ss:$16 sm:$0xc0] %vm122, %v121
  %s131 = scalar_lea.vmem %s0, 8
  %v132 = vld [vmem:[%s131] sm:$0xff]
  %133 = vrot.lane.b32.xlu0 %v132, 88
  %v134 = vpop.permute.xlu0 %133
  %vm135 = vcmask 64512
  %s136 = scalar_lea.vmem %s1, 133
  %137 = vst.msk [vmem:[%s136] ss:$16 sm:$0x3] %vm135, %v134
  %s138 = scalar_lea.vmem %s1, 133
  %139 = vst.msk [vmem:[%s138] ss:$16 sm:$0xc] %vm135, %v134
  %s140 = scalar_lea.vmem %s1, 133
  %141 = vst.msk [vmem:[%s140] ss:$16 sm:$0x30] %vm135, %v134
  %s142 = scalar_lea.vmem %s1, 133
  %143 = vst.msk [vmem:[%s142] ss:$16 sm:$0xc0] %vm135, %v134
  %v144 = vld [vmem:[%s0] sm:$0xff]
  %145 = vrot.lane.b32.xlu0 %v144, 80
  %v146 = vpop.permute.xlu0 %145
  %vm147 = vcmask 64512
  %s148 = scalar_lea.vmem %s1, 6
  %149 = vst.msk [vmem:[%s148] ss:$16 sm:$0x3] %vm147, %v146
  %s150 = scalar_lea.vmem %s1, 6
  %151 = vst.msk [vmem:[%s150] ss:$16 sm:$0xc] %vm147, %v146
  %s152 = scalar_lea.vmem %s1, 6
  %153 = vst.msk [vmem:[%s152] ss:$16 sm:$0x30] %vm147, %v146
  %s154 = scalar_lea.vmem %s1, 6
  %155 = vst.msk [vmem:[%s154] ss:$16 sm:$0xc0] %vm147, %v146
  %s156 = scalar_lea.vmem %s0, 8
  %v157 = vld [vmem:[%s156] sm:$0xff]
  %158 = vrot.lane.b32.xlu0 %v157, 80
  %v159 = vpop.permute.xlu0 %158
  %vm160 = vcmask 64512
  %s161 = scalar_lea.vmem %s1, 134
  %162 = vst.msk [vmem:[%s161] ss:$16 sm:$0x3] %vm160, %v159
  %s163 = scalar_lea.vmem %s1, 134
  %164 = vst.msk [vmem:[%s163] ss:$16 sm:$0xc] %vm160, %v159
  %s165 = scalar_lea.vmem %s1, 134
  %166 = vst.msk [vmem:[%s165] ss:$16 sm:$0x30] %vm160, %v159
  %s167 = scalar_lea.vmem %s1, 134
  %168 = vst.msk [vmem:[%s167] ss:$16 sm:$0xc0] %vm160, %v159
  %v169 = vld [vmem:[%s0] sm:$0xff]
  %170 = vrot.lane.b32.xlu0 %v169, 72
  %v171 = vpop.permute.xlu0 %170
  %vm172 = vcmask 64512
  %s173 = scalar_lea.vmem %s1, 7
  %174 = vst.msk [vmem:[%s173] ss:$16 sm:$0x3] %vm172, %v171
  %s175 = scalar_lea.vmem %s1, 7
  %176 = vst.msk [vmem:[%s175] ss:$16 sm:$0xc] %vm172, %v171
  %s177 = scalar_lea.vmem %s1, 7
  %178 = vst.msk [vmem:[%s177] ss:$16 sm:$0x30] %vm172, %v171
  %s179 = scalar_lea.vmem %s1, 7
  %180 = vst.msk [vmem:[%s179] ss:$16 sm:$0xc0] %vm172, %v171
  %s181 = scalar_lea.vmem %s0, 8
  %v182 = vld [vmem:[%s181] sm:$0xff]
  %183 = vrot.lane.b32.xlu0 %v182, 72
  %v184 = vpop.permute.xlu0 %183
  %vm185 = vcmask 64512
  %s186 = scalar_lea.vmem %s1, 135
  %187 = vst.msk [vmem:[%s186] ss:$16 sm:$0x3] %vm185, %v184
  %s188 = scalar_lea.vmem %s1, 135
  %189 = vst.msk [vmem:[%s188] ss:$16 sm:$0xc] %vm185, %v184
  %s190 = scalar_lea.vmem %s1, 135
  %191 = vst.msk [vmem:[%s190] ss:$16 sm:$0x30] %vm185, %v184
  %s192 = scalar_lea.vmem %s1, 135
  %193 = vst.msk [vmem:[%s192] ss:$16 sm:$0xc0] %vm185, %v184
  %v194 = vld [vmem:[%s0] sm:$0xff]
  %195 = vrot.lane.b32.xlu0 %v194, 64
  %v196 = vpop.permute.xlu0 %195
  %vm197 = vcmask 64512
  %s198 = scalar_lea.vmem %s1, 8
  %199 = vst.msk [vmem:[%s198] ss:$16 sm:$0x3] %vm197, %v196
  %s200 = scalar_lea.vmem %s1, 8
  %201 = vst.msk [vmem:[%s200] ss:$16 sm:$0xc] %vm197, %v196
  %s202 = scalar_lea.vmem %s1, 8
  %203 = vst.msk [vmem:[%s202] ss:$16 sm:$0x30] %vm197, %v196
  %s204 = scalar_lea.vmem %s1, 8
  %205 = vst.msk [vmem:[%s204] ss:$16 sm:$0xc0] %vm197, %v196
  %s206 = scalar_lea.vmem %s0, 8
  %v207 = vld [vmem:[%s206] sm:$0xff]
  %208 = vrot.lane.b32.xlu0 %v207, 64
  %v209 = vpop.permute.xlu0 %208
  %vm210 = vcmask 64512
  %s211 = scalar_lea.vmem %s1, 136
  %212 = vst.msk [vmem:[%s211] ss:$16 sm:$0x3] %vm210, %v209
  %s213 = scalar_lea.vmem %s1, 136
  %214 = vst.msk [vmem:[%s213] ss:$16 sm:$0xc] %vm210, %v209
  %s215 = scalar_lea.vmem %s1, 136
  %216 = vst.msk [vmem:[%s215] ss:$16 sm:$0x30] %vm210, %v209
  %s217 = scalar_lea.vmem %s1, 136
  %218 = vst.msk [vmem:[%s217] ss:$16 sm:$0xc0] %vm210, %v209
  %v219 = vld [vmem:[%s0] sm:$0xff]
  %220 = vrot.lane.b32.xlu0 %v219, 56
  %v221 = vpop.permute.xlu0 %220
  %vm222 = vcmask 64512
  %s223 = scalar_lea.vmem %s1, 9
  %224 = vst.msk [vmem:[%s223] ss:$16 sm:$0x3] %vm222, %v221
  %s225 = scalar_lea.vmem %s1, 9
  %226 = vst.msk [vmem:[%s225] ss:$16 sm:$0xc] %vm222, %v221
  %s227 = scalar_lea.vmem %s1, 9
  %228 = vst.msk [vmem:[%s227] ss:$16 sm:$0x30] %vm222, %v221
  %s229 = scalar_lea.vmem %s1, 9
  %230 = vst.msk [vmem:[%s229] ss:$16 sm:$0xc0] %vm222, %v221
  %s231 = scalar_lea.vmem %s0, 8
  %v232 = vld [vmem:[%s231] sm:$0xff]
  %233 = vrot.lane.b32.xlu0 %v232, 56
  %v234 = vpop.permute.xlu0 %233
  %vm235 = vcmask 64512
  %s236 = scalar_lea.vmem %s1, 137
  %237 = vst.msk [vmem:[%s236] ss:$16 sm:$0x3] %vm235, %v234
  %s238 = scalar_lea.vmem %s1, 137
  %239 = vst.msk [vmem:[%s238] ss:$16 sm:$0xc] %vm235, %v234
  %s240 = scalar_lea.vmem %s1, 137
  %241 = vst.msk [vmem:[%s240] ss:$16 sm:$0x30] %vm235, %v234
  %s242 = scalar_lea.vmem %s1, 137
  %243 = vst.msk [vmem:[%s242] ss:$16 sm:$0xc0] %vm235, %v234
  %v244 = vld [vmem:[%s0] sm:$0xff]
  %245 = vrot.lane.b32.xlu0 %v244, 48
  %v246 = vpop.permute.xlu0 %245
  %vm247 = vcmask 64512
  %s248 = scalar_lea.vmem %s1, 10
  %249 = vst.msk [vmem:[%s248] ss:$16 sm:$0x3] %vm247, %v246
  %s250 = scalar_lea.vmem %s1, 10
  %251 = vst.msk [vmem:[%s250] ss:$16 sm:$0xc] %vm247, %v246
  %s252 = scalar_lea.vmem %s1, 10
  %253 = vst.msk [vmem:[%s252] ss:$16 sm:$0x30] %vm247, %v246
  %s254 = scalar_lea.vmem %s1, 10
  %255 = vst.msk [vmem:[%s254] ss:$16 sm:$0xc0] %vm247, %v246
  %s256 = scalar_lea.vmem %s0, 8
  %v257 = vld [vmem:[%s256] sm:$0xff]
  %258 = vrot.lane.b32.xlu0 %v257, 48
  %v259 = vpop.permute.xlu0 %258
  %vm260 = vcmask 64512
  %s261 = scalar_lea.vmem %s1, 138
  %262 = vst.msk [vmem:[%s261] ss:$16 sm:$0x3] %vm260, %v259
  %s263 = scalar_lea.vmem %s1, 138
  %264 = vst.msk [vmem:[%s263] ss:$16 sm:$0xc] %vm260, %v259
  %s265 = scalar_lea.vmem %s1, 138
  %266 = vst.msk [vmem:[%s265] ss:$16 sm:$0x30] %vm260, %v259
  %s267 = scalar_lea.vmem %s1, 138
  %268 = vst.msk [vmem:[%s267] ss:$16 sm:$0xc0] %vm260, %v259
  %v269 = vld [vmem:[%s0] sm:$0xff]
  %270 = vrot.lane.b32.xlu0 %v269, 40
  %v271 = vpop.permute.xlu0 %270
  %vm272 = vcmask 64512
  %s273 = scalar_lea.vmem %s1, 11
  %274 = vst.msk [vmem:[%s273] ss:$16 sm:$0x3] %vm272, %v271
  %s275 = scalar_lea.vmem %s1, 11
  %276 = vst.msk [vmem:[%s275] ss:$16 sm:$0xc] %vm272, %v271
  %s277 = scalar_lea.vmem %s1, 11
  %278 = vst.msk [vmem:[%s277] ss:$16 sm:$0x30] %vm272, %v271
  %s279 = scalar_lea.vmem %s1, 11
  %280 = vst.msk [vmem:[%s279] ss:$16 sm:$0xc0] %vm272, %v271
  %s281 = scalar_lea.vmem %s0, 8
  %v282 = vld [vmem:[%s281] sm:$0xff]
  %283 = vrot.lane.b32.xlu0 %v282, 40
  %v284 = vpop.permute.xlu0 %283
  %vm285 = vcmask 64512
  %s286 = scalar_lea.vmem %s1, 139
  %287 = vst.msk [vmem:[%s286] ss:$16 sm:$0x3] %vm285, %v284
  %s288 = scalar_lea.vmem %s1, 139
  %289 = vst.msk [vmem:[%s288] ss:$16 sm:$0xc] %vm285, %v284
  %s290 = scalar_lea.vmem %s1, 139
  %291 = vst.msk [vmem:[%s290] ss:$16 sm:$0x30] %vm285, %v284
  %s292 = scalar_lea.vmem %s1, 139
  %293 = vst.msk [vmem:[%s292] ss:$16 sm:$0xc0] %vm285, %v284
  %v294 = vld [vmem:[%s0] sm:$0xff]
  %295 = vrot.lane.b32.xlu0 %v294, 32
  %v296 = vpop.permute.xlu0 %295
  %vm297 = vcmask 64512
  %s298 = scalar_lea.vmem %s1, 12
  %299 = vst.msk [vmem:[%s298] ss:$16 sm:$0x3] %vm297, %v296
  %s300 = scalar_lea.vmem %s1, 12
  %301 = vst.msk [vmem:[%s300] ss:$16 sm:$0xc] %vm297, %v296
  %s302 = scalar_lea.vmem %s1, 12
  %303 = vst.msk [vmem:[%s302] ss:$16 sm:$0x30] %vm297, %v296
  %s304 = scalar_lea.vmem %s1, 12
  %305 = vst.msk [vmem:[%s304] ss:$16 sm:$0xc0] %vm297, %v296
  %s306 = scalar_lea.vmem %s0, 8
  %v307 = vld [vmem:[%s306] sm:$0xff]
  %308 = vrot.lane.b32.xlu0 %v307, 32
  %v309 = vpop.permute.xlu0 %308
  %vm310 = vcmask 64512
  %s311 = scalar_lea.vmem %s1, 140
  %312 = vst.msk [vmem:[%s311] ss:$16 sm:$0x3] %vm310, %v309
  %s313 = scalar_lea.vmem %s1, 140
  %314 = vst.msk [vmem:[%s313] ss:$16 sm:$0xc] %vm310, %v309
  %s315 = scalar_lea.vmem %s1, 140
  %316 = vst.msk [vmem:[%s315] ss:$16 sm:$0x30] %vm310, %v309
  %s317 = scalar_lea.vmem %s1, 140
  %318 = vst.msk [vmem:[%s317] ss:$16 sm:$0xc0] %vm310, %v309
  %v319 = vld [vmem:[%s0] sm:$0xff]
  %320 = vrot.lane.b32.xlu0 %v319, 24
  %v321 = vpop.permute.xlu0 %320
  %vm322 = vcmask 64512
  %s323 = scalar_lea.vmem %s1, 13
  %324 = vst.msk [vmem:[%s323] ss:$16 sm:$0x3] %vm322, %v321
  %s325 = scalar_lea.vmem %s1, 13
  %326 = vst.msk [vmem:[%s325] ss:$16 sm:$0xc] %vm322, %v321
  %s327 = scalar_lea.vmem %s1, 13
  %328 = vst.msk [vmem:[%s327] ss:$16 sm:$0x30] %vm322, %v321
  %s329 = scalar_lea.vmem %s1, 13
  %330 = vst.msk [vmem:[%s329] ss:$16 sm:$0xc0] %vm322, %v321
  %s331 = scalar_lea.vmem %s0, 8
  %v332 = vld [vmem:[%s331] sm:$0xff]
  %333 = vrot.lane.b32.xlu0 %v332, 24
  %v334 = vpop.permute.xlu0 %333
  %vm335 = vcmask 64512
  %s336 = scalar_lea.vmem %s1, 141
  %337 = vst.msk [vmem:[%s336] ss:$16 sm:$0x3] %vm335, %v334
  %s338 = scalar_lea.vmem %s1, 141
  %339 = vst.msk [vmem:[%s338] ss:$16 sm:$0xc] %vm335, %v334
  %s340 = scalar_lea.vmem %s1, 141
  %341 = vst.msk [vmem:[%s340] ss:$16 sm:$0x30] %vm335, %v334
  %s342 = scalar_lea.vmem %s1, 141
  %343 = vst.msk [vmem:[%s342] ss:$16 sm:$0xc0] %vm335, %v334
  %v344 = vld [vmem:[%s0] sm:$0xff]
  %345 = vrot.lane.b32.xlu0 %v344, 16
  %v346 = vpop.permute.xlu0 %345
  %vm347 = vcmask 64512
  %s348 = scalar_lea.vmem %s1, 14
  %349 = vst.msk [vmem:[%s348] ss:$16 sm:$0x3] %vm347, %v346
  %s350 = scalar_lea.vmem %s1, 14
  %351 = vst.msk [vmem:[%s350] ss:$16 sm:$0xc] %vm347, %v346
  %s352 = scalar_lea.vmem %s1, 14
  %353 = vst.msk [vmem:[%s352] ss:$16 sm:$0x30] %vm347, %v346
  %s354 = scalar_lea.vmem %s1, 14
  %355 = vst.msk [vmem:[%s354] ss:$16 sm:$0xc0] %vm347, %v346
  %s356 = scalar_lea.vmem %s0, 8
  %v357 = vld [vmem:[%s356] sm:$0xff]
  %358 = vrot.lane.b32.xlu0 %v357, 16
  %v359 = vpop.permute.xlu0 %358
  %vm360 = vcmask 64512
  %s361 = scalar_lea.vmem %s1, 142
  %362 = vst.msk [vmem:[%s361] ss:$16 sm:$0x3] %vm360, %v359
  %s363 = scalar_lea.vmem %s1, 142
  %364 = vst.msk [vmem:[%s363] ss:$16 sm:$0xc] %vm360, %v359
  %s365 = scalar_lea.vmem %s1, 142
  %366 = vst.msk [vmem:[%s365] ss:$16 sm:$0x30] %vm360, %v359
  %s367 = scalar_lea.vmem %s1, 142
  %368 = vst.msk [vmem:[%s367] ss:$16 sm:$0xc0] %vm360, %v359
  %v369 = vld [vmem:[%s0] sm:$0xff]
  %370 = vrot.lane.b32.xlu0 %v369, 8
  %v371 = vpop.permute.xlu0 %370
  %vm372 = vcmask 64512
  %s373 = scalar_lea.vmem %s1, 15
  %374 = vst.msk [vmem:[%s373] ss:$16 sm:$0x3] %vm372, %v371
  %s375 = scalar_lea.vmem %s1, 15
  %376 = vst.msk [vmem:[%s375] ss:$16 sm:$0xc] %vm372, %v371
  %s377 = scalar_lea.vmem %s1, 15
  %378 = vst.msk [vmem:[%s377] ss:$16 sm:$0x30] %vm372, %v371
  %s379 = scalar_lea.vmem %s1, 15
  %380 = vst.msk [vmem:[%s379] ss:$16 sm:$0xc0] %vm372, %v371
  %s381 = scalar_lea.vmem %s0, 8
  %v382 = vld [vmem:[%s381] sm:$0xff]
  %383 = vrot.lane.b32.xlu0 %v382, 8
  %v384 = vpop.permute.xlu0 %383
  %vm385 = vcmask 64512
  %s386 = scalar_lea.vmem %s1, 143
  %387 = vst.msk [vmem:[%s386] ss:$16 sm:$0x3] %vm385, %v384
  %s388 = scalar_lea.vmem %s1, 143
  %389 = vst.msk [vmem:[%s388] ss:$16 sm:$0xc] %vm385, %v384
  %s390 = scalar_lea.vmem %s1, 143
  %391 = vst.msk [vmem:[%s390] ss:$16 sm:$0x30] %vm385, %v384
  %s392 = scalar_lea.vmem %s1, 143
  %393 = vst.msk [vmem:[%s392] ss:$16 sm:$0xc0] %vm385, %v384

// kernel: fid_forward.1
$region0: #{fid_forward.1}
  #allocation0 [shape = 'u32[]', space=smem, size = 0x4, offset = 0x4, fixed_abs, tag = 'smem constant byte address 0x4 - core index']
  #allocation1 [shape = 'u32[144,128]{1,0:T(1,128)}', space=vmem, size = 0x12000, scoped, tag = 'internal scratch']
  #allocation2 [shape = 'f32[1,1]{1,0:T(1,128)S(1)}', space=vmem, size = 0x200, scoped, tag = 'scoped memory for fid_forward.1']
  %s0 = inlined_call_operand.vmem [shape: f32[64,16,64], index: 0, kind: input, shape index: {}]
  %s1 = inlined_call_operand.vmem [shape: f32[3,64,512], index: 1, kind: input, shape index: {}]
  %s2 = inlined_call_operand.vmem [shape: f32[1,512], index: 2, kind: input, shape index: {}]
  %s3 = inlined_call_operand.vmem [shape: f32[3,256,512], index: 3, kind: input, shape index: {}]
  %s4 = inlined_call_operand.vmem [shape: f32[1,512], index: 4, kind: input, shape index: {}]
  %s5 = inlined_call_operand.vmem [shape: f32[3,256,512], index: 5, kind: input, shape index: {}]
  %s6 = inlined_call_operand.vmem [shape: f32[1,512], index: 6, kind: input, shape index: {}]
  %s7 = inlined_call_operand.vmem [shape: f32[64,256], index: 7, kind: input, shape index: {}]
  %s8 = inlined_call_operand.vmem [shape: f32[8,64], index: 8, kind: input, shape index: {}]
  %s9 = inlined_call_operand.<no memory space> [shape: f32[1,1], index: 9, kind: input, shape index: {}]
  %s10 = inlined_call_operand.vmem [shape: f32[16,1], index: 10, kind: output, shape index: {}]
  %s11 = sld [smem:[#allocation0]]
  $region111: #{fid_forward.1} parent=0
    _
  %s13 = ssub.s32 1, %s11
  %s14 = scalar_select 0, %s13, %s11
  %v15 = vstv %s9
  %16 = vst [vmem:[#allocation2] sm:$0x1] %v15
  $region1: #{fid_forward.1} parent=0
    #allocation3 [shape = 'u8[524288]{0}', space=vmem, size = 0x80000, scoped, tag = 'input window, operand 0']
    loop: start=0, step=1, limit=4
    $region2: #{fid_forward.1} parent=1 // loop_pre_header
      _
    $region3: #{fid_forward.1} parent=1 // loop_header
      %s18 = sphi 0, %s22
      %p19 = scmp.ge.s32.totalorder %s18, 4
      %s28 = sphi 0, %s30
      %s31 = sphi 0, %s28
      %s32 = sphi 0, %s31
      %s48 = sphi 0, %s32
      %s52 = sphi 0, %s52
      %s54 = sphi 0, %s52
      %s55 = sphi 0, %s54
      %s69 = sphi 0, %s55
      %s73 = sphi 0, %s73
      %s75 = sphi 0, %s73
      %s76 = sphi 0, %s75
      %s90 = sphi 0, %s76
      %s94 = sphi 0, %s94
      %s96 = sphi 0, %s94
      %s97 = sphi 0, %s96
      %s111 = sphi 0, %s97
      %s115 = sphi 0, %s115
      %s117 = sphi 0, %s115
      %s118 = sphi 0, %s117
      %s132 = sphi 0, %s118
      %s136 = sphi 0, %s136
      %s138 = sphi 0, %s136
      %s139 = sphi 0, %s138
      %s153 = sphi 0, %s139
      %s157 = sphi 0, %s157
      %s159 = sphi 0, %s157
      %s160 = sphi 0, %s159
      %s174 = sphi 0, %s160
      %s178 = sphi 0, %s178
      %s180 = sphi 0, %s178
      %s181 = sphi 0, %s180
      %s195 = sphi 0, %s181
      %s199 = sphi 0, %s199
      %s201 = sphi 0, %s199
      %s202 = sphi 0, %s201
      %s216 = sphi 0, %s202
      %s220 = sphi 0, %s220
      %s222 = sphi 0, %s220
      %s223 = sphi 0, %s222
      %s237 = sphi 0, %s223
      %s243 = sphi 0, %s245
      %s246 = sphi 0, %s243
      %s247 = sphi 0, %s246
      %s263 = sphi 0, %s247
    $region4: #{fid_forward.1} parent=1 // loop_header_branch
      %21 = sbr.rel (%p19) target = $region8
    $region5: #{fid_forward.1} parent=1 // loop_body
      %s23 = ssub.s32 %s18, 1
      %s24 = ssub.s32 %s18, 2
      %s25 = sadd.s32 %s18, 1
      %s26 = ssub.s32 %s18, %s25
      %p27 = scmp.eq.s32.totalorder %s26, 0
      %s29 = sadd.s32 %s28, 1
      %s30 = scalar_select %p27, %s28, %s29
      %p33 = pneg %p27
      %p34 = scmp.eq.s32.totalorder %s18, 1
      %p35 = por %p33, %p34
      %p36 = scmp.ne.s32.totalorder %s28, %s31
      %p37 = scmp.eq.s32.totalorder %s18, 0
      %p38 = por %p36, %p37
      %p39 = scmp.ne.s32.totalorder %s28, %s31
      %p40 = scmp.eq.s32.totalorder %s23, 1
      %p41 = por %p39, %p40
      %p42 = scmp.ne.s32.totalorder %s31, %s32
      %p43 = scmp.eq.s32.totalorder %s23, 0
      %p44 = por %p42, %p43
      %p45 = scmp.ne.s32.totalorder %s31, %s32
      %p46 = scmp.eq.s32.totalorder %s24, 1
      %p47 = por %p45, %p46
      %p49 = scmp.ne.s32.totalorder %s32, %s48
      %p50 = scmp.eq.s32.totalorder %s24, 0
      %p51 = por %p49, %p50
      %s53 = sadd.s32 %s52, 1
      %p56 = scmp.eq.s32.totalorder %s18, 1
      %p57 = scmp.ne.s32.totalorder %s52, %s54
      %p58 = scmp.eq.s32.totalorder %s18, 0
      %p59 = por %p57, %p58
      %p60 = scmp.ne.s32.totalorder %s52, %s54
      %p61 = scmp.eq.s32.totalorder %s23, 1
      %p62 = por %p60, %p61
      %p63 = scmp.ne.s32.totalorder %s54, %s55
      %p64 = scmp.eq.s32.totalorder %s23, 0
      %p65 = por %p63, %p64
      %p66 = scmp.ne.s32.totalorder %s54, %s55
      %p67 = scmp.eq.s32.totalorder %s24, 1
      %p68 = por %p66, %p67
      %p70 = scmp.ne.s32.totalorder %s55, %s69
      %p71 = scmp.eq.s32.totalorder %s24, 0
      %p72 = por %p70, %p71
      %s74 = sadd.s32 %s73, 1
      %p77 = scmp.eq.s32.totalorder %s18, 1
      %p78 = scmp.ne.s32.totalorder %s73, %s75
      %p79 = scmp.eq.s32.totalorder %s18, 0
      %p80 = por %p78, %p79
      %p81 = scmp.ne.s32.totalorder %s73, %s75
      %p82 = scmp.eq.s32.totalorder %s23, 1
      %p83 = por %p81, %p82
      %p84 = scmp.ne.s32.totalorder %s75, %s76
      %p85 = scmp.eq.s32.totalorder %s23, 0
      %p86 = por %p84, %p85
      %p87 = scmp.ne.s32.totalorder %s75, %s76
      %p88 = scmp.eq.s32.totalorder %s24, 1
      %p89 = por %p87, %p88
      %p91 = scmp.ne.s32.totalorder %s76, %s90
      %p92 = scmp.eq.s32.totalorder %s24, 0
      %p93 = por %p91, %p92
      %s95 = sadd.s32 %s94, 1
      %p98 = scmp.eq.s32.totalorder %s18, 1
      %p99 = scmp.ne.s32.totalorder %s94, %s96
      %p100 = scmp.eq.s32.totalorder %s18, 0
      %p101 = por %p99, %p100
      %p102 = scmp.ne.s32.totalorder %s94, %s96
      %p103 = scmp.eq.s32.totalorder %s23, 1
      %p104 = por %p102, %p103
      %p105 = scmp.ne.s32.totalorder %s96, %s97
      %p106 = scmp.eq.s32.totalorder %s23, 0
      %p107 = por %p105, %p106
      %p108 = scmp.ne.s32.totalorder %s96, %s97
      %p109 = scmp.eq.s32.totalorder %s24, 1
      %p110 = por %p108, %p109
      %p112 = scmp.ne.s32.totalorder %s97, %s111
      %p113 = scmp.eq.s32.totalorder %s24, 0
      %p114 = por %p112, %p113
      %s116 = sadd.s32 %s115, 1
      %p119 = scmp.eq.s32.totalorder %s18, 1
      %p120 = scmp.ne.s32.totalorder %s115, %s117
      %p121 = scmp.eq.s32.totalorder %s18, 0
      %p122 = por %p120, %p121
      %p123 = scmp.ne.s32.totalorder %s115, %s117
      %p124 = scmp.eq.s32.totalorder %s23, 1
      %p125 = por %p123, %p124
      %p126 = scmp.ne.s32.totalorder %s117, %s118
      %p127 = scmp.eq.s32.totalorder %s23, 0
      %p128 = por %p126, %p127
      %p129 = scmp.ne.s32.totalorder %s117, %s118
      %p130 = scmp.eq.s32.totalorder %s24, 1
      %p131 = por %p129, %p130
      %p133 = scmp.ne.s32.totalorder %s118, %s132
      %p134 = scmp.eq.s32.totalorder %s24, 0
      %p135 = por %p133, %p134
      %s137 = sadd.s32 %s136, 1
      %p140 = scmp.eq.s32.totalorder %s18, 1
      %p141 = scmp.ne.s32.totalorder %s136, %s138
      %p142 = scmp.eq.s32.totalorder %s18, 0
      %p143 = por %p141, %p142
      %p144 = scmp.ne.s32.totalorder %s136, %s138
      %p145 = scmp.eq.s32.totalorder %s23, 1
      %p146 = por %p144, %p145
      %p147 = scmp.ne.s32.totalorder %s138, %s139
      %p148 = scmp.eq.s32.totalorder %s23, 0
      %p149 = por %p147, %p148
      %p150 = scmp.ne.s32.totalorder %s138, %s139
      %p151 = scmp.eq.s32.totalorder %s24, 1
      %p152 = por %p150, %p151
      %p154 = scmp.ne.s32.totalorder %s139, %s153
      %p155 = scmp.eq.s32.totalorder %s24, 0
      %p156 = por %p154, %p155
      %s158 = sadd.s32 %s157, 1
      %p161 = scmp.eq.s32.totalorder %s18, 1
      %p162 = scmp.ne.s32.totalorder %s157, %s159
      %p163 = scmp.eq.s32.totalorder %s18, 0
      %p164 = por %p162, %p163
      %p165 = scmp.ne.s32.totalorder %s157, %s159
      %p166 = scmp.eq.s32.totalorder %s23, 1
      %p167 = por %p165, %p166
      %p168 = scmp.ne.s32.totalorder %s159, %s160
      %p169 = scmp.eq.s32.totalorder %s23, 0
      %p170 = por %p168, %p169
      %p171 = scmp.ne.s32.totalorder %s159, %s160
      %p172 = scmp.eq.s32.totalorder %s24, 1
      %p173 = por %p171, %p172
      %p175 = scmp.ne.s32.totalorder %s160, %s174
      %p176 = scmp.eq.s32.totalorder %s24, 0
      %p177 = por %p175, %p176
      %s179 = sadd.s32 %s178, 1
      %p182 = scmp.eq.s32.totalorder %s18, 1
      %p183 = scmp.ne.s32.totalorder %s178, %s180
      %p184 = scmp.eq.s32.totalorder %s18, 0
      %p185 = por %p183, %p184
      %p186 = scmp.ne.s32.totalorder %s178, %s180
      %p187 = scmp.eq.s32.totalorder %s23, 1
      %p188 = por %p186, %p187
      %p189 = scmp.ne.s32.totalorder %s180, %s181
      %p190 = scmp.eq.s32.totalorder %s23, 0
      %p191 = por %p189, %p190
      %p192 = scmp.ne.s32.totalorder %s180, %s181
      %p193 = scmp.eq.s32.totalorder %s24, 1
      %p194 = por %p192, %p193
      %p196 = scmp.ne.s32.totalorder %s181, %s195
      %p197 = scmp.eq.s32.totalorder %s24, 0
      %p198 = por %p196, %p197
      %s200 = sadd.s32 %s199, 1
      %p203 = scmp.eq.s32.totalorder %s18, 1
      %p204 = scmp.ne.s32.totalorder %s199, %s201
      %p205 = scmp.eq.s32.totalorder %s18, 0
      %p206 = por %p204, %p205
      %p207 = scmp.ne.s32.totalorder %s199, %s201
      %p208 = scmp.eq.s32.totalorder %s23, 1
      %p209 = por %p207, %p208
      %p210 = scmp.ne.s32.totalorder %s201, %s202
      %p211 = scmp.eq.s32.totalorder %s23, 0
      %p212 = por %p210, %p211
      %p213 = scmp.ne.s32.totalorder %s201, %s202
      %p214 = scmp.eq.s32.totalorder %s24, 1
      %p215 = por %p213, %p214
      %p217 = scmp.ne.s32.totalorder %s202, %s216
      %p218 = scmp.eq.s32.totalorder %s24, 0
      %p219 = por %p217, %p218
      %s221 = sadd.s32 %s220, 1
      %p224 = scmp.eq.s32.totalorder %s18, 1
      %p225 = scmp.ne.s32.totalorder %s220, %s222
      %p226 = scmp.eq.s32.totalorder %s18, 0
      %p227 = por %p225, %p226
      %p228 = scmp.ne.s32.totalorder %s220, %s222
      %p229 = scmp.eq.s32.totalorder %s23, 1
      %p230 = por %p228, %p229
      %p231 = scmp.ne.s32.totalorder %s222, %s223
      %p232 = scmp.eq.s32.totalorder %s23, 0
      %p233 = por %p231, %p232
      %p234 = scmp.ne.s32.totalorder %s222, %s223
      %p235 = scmp.eq.s32.totalorder %s24, 1
      %p236 = por %p234, %p235
      %p238 = scmp.ne.s32.totalorder %s223, %s237
      %p239 = scmp.eq.s32.totalorder %s24, 0
      %p240 = por %p238, %p239
      %s241 = ssub.s32 %s18, %s25
      %p242 = scmp.eq.s32.totalorder %s241, 0
      %s244 = sadd.s32 %s243, 1
      %s245 = scalar_select %p242, %s243, %s244
      %p248 = pneg %p242
      %p249 = scmp.eq.s32.totalorder %s18, 1
      %p250 = por %p248, %p249
      %p251 = scmp.ne.s32.totalorder %s243, %s246
      %p252 = scmp.eq.s32.totalorder %s18, 0
      %p253 = por %p251, %p252
      %p254 = scmp.ne.s32.totalorder %s243, %s246
      %p255 = scmp.eq.s32.totalorder %s23, 1
      %p256 = por %p254, %p255
      %p257 = scmp.ne.s32.totalorder %s246, %s247
      %p258 = scmp.eq.s32.totalorder %s23, 0
      %p259 = por %p257, %p258
      %p260 = scmp.ne.s32.totalorder %s246, %s247
      %p261 = scmp.eq.s32.totalorder %s24, 1
      %p262 = por %p260, %p261
      %p264 = scmp.ne.s32.totalorder %s247, %s263
      %p265 = scmp.eq.s32.totalorder %s24, 0
      %p266 = por %p264, %p265
      %p267 = scmp.le.s32.totalorder 1, %s18
      %p268 = scmp.lt.s32.totalorder %s18, 3
      %p269 = pnand %p267, %p268
      %p270 = pneg %p269
      // Predicated region
      $region9: #{fid_forward.1} parent=5 // pred_check
        _
      $region10: #{fid_forward.1} parent=5 // pred_check_branch
        %272 = sbr.rel (%p269) target = $region12
      $region11: #{fid_forward.1} parent=5 // pred_region
        %s273 = ssub.s32 %s18, 1
        // Predicated region
        $region13: #{fid_forward.1} parent=11 // pred_check
          %p274 = pneg %p65
        $region14: #{fid_forward.1} parent=11 // pred_check_branch
          %276 = sbr.rel (%p274) target = $region16
        $region15: #{fid_forward.1} parent=11 // pred_region
          _
        $region16: #{fid_forward.1} parent=11 // pred_fallthru
          _
        // Predicated region
        $region17: #{fid_forward.1} parent=11 // pred_check
          %p277 = pneg %p86
        $region18: #{fid_forward.1} parent=11 // pred_check_branch
          %279 = sbr.rel (%p277) target = $region20
        $region19: #{fid_forward.1} parent=11 // pred_region
          _
        $region20: #{fid_forward.1} parent=11 // pred_fallthru
          _
        // Predicated region
        $region21: #{fid_forward.1} parent=11 // pred_check
          %p280 = pneg %p107
        $region22: #{fid_forward.1} parent=11 // pred_check_branch
          %282 = sbr.rel (%p280) target = $region24
        $region23: #{fid_forward.1} parent=11 // pred_region
          _
        $region24: #{fid_forward.1} parent=11 // pred_fallthru
          _
        // Predicated region
        $region25: #{fid_forward.1} parent=11 // pred_check
          %p283 = pneg %p128
        $region26: #{fid_forward.1} parent=11 // pred_check_branch
          %285 = sbr.rel (%p283) target = $region28
        $region27: #{fid_forward.1} parent=11 // pred_region
          _
        $region28: #{fid_forward.1} parent=11 // pred_fallthru
          _
        // Predicated region
        $region29: #{fid_forward.1} parent=11 // pred_check
          %p286 = pneg %p149
        $region30: #{fid_forward.1} parent=11 // pred_check_branch
          %288 = sbr.rel (%p286) target = $region32
        $region31: #{fid_forward.1} parent=11 // pred_region
          _
        $region32: #{fid_forward.1} parent=11 // pred_fallthru
          _
        // Predicated region
        $region33: #{fid_forward.1} parent=11 // pred_check
          %p289 = pneg %p170
        $region34: #{fid_forward.1} parent=11 // pred_check_branch
          %291 = sbr.rel (%p289) target = $region36
        $region35: #{fid_forward.1} parent=11 // pred_region
          _
        $region36: #{fid_forward.1} parent=11 // pred_fallthru
          _
        // Predicated region
        $region37: #{fid_forward.1} parent=11 // pred_check
          %p292 = pneg %p191
        $region38: #{fid_forward.1} parent=11 // pred_check_branch
          %294 = sbr.rel (%p292) target = $region40
        $region39: #{fid_forward.1} parent=11 // pred_region
          _
        $region40: #{fid_forward.1} parent=11 // pred_fallthru
          _
        // Predicated region
        $region41: #{fid_forward.1} parent=11 // pred_check
          %p295 = pneg %p212
        $region42: #{fid_forward.1} parent=11 // pred_check_branch
          %297 = sbr.rel (%p295) target = $region44
        $region43: #{fid_forward.1} parent=11 // pred_region
          _
        $region44: #{fid_forward.1} parent=11 // pred_fallthru
          _
        // Predicated region
        $region45: #{fid_forward.1} parent=11 // pred_check
          %p298 = pneg %p233
        $region46: #{fid_forward.1} parent=11 // pred_check_branch
          %300 = sbr.rel (%p298) target = $region48
        $region47: #{fid_forward.1} parent=11 // pred_region
          _
        $region48: #{fid_forward.1} parent=11 // pred_fallthru
          _
      $region12: #{fid_forward.1} parent=5 // pred_fallthru
        _
      %p301 = scmp.lt.s32.totalorder %s18, 2
      // Predicated region
      $region49: #{fid_forward.1} parent=5 // pred_check
        %p302 = pneg %p301
      $region50: #{fid_forward.1} parent=5 // pred_check_branch
        %304 = sbr.rel (%p302) target = $region52
      $region51: #{fid_forward.1} parent=5 // pred_region
        // Predicated region
        $region53: #{fid_forward.1} parent=51 // pred_check
          %p305 = pneg %p38
        $region54: #{fid_forward.1} parent=51 // pred_check_branch
          %307 = sbr.rel (%p305) target = $region56
        $region55: #{fid_forward.1} parent=51 // pred_region
          %s308 = sand.u32 %s28, 1
          %s309 = sand.u32 %s28, 1
          %s310 = smul.addr %s309, 512
          %s311 = scalar_lea.vmem [#allocation3], %s310
          %s312 = smul.addr %s18, 8
          %s313 = scalar_lea.vmem %s0, %s312
          // Predicated region
          $region57: #{fid_forward.1} parent=55 // pred_check
            _
          $region58: #{fid_forward.1} parent=55 // pred_check_branch
            %315 = sbr.rel (0) target = $region60
          $region59: #{fid_forward.1} parent=55 // pred_region
            // Predicated region
            $region61: #{fid_forward.1} parent=59 // pred_check
              _
            $region62: #{fid_forward.1} parent=59 // pred_check_branch
              %317 = sbr.rel (0) target = $region64
            $region63: #{fid_forward.1} parent=59 // pred_region
              // Predicated region
              $region76: #{fid_forward.1} parent=63 // pred_check
                _
              $region77: #{fid_forward.1} parent=63 // pred_check_branch
                %458 = sbr.rel (0) target = $region79
              $region78: #{fid_forward.1} parent=63 // pred_region
                loop: start=0, step=1, limit=1
                $region80: #{fid_forward.1} parent=78 // loop_pre_header
                  _
                $region81: #{fid_forward.1} parent=78 // loop_header
                  %s460 = sphi 0, %s464
                  %p461 = scmp.ge.s32.totalorder %s460, 1
                  %s465 = sphi %s313, %s313
                  %s466 = sphi %s311, %s311
                $region82: #{fid_forward.1} parent=78 // loop_header_branch
                  %463 = sbr.rel (%p461) target = $region86
                $region83: #{fid_forward.1} parent=78 // loop_body
                  %v467 = vld [vmem:[%s465] sm:$0xff]
                  %468 = vst [vmem:[%s466] sm:$0xff] %v467
                  %v469 = vld [vmem:[%s465 + $0x10] sm:$0xff]
                  %470 = vst [vmem:[%s466 + $0x8] sm:$0xff] %v469
                  %v471 = vld [vmem:[%s465 + $0x20] sm:$0xff]
                  %472 = vst [vmem:[%s466 + $0x10] sm:$0xff] %v471
                  %v473 = vld [vmem:[%s465 + $0x30] sm:$0xff]
                  %474 = vst [vmem:[%s466 + $0x18] sm:$0xff] %v473
                  %v475 = vld [vmem:[%s465 + $0x40] sm:$0xff]
                  %476 = vst [vmem:[%s466 + $0x20] sm:$0xff] %v475
                  %v477 = vld [vmem:[%s465 + $0x50] sm:$0xff]
                  %478 = vst [vmem:[%s466 + $0x28] sm:$0xff] %v477
                  %v479 = vld [vmem:[%s465 + $0x60] sm:$0xff]
                  %480 = vst [vmem:[%s466 + $0x30] sm:$0xff] %v479
                  %v481 = vld [vmem:[%s465 + $0x70] sm:$0xff]
                  %482 = vst [vmem:[%s466 + $0x38] sm:$0xff] %v481
                  %v483 = vld [vmem:[%s465 + $0x80] sm:$0xff]
                  %484 = vst [vmem:[%s466 + $0x40] sm:$0xff] %v483
                  %v485 = vld [vmem:[%s465 + $0x90] sm:$0xff]
                  %486 = vst [vmem:[%s466 + $0x48] sm:$0xff] %v485
                  %v487 = vld [vmem:[%s465 + $0xa0] sm:$0xff]
                  %488 = vst [vmem:[%s466 + $0x50] sm:$0xff] %v487
                  %v489 = vld [vmem:[%s465 + $0xb0] sm:$0xff]
                  %490 = vst [vmem:[%s466 + $0x58] sm:$0xff] %v489
                  %v491 = vld [vmem:[%s465 + $0xc0] sm:$0xff]
                  %492 = vst [vmem:[%s466 + $0x60] sm:$0xff] %v491
                  %v493 = vld [vmem:[%s465 + $0xd0] sm:$0xff]
                  %494 = vst [vmem:[%s466 + $0x68] sm:$0xff] %v493
                  %v495 = vld [vmem:[%s465 + $0xe0] sm:$0xff]
                  %496 = vst [vmem:[%s466 + $0x70] sm:$0xff] %v495
                  %v497 = vld [vmem:[%s465 + $0xf0] sm:$0xff]
                  %498 = vst [vmem:[%s466 + $0x78] sm:$0xff] %v497
                  %v499 = vld [vmem:[%s465 + $0x100] sm:$0xff]
                  %500 = vst [vmem:[%s466 + $0x80] sm:$0xff] %v499
                  %v501 = vld [vmem:[%s465 + $0x110] sm:$0xff]
                  %502 = vst [vmem:[%s466 + $0x88] sm:$0xff] %v501
                  %v503 = vld [vmem:[%s465 + $0x120] sm:$0xff]
                  %504 = vst [vmem:[%s466 + $0x90] sm:$0xff] %v503
                  %v505 = vld [vmem:[%s465 + $0x130] sm:$0xff]
                  %506 = vst [vmem:[%s466 + $0x98] sm:$0xff] %v505
                  %v507 = vld [vmem:[%s465 + $0x140] sm:$0xff]
                  %508 = vst [vmem:[%s466 + $0xa0] sm:$0xff] %v507
                  %v509 = vld [vmem:[%s465 + $0x150] sm:$0xff]
                  %510 = vst [vmem:[%s466 + $0xa8] sm:$0xff] %v509
                  %v511 = vld [vmem:[%s465 + $0x160] sm:$0xff]
                  %512 = vst [vmem:[%s466 + $0xb0] sm:$0xff] %v511
                  %v513 = vld [vmem:[%s465 + $0x170] sm:$0xff]
                  %514 = vst [vmem:[%s466 + $0xb8] sm:$0xff] %v513
                  %v515 = vld [vmem:[%s465 + $0x180] sm:$0xff]
                  %516 = vst [vmem:[%s466 + $0xc0] sm:$0xff] %v515
                  %v517 = vld [vmem:[%s465 + $0x190] sm:$0xff]
                  %518 = vst [vmem:[%s466 + $0xc8] sm:$0xff] %v517
                  %v519 = vld [vmem:[%s465 + $0x1a0] sm:$0xff]
                  %520 = vst [vmem:[%s466 + $0xd0] sm:$0xff] %v519
                  %v521 = vld [vmem:[%s465 + $0x1b0] sm:$0xff]
                  %522 = vst [vmem:[%s466 + $0xd8] sm:$0xff] %v521
                  %v523 = vld [vmem:[%s465 + $0x1c0] sm:$0xff]
                  %524 = vst [vmem:[%s466 + $0xe0] sm:$0xff] %v523
                  %v525 = vld [vmem:[%s465 + $0x1d0] sm:$0xff]
                  %526 = vst [vmem:[%s466 + $0xe8] sm:$0xff] %v525
                  %v527 = vld [vmem:[%s465 + $0x1e0] sm:$0xff]
                  %528 = vst [vmem:[%s466 + $0xf0] sm:$0xff] %v527
                  %v529 = vld [vmem:[%s465 + $0x1f0] sm:$0xff]
                  %530 = vst [vmem:[%s466 + $0xf8] sm:$0xff] %v529
                  %v531 = vld [vmem:[%s465 + $0x200] sm:$0xff]
                  %532 = vst [vmem:[%s466 + $0x100] sm:$0xff] %v531
                  %v533 = vld [vmem:[%s465 + $0x210] sm:$0xff]
                  %534 = vst [vmem:[%s466 + $0x108] sm:$0xff] %v533
                  %v535 = vld [vmem:[%s465 + $0x220] sm:$0xff]
                  %536 = vst [vmem:[%s466 + $0x110] sm:$0xff] %v535
                  %v537 = vld [vmem:[%s465 + $0x230] sm:$0xff]
                  %538 = vst [vmem:[%s466 + $0x118] sm:$0xff] %v537
                  %v539 = vld [vmem:[%s465 + $0x240] sm:$0xff]
                  %540 = vst [vmem:[%s466 + $0x120] sm:$0xff] %v539
                  %v541 = vld [vmem:[%s465 + $0x250] sm:$0xff]
                  %542 = vst [vmem:[%s466 + $0x128] sm:$0xff] %v541
                  %v543 = vld [vmem:[%s465 + $0x260] sm:$0xff]
                  %544 = vst [vmem:[%s466 + $0x130] sm:$0xff] %v543
                  %v545 = vld [vmem:[%s465 + $0x270] sm:$0xff]
                  %546 = vst [vmem:[%s466 + $0x138] sm:$0xff] %v545
                  %v547 = vld [vmem:[%s465 + $0x280] sm:$0xff]
                  %548 = vst [vmem:[%s466 + $0x140] sm:$0xff] %v547
                  %v549 = vld [vmem:[%s465 + $0x290] sm:$0xff]
                  %550 = vst [vmem:[%s466 + $0x148] sm:$0xff] %v549
                  %v551 = vld [vmem:[%s465 + $0x2a0] sm:$0xff]
                  %552 = vst [vmem:[%s466 + $0x150] sm:$0xff] %v551
                  %v553 = vld [vmem:[%s465 + $0x2b0] sm:$0xff]
                  %554 = vst [vmem:[%s466 + $0x158] sm:$0xff] %v553
                  %v555 = vld [vmem:[%s465 + $0x2c0] sm:$0xff]
                  %556 = vst [vmem:[%s466 + $0x160] sm:$0xff] %v555
                  %v557 = vld [vmem:[%s465 + $0x2d0] sm:$0xff]
                  %558 = vst [vmem:[%s466 + $0x168] sm:$0xff] %v557
                  %v559 = vld [vmem:[%s465 + $0x2e0] sm:$0xff]
                  %560 = vst [vmem:[%s466 + $0x170] sm:$0xff] %v559
                  %v561 = vld [vmem:[%s465 + $0x2f0] sm:$0xff]
                  %562 = vst [vmem:[%s466 + $0x178] sm:$0xff] %v561
                  %v563 = vld [vmem:[%s465 + $0x300] sm:$0xff]
                  %564 = vst [vmem:[%s466 + $0x180] sm:$0xff] %v563
                  %v565 = vld [vmem:[%s465 + $0x310] sm:$0xff]
                  %566 = vst [vmem:[%s466 + $0x188] sm:$0xff] %v565
                  %v567 = vld [vmem:[%s465 + $0x320] sm:$0xff]
                  %568 = vst [vmem:[%s466 + $0x190] sm:$0xff] %v567
                  %v569 = vld [vmem:[%s465 + $0x330] sm:$0xff]
                  %570 = vst [vmem:[%s466 + $0x198] sm:$0xff] %v569
                  %v571 = vld [vmem:[%s465 + $0x340] sm:$0xff]
                  %572 = vst [vmem:[%s466 + $0x1a0] sm:$0xff] %v571
                  %v573 = vld [vmem:[%s465 + $0x350] sm:$0xff]
                  %574 = vst [vmem:[%s466 + $0x1a8] sm:$0xff] %v573
                  %v575 = vld [vmem:[%s465 + $0x360] sm:$0xff]
                  %576 = vst [vmem:[%s466 + $0x1b0] sm:$0xff] %v575
                  %v577 = vld [vmem:[%s465 + $0x370] sm:$0xff]
                  %578 = vst [vmem:[%s466 + $0x1b8] sm:$0xff] %v577
                  %v579 = vld [vmem:[%s465 + $0x380] sm:$0xff]
                  %580 = vst [vmem:[%s466 + $0x1c0] sm:$0xff] %v579
                  %v581 = vld [vmem:[%s465 + $0x390] sm:$0xff]
                  %582 = vst [vmem:[%s466 + $0x1c8] sm:$0xff] %v581
                  %v583 = vld [vmem:[%s465 + $0x3a0] sm:$0xff]
                  %584 = vst [vmem:[%s466 + $0x1d0] sm:$0xff] %v583
                  %v585 = vld [vmem:[%s465 + $0x3b0] sm:$0xff]
                  %586 = vst [vmem:[%s466 + $0x1d8] sm:$0xff] %v585
                  %v587 = vld [vmem:[%s465 + $0x3c0] sm:$0xff]
                  %588 = vst [vmem:[%s466 + $0x1e0] sm:$0xff] %v587
                  %v589 = vld [vmem:[%s465 + $0x3d0] sm:$0xff]
                  %590 = vst [vmem:[%s466 + $0x1e8] sm:$0xff] %v589
                  %v591 = vld [vmem:[%s465 + $0x3e0] sm:$0xff]
                  %592 = vst [vmem:[%s466 + $0x1f0] sm:$0xff] %v591
                  %v593 = vld [vmem:[%s465 + $0x3f0] sm:$0xff]
                  %594 = vst [vmem:[%s466 + $0x1f8] sm:$0xff] %v593
                $region84: #{fid_forward.1} parent=78 // loop_footer
                  %s464 = sadd.s32 1, %s460
                $region85: #{fid_forward.1} parent=78 // loop_footer_branch
                  %459 = sbr.rel target = $region81
                $region86: #{fid_forward.1} parent=78 // loop_exit
                  _
              $region79: #{fid_forward.1} parent=63 // pred_fallthru
                _
              // Predicated region
              $region87: #{fid_forward.1} parent=63 // pred_check
                _
              $region88: #{fid_forward.1} parent=63 // pred_check_branch
                %596 = sbr.rel target = $region90
              $region89: #{fid_forward.1} parent=63 // pred_region
                _
              $region90: #{fid_forward.1} parent=63 // pred_fallthru
                _
            $region64: #{fid_forward.1} parent=59 // pred_fallthru
              _
            // Predicated region
            $region65: #{fid_forward.1} parent=59 // pred_check
              _
            $region66: #{fid_forward.1} parent=59 // pred_check_branch
              %319 = sbr.rel target = $region68
            $region67: #{fid_forward.1} parent=59 // pred_region
              loop: start=0, step=1, limit=1
              $region69: #{fid_forward.1} parent=67 // loop_pre_header
                _
              $region70: #{fid_forward.1} parent=67 // loop_header
                %s322 = sphi 0, %s326
                %p323 = scmp.ge.s32.totalorder %s322, 1
                %s327 = sphi %s313, %s313
                %s328 = sphi %s311, %s311
              $region71: #{fid_forward.1} parent=67 // loop_header_branch
                %325 = sbr.rel (%p323) target = $region75
              $region72: #{fid_forward.1} parent=67 // loop_body
                %v329 = vld [vmem:[%s327] sm:$0xff]
                %330 = vst [vmem:[%s328] sm:$0xff] %v329
                %v331 = vld [vmem:[%s327 + $0x10] sm:$0xff]
                %332 = vst [vmem:[%s328 + $0x8] sm:$0xff] %v331
                %v333 = vld [vmem:[%s327 + $0x20] sm:$0xff]
                %334 = vst [vmem:[%s328 + $0x10] sm:$0xff] %v333
                %v335 = vld [vmem:[%s327 + $0x30] sm:$0xff]
                %336 = vst [vmem:[%s328 + $0x18] sm:$0xff] %v335
                %v337 = vld [vmem:[%s327 + $0x40] sm:$0xff]
                %338 = vst [vmem:[%s328 + $0x20] sm:$0xff] %v337
                %v339 = vld [vmem:[%s327 + $0x50] sm:$0xff]
                %340 = vst [vmem:[%s328 + $0x28] sm:$0xff] %v339
                %v341 = vld [vmem:[%s327 + $0x60] sm:$0xff]
                %342 = vst [vmem:[%s328 + $0x30] sm:$0xff] %v341
                %v343 = vld [vmem:[%s327 + $0x70] sm:$0xff]
                %344 = vst [vmem:[%s328 + $0x38] sm:$0xff] %v343
                %v345 = vld [vmem:[%s327 + $0x80] sm:$0xff]
                %346 = vst [vmem:[%s328 + $0x40] sm:$0xff] %v345
                %v347 = vld [vmem:[%s327 + $0x90] sm:$0xff]
                %348 = vst [vmem:[%s328 + $0x48] sm:$0xff] %v347
                %v349 = vld [vmem:[%s327 + $0xa0] sm:$0xff]
                %350 = vst [vmem:[%s328 + $0x50] sm:$0xff] %v349
                %v351 = vld [vmem:[%s327 + $0xb0] sm:$0xff]
                %352 = vst [vmem:[%s328 + $0x58] sm:$0xff] %v351
                %v353 = vld [vmem:[%s327 + $0xc0] sm:$0xff]
                %354 = vst [vmem:[%s328 + $0x60] sm:$0xff] %v353
                %v355 = vld [vmem:[%s327 + $0xd0] sm:$0xff]
                %356 = vst [vmem:[%s328 + $0x68] sm:$0xff] %v355
                %v357 = vld [vmem:[%s327 + $0xe0] sm:$0xff]
                %358 = vst [vmem:[%s328 + $0x70] sm:$0xff] %v357
                %v359 = vld [vmem:[%s327 + $0xf0] sm:$0xff]
                %360 = vst [vmem:[%s328 + $0x78] sm:$0xff] %v359
                %v361 = vld [vmem:[%s327 + $0x100] sm:$0xff]
                %362 = vst [vmem:[%s328 + $0x80] sm:$0xff] %v361
                %v363 = vld [vmem:[%s327 + $0x110] sm:$0xff]
                %364 = vst [vmem:[%s328 + $0x88] sm:$0xff] %v363
                %v365 = vld [vmem:[%s327 + $0x120] sm:$0xff]
                %366 = vst [vmem:[%s328 + $0x90] sm:$0xff] %v365
                %v367 = vld [vmem:[%s327 + $0x130] sm:$0xff]
                %368 = vst [vmem:[%s328 + $0x98] sm:$0xff] %v367
                %v369 = vld [vmem:[%s327 + $0x140] sm:$0xff]
                %370 = vst [vmem:[%s328 + $0xa0] sm:$0xff] %v369
                %v371 = vld [vmem:[%s327 + $0x150] sm:$0xff]
                %372 = vst [vmem:[%s328 + $0xa8] sm:$0xff] %v371
                %v373 = vld [vmem:[%s327 + $0x160] sm:$0xff]
                %374 = vst [vmem:[%s328 + $0xb0] sm:$0xff] %v373
                %v375 = vld [vmem:[%s327 + $0x170] sm:$0xff]
                %376 = vst [vmem:[%s328 + $0xb8] sm:$0xff] %v375
                %v377 = vld [vmem:[%s327 + $0x180] sm:$0xff]
                %378 = vst [vmem:[%s328 + $0xc0] sm:$0xff] %v377
                %v379 = vld [vmem:[%s327 + $0x190] sm:$0xff]
                %380 = vst [vmem:[%s328 + $0xc8] sm:$0xff] %v379
                %v381 = vld [vmem:[%s327 + $0x1a0] sm:$0xff]
                %382 = vst [vmem:[%s328 + $0xd0] sm:$0xff] %v381
                %v383 = vld [vmem:[%s327 + $0x1b0] sm:$0xff]
                %384 = vst [vmem:[%s328 + $0xd8] sm:$0xff] %v383
                %v385 = vld [vmem:[%s327 + $0x1c0] sm:$0xff]
                %386 = vst [vmem:[%s328 + $0xe0] sm:$0xff] %v385
                %v387 = vld [vmem:[%s327 + $0x1d0] sm:$0xff]
                %388 = vst [vmem:[%s328 + $0xe8] sm:$0xff] %v387
                %v389 = vld [vmem:[%s327 + $0x1e0] sm:$0xff]
                %390 = vst [vmem:[%s328 + $0xf0] sm:$0xff] %v389
                %v391 = vld [vmem:[%s327 + $0x1f0] sm:$0xff]
                %392 = vst [vmem:[%s328 + $0xf8] sm:$0xff] %v391
                %v393 = vld [vmem:[%s327 + $0x200] sm:$0xff]
                %394 = vst [vmem:[%s328 + $0x100] sm:$0xff] %v393
                %v395 = vld [vmem:[%s327 + $0x210] sm:$0xff]
                %396 = vst [vmem:[%s328 + $0x108] sm:$0xff] %v395
                %v397 = vld [vmem:[%s327 + $0x220] sm:$0xff]
                %398 = vst [vmem:[%s328 + $0x110] sm:$0xff] %v397
                %v399 = vld [vmem:[%s327 + $0x230] sm:$0xff]
                %400 = vst [vmem:[%s328 + $0x118] sm:$0xff] %v399
                %v401 = vld [vmem:[%s327 + $0x240] sm:$0xff]
                %402 = vst [vmem:[%s328 + $0x120] sm:$0xff] %v401
                %v403 = vld [vmem:[%s327 + $0x250] sm:$0xff]
                %404 = vst [vmem:[%s328 + $0x128] sm:$0xff] %v403
                %v405 = vld [vmem:[%s327 + $0x260] sm:$0xff]
                %406 = vst [vmem:[%s328 + $0x130] sm:$0xff] %v405
                %v407 = vld [vmem:[%s327 + $0x270] sm:$0xff]
                %408 = vst [vmem:[%s328 + $0x138] sm:$0xff] %v407
                %v409 = vld [vmem:[%s327 + $0x280] sm:$0xff]
                %410 = vst [vmem:[%s328 + $0x140] sm:$0xff] %v409
                %v411 = vld [vmem:[%s327 + $0x290] sm:$0xff]
                %412 = vst [vmem:[%s328 + $0x148] sm:$0xff] %v411
                %v413 = vld [vmem:[%s327 + $0x2a0] sm:$0xff]
                %414 = vst [vmem:[%s328 + $0x150] sm:$0xff] %v413
                %v415 = vld [vmem:[%s327 + $0x2b0] sm:$0xff]
                %416 = vst [vmem:[%s328 + $0x158] sm:$0xff] %v415
                %v417 = vld [vmem:[%s327 + $0x2c0] sm:$0xff]
                %418 = vst [vmem:[%s328 + $0x160] sm:$0xff] %v417
                %v419 = vld [vmem:[%s327 + $0x2d0] sm:$0xff]
                %420 = vst [vmem:[%s328 + $0x168] sm:$0xff] %v419
                %v421 = vld [vmem:[%s327 + $0x2e0] sm:$0xff]
                %422 = vst [vmem:[%s328 + $0x170] sm:$0xff] %v421
                %v423 = vld [vmem:[%s327 + $0x2f0] sm:$0xff]
                %424 = vst [vmem:[%s328 + $0x178] sm:$0xff] %v423
                %v425 = vld [vmem:[%s327 + $0x300] sm:$0xff]
                %426 = vst [vmem:[%s328 + $0x180] sm:$0xff] %v425
                %v427 = vld [vmem:[%s327 + $0x310] sm:$0xff]
                %428 = vst [vmem:[%s328 + $0x188] sm:$0xff] %v427
                %v429 = vld [vmem:[%s327 + $0x320] sm:$0xff]
                %430 = vst [vmem:[%s328 + $0x190] sm:$0xff] %v429
                %v431 = vld [vmem:[%s327 + $0x330] sm:$0xff]
                %432 = vst [vmem:[%s328 + $0x198] sm:$0xff] %v431
                %v433 = vld [vmem:[%s327 + $0x340] sm:$0xff]
                %434 = vst [vmem:[%s328 + $0x1a0] sm:$0xff] %v433
                %v435 = vld [vmem:[%s327 + $0x350] sm:$0xff]
                %436 = vst [vmem:[%s328 + $0x1a8] sm:$0xff] %v435
                %v437 = vld [vmem:[%s327 + $0x360] sm:$0xff]
                %438 = vst [vmem:[%s328 + $0x1b0] sm:$0xff] %v437
                %v439 = vld [vmem:[%s327 + $0x370] sm:$0xff]
                %440 = vst [vmem:[%s328 + $0x1b8] sm:$0xff] %v439
                %v441 = vld [vmem:[%s327 + $0x380] sm:$0xff]
                %442 = vst [vmem:[%s328 + $0x1c0] sm:$0xff] %v441
                %v443 = vld [vmem:[%s327 + $0x390] sm:$0xff]
                %444 = vst [vmem:[%s328 + $0x1c8] sm:$0xff] %v443
                %v445 = vld [vmem:[%s327 + $0x3a0] sm:$0xff]
                %446 = vst [vmem:[%s328 + $0x1d0] sm:$0xff] %v445
                %v447 = vld [vmem:[%s327 + $0x3b0] sm:$0xff]
                %448 = vst [vmem:[%s328 + $0x1d8] sm:$0xff] %v447
                %v449 = vld [vmem:[%s327 + $0x3c0] sm:$0xff]
                %450 = vst [vmem:[%s328 + $0x1e0] sm:$0xff] %v449
                %v451 = vld [vmem:[%s327 + $0x3d0] sm:$0xff]
                %452 = vst [vmem:[%s328 + $0x1e8] sm:$0xff] %v451
                %v453 = vld [vmem:[%s327 + $0x3e0] sm:$0xff]
                %454 = vst [vmem:[%s328 + $0x1f0] sm:$0xff] %v453
                %v455 = vld [vmem:[%s327 + $0x3f0] sm:$0xff]
                %456 = vst [vmem:[%s328 + $0x1f8] sm:$0xff] %v455
              $region73: #{fid_forward.1} parent=67 // loop_footer
                %s326 = sadd.s32 1, %s322
              $region74: #{fid_forward.1} parent=67 // loop_footer_branch
                %321 = sbr.rel target = $region70
              $region75: #{fid_forward.1} parent=67 // loop_exit
                _
            $region68: #{fid_forward.1} parent=59 // pred_fallthru
              _
          $region60: #{fid_forward.1} parent=55 // pred_fallthru
            _
          %597 = vnop
        $region56: #{fid_forward.1} parent=51 // pred_fallthru
          _
      $region52: #{fid_forward.1} parent=5 // pred_fallthru
        _
      %p598 = scmp.le.s32.totalorder 1, %s18
      %p599 = scmp.lt.s32.totalorder %s18, 3
      %p600 = pnand %p598, %p599
      %p601 = pneg %p600
      // Predicated region
      $region91: #{fid_forward.1} parent=5 // pred_check
        _
      $region92: #{fid_forward.1} parent=5 // pred_check_branch
        %603 = sbr.rel (%p600) target = $region94
      $region93: #{fid_forward.1} parent=5 // pred_region
        %s604 = ssub.s32 %s18, 1
        %s605 = sand.u32 %s31, 1
        %s606 = sand.u32 %s31, 1
        %s607 = smul.addr %s606, 512
        %s608 = scalar_lea.vmem [#allocation3], %s607
        // Predicated region
        $region95: #{fid_forward.1} parent=93 // pred_check
          %p609 = pneg %p44
        $region96: #{fid_forward.1} parent=93 // pred_check_branch
          %611 = sbr.rel (%p609) target = $region98
        $region97: #{fid_forward.1} parent=93 // pred_region
          _
        $region98: #{fid_forward.1} parent=93 // pred_fallthru
          _
        %s612 = sand.u32 %s31, 1
        %s613 = sand.u32 %s31, 1
        %s614 = smul.addr %s613, 512
        %s615 = scalar_lea.vmem [#allocation3], %s614
        %p616 = pneg %p44
        %p617 = pneg %p41
        %p618 = pneg %p65
        %p619 = pneg %p62
        %p620 = pneg %p86
        %p621 = pneg %p83
        %p622 = pneg %p107
        %p623 = pneg %p104
        %p624 = pneg %p128
        %p625 = pneg %p125
        %p626 = pneg %p149
        %p627 = pneg %p146
        %p628 = pneg %p170
        %p629 = pneg %p167
        %p630 = pneg %p191
        %p631 = pneg %p188
        %p632 = pneg %p212
        %p633 = pneg %p209
        %p634 = pneg %p233
        %p635 = pneg %p230
        %p636 = pneg %p259
        %p637 = pneg %p256
        %p638 = scmp.lt.s32.totalorder %s23, 1
        %s639 = scalar_select %p638, %s23, 1
        %s640 = smul.addr %s639, 8
        %s641 = scalar_lea.vmem %s10, %s640
        %p642 = scmp.lt.s32.totalorder %s23, 1
        %s643 = scalar_select %p642, %s23, 1
        %s644 = smul.addr %s643, 8
        %s645 = scalar_lea.vmem %s10, %s644
        %v646 = vld [vmem:[%s608] sm:$0xff]
        %v647 = vld [vmem:[%s608 + $0x8] sm:$0xff]
        %v648 = vld [vmem:[%s608 + $0x10] sm:$0xff]
        %v649 = vld [vmem:[%s608 + $0x18] sm:$0xff]
        %v650 = vld [vmem:[%s608 + $0x20] sm:$0xff]
        %v651 = vld [vmem:[%s608 + $0x28] sm:$0xff]
        %v652 = vld [vmem:[%s608 + $0x30] sm:$0xff]
        %v653 = vld [vmem:[%s608 + $0x38] sm:$0xff]
        %v654 = vld [vmem:[%s608 + $0x40] sm:$0xff]
        %v655 = vld [vmem:[%s608 + $0x48] sm:$0xff]
        %v656 = vld [vmem:[%s608 + $0x50] sm:$0xff]
        %v657 = vld [vmem:[%s608 + $0x58] sm:$0xff]
        %v658 = vld [vmem:[%s608 + $0x60] sm:$0xff]
        %v659 = vld [vmem:[%s608 + $0x68] sm:$0xff]
        %v660 = vld [vmem:[%s608 + $0x70] sm:$0xff]
        %v661 = vld [vmem:[%s608 + $0x78] sm:$0xff]
        %v662 = vld [vmem:[%s608 + $0x80] sm:$0xff]
        %v663 = vld [vmem:[%s608 + $0x88] sm:$0xff]
        %v664 = vld [vmem:[%s608 + $0x90] sm:$0xff]
        %v665 = vld [vmem:[%s608 + $0x98] sm:$0xff]
        %v666 = vld [vmem:[%s608 + $0xa0] sm:$0xff]
        %v667 = vld [vmem:[%s608 + $0xa8] sm:$0xff]
        %v668 = vld [vmem:[%s608 + $0xb0] sm:$0xff]
        %v669 = vld [vmem:[%s608 + $0xb8] sm:$0xff]
        %v670 = vld [vmem:[%s608 + $0xc0] sm:$0xff]
        %v671 = vld [vmem:[%s608 + $0xc8] sm:$0xff]
        %v672 = vld [vmem:[%s608 + $0xd0] sm:$0xff]
        %v673 = vld [vmem:[%s608 + $0xd8] sm:$0xff]
        %v674 = vld [vmem:[%s608 + $0xe0] sm:$0xff]
        %v675 = vld [vmem:[%s608 + $0xe8] sm:$0xff]
        %v676 = vld [vmem:[%s608 + $0xf0] sm:$0xff]
        %v677 = vld [vmem:[%s608 + $0xf8] sm:$0xff]
        %v678 = vld [vmem:[%s608 + $0x100] sm:$0xff]
        %v679 = vld [vmem:[%s608 + $0x108] sm:$0xff]
        %v680 = vld [vmem:[%s608 + $0x110] sm:$0xff]
        %v681 = vld [vmem:[%s608 + $0x118] sm:$0xff]
        %v682 = vld [vmem:[%s608 + $0x120] sm:$0xff]
        %v683 = vld [vmem:[%s608 + $0x128] sm:$0xff]
        %v684 = vld [vmem:[%s608 + $0x130] sm:$0xff]
        %v685 = vld [vmem:[%s608 + $0x138] sm:$0xff]
        %v686 = vld [vmem:[%s608 + $0x140] sm:$0xff]
        %v687 = vld [vmem:[%s608 + $0x148] sm:$0xff]
        %v688 = vld [vmem:[%s608 + $0x150] sm:$0xff]
        %v689 = vld [vmem:[%s608 + $0x158] sm:$0xff]
        %v690 = vld [vmem:[%s608 + $0x160] sm:$0xff]
        %v691 = vld [vmem:[%s608 + $0x168] sm:$0xff]
        %v692 = vld [vmem:[%s608 + $0x170] sm:$0xff]
        %v693 = vld [vmem:[%s608 + $0x178] sm:$0xff]
        %v694 = vld [vmem:[%s608 + $0x180] sm:$0xff]
        %v695 = vld [vmem:[%s608 + $0x188] sm:$0xff]
        %v696 = vld [vmem:[%s608 + $0x190] sm:$0xff]
        %v697 = vld [vmem:[%s608 + $0x198] sm:$0xff]
        %v698 = vld [vmem:[%s608 + $0x1a0] sm:$0xff]
        %v699 = vld [vmem:[%s608 + $0x1a8] sm:$0xff]
        %v700 = vld [vmem:[%s608 + $0x1b0] sm:$0xff]
        %v701 = vld [vmem:[%s608 + $0x1b8] sm:$0xff]
        %v702 = vld [vmem:[%s608 + $0x1c0] sm:$0xff]
        %v703 = vld [vmem:[%s608 + $0x1c8] sm:$0xff]
        %v704 = vld [vmem:[%s608 + $0x1d0] sm:$0xff]
        %v705 = vld [vmem:[%s608 + $0x1d8] sm:$0xff]
        %v706 = vld [vmem:[%s608 + $0x1e0] sm:$0xff]
        %v707 = vld [vmem:[%s608 + $0x1e8] sm:$0xff]
        %v708 = vld [vmem:[%s608 + $0x1f0] sm:$0xff]
        %v709 = vld [vmem:[%s608 + $0x1f8] sm:$0xff]
        %v710 = vld [vmem:[%s2] sm:$0xf]
        %s711 = scalar_lea.vmem %s1, 256
        %v712 = vld [vmem:[%s711] sm:$0xff]
        %v713 = vld [vmem:[%s711 + $0x8] sm:$0xff]
        %v714 = vld [vmem:[%s711 + $0x10] sm:$0xff]
        %v715 = vld [vmem:[%s711 + $0x18] sm:$0xff]
        %v716 = vld [vmem:[%s711 + $0x20] sm:$0xff]
        %v717 = vld [vmem:[%s711 + $0x28] sm:$0xff]
        %v718 = vld [vmem:[%s711 + $0x30] sm:$0xff]
        %v719 = vld [vmem:[%s711 + $0x38] sm:$0xff]
        %v720 = vld [vmem:[%s711 + $0x40] sm:$0xff]
        %v721 = vld [vmem:[%s711 + $0x48] sm:$0xff]
        %v722 = vld [vmem:[%s711 + $0x50] sm:$0xff]
        %v723 = vld [vmem:[%s711 + $0x58] sm:$0xff]
        %v724 = vld [vmem:[%s711 + $0x60] sm:$0xff]
        %v725 = vld [vmem:[%s711 + $0x68] sm:$0xff]
        %v726 = vld [vmem:[%s711 + $0x70] sm:$0xff]
        %v727 = vld [vmem:[%s711 + $0x78] sm:$0xff]
        %v728 = vld [vmem:[%s711 + $0x80] sm:$0xff]
        %v729 = vld [vmem:[%s711 + $0x88] sm:$0xff]
        %v730 = vld [vmem:[%s711 + $0x90] sm:$0xff]
        %v731 = vld [vmem:[%s711 + $0x98] sm:$0xff]
        %v732 = vld [vmem:[%s711 + $0xa0] sm:$0xff]
        %v733 = vld [vmem:[%s711 + $0xa8] sm:$0xff]
        %v734 = vld [vmem:[%s711 + $0xb0] sm:$0xff]
        %v735 = vld [vmem:[%s711 + $0xb8] sm:$0xff]
        %v736 = vld [vmem:[%s711 + $0xc0] sm:$0xff]
        %v737 = vld [vmem:[%s711 + $0xc8] sm:$0xff]
        %v738 = vld [vmem:[%s711 + $0xd0] sm:$0xff]
        %v739 = vld [vmem:[%s711 + $0xd8] sm:$0xff]
        %v740 = vld [vmem:[%s711 + $0xe0] sm:$0xff]
        %v741 = vld [vmem:[%s711 + $0xe8] sm:$0xff]
        %v742 = vld [vmem:[%s711 + $0xf0] sm:$0xff]
        %v743 = vld [vmem:[%s711 + $0xf8] sm:$0xff]
        %vm744 = vcmask 523264
        %v746 = vsel %vm744, %v646, 0
        %v749 = vsel %vm744, %v647, 0
        %v752 = vsel %vm744, %v648, 0
        %v755 = vsel %vm744, %v649, 0
        %v758 = vsel %vm744, %v650, 0
        %v761 = vsel %vm744, %v651, 0
        %v764 = vsel %vm744, %v652, 0
        %v767 = vsel %vm744, %v653, 0
        %v770 = vsel %vm744, %v654, 0
        %v773 = vsel %vm744, %v655, 0
        %v776 = vsel %vm744, %v656, 0
        %v779 = vsel %vm744, %v657, 0
        %v782 = vsel %vm744, %v658, 0
        %v785 = vsel %vm744, %v659, 0
        %v788 = vsel %vm744, %v660, 0
        %v791 = vsel %vm744, %v661, 0
        %v794 = vsel %vm744, %v662, 0
        %v797 = vsel %vm744, %v663, 0
        %v800 = vsel %vm744, %v664, 0
        %v803 = vsel %vm744, %v665, 0
        %v806 = vsel %vm744, %v666, 0
        %v809 = vsel %vm744, %v667, 0
        %v812 = vsel %vm744, %v668, 0
        %v815 = vsel %vm744, %v669, 0
        %v818 = vsel %vm744, %v670, 0
        %v821 = vsel %vm744, %v671, 0
        %v824 = vsel %vm744, %v672, 0
        %v827 = vsel %vm744, %v673, 0
        %v830 = vsel %vm744, %v674, 0
        %v833 = vsel %vm744, %v675, 0
        %v836 = vsel %vm744, %v676, 0
        %v839 = vsel %vm744, %v677, 0
        %v842 = vsel %vm744, %v678, 0
        %v845 = vsel %vm744, %v679, 0
        %v848 = vsel %vm744, %v680, 0
        %v851 = vsel %vm744, %v681, 0
        %v854 = vsel %vm744, %v682, 0
        %v857 = vsel %vm744, %v683, 0
        %v860 = vsel %vm744, %v684, 0
        %v863 = vsel %vm744, %v685, 0
        %v866 = vsel %vm744, %v686, 0
        %v869 = vsel %vm744, %v687, 0
        %v872 = vsel %vm744, %v688, 0
        %v875 = vsel %vm744, %v689, 0
        %v878 = vsel %vm744, %v690, 0
        %v881 = vsel %vm744, %v691, 0
        %v884 = vsel %vm744, %v692, 0
        %v887 = vsel %vm744, %v693, 0
        %v890 = vsel %vm744, %v694, 0
        %v893 = vsel %vm744, %v695, 0
        %v896 = vsel %vm744, %v696, 0
        %v899 = vsel %vm744, %v697, 0
        %v902 = vsel %vm744, %v698, 0
        %v905 = vsel %vm744, %v699, 0
        %v908 = vsel %vm744, %v700, 0
        %v911 = vsel %vm744, %v701, 0
        %v914 = vsel %vm744, %v702, 0
        %v917 = vsel %vm744, %v703, 0
        %v920 = vsel %vm744, %v704, 0
        %v923 = vsel %vm744, %v705, 0
        %v926 = vsel %vm744, %v706, 0
        %v929 = vsel %vm744, %v707, 0
        %v932 = vsel %vm744, %v708, 0
        %v935 = vsel %vm744, %v709, 0
        %937 = vmatprep.subr.mxu0 %v713
        %938 = vmatpush1.msra.mxu0 %v712
        %939 = vmatprep.subr.mxu0 %v717
        %940 = vmatpush1.msra.mxu0 %v716
        %941 = vmatprep.subr.mxu0 %v721
        %942 = vmatpush1.msra.mxu0 %v720
        %943 = vmatprep.subr.mxu0 %v725
        %944 = vmatpush1.msra.mxu0 %v724
        %945 = vmatprep.subr.mxu0 %v729
        %946 = vmatpush1.msra.mxu0 %v728
        %947 = vmatprep.subr.mxu0 %v733
        %948 = vmatpush1.msra.mxu0 %v732
        %949 = vmatprep.subr.mxu0 %v737
        %950 = vmatpush1.msra.mxu0 %v736
        %951 = vmatprep.subr.mxu0 %v741
        %952 = vmatpush1.msra.mxu0 %v740
        %953 = vmatprep.subr.mxu0 0.0
        %954 = vmatpush1.msra.mxu0 0.0
        %955 = vmatprep.subr.mxu0 0.0
        %956 = vmatpush1.msra.mxu0 0.0
        %957 = vmatprep.subr.mxu0 0.0
        %958 = vmatpush1.msra.mxu0 0.0
        %959 = vmatprep.subr.mxu0 0.0
        %960 = vmatpush1.msra.mxu0 0.0
        %961 = vmatprep.subr.mxu0 0.0
        %962 = vmatpush1.msra.mxu0 0.0
        %963 = vmatprep.subr.mxu0 0.0
        %964 = vmatpush1.msra.mxu0 0.0
        %965 = vmatprep.subr.mxu0 0.0
        %966 = vmatpush1.msra.mxu0 0.0
        %967 = vmatprep.subr.mxu0 0.0
        %968 = vmatpush1.msra.mxu0 0.0
        %969 = vmatprep.subr.mxu0 0.0
        %970 = vmatpush1.msra.mxu0 0.0
        %971 = vmatprep.subr.mxu0 0.0
        %972 = vmatpush1.msra.mxu0 0.0
        %973 = vmatprep.subr.mxu0 0.0
        %974 = vmatpush1.msra.mxu0 0.0
        %975 = vmatprep.subr.mxu0 0.0
        %976 = vmatpush1.msra.mxu0 0.0
        %977 = vmatprep.subr.mxu0 0.0
        %978 = vmatpush1.msra.mxu0 0.0
        %979 = vmatprep.subr.mxu0 0.0
        %980 = vmatpush1.msra.mxu0 0.0
        %981 = vmatprep.subr.mxu0 0.0
        %982 = vmatpush1.msra.mxu0 0.0
        %983 = vmatprep.subr.mxu0 0.0
        %984 = vmatpush1.msra.mxu0 0.0
        %985 = vmatprep.subr.mxu0 0.0
        %986 = vmatpush1.msra.mxu0 0.0
        %987 = vmatprep.subr.mxu0 0.0
        %988 = vmatpush1.msra.mxu0 0.0
        %989 = vmatprep.subr.mxu0 0.0
        %990 = vmatpush1.msra.mxu0 0.0
        %991 = vmatprep.subr.mxu0 0.0
        %992 = vmatpush1.msra.mxu0 0.0
        %993 = vmatprep.subr.mxu0 0.0
        %994 = vmatpush1.msra.mxu0 0.0
        %995 = vmatprep.subr.mxu0 0.0
        %996 = vmatpush1.msra.mxu0 0.0
        %997 = vmatprep.subr.mxu0 0.0
        %998 = vmatpush1.msra.mxu0 0.0
        %999 = vmatprep.subr.mxu0 0.0
        %1000 = vmatpush1.msra.mxu0 0.0
        %1001 = vmatprep.mubr.f32.mxu0 0.0
        %1002 = vmatmul.mubr.f32.gmra.mrb[0].mxu0 %v746
        %v1003 = vpop.f32.mrb[0].mxu0
        %v1004 = vadd.f32 0.0, %v1003
        %v1005 = vpop.f32.mrb[0].mxu0
        %v1006 = vadd.f32 0.0, %v1005
        %1007 = vmatprep.mubr.f32.mxu0 0.0
        %1008 = vmatmul.mubr.f32.gmra.mrb[0].mxu0 %v749
        %v1009 = vpop.f32.mrb[0].mxu0
        %v1010 = vadd.f32 0.0, %v1009
        %v1011 = vpop.f32.mrb[0].mxu0
        %v1012 = vadd.f32 0.0, %v1011
        %1013 = vmatprep.mubr.f32.mxu0 0.0
        %1014 = vmatmul.mubr.f32.gmra.mrb[0].mxu0 %v752
        %v1015 = vpop.f32.mrb[0].mxu0
        %v1016 = vadd.f32 0.0, %v1015
        %v1017 = vpop.f32.mrb[0].mxu0
        %v1018 = vadd.f32 0.0, %v1017
        %1019 = vmatprep.mubr.f32.mxu0 0.0
        %1020 = vmatmul.mubr.f32.gmra.mrb[0].mxu0 %v755
        %v1021 = vpop.f32.mrb[0].mxu0
        %v1022 = vadd.f32 0.0, %v1021
        %v1023 = vpop.f32.mrb[0].mxu0
        %v1024 = vadd.f32 0.0, %v1023
        %1025 = vmatprep.mubr.f32.mxu0 0.0
        %1026 = vmatmul.mubr.f32.gmra.mrb[0].mxu0 %v758
        %v1027 = vpop.f32.mrb[0].mxu0
        %v1028 = vadd.f32 0.0, %v1027
        %v1029 = vpop.f32.mrb[0].mxu0
        %v1030 = vadd.f32 0.0, %v1029
        %1031 = vmatprep.mubr.f32.mxu0 0.0
        %1032 = vmatmul.mubr.f32.gmra.mrb[0].mxu0 %v761
        %v1033 = vpop.f32.mrb[0].mxu0
        %v1034 = vadd.f32 0.0, %v1033
        %v1035 = vpop.f32.mrb[0].mxu0
        %v1036 = vadd.f32 0.0, %v1035
        %1037 = vmatprep.mubr.f32.mxu0 0.0
        %1038 = vmatmul.mubr.f32.gmra.mrb[0].mxu0 %v764
        %v1039 = vpop.f32.mrb[0].mxu0
        %v1040 = vadd.f32 0.0, %v1039
        %v1041 = vpop.f32.mrb[0].mxu0
        %v1042 = vadd.f32 0.0, %v1041
        %1043 = vmatprep.mubr.f32.mxu0 0.0
        %1044 = vmatmul.mubr.f32.gmra.mrb[0].mxu0 %v767
        %v1045 = vpop.f32.mrb[0].mxu0
        %v1046 = vadd.f32 0.0, %v1045
        %v1047 = vpop.f32.mrb[0].mxu0
        %v1048 = vadd.f32 0.0, %v1047
        %1049 = vmatprep.mubr.f32.mxu0 0.0
        %1050 = vmatmul.mubr.f32.gmra.mrb[0].mxu0 %v770
        %v1051 = vpop.f32.mrb[0].mxu0
        %v1052 = vadd.f32 0.0, %v1051
        %v1053 = vpop.f32.mrb[0].mxu0
        %v1054 = vadd.f32 0.0, %v1053
        %1055 = vmatprep.mubr.f32.mxu0 0.0
        %1056 = vmatmul.mubr.f32.gmra.mrb[0].mxu0 %v773
        %v1057 = vpop.f32.mrb[0].mxu0
        %v1058 = vadd.f32 0.0, %v1057
        %v1059 = vpop.f32.mrb[0].mxu0
        %v1060 = vadd.f32 0.0, %v1059
        %1061 = vmatprep.mubr.f32.mxu0 0.0
        %1062 = vmatmul.mubr.f32.gmra.mrb[0].mxu0 %v776
        %v1063 = vpop.f32.mrb[0].mxu0
        %v1064 = vadd.f32 0.0, %v1063
        %v1065 = vpop.f32.mrb[0].mxu0
        %v1066 = vadd.f32 0.0, %v1065
        %1067 = vmatprep.mubr.f32.mxu0 0.0
        %1068 = vmatmul.mubr.f32.gmra.mrb[0].mxu0 %v779
        %v1069 = vpop.f32.mrb[0].mxu0
        %v1070 = vadd.f32 0.0, %v1069
        %v1071 = vpop.f32.mrb[0].mxu0
        %v1072 = vadd.f32 0.0, %v1071
        %1073 = vmatprep.mubr.f32.mxu0 0.0
        %1074 = vmatmul.mubr.f32.gmra.mrb[0].mxu0 %v782
        %v1075 = vpop.f32.mrb[0].mxu0
        %v1076 = vadd.f32 0.0, %v1075
        %v1077 = vpop.f32.mrb[0].mxu0
        %v1078 = vadd.f32 0.0, %v1077
        %1079 = vmatprep.mubr.f32.mxu0 0.0
        %1080 = vmatmul.mubr.f32.gmra.mrb[0].mxu0 %v785
        %v1081 = vpop.f32.mrb[0].mxu0
        %v1082 = vadd.f32 0.0, %v1081
        %v1083 = vpop.f32.mrb[0].mxu0
        %v1084 = vadd.f32 0.0, %v1083
        %1085 = vmatprep.mubr.f32.mxu0 0.0
        %1086 = vmatmul.mubr.f32.gmra.mrb[0].mxu0 %v788
        %v1087 = vpop.f32.mrb[0].mxu0
        %v1088 = vadd.f32 0.0, %v1087
        %v1089 = vpop.f32.mrb[0].mxu0
        %v1090 = vadd.f32 0.0, %v1089
        %1091 = vmatprep.mubr.f32.mxu0 0.0
        %1092 = vmatmul.mubr.f32.gmra.mrb[0].mxu0 %v791
        %v1093 = vpop.f32.mrb[0].mxu0
        %v1094 = vadd.f32 0.0, %v1093
        %v1095 = vpop.f32.mrb[0].mxu0
        %v1096 = vadd.f32 0.0, %v1095
        %1097 = vmatprep.mubr.f32.mxu0 0.0
        %1098 = vmatmul.mubr.f32.gmra.mrb[0].mxu0 %v794
        %v1099 = vpop.f32.mrb[0].mxu0
        %v1100 = vadd.f32 0.0, %v1099
        %v1101 = vpop.f32.mrb[0].mxu0
        %v1102 = vadd.f32 0.0, %v1101
        %1103 = vmatprep.mubr.f32.mxu0 0.0
        %1104 = vmatmul.mubr.f32.gmra.mrb[0].mxu0 %v797
        %v1105 = vpop.f32.mrb[0].mxu0
        %v1106 = vadd.f32 0.0, %v1105
        %v1107 = vpop.f32.mrb[0].mxu0
        %v1108 = vadd.f32 0.0, %v1107
        %1109 = vmatprep.mubr.f32.mxu0 0.0
        %1110 = vmatmul.mubr.f32.gmra.mrb[0].mxu0 %v800
        %v1111 = vpop.f32.mrb[0].mxu0
        %v1112 = vadd.f32 0.0, %v1111
        %v1113 = vpop.f32.mrb[0].mxu0
        %v1114 = vadd.f32 0.0, %v1113
        %1115 = vmatprep.mubr.f32.mxu0 0.0
        %1116 = vmatmul.mubr.f32.gmra.mrb[0].mxu0 %v803
        %v1117 = vpop.f32.mrb[0].mxu0
        %v1118 = vadd.f32 0.0, %v1117
        %v1119 = vpop.f32.mrb[0].mxu0
        %v1120 = vadd.f32 0.0, %v1119
        %1121 = vmatprep.mubr.f32.mxu0 0.0
        %1122 = vmatmul.mubr.f32.gmra.mrb[0].mxu0 %v806
        %v1123 = vpop.f32.mrb[0].mxu0
        %v1124 = vadd.f32 0.0, %v1123
        %v1125 = vpop.f32.mrb[0].mxu0
        %v1126 = vadd.f32 0.0, %v1125
        %1127 = vmatprep.mubr.f32.mxu0 0.0
        %1128 = vmatmul.mubr.f32.gmra.mrb[0].mxu0 %v809
        %v1129 = vpop.f32.mrb[0].mxu0
        %v1130 = vadd.f32 0.0, %v1129
        %v1131 = vpop.f32.mrb[0].mxu0
        %v1132 = vadd.f32 0.0, %v1131
        %1133 = vmatprep.mubr.f32.mxu0 0.0
        %1134 = vmatmul.mubr.f32.gmra.mrb[0].mxu0 %v812
        %v1135 = vpop.f32.mrb[0].mxu0
        %v1136 = vadd.f32 0.0, %v1135
        %v1137 = vpop.f32.mrb[0].mxu0
        %v1138 = vadd.f32 0.0, %v1137
        %1139 = vmatprep.mubr.f32.mxu0 0.0
        %1140 = vmatmul.mubr.f32.gmra.mrb[0].mxu0 %v815
        %v1141 = vpop.f32.mrb[0].mxu0
        %v1142 = vadd.f32 0.0, %v1141
        %v1143 = vpop.f32.mrb[0].mxu0
        %v1144 = vadd.f32 0.0, %v1143
        %1145 = vmatprep.mubr.f32.mxu0 0.0
        %1146 = vmatmul.mubr.f32.gmra.mrb[0].mxu0 %v818
        %v1147 = vpop.f32.mrb[0].mxu0
        %v1148 = vadd.f32 0.0, %v1147
        %v1149 = vpop.f32.mrb[0].mxu0
        %v1150 = vadd.f32 0.0, %v1149
        %1151 = vmatprep.mubr.f32.mxu0 0.0
        %1152 = vmatmul.mubr.f32.gmra.mrb[0].mxu0 %v821
        %v1153 = vpop.f32.mrb[0].mxu0
        %v1154 = vadd.f32 0.0, %v1153
        %v1155 = vpop.f32.mrb[0].mxu0
        %v1156 = vadd.f32 0.0, %v1155
        %1157 = vmatprep.mubr.f32.mxu0 0.0
        %1158 = vmatmul.mubr.f32.gmra.mrb[0].mxu0 %v824
        %v1159 = vpop.f32.mrb[0].mxu0
        %v1160 = vadd.f32 0.0, %v1159
        %v1161 = vpop.f32.mrb[0].mxu0
        %v1162 = vadd.f32 0.0, %v1161
        %1163 = vmatprep.mubr.f32.mxu0 0.0
        %1164 = vmatmul.mubr.f32.gmra.mrb[0].mxu0 %v827
        %v1165 = vpop.f32.mrb[0].mxu0
        %v1166 = vadd.f32 0.0, %v1165
        %v1167 = vpop.f32.mrb[0].mxu0
        %v1168 = vadd.f32 0.0, %v1167
        %1169 = vmatprep.mubr.f32.mxu0 0.0
        %1170 = vmatmul.mubr.f32.gmra.mrb[0].mxu0 %v830
        %v1171 = vpop.f32.mrb[0].mxu0
        %v1172 = vadd.f32 0.0, %v1171
        %v1173 = vpop.f32.mrb[0].mxu0
        %v1174 = vadd.f32 0.0, %v1173
        %1175 = vmatprep.mubr.f32.mxu0 0.0
        %1176 = vmatmul.mubr.f32.gmra.mrb[0].mxu0 %v833
        %v1177 = vpop.f32.mrb[0].mxu0
        %v1178 = vadd.f32 0.0, %v1177
        %v1179 = vpop.f32.mrb[0].mxu0
        %v1180 = vadd.f32 0.0, %v1179
        %1181 = vmatprep.mubr.f32.mxu0 0.0
        %1182 = vmatmul.mubr.f32.gmra.mrb[0].mxu0 %v836
        %v1183 = vpop.f32.mrb[0].mxu0
        %v1184 = vadd.f32 0.0, %v1183
        %v1185 = vpop.f32.mrb[0].mxu0
        %v1186 = vadd.f32 0.0, %v1185
        %1187 = vmatprep.mubr.f32.mxu0 0.0
        %1188 = vmatmul.mubr.f32.gmra.mrb[0].mxu0 %v839
        %v1189 = vpop.f32.mrb[0].mxu0
        %v1190 = vadd.f32 0.0, %v1189
        %v1191 = vpop.f32.mrb[0].mxu0
        %v1192 = vadd.f32 0.0, %v1191
        %1193 = vmatprep.mubr.f32.mxu0 0.0
        %1194 = vmatmul.mubr.f32.gmra.mrb[0].mxu0 %v842
        %v1195 = vpop.f32.mrb[0].mxu0
        %v1196 = vadd.f32 0.0, %v1195
        %v1197 = vpop.f32.mrb[0].mxu0
        %v1198 = vadd.f32 0.0, %v1197
        %1199 = vmatprep.mubr.f32.mxu0 0.0
        %1200 = vmatmul.mubr.f32.gmra.mrb[0].mxu0 %v845
        %v1201 = vpop.f32.mrb[0].mxu0
        %v1202 = vadd.f32 0.0, %v1201
        %v1203 = vpop.f32.mrb[0].mxu0
        %v1204 = vadd.f32 0.0, %v1203
        %1205 = vmatprep.mubr.f32.mxu0 0.0
        %1206 = vmatmul.mubr.f32.gmra.mrb[0].mxu0 %v848
        %v1207 = vpop.f32.mrb[0].mxu0
        %v1208 = vadd.f32 0.0, %v1207
        %v1209 = vpop.f32.mrb[0].mxu0
        %v1210 = vadd.f32 0.0, %v1209
        %1211 = vmatprep.mubr.f32.mxu0 0.0
        %1212 = vmatmul.mubr.f32.gmra.mrb[0].mxu0 %v851
        %v1213 = vpop.f32.mrb[0].mxu0
        %v1214 = vadd.f32 0.0, %v1213
        %v1215 = vpop.f32.mrb[0].mxu0
        %v1216 = vadd.f32 0.0, %v1215
        %1217 = vmatprep.mubr.f32.mxu0 0.0
        %1218 = vmatmul.mubr.f32.gmra.mrb[0].mxu0 %v854
        %v1219 = vpop.f32.mrb[0].mxu0
        %v1220 = vadd.f32 0.0, %v1219
        %v1221 = vpop.f32.mrb[0].mxu0
        %v1222 = vadd.f32 0.0, %v1221
        %1223 = vmatprep.mubr.f32.mxu0 0.0
        %1224 = vmatmul.mubr.f32.gmra.mrb[0].mxu0 %v857
        %v1225 = vpop.f32.mrb[0].mxu0
        %v1226 = vadd.f32 0.0, %v1225
        %v1227 = vpop.f32.mrb[0].mxu0
        %v1228 = vadd.f32 0.0, %v1227
        %1229 = vmatprep.mubr.f32.mxu0 0.0
        %1230 = vmatmul.mubr.f32.gmra.mrb[0].mxu0 %v860
        %v1231 = vpop.f32.mrb[0].mxu0
        %v1232 = vadd.f32 0.0, %v1231
        %v1233 = vpop.f32.mrb[0].mxu0
        %v1234 = vadd.f32 0.0, %v1233
        %1235 = vmatprep.mubr.f32.mxu0 0.0
        %1236 = vmatmul.mubr.f32.gmra.mrb[0].mxu0 %v863
        %v1237 = vpop.f32.mrb[0].mxu0
        %v1238 = vadd.f32 0.0, %v1237
        %v1239 = vpop.f32.mrb[0].mxu0
        %v1240 = vadd.f32 0.0, %v1239
        %1241 = vmatprep.mubr.f32.mxu0 0.0
        %1242 = vmatmul.mubr.f32.gmra.mrb[0].mxu0 %v866
        %v1243 = vpop.f32.mrb[0].mxu0
        %v1244 = vadd.f32 0.0, %v1243
        %v1245 = vpop.f32.mrb[0].mxu0
        %v1246 = vadd.f32 0.0, %v1245
        %1247 = vmatprep.mubr.f32.mxu0 0.0
        %1248 = vmatmul.mubr.f32.gmra.mrb[0].mxu0 %v869
        %v1249 = vpop.f32.mrb[0].mxu0
        %v1250 = vadd.f32 0.0, %v1249
        %v1251 = vpop.f32.mrb[0].mxu0
        %v1252 = vadd.f32 0.0, %v1251
        %1253 = vmatprep.mubr.f32.mxu0 0.0
        %1254 = vmatmul.mubr.f32.gmra.mrb[0].mxu0 %v872
        %v1255 = vpop.f32.mrb[0].mxu0
        %v1256 = vadd.f32 0.0, %v1255
        %v1257 = vpop.f32.mrb[0].mxu0
        %v1258 = vadd.f32 0.0, %v1257
        %1259 = vmatprep.mubr.f32.mxu0 0.0
        %1260 = vmatmul.mubr.f32.gmra.mrb[0].mxu0 %v875
        %v1261 = vpop.f32.mrb[0].mxu0
        %v1262 = vadd.f32 0.0, %v1261
        %v1263 = vpop.f32.mrb[0].mxu0
        %v1264 = vadd.f32 0.0, %v1263
        %1265 = vmatprep.mubr.f32.mxu0 0.0
        %1266 = vmatmul.mubr.f32.gmra.mrb[0].mxu0 %v878
        %v1267 = vpop.f32.mrb[0].mxu0
        %v1268 = vadd.f32 0.0, %v1267
        %v1269 = vpop.f32.mrb[0].mxu0
        %v1270 = vadd.f32 0.0, %v1269
        %1271 = vmatprep.mubr.f32.mxu0 0.0
        %1272 = vmatmul.mubr.f32.gmra.mrb[0].mxu0 %v881
        %v1273 = vpop.f32.mrb[0].mxu0
        %v1274 = vadd.f32 0.0, %v1273
        %v1275 = vpop.f32.mrb[0].mxu0
        %v1276 = vadd.f32 0.0, %v1275
        %1277 = vmatprep.mubr.f32.mxu0 0.0
        %1278 = vmatmul.mubr.f32.gmra.mrb[0].mxu0 %v884
        %v1279 = vpop.f32.mrb[0].mxu0
        %v1280 = vadd.f32 0.0, %v1279
        %v1281 = vpop.f32.mrb[0].mxu0
        %v1282 = vadd.f32 0.0, %v1281
        %1283 = vmatprep.mubr.f32.mxu0 0.0
        %1284 = vmatmul.mubr.f32.gmra.mrb[0].mxu0 %v887
        %v1285 = vpop.f32.mrb[0].mxu0
        %v1286 = vadd.f32 0.0, %v1285
        %v1287 = vpop.f32.mrb[0].mxu0
        %v1288 = vadd.f32 0.0, %v1287
        %1289 = vmatprep.mubr.f32.mxu0 0.0
        %1290 = vmatmul.mubr.f32.gmra.mrb[0].mxu0 %v890
        %v1291 = vpop.f32.mrb[0].mxu0
        %v1292 = vadd.f32 0.0, %v1291
        %v1293 = vpop.f32.mrb[0].mxu0
        %v1294 = vadd.f32 0.0, %v1293
        %1295 = vmatprep.mubr.f32.mxu0 0.0
        %1296 = vmatmul.mubr.f32.gmra.mrb[0].mxu0 %v893
        %v1297 = vpop.f32.mrb[0].mxu0
        %v1298 = vadd.f32 0.0, %v1297
        %v1299 = vpop.f32.mrb[0].mxu0
        %v1300 = vadd.f32 0.0, %v1299
        %1301 = vmatprep.mubr.f32.mxu0 0.0
        %1302 = vmatmul.mubr.f32.gmra.mrb[0].mxu0 %v896
        %v1303 = vpop.f32.mrb[0].mxu0
        %v1304 = vadd.f32 0.0, %v1303
        %v1305 = vpop.f32.mrb[0].mxu0
        %v1306 = vadd.f32 0.0, %v1305
        %1307 = vmatprep.mubr.f32.mxu0 0.0
        %1308 = vmatmul.mubr.f32.gmra.mrb[0].mxu0 %v899
        %v1309 = vpop.f32.mrb[0].mxu0
        %v1310 = vadd.f32 0.0, %v1309
        %v1311 = vpop.f32.mrb[0].mxu0
        %v1312 = vadd.f32 0.0, %v1311
        %1313 = vmatprep.mubr.f32.mxu0 0.0
        %1314 = vmatmul.mubr.f32.gmra.mrb[0].mxu0 %v902
        %v1315 = vpop.f32.mrb[0].mxu0
        %v1316 = vadd.f32 0.0, %v1315
        %v1317 = vpop.f32.mrb[0].mxu0
        %v1318 = vadd.f32 0.0, %v1317
        %1319 = vmatprep.mubr.f32.mxu0 0.0
        %1320 = vmatmul.mubr.f32.gmra.mrb[0].mxu0 %v905
        %v1321 = vpop.f32.mrb[0].mxu0
        %v1322 = vadd.f32 0.0, %v1321
        %v1323 = vpop.f32.mrb[0].mxu0
        %v1324 = vadd.f32 0.0, %v1323
        %1325 = vmatprep.mubr.f32.mxu0 0.0
        %1326 = vmatmul.mubr.f32.gmra.mrb[0].mxu0 %v908
        %v1327 = vpop.f32.mrb[0].mxu0
        %v1328 = vadd.f32 0.0, %v1327
        %v1329 = vpop.f32.mrb[0].mxu0
        %v1330 = vadd.f32 0.0, %v1329
        %1331 = vmatprep.mubr.f32.mxu0 0.0
        %1332 = vmatmul.mubr.f32.gmra.mrb[0].mxu0 %v911
        %v1333 = vpop.f32.mrb[0].mxu0
        %v1334 = vadd.f32 0.0, %v1333
        %v1335 = vpop.f32.mrb[0].mxu0
        %v1336 = vadd.f32 0.0, %v1335
        %1337 = vmatprep.mubr.f32.mxu0 0.0
        %1338 = vmatmul.mubr.f32.gmra.mrb[0].mxu0 %v914
        %v1339 = vpop.f32.mrb[0].mxu0
        %v1340 = vadd.f32 0.0, %v1339
        %v1341 = vpop.f32.mrb[0].mxu0
        %v1342 = vadd.f32 0.0, %v1341
        %1343 = vmatprep.mubr.f32.mxu0 0.0
        %1344 = vmatmul.mubr.f32.gmra.mrb[0].mxu0 %v917
        %v1345 = vpop.f32.mrb[0].mxu0
        %v1346 = vadd.f32 0.0, %v1345
        %v1347 = vpop.f32.mrb[0].mxu0
        %v1348 = vadd.f32 0.0, %v1347
        %1349 = vmatprep.mubr.f32.mxu0 0.0
        %1350 = vmatmul.mubr.f32.gmra.mrb[0].mxu0 %v920
        %v1351 = vpop.f32.mrb[0].mxu0
        %v1352 = vadd.f32 0.0, %v1351
        %v1353 = vpop.f32.mrb[0].mxu0
        %v1354 = vadd.f32 0.0, %v1353
        %1355 = vmatprep.mubr.f32.mxu0 0.0
        %1356 = vmatmul.mubr.f32.gmra.mrb[0].mxu0 %v923
        %v1357 = vpop.f32.mrb[0].mxu0
        %v1358 = vadd.f32 0.0, %v1357
        %v1359 = vpop.f32.mrb[0].mxu0
        %v1360 = vadd.f32 0.0, %v1359
        %1361 = vmatprep.mubr.f32.mxu0 0.0
        %1362 = vmatmul.mubr.f32.gmra.mrb[0].mxu0 %v926
        %v1363 = vpop.f32.mrb[0].mxu0
        %v1364 = vadd.f32 0.0, %v1363
        %v1365 = vpop.f32.mrb[0].mxu0
        %v1366 = vadd.f32 0.0, %v1365
        %1367 = vmatprep.mubr.f32.mxu0 0.0
        %1368 = vmatmul.mubr.f32.gmra.mrb[0].mxu0 %v929
        %v1369 = vpop.f32.mrb[0].mxu0
        %v1370 = vadd.f32 0.0, %v1369
        %v1371 = vpop.f32.mrb[0].mxu0
        %v1372 = vadd.f32 0.0, %v1371
        %1373 = vmatprep.mubr.f32.mxu0 0.0
        %1374 = vmatmul.mubr.f32.gmra.mrb[0].mxu0 %v932
        %v1375 = vpop.f32.mrb[0].mxu0
        %v1376 = vadd.f32 0.0, %v1375
        %v1377 = vpop.f32.mrb[0].mxu0
        %v1378 = vadd.f32 0.0, %v1377
        %1379 = vmatprep.mubr.f32.mxu0 0.0
        %1380 = vmatmul.mubr.f32.gmra.mrb[0].mxu0 %v935
        %v1381 = vpop.f32.mrb[0].mxu0
        %v1382 = vadd.f32 0.0, %v1381
        %v1383 = vpop.f32.mrb[0].mxu0
        %v1384 = vadd.f32 0.0, %v1383
        %1385 = vdwg.mxu0
        %1386 = vmatprep.subr.mxu0 %v715
        %1387 = vmatpush1.msra.mxu0 %v714
        %1388 = vmatprep.subr.mxu0 %v719
        %1389 = vmatpush1.msra.mxu0 %v718
        %1390 = vmatprep.subr.mxu0 %v723
        %1391 = vmatpush1.msra.mxu0 %v722
        %1392 = vmatprep.subr.mxu0 %v727
        %1393 = vmatpush1.msra.mxu0 %v726
        %1394 = vmatprep.subr.mxu0 %v731
        %1395 = vmatpush1.msra.mxu0 %v730
        %1396 = vmatprep.subr.mxu0 %v735
        %1397 = vmatpush1.msra.mxu0 %v734
        %1398 = vmatprep.subr.mxu0 %v739
        %1399 = vmatpush1.msra.mxu0 %v738
        %1400 = vmatprep.subr.mxu0 %v743
        %1401 = vmatpush1.msra.mxu0 %v742
        %1402 = vmatprep.subr.mxu0 0.0
        %1403 = vmatpush1.msra.mxu0 0.0
        %1404 = vmatprep.subr.mxu0 0.0
        %1405 = vmatpush1.msra.mxu0 0.0
        %1406 = vmatprep.subr.mxu0 0.0
        %1407 = vmatpush1.msra.mxu0 0.0
        %1408 = vmatprep.subr.mxu0 0.0
        %1409 = vmatpush1.msra.mxu0 0.0
        %1410 = vmatprep.subr.mxu0 0.0
        %1411 = vmatpush1.msra.mxu0 0.0
        %1412 = vmatprep.subr.mxu0 0.0
        %1413 = vmatpush1.msra.mxu0 0.0
        %1414 = vmatprep.subr.mxu0 0.0
        %1415 = vmatpush1.msra.mxu0 0.0
        %1416 = vmatprep.subr.mxu0 0.0
        %1417 = vmatpush1.msra.mxu0 0.0
        %1418 = vmatprep.subr.mxu0 0.0
        %1419 = vmatpush1.msra.mxu0 0.0
        %1420 = vmatprep.subr.mxu0 0.0
        %1421 = vmatpush1.msra.mxu0 0.0
        %1422 = vmatprep.subr.mxu0 0.0
        %1423 = vmatpush1.msra.mxu0 0.0
        %1424 = vmatprep.subr.mxu0 0.0
        %1425 = vmatpush1.msra.mxu0 0.0
        %1426 = vmatprep.subr.mxu0 0.0
        %1427 = vmatpush1.msra.mxu0 0.0
        %1428 = vmatprep.subr.mxu0 0.0
        %1429 = vmatpush1.msra.mxu0 0.0
        %1430 = vmatprep.subr.mxu0 0.0
        %1431 = vmatpush1.msra.mxu0 0.0
        %1432 = vmatprep.subr.mxu0 0.0
        %1433 = vmatpush1.msra.mxu0 0.0
        %1434 = vmatprep.subr.mxu0 0.0
        %1435 = vmatpush1.msra.mxu0 0.0
        %1436 = vmatprep.subr.mxu0 0.0
        %1437 = vmatpush1.msra.mxu0 0.0
        %1438 = vmatprep.subr.mxu0 0.0
        %1439 = vmatpush1.msra.mxu0 0.0
        %1440 = vmatprep.subr.mxu0 0.0
        %1441 = vmatpush1.msra.mxu0 0.0
        %1442 = vmatprep.subr.mxu0 0.0
        %1443 = vmatpush1.msra.mxu0 0.0
        %1444 = vmatprep.subr.mxu0 0.0
        %1445 = vmatpush1.msra.mxu0 0.0
        %1446 = vmatprep.subr.mxu0 0.0
        %1447 = vmatpush1.msra.mxu0 0.0
        %1448 = vmatprep.subr.mxu0 0.0
        %1449 = vmatpush1.msra.mxu0 0.0
        %1450 = vmatprep.mubr.f32.mxu0 0.0
        %1451 = vmatmul.mubr.f32.gmra.mrb[0].mxu0 %v746
        %v1452 = vpop.f32.mrb[0].mxu0
        %v1453 = vadd.f32 0.0, %v1452
        %v1454 = vpop.f32.mrb[0].mxu0
        %v1455 = vadd.f32 0.0, %v1454
        %1456 = vmatprep.mubr.f32.mxu0 0.0
        %1457 = vmatmul.mubr.f32.gmra.mrb[0].mxu0 %v749
        %v1458 = vpop.f32.mrb[0].mxu0
        %v1459 = vadd.f32 0.0, %v1458
        %v1460 = vpop.f32.mrb[0].mxu0
        %v1461 = vadd.f32 0.0, %v1460
        %1462 = vmatprep.mubr.f32.mxu0 0.0
        %1463 = vmatmul.mubr.f32.gmra.mrb[0].mxu0 %v752
        %v1464 = vpop.f32.mrb[0].mxu0
        %v1465 = vadd.f32 0.0, %v1464
        %v1466 = vpop.f32.mrb[0].mxu0
        %v1467 = vadd.f32 0.0, %v1466
        %1468 = vmatprep.mubr.f32.mxu0 0.0
        %1469 = vmatmul.mubr.f32.gmra.mrb[0].mxu0 %v755
        %v1470 = vpop.f32.mrb[0].mxu0
        %v1471 = vadd.f32 0.0, %v1470
        %v1472 = vpop.f32.mrb[0].mxu0
        %v1473 = vadd.f32 0.0, %v1472
        %1474 = vmatprep.mubr.f32.mxu0 0.0
        %1475 = vmatmul.mubr.f32.gmra.mrb[0].mxu0 %v758
        %v1476 = vpop.f32.mrb[0].mxu0
        %v1477 = vadd.f32 0.0, %v1476
        %v1478 = vpop.f32.mrb[0].mxu0
        %v1479 = vadd.f32 0.0, %v1478
        %1480 = vmatprep.mubr.f32.mxu0 0.0
        %1481 = vmatmul.mubr.f32.gmra.mrb[0].mxu0 %v761
        %v1482 = vpop.f32.mrb[0].mxu0
        %v1483 = vadd.f32 0.0, %v1482
        %v1484 = vpop.f32.mrb[0].mxu0
        %v1485 = vadd.f32 0.0, %v1484
        %1486 = vmatprep.mubr.f32.mxu0 0.0
        %1487 = vmatmul.mubr.f32.gmra.mrb[0].mxu0 %v764
        %v1488 = vpop.f32.mrb[0].mxu0
        %v1489 = vadd.f32 0.0, %v1488
        %v1490 = vpop.f32.mrb[0].mxu0
        %v1491 = vadd.f32 0.0, %v1490
        %1492 = vmatprep.mubr.f32.mxu0 0.0
        %1493 = vmatmul.mubr.f32.gmra.mrb[0].mxu0 %v767
        %v1494 = vpop.f32.mrb[0].mxu0
        %v1495 = vadd.f32 0.0, %v1494
        %v1496 = vpop.f32.mrb[0].mxu0
        %v1497 = vadd.f32 0.0, %v1496
        %1498 = vmatprep.mubr.f32.mxu0 0.0
        %1499 = vmatmul.mubr.f32.gmra.mrb[0].mxu0 %v770
        %v1500 = vpop.f32.mrb[0].mxu0
        %v1501 = vadd.f32 0.0, %v1500
        %v1502 = vpop.f32.mrb[0].mxu0
        %v1503 = vadd.f32 0.0, %v1502
        %1504 = vmatprep.mubr.f32.mxu0 0.0
        %1505 = vmatmul.mubr.f32.gmra.mrb[0].mxu0 %v773
        %v1506 = vpop.f32.mrb[0].mxu0
        %v1507 = vadd.f32 0.0, %v1506
        %v1508 = vpop.f32.mrb[0].mxu0
        %v1509 = vadd.f32 0.0, %v1508
        %1510 = vmatprep.mubr.f32.mxu0 0.0
        %1511 = vmatmul.mubr.f32.gmra.mrb[0].mxu0 %v776
        %v1512 = vpop.f32.mrb[0].mxu0
        %v1513 = vadd.f32 0.0, %v1512
        %v1514 = vpop.f32.mrb[0].mxu0
        %v1515 = vadd.f32 0.0, %v1514
        %1516 = vmatprep.mubr.f32.mxu0 0.0
        %1517 = vmatmul.mubr.f32.gmra.mrb[0].mxu0 %v779
        %v1518 = vpop.f32.mrb[0].mxu0
        %v1519 = vadd.f32 0.0, %v1518
        %v1520 = vpop.f32.mrb[0].mxu0
        %v1521 = vadd.f32 0.0, %v1520
        %1522 = vmatprep.mubr.f32.mxu0 0.0
        %1523 = vmatmul.mubr.f32.gmra.mrb[0].mxu0 %v782
        %v1524 = vpop.f32.mrb[0].mxu0
        %v1525 = vadd.f32 0.0, %v1524
        %v1526 = vpop.f32.mrb[0].mxu0
        %v1527 = vadd.f32 0.0, %v1526
        %1528 = vmatprep.mubr.f32.mxu0 0.0
        %1529 = vmatmul.mubr.f32.gmra.mrb[0].mxu0 %v785
        %v1530 = vpop.f32.mrb[0].mxu0
        %v1531 = vadd.f32 0.0, %v1530
        %v1532 = vpop.f32.mrb[0].mxu0
        %v1533 = vadd.f32 0.0, %v1532
        %1534 = vmatprep.mubr.f32.mxu0 0.0
        %1535 = vmatmul.mubr.f32.gmra.mrb[0].mxu0 %v788
        %v1536 = vpop.f32.mrb[0].mxu0
        %v1537 = vadd.f32 0.0, %v1536
        %v1538 = vpop.f32.mrb[0].mxu0
        %v1539 = vadd.f32 0.0, %v1538
        %1540 = vmatprep.mubr.f32.mxu0 0.0
        %1541 = vmatmul.mubr.f32.gmra.mrb[0].mxu0 %v791
        %v1542 = vpop.f32.mrb[0].mxu0
        %v1543 = vadd.f32 0.0, %v1542
        %v1544 = vpop.f32.mrb[0].mxu0
        %v1545 = vadd.f32 0.0, %v1544
        %1546 = vmatprep.mubr.f32.mxu0 0.0
        %1547 = vmatmul.mubr.f32.gmra.mrb[0].mxu0 %v794
        %v1548 = vpop.f32.mrb[0].mxu0
        %v1549 = vadd.f32 0.0, %v1548
        %v1550 = vpop.f32.mrb[0].mxu0
        %v1551 = vadd.f32 0.0, %v1550
        %1552 = vmatprep.mubr.f32.mxu0 0.0
        %1553 = vmatmul.mubr.f32.gmra.mrb[0].mxu0 %v797
        %v1554 = vpop.f32.mrb[0].mxu0
        %v1555 = vadd.f32 0.0, %v1554
        %v1556 = vpop.f32.mrb[0].mxu0
        %v1557 = vadd.f32 0.0, %v1556
        %1558 = vmatprep.mubr.f32.mxu0 0.0
        %1559 = vmatmul.mubr.f32.gmra.mrb[0].mxu0 %v800
        %v1560 = vpop.f32.mrb[0].mxu0
        %v1561 = vadd.f32 0.0, %v1560
        %v1562 = vpop.f32.mrb[0].mxu0
        %v1563 = vadd.f32 0.0, %v1562
        %1564 = vmatprep.mubr.f32.mxu0 0.0
        %1565 = vmatmul.mubr.f32.gmra.mrb[0].mxu0 %v803
        %v1566 = vpop.f32.mrb[0].mxu0
        %v1567 = vadd.f32 0.0, %v1566
        %v1568 = vpop.f32.mrb[0].mxu0
        %v1569 = vadd.f32 0.0, %v1568
        %1570 = vmatprep.mubr.f32.mxu0 0.0
        %1571 = vmatmul.mubr.f32.gmra.mrb[0].mxu0 %v806
        %v1572 = vpop.f32.mrb[0].mxu0
        %v1573 = vadd.f32 0.0, %v1572
        %v1574 = vpop.f32.mrb[0].mxu0
        %v1575 = vadd.f32 0.0, %v1574
        %1576 = vmatprep.mubr.f32.mxu0 0.0
        %1577 = vmatmul.mubr.f32.gmra.mrb[0].mxu0 %v809
        %v1578 = vpop.f32.mrb[0].mxu0
        %v1579 = vadd.f32 0.0, %v1578
        %v1580 = vpop.f32.mrb[0].mxu0
        %v1581 = vadd.f32 0.0, %v1580
        %1582 = vmatprep.mubr.f32.mxu0 0.0
        %1583 = vmatmul.mubr.f32.gmra.mrb[0].mxu0 %v812
        %v1584 = vpop.f32.mrb[0].mxu0
        %v1585 = vadd.f32 0.0, %v1584
        %v1586 = vpop.f32.mrb[0].mxu0
        %v1587 = vadd.f32 0.0, %v1586
        %1588 = vmatprep.mubr.f32.mxu0 0.0
        %1589 = vmatmul.mubr.f32.gmra.mrb[0].mxu0 %v815
        %v1590 = vpop.f32.mrb[0].mxu0
        %v1591 = vadd.f32 0.0, %v1590
        %v1592 = vpop.f32.mrb[0].mxu0
        %v1593 = vadd.f32 0.0, %v1592
        %1594 = vmatprep.mubr.f32.mxu0 0.0
        %1595 = vmatmul.mubr.f32.gmra.mrb[0].mxu0 %v818
        %v1596 = vpop.f32.mrb[0].mxu0
        %v1597 = vadd.f32 0.0, %v1596
        %v1598 = vpop.f32.mrb[0].mxu0
        %v1599 = vadd.f32 0.0, %v1598
        %1600 = vmatprep.mubr.f32.mxu0 0.0
        %1601 = vmatmul.mubr.f32.gmra.mrb[0].mxu0 %v821
        %v1602 = vpop.f32.mrb[0].mxu0
        %v1603 = vadd.f32 0.0, %v1602
        %v1604 = vpop.f32.mrb[0].mxu0
        %v1605 = vadd.f32 0.0, %v1604
        %1606 = vmatprep.mubr.f32.mxu0 0.0
        %1607 = vmatmul.mubr.f32.gmra.mrb[0].mxu0 %v824
        %v1608 = vpop.f32.mrb[0].mxu0
        %v1609 = vadd.f32 0.0, %v1608
        %v1610 = vpop.f32.mrb[0].mxu0
        %v1611 = vadd.f32 0.0, %v1610
        %1612 = vmatprep.mubr.f32.mxu0 0.0
        %1613 = vmatmul.mubr.f32.gmra.mrb[0].mxu0 %v827
        %v1614 = vpop.f32.mrb[0].mxu0
        %v1615 = vadd.f32 0.0, %v1614
        %v1616 = vpop.f32.mrb[0].mxu0
        %v1617 = vadd.f32 0.0, %v1616
        %1618 = vmatprep.mubr.f32.mxu0 0.0
        %1619 = vmatmul.mubr.f32.gmra.mrb[0].mxu0 %v830
        %v1620 = vpop.f32.mrb[0].mxu0
        %v1621 = vadd.f32 0.0, %v1620
        %v1622 = vpop.f32.mrb[0].mxu0
        %v1623 = vadd.f32 0.0, %v1622
        %1624 = vmatprep.mubr.f32.mxu0 0.0
        %1625 = vmatmul.mubr.f32.gmra.mrb[0].mxu0 %v833
        %v1626 = vpop.f32.mrb[0].mxu0
        %v1627 = vadd.f32 0.0, %v1626
        %v1628 = vpop.f32.mrb[0].mxu0
        %v1629 = vadd.f32 0.0, %v1628
        %1630 = vmatprep.mubr.f32.mxu0 0.0
        %1631 = vmatmul.mubr.f32.gmra.mrb[0].mxu0 %v836
        %v1632 = vpop.f32.mrb[0].mxu0
        %v1633 = vadd.f32 0.0, %v1632
        %v1634 = vpop.f32.mrb[0].mxu0
        %v1635 = vadd.f32 0.0, %v1634
        %1636 = vmatprep.mubr.f32.mxu0 0.0
        %1637 = vmatmul.mubr.f32.gmra.mrb[0].mxu0 %v839
        %v1638 = vpop.f32.mrb[0].mxu0
        %v1639 = vadd.f32 0.0, %v1638
        %v1640 = vpop.f32.mrb[0].mxu0
        %v1641 = vadd.f32 0.0, %v1640
        %1642 = vmatprep.mubr.f32.mxu0 0.0
        %1643 = vmatmul.mubr.f32.gmra.mrb[0].mxu0 %v842
        %v1644 = vpop.f32.mrb[0].mxu0
        %v1645 = vadd.f32 0.0, %v1644
        %v1646 = vpop.f32.mrb[0].mxu0
        %v1647 = vadd.f32 0.0, %v1646
        %1648 = vmatprep.mubr.f32.mxu0 0.0
        %1649 = vmatmul.mubr.f32.gmra.mrb[0].mxu0 %v845
        %v1650 = vpop.f32.mrb[0].mxu0
        %v1651 = vadd.f32 0.0, %v1650
        %v1652 = vpop.f32.mrb[0].mxu0
        %v1653 = vadd.f32 0.0, %v1652
        %1654 = vmatprep.mubr.f32.mxu0 0.0
        %1655 = vmatmul.mubr.f32.gmra.mrb[0].mxu0 %v848
        %v1656 = vpop.f32.mrb[0].mxu0
        %v1657 = vadd.f32 0.0, %v1656
        %v1658 = vpop.f32.mrb[0].mxu0
        %v1659 = vadd.f32 0.0, %v1658
        %1660 = vmatprep.mubr.f32.mxu0 0.0
        %1661 = vmatmul.mubr.f32.gmra.mrb[0].mxu0 %v851
        %v1662 = vpop.f32.mrb[0].mxu0
        %v1663 = vadd.f32 0.0, %v1662
        %v1664 = vpop.f32.mrb[0].mxu0
        %v1665 = vadd.f32 0.0, %v1664
        %1666 = vmatprep.mubr.f32.mxu0 0.0
        %1667 = vmatmul.mubr.f32.gmra.mrb[0].mxu0 %v854
        %v1668 = vpop.f32.mrb[0].mxu0
        %v1669 = vadd.f32 0.0, %v1668
        %v1670 = vpop.f32.mrb[0].mxu0
        %v1671 = vadd.f32 0.0, %v1670
        %1672 = vmatprep.mubr.f32.mxu0 0.0
        %1673 = vmatmul.mubr.f32.gmra.mrb[0].mxu0 %v857
        %v1674 = vpop.f32.mrb[0].mxu0
        %v1675 = vadd.f32 0.0, %v1674
        %v1676 = vpop.f32.mrb[0].mxu0
        %v1677 = vadd.f32 0.0, %v1676
        %1678 = vmatprep.mubr.f32.mxu0 0.0
        %1679 = vmatmul.mubr.f32.gmra.mrb[0].mxu0 %v860
        %v1680 = vpop.f32.mrb[0].mxu0
        %v1681 = vadd.f32 0.0, %v1680
        %v1682 = vpop.f32.mrb[0].mxu0
        %v1683 = vadd.f32 0.0, %v1682
        %1684 = vmatprep.mubr.f32.mxu0 0.0
        %1685 = vmatmul.mubr.f32.gmra.mrb[0].mxu0 %v863
        %v1686 = vpop.f32.mrb[0].mxu0
        %v1687 = vadd.f32 0.0, %v1686
        %v1688 = vpop.f32.mrb[0].mxu0
        %v1689 = vadd.f32 0.0, %v1688
        %1690 = vmatprep.mubr.f32.mxu0 0.0
        %1691 = vmatmul.mubr.f32.gmra.mrb[0].mxu0 %v866
        %v1692 = vpop.f32.mrb[0].mxu0
        %v1693 = vadd.f32 0.0, %v1692
        %v1694 = vpop.f32.mrb[0].mxu0
        %v1695 = vadd.f32 0.0, %v1694
        %1696 = vmatprep.mubr.f32.mxu0 0.0
        %1697 = vmatmul.mubr.f32.gmra.mrb[0].mxu0 %v869
        %v1698 = vpop.f32.mrb[0].mxu0
        %v1699 = vadd.f32 0.0, %v1698
        %v1700 = vpop.f32.mrb[0].mxu0
        %v1701 = vadd.f32 0.0, %v1700
        %1702 = vmatprep.mubr.f32.mxu0 0.0
        %1703 = vmatmul.mubr.f32.gmra.mrb[0].mxu0 %v872
        %v1704 = vpop.f32.mrb[0].mxu0
        %v1705 = vadd.f32 0.0, %v1704
        %v1706 = vpop.f32.mrb[0].mxu0
        %v1707 = vadd.f32 0.0, %v1706
        %1708 = vmatprep.mubr.f32.mxu0 0.0
        %1709 = vmatmul.mubr.f32.gmra.mrb[0].mxu0 %v875
        %v1710 = vpop.f32.mrb[0].mxu0
        %v1711 = vadd.f32 0.0, %v1710
        %v1712 = vpop.f32.mrb[0].mxu0
        %v1713 = vadd.f32 0.0, %v1712
        %1714 = vmatprep.mubr.f32.mxu0 0.0
        %1715 = vmatmul.mubr.f32.gmra.mrb[0].mxu0 %v878
        %v1716 = vpop.f32.mrb[0].mxu0
        %v1717 = vadd.f32 0.0, %v1716
        %v1718 = vpop.f32.mrb[0].mxu0
        %v1719 = vadd.f32 0.0, %v1718
        %1720 = vmatprep.mubr.f32.mxu0 0.0
        %1721 = vmatmul.mubr.f32.gmra.mrb[0].mxu0 %v881
        %v1722 = vpop.f32.mrb[0].mxu0
        %v1723 = vadd.f32 0.0, %v1722
        %v1724 = vpop.f32.mrb[0].mxu0
        %v1725 = vadd.f32 0.0, %v1724
        %1726 = vmatprep.mubr.f32.mxu0 0.0
        %1727 = vmatmul.mubr.f32.gmra.mrb[0].mxu0 %v884
        %v1728 = vpop.f32.mrb[0].mxu0
        %v1729 = vadd.f32 0.0, %v1728
        %v1730 = vpop.f32.mrb[0].mxu0
        %v1731 = vadd.f32 0.0, %v1730
        %1732 = vmatprep.mubr.f32.mxu0 0.0
        %1733 = vmatmul.mubr.f32.gmra.mrb[0].mxu0 %v887
        %v1734 = vpop.f32.mrb[0].mxu0
        %v1735 = vadd.f32 0.0, %v1734
        %v1736 = vpop.f32.mrb[0].mxu0
        %v1737 = vadd.f32 0.0, %v1736
        %1738 = vmatprep.mubr.f32.mxu0 0.0
        %1739 = vmatmul.mubr.f32.gmra.mrb[0].mxu0 %v890
        %v1740 = vpop.f32.mrb[0].mxu0
        %v1741 = vadd.f32 0.0, %v1740
        %v1742 = vpop.f32.mrb[0].mxu0
        %v1743 = vadd.f32 0.0, %v1742
        %1744 = vmatprep.mubr.f32.mxu0 0.0
        %1745 = vmatmul.mubr.f32.gmra.mrb[0].mxu0 %v893
        %v1746 = vpop.f32.mrb[0].mxu0
        %v1747 = vadd.f32 0.0, %v1746
        %v1748 = vpop.f32.mrb[0].mxu0
        %v1749 = vadd.f32 0.0, %v1748
        %1750 = vmatprep.mubr.f32.mxu0 0.0
        %1751 = vmatmul.mubr.f32.gmra.mrb[0].mxu0 %v896
        %v1752 = vpop.f32.mrb[0].mxu0
        %v1753 = vadd.f32 0.0, %v1752
        %v1754 = vpop.f32.mrb[0].mxu0
        %v1755 = vadd.f32 0.0, %v1754
        %1756 = vmatprep.mubr.f32.mxu0 0.0
        %1757 = vmatmul.mubr.f32.gmra.mrb[0].mxu0 %v899
        %v1758 = vpop.f32.mrb[0].mxu0
        %v1759 = vadd.f32 0.0, %v1758
        %v1760 = vpop.f32.mrb[0].mxu0
        %v1761 = vadd.f32 0.0, %v1760
        %1762 = vmatprep.mubr.f32.mxu0 0.0
        %1763 = vmatmul.mubr.f32.gmra.mrb[0].mxu0 %v902
        %v1764 = vpop.f32.mrb[0].mxu0
        %v1765 = vadd.f32 0.0, %v1764
        %v1766 = vpop.f32.mrb[0].mxu0
        %v1767 = vadd.f32 0.0, %v1766
        %1768 = vmatprep.mubr.f32.mxu0 0.0
        %1769 = vmatmul.mubr.f32.gmra.mrb[0].mxu0 %v905
        %v1770 = vpop.f32.mrb[0].mxu0
        %v1771 = vadd.f32 0.0, %v1770
        %v1772 = vpop.f32.mrb[0].mxu0
        %v1773 = vadd.f32 0.0, %v1772
        %1774 = vmatprep.mubr.f32.mxu0 0.0
        %1775 = vmatmul.mubr.f32.gmra.mrb[0].mxu0 %v908
        %v1776 = vpop.f32.mrb[0].mxu0
        %v1777 = vadd.f32 0.0, %v1776
        %v1778 = vpop.f32.mrb[0].mxu0
        %v1779 = vadd.f32 0.0, %v1778
        %1780 = vmatprep.mubr.f32.mxu0 0.0
        %1781 = vmatmul.mubr.f32.gmra.mrb[0].mxu0 %v911
        %v1782 = vpop.f32.mrb[0].mxu0
        %v1783 = vadd.f32 0.0, %v1782
        %v1784 = vpop.f32.mrb[0].mxu0
        %v1785 = vadd.f32 0.0, %v1784
        %1786 = vmatprep.mubr.f32.mxu0 0.0
        %1787 = vmatmul.mubr.f32.gmra.mrb[0].mxu0 %v914
        %v1788 = vpop.f32.mrb[0].mxu0
        %v1789 = vadd.f32 0.0, %v1788
        %v1790 = vpop.f32.mrb[0].mxu0
        %v1791 = vadd.f32 0.0, %v1790
        %1792 = vmatprep.mubr.f32.mxu0 0.0
        %1793 = vmatmul.mubr.f32.gmra.mrb[0].mxu0 %v917
        %v1794 = vpop.f32.mrb[0].mxu0
        %v1795 = vadd.f32 0.0, %v1794
        %v1796 = vpop.f32.mrb[0].mxu0
        %v1797 = vadd.f32 0.0, %v1796
        %1798 = vmatprep.mubr.f32.mxu0 0.0
        %1799 = vmatmul.mubr.f32.gmra.mrb[0].mxu0 %v920
        %v1800 = vpop.f32.mrb[0].mxu0
        %v1801 = vadd.f32 0.0, %v1800
        %v1802 = vpop.f32.mrb[0].mxu0
        %v1803 = vadd.f32 0.0, %v1802
        %1804 = vmatprep.mubr.f32.mxu0 0.0
        %1805 = vmatmul.mubr.f32.gmra.mrb[0].mxu0 %v923
        %v1806 = vpop.f32.mrb[0].mxu0
        %v1807 = vadd.f32 0.0, %v1806
        %v1808 = vpop.f32.mrb[0].mxu0
        %v1809 = vadd.f32 0.0, %v1808
        %1810 = vmatprep.mubr.f32.mxu0 0.0
        %1811 = vmatmul.mubr.f32.gmra.mrb[0].mxu0 %v926
        %v1812 = vpop.f32.mrb[0].mxu0
        %v1813 = vadd.f32 0.0, %v1812
        %v1814 = vpop.f32.mrb[0].mxu0
        %v1815 = vadd.f32 0.0, %v1814
        %1816 = vmatprep.mubr.f32.mxu0 0.0
        %1817 = vmatmul.mubr.f32.gmra.mrb[0].mxu0 %v929
        %v1818 = vpop.f32.mrb[0].mxu0
        %v1819 = vadd.f32 0.0, %v1818
        %v1820 = vpop.f32.mrb[0].mxu0
        %v1821 = vadd.f32 0.0, %v1820
        %1822 = vmatprep.mubr.f32.mxu0 0.0
        %1823 = vmatmul.mubr.f32.gmra.mrb[0].mxu0 %v932
        %v1824 = vpop.f32.mrb[0].mxu0
        %v1825 = vadd.f32 0.0, %v1824
        %v1826 = vpop.f32.mrb[0].mxu0
        %v1827 = vadd.f32 0.0, %v1826
        %1828 = vmatprep.mubr.f32.mxu0 0.0
        %1829 = vmatmul.mubr.f32.gmra.mrb[0].mxu0 %v935
        %v1830 = vpop.f32.mrb[0].mxu0
        %v1831 = vadd.f32 0.0, %v1830
        %v1832 = vpop.f32.mrb[0].mxu0
        %v1833 = vadd.f32 0.0, %v1832
        %1834 = vdwg.mxu0
        %v1836 = vlaneseq
        %v1837 = vshrl.u32 %v1836, 7
        %v1838 = vsub.s32 0, %v1837
        %v1839 = vrot.slane %v710, %v1838
        %v1840 = vlaneseq
        %v1841 = vshrl.u32 %v1840, 7
        %v1842 = vsub.s32 1, %v1841
        %v1843 = vrot.slane %v710, %v1842
        %v1844 = vlaneseq
        %v1845 = vshrl.u32 %v1844, 7
        %v1846 = vsub.s32 2, %v1845
        %v1847 = vrot.slane %v710, %v1846
        %v1848 = vlaneseq
        %v1849 = vshrl.u32 %v1848, 7
        %v1850 = vsub.s32 3, %v1849
        %v1851 = vrot.slane %v710, %v1850
        %v1856 = vadd.f32 %v1839, %v1004
        %v1857 = vadd.f32 %v1843, %v1006
        %v1858 = vadd.f32 %v1847, %v1453
        %v1859 = vadd.f32 %v1851, %v1455
        %v1860 = vadd.f32 %v1839, %v1010
        %v1861 = vadd.f32 %v1843, %v1012
        %v1862 = vadd.f32 %v1847, %v1459
        %v1863 = vadd.f32 %v1851, %v1461
        %v1864 = vadd.f32 %v1839, %v1016
        %v1865 = vadd.f32 %v1843, %v1018
        %v1866 = vadd.f32 %v1847, %v1465
        %v1867 = vadd.f32 %v1851, %v1467
        %v1868 = vadd.f32 %v1839, %v1022
        %v1869 = vadd.f32 %v1843, %v1024
        %v1870 = vadd.f32 %v1847, %v1471
        %v1871 = vadd.f32 %v1851, %v1473
        %v1872 = vadd.f32 %v1839, %v1028
        %v1873 = vadd.f32 %v1843, %v1030
        %v1874 = vadd.f32 %v1847, %v1477
        %v1875 = vadd.f32 %v1851, %v1479
        %v1876 = vadd.f32 %v1839, %v1034
        %v1877 = vadd.f32 %v1843, %v1036
        %v1878 = vadd.f32 %v1847, %v1483
        %v1879 = vadd.f32 %v1851, %v1485
        %v1880 = vadd.f32 %v1839, %v1040
        %v1881 = vadd.f32 %v1843, %v1042
        %v1882 = vadd.f32 %v1847, %v1489
        %v1883 = vadd.f32 %v1851, %v1491
        %v1884 = vadd.f32 %v1839, %v1046
        %v1885 = vadd.f32 %v1843, %v1048
        %v1886 = vadd.f32 %v1847, %v1495
        %v1887 = vadd.f32 %v1851, %v1497
        %v1888 = vadd.f32 %v1839, %v1052
        %v1889 = vadd.f32 %v1843, %v1054
        %v1890 = vadd.f32 %v1847, %v1501
        %v1891 = vadd.f32 %v1851, %v1503
        %v1892 = vadd.f32 %v1839, %v1058
        %v1893 = vadd.f32 %v1843, %v1060
        %v1894 = vadd.f32 %v1847, %v1507
        %v1895 = vadd.f32 %v1851, %v1509
        %v1896 = vadd.f32 %v1839, %v1064
        %v1897 = vadd.f32 %v1843, %v1066
        %v1898 = vadd.f32 %v1847, %v1513
        %v1899 = vadd.f32 %v1851, %v1515
        %v1900 = vadd.f32 %v1839, %v1070
        %v1901 = vadd.f32 %v1843, %v1072
        %v1902 = vadd.f32 %v1847, %v1519
        %v1903 = vadd.f32 %v1851, %v1521
        %v1904 = vadd.f32 %v1839, %v1076
        %v1905 = vadd.f32 %v1843, %v1078
        %v1906 = vadd.f32 %v1847, %v1525
        %v1907 = vadd.f32 %v1851, %v1527
        %v1908 = vadd.f32 %v1839, %v1082
        %v1909 = vadd.f32 %v1843, %v1084
        %v1910 = vadd.f32 %v1847, %v1531
        %v1911 = vadd.f32 %v1851, %v1533
        %v1912 = vadd.f32 %v1839, %v1088
        %v1913 = vadd.f32 %v1843, %v1090
        %v1914 = vadd.f32 %v1847, %v1537
        %v1915 = vadd.f32 %v1851, %v1539
        %v1916 = vadd.f32 %v1839, %v1094
        %v1917 = vadd.f32 %v1843, %v1096
        %v1918 = vadd.f32 %v1847, %v1543
        %v1919 = vadd.f32 %v1851, %v1545
        %v1920 = vadd.f32 %v1839, %v1100
        %v1921 = vadd.f32 %v1843, %v1102
        %v1922 = vadd.f32 %v1847, %v1549
        %v1923 = vadd.f32 %v1851, %v1551
        %v1924 = vadd.f32 %v1839, %v1106
        %v1925 = vadd.f32 %v1843, %v1108
        %v1926 = vadd.f32 %v1847, %v1555
        %v1927 = vadd.f32 %v1851, %v1557
        %v1928 = vadd.f32 %v1839, %v1112
        %v1929 = vadd.f32 %v1843, %v1114
        %v1930 = vadd.f32 %v1847, %v1561
        %v1931 = vadd.f32 %v1851, %v1563
        %v1932 = vadd.f32 %v1839, %v1118
        %v1933 = vadd.f32 %v1843, %v1120
        %v1934 = vadd.f32 %v1847, %v1567
        %v1935 = vadd.f32 %v1851, %v1569
        %v1936 = vadd.f32 %v1839, %v1124
        %v1937 = vadd.f32 %v1843, %v1126
        %v1938 = vadd.f32 %v1847, %v1573
        %v1939 = vadd.f32 %v1851, %v1575
        %v1940 = vadd.f32 %v1839, %v1130
        %v1941 = vadd.f32 %v1843, %v1132
        %v1942 = vadd.f32 %v1847, %v1579
        %v1943 = vadd.f32 %v1851, %v1581
        %v1944 = vadd.f32 %v1839, %v1136
        %v1945 = vadd.f32 %v1843, %v1138
        %v1946 = vadd.f32 %v1847, %v1585
        %v1947 = vadd.f32 %v1851, %v1587
        %v1948 = vadd.f32 %v1839, %v1142
        %v1949 = vadd.f32 %v1843, %v1144
        %v1950 = vadd.f32 %v1847, %v1591
        %v1951 = vadd.f32 %v1851, %v1593
        %v1952 = vadd.f32 %v1839, %v1148
        %v1953 = vadd.f32 %v1843, %v1150
        %v1954 = vadd.f32 %v1847, %v1597
        %v1955 = vadd.f32 %v1851, %v1599
        %v1956 = vadd.f32 %v1839, %v1154
        %v1957 = vadd.f32 %v1843, %v1156
        %v1958 = vadd.f32 %v1847, %v1603
        %v1959 = vadd.f32 %v1851, %v1605
        %v1960 = vadd.f32 %v1839, %v1160
        %v1961 = vadd.f32 %v1843, %v1162
        %v1962 = vadd.f32 %v1847, %v1609
        %v1963 = vadd.f32 %v1851, %v1611
        %v1964 = vadd.f32 %v1839, %v1166
        %v1965 = vadd.f32 %v1843, %v1168
        %v1966 = vadd.f32 %v1847, %v1615
        %v1967 = vadd.f32 %v1851, %v1617
        %v1968 = vadd.f32 %v1839, %v1172
        %v1969 = vadd.f32 %v1843, %v1174
        %v1970 = vadd.f32 %v1847, %v1621
        %v1971 = vadd.f32 %v1851, %v1623
        %v1972 = vadd.f32 %v1839, %v1178
        %v1973 = vadd.f32 %v1843, %v1180
        %v1974 = vadd.f32 %v1847, %v1627
        %v1975 = vadd.f32 %v1851, %v1629
        %v1976 = vadd.f32 %v1839, %v1184
        %v1977 = vadd.f32 %v1843, %v1186
        %v1978 = vadd.f32 %v1847, %v1633
        %v1979 = vadd.f32 %v1851, %v1635
        %v1980 = vadd.f32 %v1839, %v1190
        %v1981 = vadd.f32 %v1843, %v1192
        %v1982 = vadd.f32 %v1847, %v1639
        %v1983 = vadd.f32 %v1851, %v1641
        %v1984 = vadd.f32 %v1839, %v1196
        %v1985 = vadd.f32 %v1843, %v1198
        %v1986 = vadd.f32 %v1847, %v1645
        %v1987 = vadd.f32 %v1851, %v1647
        %v1988 = vadd.f32 %v1839, %v1202
        %v1989 = vadd.f32 %v1843, %v1204
        %v1990 = vadd.f32 %v1847, %v1651
        %v1991 = vadd.f32 %v1851, %v1653
        %v1992 = vadd.f32 %v1839, %v1208
        %v1993 = vadd.f32 %v1843, %v1210
        %v1994 = vadd.f32 %v1847, %v1657
        %v1995 = vadd.f32 %v1851, %v1659
        %v1996 = vadd.f32 %v1839, %v1214
        %v1997 = vadd.f32 %v1843, %v1216
        %v1998 = vadd.f32 %v1847, %v1663
        %v1999 = vadd.f32 %v1851, %v1665
        %v2000 = vadd.f32 %v1839, %v1220
        %v2001 = vadd.f32 %v1843, %v1222
        %v2002 = vadd.f32 %v1847, %v1669
        %v2003 = vadd.f32 %v1851, %v1671
        %v2004 = vadd.f32 %v1839, %v1226
        %v2005 = vadd.f32 %v1843, %v1228
        %v2006 = vadd.f32 %v1847, %v1675
        %v2007 = vadd.f32 %v1851, %v1677
        %v2008 = vadd.f32 %v1839, %v1232
        %v2009 = vadd.f32 %v1843, %v1234
        %v2010 = vadd.f32 %v1847, %v1681
        %v2011 = vadd.f32 %v1851, %v1683
        %v2012 = vadd.f32 %v1839, %v1238
        %v2013 = vadd.f32 %v1843, %v1240
        %v2014 = vadd.f32 %v1847, %v1687
        %v2015 = vadd.f32 %v1851, %v1689
        %v2016 = vadd.f32 %v1839, %v1244
        %v2017 = vadd.f32 %v1843, %v1246
        %v2018 = vadd.f32 %v1847, %v1693
        %v2019 = vadd.f32 %v1851, %v1695
        %v2020 = vadd.f32 %v1839, %v1250
        %v2021 = vadd.f32 %v1843, %v1252
        %v2022 = vadd.f32 %v1847, %v1699
        %v2023 = vadd.f32 %v1851, %v1701
        %v2024 = vadd.f32 %v1839, %v1256
        %v2025 = vadd.f32 %v1843, %v1258
        %v2026 = vadd.f32 %v1847, %v1705
        %v2027 = vadd.f32 %v1851, %v1707
        %v2028 = vadd.f32 %v1839, %v1262
        %v2029 = vadd.f32 %v1843, %v1264
        %v2030 = vadd.f32 %v1847, %v1711
        %v2031 = vadd.f32 %v1851, %v1713
        %v2032 = vadd.f32 %v1839, %v1268
        %v2033 = vadd.f32 %v1843, %v1270
        %v2034 = vadd.f32 %v1847, %v1717
        %v2035 = vadd.f32 %v1851, %v1719
        %v2036 = vadd.f32 %v1839, %v1274
        %v2037 = vadd.f32 %v1843, %v1276
        %v2038 = vadd.f32 %v1847, %v1723
        %v2039 = vadd.f32 %v1851, %v1725
        %v2040 = vadd.f32 %v1839, %v1280
        %v2041 = vadd.f32 %v1843, %v1282
        %v2042 = vadd.f32 %v1847, %v1729
        %v2043 = vadd.f32 %v1851, %v1731
        %v2044 = vadd.f32 %v1839, %v1286
        %v2045 = vadd.f32 %v1843, %v1288
        %v2046 = vadd.f32 %v1847, %v1735
        %v2047 = vadd.f32 %v1851, %v1737
        %v2048 = vadd.f32 %v1839, %v1292
        %v2049 = vadd.f32 %v1843, %v1294
        %v2050 = vadd.f32 %v1847, %v1741
        %v2051 = vadd.f32 %v1851, %v1743
        %v2052 = vadd.f32 %v1839, %v1298
        %v2053 = vadd.f32 %v1843, %v1300
        %v2054 = vadd.f32 %v1847, %v1747
        %v2055 = vadd.f32 %v1851, %v1749
        %v2056 = vadd.f32 %v1839, %v1304
        %v2057 = vadd.f32 %v1843, %v1306
        %v2058 = vadd.f32 %v1847, %v1753
        %v2059 = vadd.f32 %v1851, %v1755
        %v2060 = vadd.f32 %v1839, %v1310
        %v2061 = vadd.f32 %v1843, %v1312
        %v2062 = vadd.f32 %v1847, %v1759
        %v2063 = vadd.f32 %v1851, %v1761
        %v2064 = vadd.f32 %v1839, %v1316
        %v2065 = vadd.f32 %v1843, %v1318
        %v2066 = vadd.f32 %v1847, %v1765
        %v2067 = vadd.f32 %v1851, %v1767
        %v2068 = vadd.f32 %v1839, %v1322
        %v2069 = vadd.f32 %v1843, %v1324
        %v2070 = vadd.f32 %v1847, %v1771
        %v2071 = vadd.f32 %v1851, %v1773
        %v2072 = vadd.f32 %v1839, %v1328
        %v2073 = vadd.f32 %v1843, %v1330
        %v2074 = vadd.f32 %v1847, %v1777
        %v2075 = vadd.f32 %v1851, %v1779
        %v2076 = vadd.f32 %v1839, %v1334
        %v2077 = vadd.f32 %v1843, %v1336
        %v2078 = vadd.f32 %v1847, %v1783
        %v2079 = vadd.f32 %v1851, %v1785
        %v2080 = vadd.f32 %v1839, %v1340
        %v2081 = vadd.f32 %v1843, %v1342
        %v2082 = vadd.f32 %v1847, %v1789
        %v2083 = vadd.f32 %v1851, %v1791
        %v2084 = vadd.f32 %v1839, %v1346
        %v2085 = vadd.f32 %v1843, %v1348
        %v2086 = vadd.f32 %v1847, %v1795
        %v2087 = vadd.f32 %v1851, %v1797
        %v2088 = vadd.f32 %v1839, %v1352
        %v2089 = vadd.f32 %v1843, %v1354
        %v2090 = vadd.f32 %v1847, %v1801
        %v2091 = vadd.f32 %v1851, %v1803
        %v2092 = vadd.f32 %v1839, %v1358
        %v2093 = vadd.f32 %v1843, %v1360
        %v2094 = vadd.f32 %v1847, %v1807
        %v2095 = vadd.f32 %v1851, %v1809
        %v2096 = vadd.f32 %v1839, %v1364
        %v2097 = vadd.f32 %v1843, %v1366
        %v2098 = vadd.f32 %v1847, %v1813
        %v2099 = vadd.f32 %v1851, %v1815
        %v2100 = vadd.f32 %v1839, %v1370
        %v2101 = vadd.f32 %v1843, %v1372
        %v2102 = vadd.f32 %v1847, %v1819
        %v2103 = vadd.f32 %v1851, %v1821
        %v2104 = vadd.f32 %v1839, %v1376
        %v2105 = vadd.f32 %v1843, %v1378
        %v2106 = vadd.f32 %v1847, %v1825
        %v2107 = vadd.f32 %v1851, %v1827
        %v2108 = vadd.f32 %v1839, %v1382
        %v2109 = vadd.f32 %v1843, %v1384
        %v2110 = vadd.f32 %v1847, %v1831
        %v2111 = vadd.f32 %v1851, %v1833
        %v2112 = vld [vmem:[%s1] sm:$0xff]
        %v2113 = vld [vmem:[%s1 + $0x8] sm:$0xff]
        %v2114 = vld [vmem:[%s1 + $0x10] sm:$0xff]
        %v2115 = vld [vmem:[%s1 + $0x18] sm:$0xff]
        %v2116 = vld [vmem:[%s1 + $0x20] sm:$0xff]
        %v2117 = vld [vmem:[%s1 + $0x28] sm:$0xff]
        %v2118 = vld [vmem:[%s1 + $0x30] sm:$0xff]
        %v2119 = vld [vmem:[%s1 + $0x38] sm:$0xff]
        %v2120 = vld [vmem:[%s1 + $0x40] sm:$0xff]
        %v2121 = vld [vmem:[%s1 + $0x48] sm:$0xff]
        %v2122 = vld [vmem:[%s1 + $0x50] sm:$0xff]
        %v2123 = vld [vmem:[%s1 + $0x58] sm:$0xff]
        %v2124 = vld [vmem:[%s1 + $0x60] sm:$0xff]
        %v2125 = vld [vmem:[%s1 + $0x68] sm:$0xff]
        %v2126 = vld [vmem:[%s1 + $0x70] sm:$0xff]
        %v2127 = vld [vmem:[%s1 + $0x78] sm:$0xff]
        %v2128 = vld [vmem:[%s1 + $0x80] sm:$0xff]
        %v2129 = vld [vmem:[%s1 + $0x88] sm:$0xff]
        %v2130 = vld [vmem:[%s1 + $0x90] sm:$0xff]
        %v2131 = vld [vmem:[%s1 + $0x98] sm:$0xff]
        %v2132 = vld [vmem:[%s1 + $0xa0] sm:$0xff]
        %v2133 = vld [vmem:[%s1 + $0xa8] sm:$0xff]
        %v2134 = vld [vmem:[%s1 + $0xb0] sm:$0xff]
        %v2135 = vld [vmem:[%s1 + $0xb8] sm:$0xff]
        %v2136 = vld [vmem:[%s1 + $0xc0] sm:$0xff]
        %v2137 = vld [vmem:[%s1 + $0xc8] sm:$0xff]
        %v2138 = vld [vmem:[%s1 + $0xd0] sm:$0xff]
        %v2139 = vld [vmem:[%s1 + $0xd8] sm:$0xff]
        %v2140 = vld [vmem:[%s1 + $0xe0] sm:$0xff]
        %v2141 = vld [vmem:[%s1 + $0xe8] sm:$0xff]
        %v2142 = vld [vmem:[%s1 + $0xf0] sm:$0xff]
        %v2143 = vld [vmem:[%s1 + $0xf8] sm:$0xff]
        %v2145 = vsel %vm744, 0.0, 0
        %2147 = vmatprep.subr.mxu0 %v2113
        %2148 = vmatpush1.msra.mxu0 %v2112
        %2149 = vmatprep.subr.mxu0 %v2117
        %2150 = vmatpush1.msra.mxu0 %v2116
        %2151 = vmatprep.subr.mxu0 %v2121
        %2152 = vmatpush1.msra.mxu0 %v2120
        %2153 = vmatprep.subr.mxu0 %v2125
        %2154 = vmatpush1.msra.mxu0 %v2124
        %2155 = vmatprep.subr.mxu0 %v2129
        %2156 = vmatpush1.msra.mxu0 %v2128
        %2157 = vmatprep.subr.mxu0 %v2133
        %2158 = vmatpush1.msra.mxu0 %v2132
        %2159 = vmatprep.subr.mxu0 %v2137
        %2160 = vmatpush1.msra.mxu0 %v2136
        %2161 = vmatprep.subr.mxu0 %v2141
        %2162 = vmatpush1.msra.mxu0 %v2140
        %2163 = vmatprep.subr.mxu0 0.0
        %2164 = vmatpush1.msra.mxu0 0.0
        %2165 = vmatprep.subr.mxu0 0.0
        %2166 = vmatpush1.msra.mxu0 0.0
        %2167 = vmatprep.subr.mxu0 0.0
        %2168 = vmatpush1.msra.mxu0 0.0
        %2169 = vmatprep.subr.mxu0 0.0
        %2170 = vmatpush1.msra.mxu0 0.0
        %2171 = vmatprep.subr.mxu0 0.0
        %2172 = vmatpush1.msra.mxu0 0.0
        %2173 = vmatprep.subr.mxu0 0.0
        %2174 = vmatpush1.msra.mxu0 0.0
        %2175 = vmatprep.subr.mxu0 0.0
        %2176 = vmatpush1.msra.mxu0 0.0
        %2177 = vmatprep.subr.mxu0 0.0
        %2178 = vmatpush1.msra.mxu0 0.0
        %2179 = vmatprep.subr.mxu0 0.0
        %2180 = vmatpush1.msra.mxu0 0.0
        %2181 = vmatprep.subr.mxu0 0.0
        %2182 = vmatpush1.msra.mxu0 0.0
        %2183 = vmatprep.subr.mxu0 0.0
        %2184 = vmatpush1.msra.mxu0 0.0
        %2185 = vmatprep.subr.mxu0 0.0
        %2186 = vmatpush1.msra.mxu0 0.0
        %2187 = vmatprep.subr.mxu0 0.0
        %2188 = vmatpush1.msra.mxu0 0.0
        %2189 = vmatprep.subr.mxu0 0.0
        %2190 = vmatpush1.msra.mxu0 0.0
        %2191 = vmatprep.subr.mxu0 0.0
        %2192 = vmatpush1.msra.mxu0 0.0
        %2193 = vmatprep.subr.mxu0 0.0
        %2194 = vmatpush1.msra.mxu0 0.0
        %2195 = vmatprep.subr.mxu0 0.0
        %2196 = vmatpush1.msra.mxu0 0.0
        %2197 = vmatprep.subr.mxu0 0.0
        %2198 = vmatpush1.msra.mxu0 0.0
        %2199 = vmatprep.subr.mxu0 0.0
        %2200 = vmatpush1.msra.mxu0 0.0
        %2201 = vmatprep.subr.mxu0 0.0
        %2202 = vmatpush1.msra.mxu0 0.0
        %2203 = vmatprep.subr.mxu0 0.0
        %2204 = vmatpush1.msra.mxu0 0.0
        %2205 = vmatprep.subr.mxu0 0.0
        %2206 = vmatpush1.msra.mxu0 0.0
        %2207 = vmatprep.subr.mxu0 0.0
        %2208 = vmatpush1.msra.mxu0 0.0
        %2209 = vmatprep.subr.mxu0 0.0
        %2210 = vmatpush1.msra.mxu0 0.0
        %2211 = vmatprep.mubr.f32.mxu0 0.0
        %2212 = vmatmul.mubr.f32.gmra.mrb[0].mxu0 %v2145
        %v2213 = vpop.f32.mrb[0].mxu0
        %v2214 = vadd.f32 0.0, %v2213
        %v2215 = vpop.f32.mrb[0].mxu0
        %v2216 = vadd.f32 0.0, %v2215
        %2217 = vmatprep.mubr.f32.mxu0 0.0
        %2218 = vmatmul.mubr.f32.gmra.mrb[0].mxu0 %v746
        %v2219 = vpop.f32.mrb[0].mxu0
        %v2220 = vadd.f32 0.0, %v2219
        %v2221 = vpop.f32.mrb[0].mxu0
        %v2222 = vadd.f32 0.0, %v2221
        %2223 = vmatprep.mubr.f32.mxu0 0.0
        %2224 = vmatmul.mubr.f32.gmra.mrb[0].mxu0 %v749
        %v2225 = vpop.f32.mrb[0].mxu0
        %v2226 = vadd.f32 0.0, %v2225
        %v2227 = vpop.f32.mrb[0].mxu0
        %v2228 = vadd.f32 0.0, %v2227
        %2229 = vmatprep.mubr.f32.mxu0 0.0
        %2230 = vmatmul.mubr.f32.gmra.mrb[0].mxu0 %v752
        %v2231 = vpop.f32.mrb[0].mxu0
        %v2232 = vadd.f32 0.0, %v2231
        %v2233 = vpop.f32.mrb[0].mxu0
        %v2234 = vadd.f32 0.0, %v2233
        %2235 = vmatprep.mubr.f32.mxu0 0.0
        %2236 = vmatmul.mubr.f32.gmra.mrb[0].mxu0 %v755
        %v2237 = vpop.f32.mrb[0].mxu0
        %v2238 = vadd.f32 0.0, %v2237
        %v2239 = vpop.f32.mrb[0].mxu0
        %v2240 = vadd.f32 0.0, %v2239
        %2241 = vmatprep.mubr.f32.mxu0 0.0
        %2242 = vmatmul.mubr.f32.gmra.mrb[0].mxu0 %v758
        %v2243 = vpop.f32.mrb[0].mxu0
        %v2244 = vadd.f32 0.0, %v2243
        %v2245 = vpop.f32.mrb[0].mxu0
        %v2246 = vadd.f32 0.0, %v2245
        %2247 = vmatprep.mubr.f32.mxu0 0.0
        %2248 = vmatmul.mubr.f32.gmra.mrb[0].mxu0 %v761
        %v2249 = vpop.f32.mrb[0].mxu0
        %v2250 = vadd.f32 0.0, %v2249
        %v2251 = vpop.f32.mrb[0].mxu0
        %v2252 = vadd.f32 0.0, %v2251
        %2253 = vmatprep.mubr.f32.mxu0 0.0
        %2254 = vmatmul.mubr.f32.gmra.mrb[0].mxu0 %v764
        %v2255 = vpop.f32.mrb[0].mxu0
        %v2256 = vadd.f32 0.0, %v2255
        %v2257 = vpop.f32.mrb[0].mxu0
        %v2258 = vadd.f32 0.0, %v2257
        %2259 = vmatprep.mubr.f32.mxu0 0.0
        %2260 = vmatmul.mubr.f32.gmra.mrb[0].mxu0 %v767
        %v2261 = vpop.f32.mrb[0].mxu0
        %v2262 = vadd.f32 0.0, %v2261
        %v2263 = vpop.f32.mrb[0].mxu0
        %v2264 = vadd.f32 0.0, %v2263
        %2265 = vmatprep.mubr.f32.mxu0 0.0
        %2266 = vmatmul.mubr.f32.gmra.mrb[0].mxu0 %v770
        %v2267 = vpop.f32.mrb[0].mxu0
        %v2268 = vadd.f32 0.0, %v2267
        %v2269 = vpop.f32.mrb[0].mxu0
        %v2270 = vadd.f32 0.0, %v2269
        %2271 = vmatprep.mubr.f32.mxu0 0.0
        %2272 = vmatmul.mubr.f32.gmra.mrb[0].mxu0 %v773
        %v2273 = vpop.f32.mrb[0].mxu0
        %v2274 = vadd.f32 0.0, %v2273
        %v2275 = vpop.f32.mrb[0].mxu0
        %v2276 = vadd.f32 0.0, %v2275
        %2277 = vmatprep.mubr.f32.mxu0 0.0
        %2278 = vmatmul.mubr.f32.gmra.mrb[0].mxu0 %v776
        %v2279 = vpop.f32.mrb[0].mxu0
        %v2280 = vadd.f32 0.0, %v2279
        %v2281 = vpop.f32.mrb[0].mxu0
        %v2282 = vadd.f32 0.0, %v2281
        %2283 = vmatprep.mubr.f32.mxu0 0.0
        %2284 = vmatmul.mubr.f32.gmra.mrb[0].mxu0 %v779
        %v2285 = vpop.f32.mrb[0].mxu0
        %v2286 = vadd.f32 0.0, %v2285
        %v2287 = vpop.f32.mrb[0].mxu0
        %v2288 = vadd.f32 0.0, %v2287
        %2289 = vmatprep.mubr.f32.mxu0 0.0
        %2290 = vmatmul.mubr.f32.gmra.mrb[0].mxu0 %v782
        %v2291 = vpop.f32.mrb[0].mxu0
        %v2292 = vadd.f32 0.0, %v2291
        %v2293 = vpop.f32.mrb[0].mxu0
        %v2294 = vadd.f32 0.0, %v2293
        %2295 = vmatprep.mubr.f32.mxu0 0.0
        %2296 = vmatmul.mubr.f32.gmra.mrb[0].mxu0 %v785
        %v2297 = vpop.f32.mrb[0].mxu0
        %v2298 = vadd.f32 0.0, %v2297
        %v2299 = vpop.f32.mrb[0].mxu0
        %v2300 = vadd.f32 0.0, %v2299
        %2301 = vmatprep.mubr.f32.mxu0 0.0
        %2302 = vmatmul.mubr.f32.gmra.mrb[0].mxu0 %v788
        %v2303 = vpop.f32.mrb[0].mxu0
        %v2304 = vadd.f32 0.0, %v2303
        %v2305 = vpop.f32.mrb[0].mxu0
        %v2306 = vadd.f32 0.0, %v2305
        %2307 = vmatprep.mubr.f32.mxu0 0.0
        %2308 = vmatmul.mubr.f32.gmra.mrb[0].mxu0 %v791
        %v2309 = vpop.f32.mrb[0].mxu0
        %v2310 = vadd.f32 0.0, %v2309
        %v2311 = vpop.f32.mrb[0].mxu0
        %v2312 = vadd.f32 0.0, %v2311
        %2313 = vmatprep.mubr.f32.mxu0 0.0
        %2314 = vmatmul.mubr.f32.gmra.mrb[0].mxu0 %v794
        %v2315 = vpop.f32.mrb[0].mxu0
        %v2316 = vadd.f32 0.0, %v2315
        %v2317 = vpop.f32.mrb[0].mxu0
        %v2318 = vadd.f32 0.0, %v2317
        %2319 = vmatprep.mubr.f32.mxu0 0.0
        %2320 = vmatmul.mubr.f32.gmra.mrb[0].mxu0 %v797
        %v2321 = vpop.f32.mrb[0].mxu0
        %v2322 = vadd.f32 0.0, %v2321
        %v2323 = vpop.f32.mrb[0].mxu0
        %v2324 = vadd.f32 0.0, %v2323
        %2325 = vmatprep.mubr.f32.mxu0 0.0
        %2326 = vmatmul.mubr.f32.gmra.mrb[0].mxu0 %v800
        %v2327 = vpop.f32.mrb[0].mxu0
        %v2328 = vadd.f32 0.0, %v2327
        %v2329 = vpop.f32.mrb[0].mxu0
        %v2330 = vadd.f32 0.0, %v2329
        %2331 = vmatprep.mubr.f32.mxu0 0.0
        %2332 = vmatmul.mubr.f32.gmra.mrb[0].mxu0 %v803
        %v2333 = vpop.f32.mrb[0].mxu0
        %v2334 = vadd.f32 0.0, %v2333
        %v2335 = vpop.f32.mrb[0].mxu0
        %v2336 = vadd.f32 0.0, %v2335
        %2337 = vmatprep.mubr.f32.mxu0 0.0
        %2338 = vmatmul.mubr.f32.gmra.mrb[0].mxu0 %v806
        %v2339 = vpop.f32.mrb[0].mxu0
        %v2340 = vadd.f32 0.0, %v2339
        %v2341 = vpop.f32.mrb[0].mxu0
        %v2342 = vadd.f32 0.0, %v2341
        %2343 = vmatprep.mubr.f32.mxu0 0.0
        %2344 = vmatmul.mubr.f32.gmra.mrb[0].mxu0 %v809
        %v2345 = vpop.f32.mrb[0].mxu0
        %v2346 = vadd.f32 0.0, %v2345
        %v2347 = vpop.f32.mrb[0].mxu0
        %v2348 = vadd.f32 0.0, %v2347
        %2349 = vmatprep.mubr.f32.mxu0 0.0
        %2350 = vmatmul.mubr.f32.gmra.mrb[0].mxu0 %v812
        %v2351 = vpop.f32.mrb[0].mxu0
        %v2352 = vadd.f32 0.0, %v2351
        %v2353 = vpop.f32.mrb[0].mxu0
        %v2354 = vadd.f32 0.0, %v2353
        %2355 = vmatprep.mubr.f32.mxu0 0.0
        %2356 = vmatmul.mubr.f32.gmra.mrb[0].mxu0 %v815
        %v2357 = vpop.f32.mrb[0].mxu0
        %v2358 = vadd.f32 0.0, %v2357
        %v2359 = vpop.f32.mrb[0].mxu0
        %v2360 = vadd.f32 0.0, %v2359
        %2361 = vmatprep.mubr.f32.mxu0 0.0
        %2362 = vmatmul.mubr.f32.gmra.mrb[0].mxu0 %v818
        %v2363 = vpop.f32.mrb[0].mxu0
        %v2364 = vadd.f32 0.0, %v2363
        %v2365 = vpop.f32.mrb[0].mxu0
        %v2366 = vadd.f32 0.0, %v2365
        %2367 = vmatprep.mubr.f32.mxu0 0.0
        %2368 = vmatmul.mubr.f32.gmra.mrb[0].mxu0 %v821
        %v2369 = vpop.f32.mrb[0].mxu0
        %v2370 = vadd.f32 0.0, %v2369
        %v2371 = vpop.f32.mrb[0].mxu0
        %v2372 = vadd.f32 0.0, %v2371
        %2373 = vmatprep.mubr.f32.mxu0 0.0
        %2374 = vmatmul.mubr.f32.gmra.mrb[0].mxu0 %v824
        %v2375 = vpop.f32.mrb[0].mxu0
        %v2376 = vadd.f32 0.0, %v2375
        %v2377 = vpop.f32.mrb[0].mxu0
        %v2378 = vadd.f32 0.0, %v2377
        %2379 = vmatprep.mubr.f32.mxu0 0.0
        %2380 = vmatmul.mubr.f32.gmra.mrb[0].mxu0 %v827
        %v2381 = vpop.f32.mrb[0].mxu0
        %v2382 = vadd.f32 0.0, %v2381
        %v2383 = vpop.f32.mrb[0].mxu0
        %v2384 = vadd.f32 0.0, %v2383
        %2385 = vmatprep.mubr.f32.mxu0 0.0
        %2386 = vmatmul.mubr.f32.gmra.mrb[0].mxu0 %v830
        %v2387 = vpop.f32.mrb[0].mxu0
        %v2388 = vadd.f32 0.0, %v2387
        %v2389 = vpop.f32.mrb[0].mxu0
        %v2390 = vadd.f32 0.0, %v2389
        %2391 = vmatprep.mubr.f32.mxu0 0.0
        %2392 = vmatmul.mubr.f32.gmra.mrb[0].mxu0 %v833
        %v2393 = vpop.f32.mrb[0].mxu0
        %v2394 = vadd.f32 0.0, %v2393
        %v2395 = vpop.f32.mrb[0].mxu0
        %v2396 = vadd.f32 0.0, %v2395
        %2397 = vmatprep.mubr.f32.mxu0 0.0
        %2398 = vmatmul.mubr.f32.gmra.mrb[0].mxu0 %v836
        %v2399 = vpop.f32.mrb[0].mxu0
        %v2400 = vadd.f32 0.0, %v2399
        %v2401 = vpop.f32.mrb[0].mxu0
        %v2402 = vadd.f32 0.0, %v2401
        %2403 = vmatprep.mubr.f32.mxu0 0.0
        %2404 = vmatmul.mubr.f32.gmra.mrb[0].mxu0 %v839
        %v2405 = vpop.f32.mrb[0].mxu0
        %v2406 = vadd.f32 0.0, %v2405
        %v2407 = vpop.f32.mrb[0].mxu0
        %v2408 = vadd.f32 0.0, %v2407
        %2409 = vmatprep.mubr.f32.mxu0 0.0
        %2410 = vmatmul.mubr.f32.gmra.mrb[0].mxu0 %v842
        %v2411 = vpop.f32.mrb[0].mxu0
        %v2412 = vadd.f32 0.0, %v2411
        %v2413 = vpop.f32.mrb[0].mxu0
        %v2414 = vadd.f32 0.0, %v2413
        %2415 = vmatprep.mubr.f32.mxu0 0.0
        %2416 = vmatmul.mubr.f32.gmra.mrb[0].mxu0 %v845
        %v2417 = vpop.f32.mrb[0].mxu0
        %v2418 = vadd.f32 0.0, %v2417
        %v2419 = vpop.f32.mrb[0].mxu0
        %v2420 = vadd.f32 0.0, %v2419
        %2421 = vmatprep.mubr.f32.mxu0 0.0
        %2422 = vmatmul.mubr.f32.gmra.mrb[0].mxu0 %v848
        %v2423 = vpop.f32.mrb[0].mxu0
        %v2424 = vadd.f32 0.0, %v2423
        %v2425 = vpop.f32.mrb[0].mxu0
        %v2426 = vadd.f32 0.0, %v2425
        %2427 = vmatprep.mubr.f32.mxu0 0.0
        %2428 = vmatmul.mubr.f32.gmra.mrb[0].mxu0 %v851
        %v2429 = vpop.f32.mrb[0].mxu0
        %v2430 = vadd.f32 0.0, %v2429
        %v2431 = vpop.f32.mrb[0].mxu0
        %v2432 = vadd.f32 0.0, %v2431
        %2433 = vmatprep.mubr.f32.mxu0 0.0
        %2434 = vmatmul.mubr.f32.gmra.mrb[0].mxu0 %v854
        %v2435 = vpop.f32.mrb[0].mxu0
        %v2436 = vadd.f32 0.0, %v2435
        %v2437 = vpop.f32.mrb[0].mxu0
        %v2438 = vadd.f32 0.0, %v2437
        %2439 = vmatprep.mubr.f32.mxu0 0.0
        %2440 = vmatmul.mubr.f32.gmra.mrb[0].mxu0 %v857
        %v2441 = vpop.f32.mrb[0].mxu0
        %v2442 = vadd.f32 0.0, %v2441
        %v2443 = vpop.f32.mrb[0].mxu0
        %v2444 = vadd.f32 0.0, %v2443
        %2445 = vmatprep.mubr.f32.mxu0 0.0
        %2446 = vmatmul.mubr.f32.gmra.mrb[0].mxu0 %v860
        %v2447 = vpop.f32.mrb[0].mxu0
        %v2448 = vadd.f32 0.0, %v2447
        %v2449 = vpop.f32.mrb[0].mxu0
        %v2450 = vadd.f32 0.0, %v2449
        %2451 = vmatprep.mubr.f32.mxu0 0.0
        %2452 = vmatmul.mubr.f32.gmra.mrb[0].mxu0 %v863
        %v2453 = vpop.f32.mrb[0].mxu0
        %v2454 = vadd.f32 0.0, %v2453
        %v2455 = vpop.f32.mrb[0].mxu0
        %v2456 = vadd.f32 0.0, %v2455
        %2457 = vmatprep.mubr.f32.mxu0 0.0
        %2458 = vmatmul.mubr.f32.gmra.mrb[0].mxu0 %v866
        %v2459 = vpop.f32.mrb[0].mxu0
        %v2460 = vadd.f32 0.0, %v2459
        %v2461 = vpop.f32.mrb[0].mxu0
        %v2462 = vadd.f32 0.0, %v2461
        %2463 = vmatprep.mubr.f32.mxu0 0.0
        %2464 = vmatmul.mubr.f32.gmra.mrb[0].mxu0 %v869
        %v2465 = vpop.f32.mrb[0].mxu0
        %v2466 = vadd.f32 0.0, %v2465
        %v2467 = vpop.f32.mrb[0].mxu0
        %v2468 = vadd.f32 0.0, %v2467
        %2469 = vmatprep.mubr.f32.mxu0 0.0
        %2470 = vmatmul.mubr.f32.gmra.mrb[0].mxu0 %v872
        %v2471 = vpop.f32.mrb[0].mxu0
        %v2472 = vadd.f32 0.0, %v2471
        %v2473 = vpop.f32.mrb[0].mxu0
        %v2474 = vadd.f32 0.0, %v2473
        %2475 = vmatprep.mubr.f32.mxu0 0.0
        %2476 = vmatmul.mubr.f32.gmra.mrb[0].mxu0 %v875
        %v2477 = vpop.f32.mrb[0].mxu0
        %v2478 = vadd.f32 0.0, %v2477
        %v2479 = vpop.f32.mrb[0].mxu0
        %v2480 = vadd.f32 0.0, %v2479
        %2481 = vmatprep.mubr.f32.mxu0 0.0
        %2482 = vmatmul.mubr.f32.gmra.mrb[0].mxu0 %v878
        %v2483 = vpop.f32.mrb[0].mxu0
        %v2484 = vadd.f32 0.0, %v2483
        %v2485 = vpop.f32.mrb[0].mxu0
        %v2486 = vadd.f32 0.0, %v2485
        %2487 = vmatprep.mubr.f32.mxu0 0.0
        %2488 = vmatmul.mubr.f32.gmra.mrb[0].mxu0 %v881
        %v2489 = vpop.f32.mrb[0].mxu0
        %v2490 = vadd.f32 0.0, %v2489
        %v2491 = vpop.f32.mrb[0].mxu0
        %v2492 = vadd.f32 0.0, %v2491
        %2493 = vmatprep.mubr.f32.mxu0 0.0
        %2494 = vmatmul.mubr.f32.gmra.mrb[0].mxu0 %v884
        %v2495 = vpop.f32.mrb[0].mxu0
        %v2496 = vadd.f32 0.0, %v2495
        %v2497 = vpop.f32.mrb[0].mxu0
        %v2498 = vadd.f32 0.0, %v2497
        %2499 = vmatprep.mubr.f32.mxu0 0.0
        %2500 = vmatmul.mubr.f32.gmra.mrb[0].mxu0 %v887
        %v2501 = vpop.f32.mrb[0].mxu0
        %v2502 = vadd.f32 0.0, %v2501
        %v2503 = vpop.f32.mrb[0].mxu0
        %v2504 = vadd.f32 0.0, %v2503
        %2505 = vmatprep.mubr.f32.mxu0 0.0
        %2506 = vmatmul.mubr.f32.gmra.mrb[0].mxu0 %v890
        %v2507 = vpop.f32.mrb[0].mxu0
        %v2508 = vadd.f32 0.0, %v2507
        %v2509 = vpop.f32.mrb[0].mxu0
        %v2510 = vadd.f32 0.0, %v2509
        %2511 = vmatprep.mubr.f32.mxu0 0.0
        %2512 = vmatmul.mubr.f32.gmra.mrb[0].mxu0 %v893
        %v2513 = vpop.f32.mrb[0].mxu0
        %v2514 = vadd.f32 0.0, %v2513
        %v2515 = vpop.f32.mrb[0].mxu0
        %v2516 = vadd.f32 0.0, %v2515
        %2517 = vmatprep.mubr.f32.mxu0 0.0
        %2518 = vmatmul.mubr.f32.gmra.mrb[0].mxu0 %v896
        %v2519 = vpop.f32.mrb[0].mxu0
        %v2520 = vadd.f32 0.0, %v2519
        %v2521 = vpop.f32.mrb[0].mxu0
        %v2522 = vadd.f32 0.0, %v2521
        %2523 = vmatprep.mubr.f32.mxu0 0.0
        %2524 = vmatmul.mubr.f32.gmra.mrb[0].mxu0 %v899
        %v2525 = vpop.f32.mrb[0].mxu0
        %v2526 = vadd.f32 0.0, %v2525
        %v2527 = vpop.f32.mrb[0].mxu0
        %v2528 = vadd.f32 0.0, %v2527
        %2529 = vmatprep.mubr.f32.mxu0 0.0
        %2530 = vmatmul.mubr.f32.gmra.mrb[0].mxu0 %v902
        %v2531 = vpop.f32.mrb[0].mxu0
        %v2532 = vadd.f32 0.0, %v2531
        %v2533 = vpop.f32.mrb[0].mxu0
        %v2534 = vadd.f32 0.0, %v2533
        %2535 = vmatprep.mubr.f32.mxu0 0.0
        %2536 = vmatmul.mubr.f32.gmra.mrb[0].mxu0 %v905
        %v2537 = vpop.f32.mrb[0].mxu0
        %v2538 = vadd.f32 0.0, %v2537
        %v2539 = vpop.f32.mrb[0].mxu0
        %v2540 = vadd.f32 0.0, %v2539
        %2541 = vmatprep.mubr.f32.mxu0 0.0
        %2542 = vmatmul.mubr.f32.gmra.mrb[0].mxu0 %v908
        %v2543 = vpop.f32.mrb[0].mxu0
        %v2544 = vadd.f32 0.0, %v2543
        %v2545 = vpop.f32.mrb[0].mxu0
        %v2546 = vadd.f32 0.0, %v2545
        %2547 = vmatprep.mubr.f32.mxu0 0.0
        %2548 = vmatmul.mubr.f32.gmra.mrb[0].mxu0 %v911
        %v2549 = vpop.f32.mrb[0].mxu0
        %v2550 = vadd.f32 0.0, %v2549
        %v2551 = vpop.f32.mrb[0].mxu0
        %v2552 = vadd.f32 0.0, %v2551
        %2553 = vmatprep.mubr.f32.mxu0 0.0
        %2554 = vmatmul.mubr.f32.gmra.mrb[0].mxu0 %v914
        %v2555 = vpop.f32.mrb[0].mxu0
        %v2556 = vadd.f32 0.0, %v2555
        %v2557 = vpop.f32.mrb[0].mxu0
        %v2558 = vadd.f32 0.0, %v2557
        %2559 = vmatprep.mubr.f32.mxu0 0.0
        %2560 = vmatmul.mubr.f32.gmra.mrb[0].mxu0 %v917
        %v2561 = vpop.f32.mrb[0].mxu0
        %v2562 = vadd.f32 0.0, %v2561
        %v2563 = vpop.f32.mrb[0].mxu0
        %v2564 = vadd.f32 0.0, %v2563
        %2565 = vmatprep.mubr.f32.mxu0 0.0
        %2566 = vmatmul.mubr.f32.gmra.mrb[0].mxu0 %v920
        %v2567 = vpop.f32.mrb[0].mxu0
        %v2568 = vadd.f32 0.0, %v2567
        %v2569 = vpop.f32.mrb[0].mxu0
        %v2570 = vadd.f32 0.0, %v2569
        %2571 = vmatprep.mubr.f32.mxu0 0.0
        %2572 = vmatmul.mubr.f32.gmra.mrb[0].mxu0 %v923
        %v2573 = vpop.f32.mrb[0].mxu0
        %v2574 = vadd.f32 0.0, %v2573
        %v2575 = vpop.f32.mrb[0].mxu0
        %v2576 = vadd.f32 0.0, %v2575
        %2577 = vmatprep.mubr.f32.mxu0 0.0
        %2578 = vmatmul.mubr.f32.gmra.mrb[0].mxu0 %v926
        %v2579 = vpop.f32.mrb[0].mxu0
        %v2580 = vadd.f32 0.0, %v2579
        %v2581 = vpop.f32.mrb[0].mxu0
        %v2582 = vadd.f32 0.0, %v2581
        %2583 = vmatprep.mubr.f32.mxu0 0.0
        %2584 = vmatmul.mubr.f32.gmra.mrb[0].mxu0 %v929
        %v2585 = vpop.f32.mrb[0].mxu0
        %v2586 = vadd.f32 0.0, %v2585
        %v2587 = vpop.f32.mrb[0].mxu0
        %v2588 = vadd.f32 0.0, %v2587
        %2589 = vmatprep.mubr.f32.mxu0 0.0
        %2590 = vmatmul.mubr.f32.gmra.mrb[0].mxu0 %v932
        %v2591 = vpop.f32.mrb[0].mxu0
        %v2592 = vadd.f32 0.0, %v2591
        %v2593 = vpop.f32.mrb[0].mxu0
        %v2594 = vadd.f32 0.0, %v2593
        %2595 = vdwg.mxu0
        %2596 = vmatprep.subr.mxu0 %v2115
        %2597 = vmatpush1.msra.mxu0 %v2114
        %2598 = vmatprep.subr.mxu0 %v2119
        %2599 = vmatpush1.msra.mxu0 %v2118
        %2600 = vmatprep.subr.mxu0 %v2123
        %2601 = vmatpush1.msra.mxu0 %v2122
        %2602 = vmatprep.subr.mxu0 %v2127
        %2603 = vmatpush1.msra.mxu0 %v2126
        %2604 = vmatprep.subr.mxu0 %v2131
        %2605 = vmatpush1.msra.mxu0 %v2130
        %2606 = vmatprep.subr.mxu0 %v2135
        %2607 = vmatpush1.msra.mxu0 %v2134
        %2608 = vmatprep.subr.mxu0 %v2139
        %2609 = vmatpush1.msra.mxu0 %v2138
        %2610 = vmatprep.subr.mxu0 %v2143
        %2611 = vmatpush1.msra.mxu0 %v2142
        %2612 = vmatprep.subr.mxu0 0.0
        %2613 = vmatpush1.msra.mxu0 0.0
        %2614 = vmatprep.subr.mxu0 0.0
        %2615 = vmatpush1.msra.mxu0 0.0
        %2616 = vmatprep.subr.mxu0 0.0
        %2617 = vmatpush1.msra.mxu0 0.0
        %2618 = vmatprep.subr.mxu0 0.0
        %2619 = vmatpush1.msra.mxu0 0.0
        %2620 = vmatprep.subr.mxu0 0.0
        %2621 = vmatpush1.msra.mxu0 0.0
        %2622 = vmatprep.subr.mxu0 0.0
        %2623 = vmatpush1.msra.mxu0 0.0
        %2624 = vmatprep.subr.mxu0 0.0
        %2625 = vmatpush1.msra.mxu0 0.0
        %2626 = vmatprep.subr.mxu0 0.0
        %2627 = vmatpush1.msra.mxu0 0.0
        %2628 = vmatprep.subr.mxu0 0.0
        %2629 = vmatpush1.msra.mxu0 0.0
        %2630 = vmatprep.subr.mxu0 0.0
        %2631 = vmatpush1.msra.mxu0 0.0
        %2632 = vmatprep.subr.mxu0 0.0
        %2633 = vmatpush1.msra.mxu0 0.0
        %2634 = vmatprep.subr.mxu0 0.0
        %2635 = vmatpush1.msra.mxu0 0.0
        %2636 = vmatprep.subr.mxu0 0.0
        %2637 = vmatpush1.msra.mxu0 0.0
        %2638 = vmatprep.subr.mxu0 0.0
        %2639 = vmatpush1.msra.mxu0 0.0
        %2640 = vmatprep.subr.mxu0 0.0
        %2641 = vmatpush1.msra.mxu0 0.0
        %2642 = vmatprep.subr.mxu0 0.0
        %2643 = vmatpush1.msra.mxu0 0.0
        %2644 = vmatprep.subr.mxu0 0.0
        %2645 = vmatpush1.msra.mxu0 0.0
        %2646 = vmatprep.subr.mxu0 0.0
        %2647 = vmatpush1.msra.mxu0 0.0
        %2648 = vmatprep.subr.mxu0 0.0
        %2649 = vmatpush1.msra.mxu0 0.0
        %2650 = vmatprep.subr.mxu0 0.0
        %2651 = vmatpush1.msra.mxu0 0.0
        %2652 = vmatprep.subr.mxu0 0.0
        %2653 = vmatpush1.msra.mxu0 0.0
        %2654 = vmatprep.subr.mxu0 0.0
        %2655 = vmatpush1.msra.mxu0 0.0
        %2656 = vmatprep.subr.mxu0 0.0
        %2657 = vmatpush1.msra.mxu0 0.0
        %2658 = vmatprep.subr.mxu0 0.0
        %2659 = vmatpush1.msra.mxu0 0.0
        %2660 = vmatprep.mubr.f32.mxu0 0.0
        %2661 = vmatmul.mubr.f32.gmra.mrb[0].mxu0 %v2145
        %v2662 = vpop.f32.mrb[0].mxu0
        %v2663 = vadd.f32 0.0, %v2662
        %v2664 = vpop.f32.mrb[0].mxu0
        %v2665 = vadd.f32 0.0, %v2664
        %2666 = vmatprep.mubr.f32.mxu0 0.0
        %2667 = vmatmul.mubr.f32.gmra.mrb[0].mxu0 %v746
        %v2668 = vpop.f32.mrb[0].mxu0
        %v2669 = vadd.f32 0.0, %v2668
        %v2670 = vpop.f32.mrb[0].mxu0
        %v2671 = vadd.f32 0.0, %v2670
        %2672 = vmatprep.mubr.f32.mxu0 0.0
        %2673 = vmatmul.mubr.f32.gmra.mrb[0].mxu0 %v749
        %v2674 = vpop.f32.mrb[0].mxu0
        %v2675 = vadd.f32 0.0, %v2674
        %v2676 = vpop.f32.mrb[0].mxu0
        %v2677 = vadd.f32 0.0, %v2676
        %2678 = vmatprep.mubr.f32.mxu0 0.0
        %2679 = vmatmul.mubr.f32.gmra.mrb[0].mxu0 %v752
        %v2680 = vpop.f32.mrb[0].mxu0
        %v2681 = vadd.f32 0.0, %v2680
        %v2682 = vpop.f32.mrb[0].mxu0
        %v2683 = vadd.f32 0.0, %v2682
        %2684 = vmatprep.mubr.f32.mxu0 0.0
        %2685 = vmatmul.mubr.f32.gmra.mrb[0].mxu0 %v755
        %v2686 = vpop.f32.mrb[0].mxu0
        %v2687 = vadd.f32 0.0, %v2686
        %v2688 = vpop.f32.mrb[0].mxu0
        %v2689 = vadd.f32 0.0, %v2688
        %2690 = vmatprep.mubr.f32.mxu0 0.0
        %2691 = vmatmul.mubr.f32.gmra.mrb[0].mxu0 %v758
        %v2692 = vpop.f32.mrb[0].mxu0
        %v2693 = vadd.f32 0.0, %v2692
        %v2694 = vpop.f32.mrb[0].mxu0
        %v2695 = vadd.f32 0.0, %v2694
        %2696 = vmatprep.mubr.f32.mxu0 0.0
        %2697 = vmatmul.mubr.f32.gmra.mrb[0].mxu0 %v761
        %v2698 = vpop.f32.mrb[0].mxu0
        %v2699 = vadd.f32 0.0, %v2698
        %v2700 = vpop.f32.mrb[0].mxu0
        %v2701 = vadd.f32 0.0, %v2700
        %2702 = vmatprep.mubr.f32.mxu0 0.0
        %2703 = vmatmul.mubr.f32.gmra.mrb[0].mxu0 %v764
        %v2704 = vpop.f32.mrb[0].mxu0
        %v2705 = vadd.f32 0.0, %v2704
        %v2706 = vpop.f32.mrb[0].mxu0
        %v2707 = vadd.f32 0.0, %v2706
        %2708 = vmatprep.mubr.f32.mxu0 0.0
        %2709 = vmatmul.mubr.f32.gmra.mrb[0].mxu0 %v767
        %v2710 = vpop.f32.mrb[0].mxu0
        %v2711 = vadd.f32 0.0, %v2710
        %v2712 = vpop.f32.mrb[0].mxu0
        %v2713 = vadd.f32 0.0, %v2712
        %2714 = vmatprep.mubr.f32.mxu0 0.0
        %2715 = vmatmul.mubr.f32.gmra.mrb[0].mxu0 %v770
        %v2716 = vpop.f32.mrb[0].mxu0
        %v2717 = vadd.f32 0.0, %v2716
        %v2718 = vpop.f32.mrb[0].mxu0
        %v2719 = vadd.f32 0.0, %v2718
        %2720 = vmatprep.mubr.f32.mxu0 0.0
        %2721 = vmatmul.mubr.f32.gmra.mrb[0].mxu0 %v773
        %v2722 = vpop.f32.mrb[0].mxu0
        %v2723 = vadd.f32 0.0, %v2722
        %v2724 = vpop.f32.mrb[0].mxu0
        %v2725 = vadd.f32 0.0, %v2724
        %2726 = vmatprep.mubr.f32.mxu0 0.0
        %2727 = vmatmul.mubr.f32.gmra.mrb[0].mxu0 %v776
        %v2728 = vpop.f32.mrb[0].mxu0
        %v2729 = vadd.f32 0.0, %v2728
        %v2730 = vpop.f32.mrb[0].mxu0
        %v2731 = vadd.f32 0.0, %v2730
        %2732 = vmatprep.mubr.f32.mxu0 0.0
        %2733 = vmatmul.mubr.f32.gmra.mrb[0].mxu0 %v779
        %v2734 = vpop.f32.mrb[0].mxu0
        %v2735 = vadd.f32 0.0, %v2734
        %v2736 = vpop.f32.mrb[0].mxu0
        %v2737 = vadd.f32 0.0, %v2736
        %2738 = vmatprep.mubr.f32.mxu0 0.0
        %2739 = vmatmul.mubr.f32.gmra.mrb[0].mxu0 %v782
        %v2740 = vpop.f32.mrb[0].mxu0
        %v2741 = vadd.f32 0.0, %v2740
        %v2742 = vpop.f32.mrb[0].mxu0
        %v2743 = vadd.f32 0.0, %v2742
        %2744 = vmatprep.mubr.f32.mxu0 0.0
        %2745 = vmatmul.mubr.f32.gmra.mrb[0].mxu0 %v785
        %v2746 = vpop.f32.mrb[0].mxu0
        %v2747 = vadd.f32 0.0, %v2746
        %v2748 = vpop.f32.mrb[0].mxu0
        %v2749 = vadd.f32 0.0, %v2748
        %2750 = vmatprep.mubr.f32.mxu0 0.0
        %2751 = vmatmul.mubr.f32.gmra.mrb[0].mxu0 %v788
        %v2752 = vpop.f32.mrb[0].mxu0
        %v2753 = vadd.f32 0.0, %v2752
        %v2754 = vpop.f32.mrb[0].mxu0
        %v2755 = vadd.f32 0.0, %v2754
        %2756 = vmatprep.mubr.f32.mxu0 0.0
        %2757 = vmatmul.mubr.f32.gmra.mrb[0].mxu0 %v791
        %v2758 = vpop.f32.mrb[0].mxu0
        %v2759 = vadd.f32 0.0, %v2758
        %v2760 = vpop.f32.mrb[0].mxu0
        %v2761 = vadd.f32 0.0, %v2760
        %2762 = vmatprep.mubr.f32.mxu0 0.0
        %2763 = vmatmul.mubr.f32.gmra.mrb[0].mxu0 %v794
        %v2764 = vpop.f32.mrb[0].mxu0
        %v2765 = vadd.f32 0.0, %v2764
        %v2766 = vpop.f32.mrb[0].mxu0
        %v2767 = vadd.f32 0.0, %v2766
        %2768 = vmatprep.mubr.f32.mxu0 0.0
        %2769 = vmatmul.mubr.f32.gmra.mrb[0].mxu0 %v797
        %v2770 = vpop.f32.mrb[0].mxu0
        %v2771 = vadd.f32 0.0, %v2770
        %v2772 = vpop.f32.mrb[0].mxu0
        %v2773 = vadd.f32 0.0, %v2772
        %2774 = vmatprep.mubr.f32.mxu0 0.0
        %2775 = vmatmul.mubr.f32.gmra.mrb[0].mxu0 %v800
        %v2776 = vpop.f32.mrb[0].mxu0
        %v2777 = vadd.f32 0.0, %v2776
        %v2778 = vpop.f32.mrb[0].mxu0
        %v2779 = vadd.f32 0.0, %v2778
        %2780 = vmatprep.mubr.f32.mxu0 0.0
        %2781 = vmatmul.mubr.f32.gmra.mrb[0].mxu0 %v803
        %v2782 = vpop.f32.mrb[0].mxu0
        %v2783 = vadd.f32 0.0, %v2782
        %v2784 = vpop.f32.mrb[0].mxu0
        %v2785 = vadd.f32 0.0, %v2784
        %2786 = vmatprep.mubr.f32.mxu0 0.0
        %2787 = vmatmul.mubr.f32.gmra.mrb[0].mxu0 %v806
        %v2788 = vpop.f32.mrb[0].mxu0
        %v2789 = vadd.f32 0.0, %v2788
        %v2790 = vpop.f32.mrb[0].mxu0
        %v2791 = vadd.f32 0.0, %v2790
        %2792 = vmatprep.mubr.f32.mxu0 0.0
        %2793 = vmatmul.mubr.f32.gmra.mrb[0].mxu0 %v809
        %v2794 = vpop.f32.mrb[0].mxu0
        %v2795 = vadd.f32 0.0, %v2794
        %v2796 = vpop.f32.mrb[0].mxu0
        %v2797 = vadd.f32 0.0, %v2796
        %2798 = vmatprep.mubr.f32.mxu0 0.0
        %2799 = vmatmul.mubr.f32.gmra.mrb[0].mxu0 %v812
        %v2800 = vpop.f32.mrb[0].mxu0
        %v2801 = vadd.f32 0.0, %v2800
        %v2802 = vpop.f32.mrb[0].mxu0
        %v2803 = vadd.f32 0.0, %v2802
        %2804 = vmatprep.mubr.f32.mxu0 0.0
        %2805 = vmatmul.mubr.f32.gmra.mrb[0].mxu0 %v815
        %v2806 = vpop.f32.mrb[0].mxu0
        %v2807 = vadd.f32 0.0, %v2806
        %v2808 = vpop.f32.mrb[0].mxu0
        %v2809 = vadd.f32 0.0, %v2808
        %2810 = vmatprep.mubr.f32.mxu0 0.0
        %2811 = vmatmul.mubr.f32.gmra.mrb[0].mxu0 %v818
        %v2812 = vpop.f32.mrb[0].mxu0
        %v2813 = vadd.f32 0.0, %v2812
        %v2814 = vpop.f32.mrb[0].mxu0
        %v2815 = vadd.f32 0.0, %v2814
        %2816 = vmatprep.mubr.f32.mxu0 0.0
        %2817 = vmatmul.mubr.f32.gmra.mrb[0].mxu0 %v821
        %v2818 = vpop.f32.mrb[0].mxu0
        %v2819 = vadd.f32 0.0, %v2818
        %v2820 = vpop.f32.mrb[0].mxu0
        %v2821 = vadd.f32 0.0, %v2820
        %2822 = vmatprep.mubr.f32.mxu0 0.0
        %2823 = vmatmul.mubr.f32.gmra.mrb[0].mxu0 %v824
        %v2824 = vpop.f32.mrb[0].mxu0
        %v2825 = vadd.f32 0.0, %v2824
        %v2826 = vpop.f32.mrb[0].mxu0
        %v2827 = vadd.f32 0.0, %v2826
        %2828 = vmatprep.mubr.f32.mxu0 0.0
        %2829 = vmatmul.mubr.f32.gmra.mrb[0].mxu0 %v827
        %v2830 = vpop.f32.mrb[0].mxu0
        %v2831 = vadd.f32 0.0, %v2830
        %v2832 = vpop.f32.mrb[0].mxu0
        %v2833 = vadd.f32 0.0, %v2832
        %2834 = vmatprep.mubr.f32.mxu0 0.0
        %2835 = vmatmul.mubr.f32.gmra.mrb[0].mxu0 %v830
        %v2836 = vpop.f32.mrb[0].mxu0
        %v2837 = vadd.f32 0.0, %v2836
        %v2838 = vpop.f32.mrb[0].mxu0
        %v2839 = vadd.f32 0.0, %v2838
        %2840 = vmatprep.mubr.f32.mxu0 0.0
        %2841 = vmatmul.mubr.f32.gmra.mrb[0].mxu0 %v833
        %v2842 = vpop.f32.mrb[0].mxu0
        %v2843 = vadd.f32 0.0, %v2842
        %v2844 = vpop.f32.mrb[0].mxu0
        %v2845 = vadd.f32 0.0, %v2844
        %2846 = vmatprep.mubr.f32.mxu0 0.0
        %2847 = vmatmul.mubr.f32.gmra.mrb[0].mxu0 %v836
        %v2848 = vpop.f32.mrb[0].mxu0
        %v2849 = vadd.f32 0.0, %v2848
        %v2850 = vpop.f32.mrb[0].mxu0
        %v2851 = vadd.f32 0.0, %v2850
        %2852 = vmatprep.mubr.f32.mxu0 0.0
        %2853 = vmatmul.mubr.f32.gmra.mrb[0].mxu0 %v839
        %v2854 = vpop.f32.mrb[0].mxu0
        %v2855 = vadd.f32 0.0, %v2854
        %v2856 = vpop.f32.mrb[0].mxu0
        %v2857 = vadd.f32 0.0, %v2856
        %2858 = vmatprep.mubr.f32.mxu0 0.0
        %2859 = vmatmul.mubr.f32.gmra.mrb[0].mxu0 %v842
        %v2860 = vpop.f32.mrb[0].mxu0
        %v2861 = vadd.f32 0.0, %v2860
        %v2862 = vpop.f32.mrb[0].mxu0
        %v2863 = vadd.f32 0.0, %v2862
        %2864 = vmatprep.mubr.f32.mxu0 0.0
        %2865 = vmatmul.mubr.f32.gmra.mrb[0].mxu0 %v845
        %v2866 = vpop.f32.mrb[0].mxu0
        %v2867 = vadd.f32 0.0, %v2866
        %v2868 = vpop.f32.mrb[0].mxu0
        %v2869 = vadd.f32 0.0, %v2868
        %2870 = vmatprep.mubr.f32.mxu0 0.0
        %2871 = vmatmul.mubr.f32.gmra.mrb[0].mxu0 %v848
        %v2872 = vpop.f32.mrb[0].mxu0
        %v2873 = vadd.f32 0.0, %v2872
        %v2874 = vpop.f32.mrb[0].mxu0
        %v2875 = vadd.f32 0.0, %v2874
        %2876 = vmatprep.mubr.f32.mxu0 0.0
        %2877 = vmatmul.mubr.f32.gmra.mrb[0].mxu0 %v851
        %v2878 = vpop.f32.mrb[0].mxu0
        %v2879 = vadd.f32 0.0, %v2878
        %v2880 = vpop.f32.mrb[0].mxu0
        %v2881 = vadd.f32 0.0, %v2880
        %2882 = vmatprep.mubr.f32.mxu0 0.0
        %2883 = vmatmul.mubr.f32.gmra.mrb[0].mxu0 %v854
        %v2884 = vpop.f32.mrb[0].mxu0
        %v2885 = vadd.f32 0.0, %v2884
        %v2886 = vpop.f32.mrb[0].mxu0
        %v2887 = vadd.f32 0.0, %v2886
        %2888 = vmatprep.mubr.f32.mxu0 0.0
        %2889 = vmatmul.mubr.f32.gmra.mrb[0].mxu0 %v857
        %v2890 = vpop.f32.mrb[0].mxu0
        %v2891 = vadd.f32 0.0, %v2890
        %v2892 = vpop.f32.mrb[0].mxu0
        %v2893 = vadd.f32 0.0, %v2892
        %2894 = vmatprep.mubr.f32.mxu0 0.0
        %2895 = vmatmul.mubr.f32.gmra.mrb[0].mxu0 %v860
        %v2896 = vpop.f32.mrb[0].mxu0
        %v2897 = vadd.f32 0.0, %v2896
        %v2898 = vpop.f32.mrb[0].mxu0
        %v2899 = vadd.f32 0.0, %v2898
        %2900 = vmatprep.mubr.f32.mxu0 0.0
        %2901 = vmatmul.mubr.f32.gmra.mrb[0].mxu0 %v863
        %v2902 = vpop.f32.mrb[0].mxu0
        %v2903 = vadd.f32 0.0, %v2902
        %v2904 = vpop.f32.mrb[0].mxu0
        %v2905 = vadd.f32 0.0, %v2904
        %2906 = vmatprep.mubr.f32.mxu0 0.0
        %2907 = vmatmul.mubr.f32.gmra.mrb[0].mxu0 %v866
        %v2908 = vpop.f32.mrb[0].mxu0
        %v2909 = vadd.f32 0.0, %v2908
        %v2910 = vpop.f32.mrb[0].mxu0
        %v2911 = vadd.f32 0.0, %v2910
        %2912 = vmatprep.mubr.f32.mxu0 0.0
        %2913 = vmatmul.mubr.f32.gmra.mrb[0].mxu0 %v869
        %v2914 = vpop.f32.mrb[0].mxu0
        %v2915 = vadd.f32 0.0, %v2914
        %v2916 = vpop.f32.mrb[0].mxu0
        %v2917 = vadd.f32 0.0, %v2916
        %2918 = vmatprep.mubr.f32.mxu0 0.0
        %2919 = vmatmul.mubr.f32.gmra.mrb[0].mxu0 %v872
        %v2920 = vpop.f32.mrb[0].mxu0
        %v2921 = vadd.f32 0.0, %v2920
        %v2922 = vpop.f32.mrb[0].mxu0
        %v2923 = vadd.f32 0.0, %v2922
        %2924 = vmatprep.mubr.f32.mxu0 0.0
        %2925 = vmatmul.mubr.f32.gmra.mrb[0].mxu0 %v875
        %v2926 = vpop.f32.mrb[0].mxu0
        %v2927 = vadd.f32 0.0, %v2926
        %v2928 = vpop.f32.mrb[0].mxu0
        %v2929 = vadd.f32 0.0, %v2928
        %2930 = vmatprep.mubr.f32.mxu0 0.0
        %2931 = vmatmul.mubr.f32.gmra.mrb[0].mxu0 %v878
        %v2932 = vpop.f32.mrb[0].mxu0
        %v2933 = vadd.f32 0.0, %v2932
        %v2934 = vpop.f32.mrb[0].mxu0
        %v2935 = vadd.f32 0.0, %v2934
        %2936 = vmatprep.mubr.f32.mxu0 0.0
        %2937 = vmatmul.mubr.f32.gmra.mrb[0].mxu0 %v881
        %v2938 = vpop.f32.mrb[0].mxu0
        %v2939 = vadd.f32 0.0, %v2938
        %v2940 = vpop.f32.mrb[0].mxu0
        %v2941 = vadd.f32 0.0, %v2940
        %2942 = vmatprep.mubr.f32.mxu0 0.0
        %2943 = vmatmul.mubr.f32.gmra.mrb[0].mxu0 %v884
        %v2944 = vpop.f32.mrb[0].mxu0
        %v2945 = vadd.f32 0.0, %v2944
        %v2946 = vpop.f32.mrb[0].mxu0
        %v2947 = vadd.f32 0.0, %v2946
        %2948 = vmatprep.mubr.f32.mxu0 0.0
        %2949 = vmatmul.mubr.f32.gmra.mrb[0].mxu0 %v887
        %v2950 = vpop.f32.mrb[0].mxu0
        %v2951 = vadd.f32 0.0, %v2950
        %v2952 = vpop.f32.mrb[0].mxu0
        %v2953 = vadd.f32 0.0, %v2952
        %2954 = vmatprep.mubr.f32.mxu0 0.0
        %2955 = vmatmul.mubr.f32.gmra.mrb[0].mxu0 %v890
        %v2956 = vpop.f32.mrb[0].mxu0
        %v2957 = vadd.f32 0.0, %v2956
        %v2958 = vpop.f32.mrb[0].mxu0
        %v2959 = vadd.f32 0.0, %v2958
        %2960 = vmatprep.mubr.f32.mxu0 0.0
        %2961 = vmatmul.mubr.f32.gmra.mrb[0].mxu0 %v893
        %v2962 = vpop.f32.mrb[0].mxu0
        %v2963 = vadd.f32 0.0, %v2962
        %v2964 = vpop.f32.mrb[0].mxu0
        %v2965 = vadd.f32 0.0, %v2964
        %2966 = vmatprep.mubr.f32.mxu0 0.0
        %2967 = vmatmul.mubr.f32.gmra.mrb[0].mxu0 %v896
        %v2968 = vpop.f32.mrb[0].mxu0
        %v2969 = vadd.f32 0.0, %v2968
        %v2970 = vpop.f32.mrb[0].mxu0
        %v2971 = vadd.f32 0.0, %v2970
        %2972 = vmatprep.mubr.f32.mxu0 0.0
        %2973 = vmatmul.mubr.f32.gmra.mrb[0].mxu0 %v899
        %v2974 = vpop.f32.mrb[0].mxu0
        %v2975 = vadd.f32 0.0, %v2974
        %v2976 = vpop.f32.mrb[0].mxu0
        %v2977 = vadd.f32 0.0, %v2976
        %2978 = vmatprep.mubr.f32.mxu0 0.0
        %2979 = vmatmul.mubr.f32.gmra.mrb[0].mxu0 %v902
        %v2980 = vpop.f32.mrb[0].mxu0
        %v2981 = vadd.f32 0.0, %v2980
        %v2982 = vpop.f32.mrb[0].mxu0
        %v2983 = vadd.f32 0.0, %v2982
        %2984 = vmatprep.mubr.f32.mxu0 0.0
        %2985 = vmatmul.mubr.f32.gmra.mrb[0].mxu0 %v905
        %v2986 = vpop.f32.mrb[0].mxu0
        %v2987 = vadd.f32 0.0, %v2986
        %v2988 = vpop.f32.mrb[0].mxu0
        %v2989 = vadd.f32 0.0, %v2988
        %2990 = vmatprep.mubr.f32.mxu0 0.0
        %2991 = vmatmul.mubr.f32.gmra.mrb[0].mxu0 %v908
        %v2992 = vpop.f32.mrb[0].mxu0
        %v2993 = vadd.f32 0.0, %v2992
        %v2994 = vpop.f32.mrb[0].mxu0
        %v2995 = vadd.f32 0.0, %v2994
        %2996 = vmatprep.mubr.f32.mxu0 0.0
        %2997 = vmatmul.mubr.f32.gmra.mrb[0].mxu0 %v911
        %v2998 = vpop.f32.mrb[0].mxu0
        %v2999 = vadd.f32 0.0, %v2998
        %v3000 = vpop.f32.mrb[0].mxu0
        %v3001 = vadd.f32 0.0, %v3000
        %3002 = vmatprep.mubr.f32.mxu0 0.0
        %3003 = vmatmul.mubr.f32.gmra.mrb[0].mxu0 %v914
        %v3004 = vpop.f32.mrb[0].mxu0
        %v3005 = vadd.f32 0.0, %v3004
        %v3006 = vpop.f32.mrb[0].mxu0
        %v3007 = vadd.f32 0.0, %v3006
        %3008 = vmatprep.mubr.f32.mxu0 0.0
        %3009 = vmatmul.mubr.f32.gmra.mrb[0].mxu0 %v917
        %v3010 = vpop.f32.mrb[0].mxu0
        %v3011 = vadd.f32 0.0, %v3010
        %v3012 = vpop.f32.mrb[0].mxu0
        %v3013 = vadd.f32 0.0, %v3012
        %3014 = vmatprep.mubr.f32.mxu0 0.0
        %3015 = vmatmul.mubr.f32.gmra.mrb[0].mxu0 %v920
        %v3016 = vpop.f32.mrb[0].mxu0
        %v3017 = vadd.f32 0.0, %v3016
        %v3018 = vpop.f32.mrb[0].mxu0
        %v3019 = vadd.f32 0.0, %v3018
        %3020 = vmatprep.mubr.f32.mxu0 0.0
        %3021 = vmatmul.mubr.f32.gmra.mrb[0].mxu0 %v923
        %v3022 = vpop.f32.mrb[0].mxu0
        %v3023 = vadd.f32 0.0, %v3022
        %v3024 = vpop.f32.mrb[0].mxu0
        %v3025 = vadd.f32 0.0, %v3024
        %3026 = vmatprep.mubr.f32.mxu0 0.0
        %3027 = vmatmul.mubr.f32.gmra.mrb[0].mxu0 %v926
        %v3028 = vpop.f32.mrb[0].mxu0
        %v3029 = vadd.f32 0.0, %v3028
        %v3030 = vpop.f32.mrb[0].mxu0
        %v3031 = vadd.f32 0.0, %v3030
        %3032 = vmatprep.mubr.f32.mxu0 0.0
        %3033 = vmatmul.mubr.f32.gmra.mrb[0].mxu0 %v929
        %v3034 = vpop.f32.mrb[0].mxu0
        %v3035 = vadd.f32 0.0, %v3034
        %v3036 = vpop.f32.mrb[0].mxu0
        %v3037 = vadd.f32 0.0, %v3036
        %3038 = vmatprep.mubr.f32.mxu0 0.0
        %3039 = vmatmul.mubr.f32.gmra.mrb[0].mxu0 %v932
        %v3040 = vpop.f32.mrb[0].mxu0
        %v3041 = vadd.f32 0.0, %v3040
        %v3042 = vpop.f32.mrb[0].mxu0
        %v3043 = vadd.f32 0.0, %v3042
        %3044 = vdwg.mxu0
        %v3045 = vadd.f32 %v1856, %v2214
        %v3046 = vadd.f32 %v1857, %v2216
        %v3047 = vadd.f32 %v1858, %v2663
        %v3048 = vadd.f32 %v1859, %v2665
        %v3049 = vadd.f32 %v1860, %v2220
        %v3050 = vadd.f32 %v1861, %v2222
        %v3051 = vadd.f32 %v1862, %v2669
        %v3052 = vadd.f32 %v1863, %v2671
        %v3053 = vadd.f32 %v1864, %v2226
        %v3054 = vadd.f32 %v1865, %v2228
        %v3055 = vadd.f32 %v1866, %v2675
        %v3056 = vadd.f32 %v1867, %v2677
        %v3057 = vadd.f32 %v1868, %v2232
        %v3058 = vadd.f32 %v1869, %v2234
        %v3059 = vadd.f32 %v1870, %v2681
        %v3060 = vadd.f32 %v1871, %v2683
        %v3061 = vadd.f32 %v1872, %v2238
        %v3062 = vadd.f32 %v1873, %v2240
        %v3063 = vadd.f32 %v1874, %v2687
        %v3064 = vadd.f32 %v1875, %v2689
        %v3065 = vadd.f32 %v1876, %v2244
        %v3066 = vadd.f32 %v1877, %v2246
        %v3067 = vadd.f32 %v1878, %v2693
        %v3068 = vadd.f32 %v1879, %v2695
        %v3069 = vadd.f32 %v1880, %v2250
        %v3070 = vadd.f32 %v1881, %v2252
        %v3071 = vadd.f32 %v1882, %v2699
        %v3072 = vadd.f32 %v1883, %v2701
        %v3073 = vadd.f32 %v1884, %v2256
        %v3074 = vadd.f32 %v1885, %v2258
        %v3075 = vadd.f32 %v1886, %v2705
        %v3076 = vadd.f32 %v1887, %v2707
        %v3077 = vadd.f32 %v1888, %v2262
        %v3078 = vadd.f32 %v1889, %v2264
        %v3079 = vadd.f32 %v1890, %v2711
        %v3080 = vadd.f32 %v1891, %v2713
        %v3081 = vadd.f32 %v1892, %v2268
        %v3082 = vadd.f32 %v1893, %v2270
        %v3083 = vadd.f32 %v1894, %v2717
        %v3084 = vadd.f32 %v1895, %v2719
        %v3085 = vadd.f32 %v1896, %v2274
        %v3086 = vadd.f32 %v1897, %v2276
        %v3087 = vadd.f32 %v1898, %v2723
        %v3088 = vadd.f32 %v1899, %v2725
        %v3089 = vadd.f32 %v1900, %v2280
        %v3090 = vadd.f32 %v1901, %v2282
        %v3091 = vadd.f32 %v1902, %v2729
        %v3092 = vadd.f32 %v1903, %v2731
        %v3093 = vadd.f32 %v1904, %v2286
        %v3094 = vadd.f32 %v1905, %v2288
        %v3095 = vadd.f32 %v1906, %v2735
        %v3096 = vadd.f32 %v1907, %v2737
        %v3097 = vadd.f32 %v1908, %v2292
        %v3098 = vadd.f32 %v1909, %v2294
        %v3099 = vadd.f32 %v1910, %v2741
        %v3100 = vadd.f32 %v1911, %v2743
        %v3101 = vadd.f32 %v1912, %v2298
        %v3102 = vadd.f32 %v1913, %v2300
        %v3103 = vadd.f32 %v1914, %v2747
        %v3104 = vadd.f32 %v1915, %v2749
        %v3105 = vadd.f32 %v1916, %v2304
        %v3106 = vadd.f32 %v1917, %v2306
        %v3107 = vadd.f32 %v1918, %v2753
        %v3108 = vadd.f32 %v1919, %v2755
        %v3109 = vadd.f32 %v1920, %v2310
        %v3110 = vadd.f32 %v1921, %v2312
        %v3111 = vadd.f32 %v1922, %v2759
        %v3112 = vadd.f32 %v1923, %v2761
        %v3113 = vadd.f32 %v1924, %v2316
        %v3114 = vadd.f32 %v1925, %v2318
        %v3115 = vadd.f32 %v1926, %v2765
        %v3116 = vadd.f32 %v1927, %v2767
        %v3117 = vadd.f32 %v1928, %v2322
        %v3118 = vadd.f32 %v1929, %v2324
        %v3119 = vadd.f32 %v1930, %v2771
        %v3120 = vadd.f32 %v1931, %v2773
        %v3121 = vadd.f32 %v1932, %v2328
        %v3122 = vadd.f32 %v1933, %v2330
        %v3123 = vadd.f32 %v1934, %v2777
        %v3124 = vadd.f32 %v1935, %v2779
        %v3125 = vadd.f32 %v1936, %v2334
        %v3126 = vadd.f32 %v1937, %v2336
        %v3127 = vadd.f32 %v1938, %v2783
        %v3128 = vadd.f32 %v1939, %v2785
        %v3129 = vadd.f32 %v1940, %v2340
        %v3130 = vadd.f32 %v1941, %v2342
        %v3131 = vadd.f32 %v1942, %v2789
        %v3132 = vadd.f32 %v1943, %v2791
        %v3133 = vadd.f32 %v1944, %v2346
        %v3134 = vadd.f32 %v1945, %v2348
        %v3135 = vadd.f32 %v1946, %v2795
        %v3136 = vadd.f32 %v1947, %v2797
        %v3137 = vadd.f32 %v1948, %v2352
        %v3138 = vadd.f32 %v1949, %v2354
        %v3139 = vadd.f32 %v1950, %v2801
        %v3140 = vadd.f32 %v1951, %v2803
        %v3141 = vadd.f32 %v1952, %v2358
        %v3142 = vadd.f32 %v1953, %v2360
        %v3143 = vadd.f32 %v1954, %v2807
        %v3144 = vadd.f32 %v1955, %v2809
        %v3145 = vadd.f32 %v1956, %v2364
        %v3146 = vadd.f32 %v1957, %v2366
        %v3147 = vadd.f32 %v1958, %v2813
        %v3148 = vadd.f32 %v1959, %v2815
        %v3149 = vadd.f32 %v1960, %v2370
        %v3150 = vadd.f32 %v1961, %v2372
        %v3151 = vadd.f32 %v1962, %v2819
        %v3152 = vadd.f32 %v1963, %v2821
        %v3153 = vadd.f32 %v1964, %v2376
        %v3154 = vadd.f32 %v1965, %v2378
        %v3155 = vadd.f32 %v1966, %v2825
        %v3156 = vadd.f32 %v1967, %v2827
        %v3157 = vadd.f32 %v1968, %v2382
        %v3158 = vadd.f32 %v1969, %v2384
        %v3159 = vadd.f32 %v1970, %v2831
        %v3160 = vadd.f32 %v1971, %v2833
        %v3161 = vadd.f32 %v1972, %v2388
        %v3162 = vadd.f32 %v1973, %v2390
        %v3163 = vadd.f32 %v1974, %v2837
        %v3164 = vadd.f32 %v1975, %v2839
        %v3165 = vadd.f32 %v1976, %v2394
        %v3166 = vadd.f32 %v1977, %v2396
        %v3167 = vadd.f32 %v1978, %v2843
        %v3168 = vadd.f32 %v1979, %v2845
        %v3169 = vadd.f32 %v1980, %v2400
        %v3170 = vadd.f32 %v1981, %v2402
        %v3171 = vadd.f32 %v1982, %v2849
        %v3172 = vadd.f32 %v1983, %v2851
        %v3173 = vadd.f32 %v1984, %v2406
        %v3174 = vadd.f32 %v1985, %v2408
        %v3175 = vadd.f32 %v1986, %v2855
        %v3176 = vadd.f32 %v1987, %v2857
        %v3177 = vadd.f32 %v1988, %v2412
        %v3178 = vadd.f32 %v1989, %v2414
        %v3179 = vadd.f32 %v1990, %v2861
        %v3180 = vadd.f32 %v1991, %v2863
        %v3181 = vadd.f32 %v1992, %v2418
        %v3182 = vadd.f32 %v1993, %v2420
        %v3183 = vadd.f32 %v1994, %v2867
        %v3184 = vadd.f32 %v1995, %v2869
        %v3185 = vadd.f32 %v1996, %v2424
        %v3186 = vadd.f32 %v1997, %v2426
        %v3187 = vadd.f32 %v1998, %v2873
        %v3188 = vadd.f32 %v1999, %v2875
        %v3189 = vadd.f32 %v2000, %v2430
        %v3190 = vadd.f32 %v2001, %v2432
        %v3191 = vadd.f32 %v2002, %v2879
        %v3192 = vadd.f32 %v2003, %v2881
        %v3193 = vadd.f32 %v2004, %v2436
        %v3194 = vadd.f32 %v2005, %v2438
        %v3195 = vadd.f32 %v2006, %v2885
        %v3196 = vadd.f32 %v2007, %v2887
        %v3197 = vadd.f32 %v2008, %v2442
        %v3198 = vadd.f32 %v2009, %v2444
        %v3199 = vadd.f32 %v2010, %v2891
        %v3200 = vadd.f32 %v2011, %v2893
        %v3201 = vadd.f32 %v2012, %v2448
        %v3202 = vadd.f32 %v2013, %v2450
        %v3203 = vadd.f32 %v2014, %v2897
        %v3204 = vadd.f32 %v2015, %v2899
        %v3205 = vadd.f32 %v2016, %v2454
        %v3206 = vadd.f32 %v2017, %v2456
        %v3207 = vadd.f32 %v2018, %v2903
        %v3208 = vadd.f32 %v2019, %v2905
        %v3209 = vadd.f32 %v2020, %v2460
        %v3210 = vadd.f32 %v2021, %v2462
        %v3211 = vadd.f32 %v2022, %v2909
        %v3212 = vadd.f32 %v2023, %v2911
        %v3213 = vadd.f32 %v2024, %v2466
        %v3214 = vadd.f32 %v2025, %v2468
        %v3215 = vadd.f32 %v2026, %v2915
        %v3216 = vadd.f32 %v2027, %v2917
        %v3217 = vadd.f32 %v2028, %v2472
        %v3218 = vadd.f32 %v2029, %v2474
        %v3219 = vadd.f32 %v2030, %v2921
        %v3220 = vadd.f32 %v2031, %v2923
        %v3221 = vadd.f32 %v2032, %v2478
        %v3222 = vadd.f32 %v2033, %v2480
        %v3223 = vadd.f32 %v2034, %v2927
        %v3224 = vadd.f32 %v2035, %v2929
        %v3225 = vadd.f32 %v2036, %v2484
        %v3226 = vadd.f32 %v2037, %v2486
        %v3227 = vadd.f32 %v2038, %v2933
        %v3228 = vadd.f32 %v2039, %v2935
        %v3229 = vadd.f32 %v2040, %v2490
        %v3230 = vadd.f32 %v2041, %v2492
        %v3231 = vadd.f32 %v2042, %v2939
        %v3232 = vadd.f32 %v2043, %v2941
        %v3233 = vadd.f32 %v2044, %v2496
        %v3234 = vadd.f32 %v2045, %v2498
        %v3235 = vadd.f32 %v2046, %v2945
        %v3236 = vadd.f32 %v2047, %v2947
        %v3237 = vadd.f32 %v2048, %v2502
        %v3238 = vadd.f32 %v2049, %v2504
        %v3239 = vadd.f32 %v2050, %v2951
        %v3240 = vadd.f32 %v2051, %v2953
        %v3241 = vadd.f32 %v2052, %v2508
        %v3242 = vadd.f32 %v2053, %v2510
        %v3243 = vadd.f32 %v2054, %v2957
        %v3244 = vadd.f32 %v2055, %v2959
        %v3245 = vadd.f32 %v2056, %v2514
        %v3246 = vadd.f32 %v2057, %v2516
        %v3247 = vadd.f32 %v2058, %v2963
        %v3248 = vadd.f32 %v2059, %v2965
        %v3249 = vadd.f32 %v2060, %v2520
        %v3250 = vadd.f32 %v2061, %v2522
        %v3251 = vadd.f32 %v2062, %v2969
        %v3252 = vadd.f32 %v2063, %v2971
        %v3253 = vadd.f32 %v2064, %v2526
        %v3254 = vadd.f32 %v2065, %v2528
        %v3255 = vadd.f32 %v2066, %v2975
        %v3256 = vadd.f32 %v2067, %v2977
        %v3257 = vadd.f32 %v2068, %v2532
        %v3258 = vadd.f32 %v2069, %v2534
        %v3259 = vadd.f32 %v2070, %v2981
        %v3260 = vadd.f32 %v2071, %v2983
        %v3261 = vadd.f32 %v2072, %v2538
        %v3262 = vadd.f32 %v2073, %v2540
        %v3263 = vadd.f32 %v2074, %v2987
        %v3264 = vadd.f32 %v2075, %v2989
        %v3265 = vadd.f32 %v2076, %v2544
        %v3266 = vadd.f32 %v2077, %v2546
        %v3267 = vadd.f32 %v2078, %v2993
        %v3268 = vadd.f32 %v2079, %v2995
        %v3269 = vadd.f32 %v2080, %v2550
        %v3270 = vadd.f32 %v2081, %v2552
        %v3271 = vadd.f32 %v2082, %v2999
        %v3272 = vadd.f32 %v2083, %v3001
        %v3273 = vadd.f32 %v2084, %v2556
        %v3274 = vadd.f32 %v2085, %v2558
        %v3275 = vadd.f32 %v2086, %v3005
        %v3276 = vadd.f32 %v2087, %v3007
        %v3277 = vadd.f32 %v2088, %v2562
        %v3278 = vadd.f32 %v2089, %v2564
        %v3279 = vadd.f32 %v2090, %v3011
        %v3280 = vadd.f32 %v2091, %v3013
        %v3281 = vadd.f32 %v2092, %v2568
        %v3282 = vadd.f32 %v2093, %v2570
        %v3283 = vadd.f32 %v2094, %v3017
        %v3284 = vadd.f32 %v2095, %v3019
        %v3285 = vadd.f32 %v2096, %v2574
        %v3286 = vadd.f32 %v2097, %v2576
        %v3287 = vadd.f32 %v2098, %v3023
        %v3288 = vadd.f32 %v2099, %v3025
        %v3289 = vadd.f32 %v2100, %v2580
        %v3290 = vadd.f32 %v2101, %v2582
        %v3291 = vadd.f32 %v2102, %v3029
        %v3292 = vadd.f32 %v2103, %v3031
        %v3293 = vadd.f32 %v2104, %v2586
        %v3294 = vadd.f32 %v2105, %v2588
        %v3295 = vadd.f32 %v2106, %v3035
        %v3296 = vadd.f32 %v2107, %v3037
        %v3297 = vadd.f32 %v2108, %v2592
        %v3298 = vadd.f32 %v2109, %v2594
        %v3299 = vadd.f32 %v2110, %v3041
        %v3300 = vadd.f32 %v2111, %v3043
        %s3301 = scalar_lea.vmem %s1, 512
        %v3302 = vld [vmem:[%s3301] sm:$0xff]
        %v3303 = vld [vmem:[%s3301 + $0x8] sm:$0xff]
        %v3304 = vld [vmem:[%s3301 + $0x10] sm:$0xff]
        %v3305 = vld [vmem:[%s3301 + $0x18] sm:$0xff]
        %v3306 = vld [vmem:[%s3301 + $0x20] sm:$0xff]
        %v3307 = vld [vmem:[%s3301 + $0x28] sm:$0xff]
        %v3308 = vld [vmem:[%s3301 + $0x30] sm:$0xff]
        %v3309 = vld [vmem:[%s3301 + $0x38] sm:$0xff]
        %v3310 = vld [vmem:[%s3301 + $0x40] sm:$0xff]
        %v3311 = vld [vmem:[%s3301 + $0x48] sm:$0xff]
        %v3312 = vld [vmem:[%s3301 + $0x50] sm:$0xff]
        %v3313 = vld [vmem:[%s3301 + $0x58] sm:$0xff]
        %v3314 = vld [vmem:[%s3301 + $0x60] sm:$0xff]
        %v3315 = vld [vmem:[%s3301 + $0x68] sm:$0xff]
        %v3316 = vld [vmem:[%s3301 + $0x70] sm:$0xff]
        %v3317 = vld [vmem:[%s3301 + $0x78] sm:$0xff]
        %v3318 = vld [vmem:[%s3301 + $0x80] sm:$0xff]
        %v3319 = vld [vmem:[%s3301 + $0x88] sm:$0xff]
        %v3320 = vld [vmem:[%s3301 + $0x90] sm:$0xff]
        %v3321 = vld [vmem:[%s3301 + $0x98] sm:$0xff]
        %v3322 = vld [vmem:[%s3301 + $0xa0] sm:$0xff]
        %v3323 = vld [vmem:[%s3301 + $0xa8] sm:$0xff]
        %v3324 = vld [vmem:[%s3301 + $0xb0] sm:$0xff]
        %v3325 = vld [vmem:[%s3301 + $0xb8] sm:$0xff]
        %v3326 = vld [vmem:[%s3301 + $0xc0] sm:$0xff]
        %v3327 = vld [vmem:[%s3301 + $0xc8] sm:$0xff]
        %v3328 = vld [vmem:[%s3301 + $0xd0] sm:$0xff]
        %v3329 = vld [vmem:[%s3301 + $0xd8] sm:$0xff]
        %v3330 = vld [vmem:[%s3301 + $0xe0] sm:$0xff]
        %v3331 = vld [vmem:[%s3301 + $0xe8] sm:$0xff]
        %v3332 = vld [vmem:[%s3301 + $0xf0] sm:$0xff]
        %v3333 = vld [vmem:[%s3301 + $0xf8] sm:$0xff]
        %3334 = vmatprep.subr.mxu0 %v3303
        %3335 = vmatpush1.msra.mxu0 %v3302
        %3336 = vmatprep.subr.mxu0 %v3307
        %3337 = vmatpush1.msra.mxu0 %v3306
        %3338 = vmatprep.subr.mxu0 %v3311
        %3339 = vmatpush1.msra.mxu0 %v3310
        %3340 = vmatprep.subr.mxu0 %v3315
        %3341 = vmatpush1.msra.mxu0 %v3314
        %3342 = vmatprep.subr.mxu0 %v3319
        %3343 = vmatpush1.msra.mxu0 %v3318
        %3344 = vmatprep.subr.mxu0 %v3323
        %3345 = vmatpush1.msra.mxu0 %v3322
        %3346 = vmatprep.subr.mxu0 %v3327
        %3347 = vmatpush1.msra.mxu0 %v3326
        %3348 = vmatprep.subr.mxu0 %v3331
        %3349 = vmatpush1.msra.mxu0 %v3330
        %3350 = vmatprep.subr.mxu0 0.0
        %3351 = vmatpush1.msra.mxu0 0.0
        %3352 = vmatprep.subr.mxu0 0.0
        %3353 = vmatpush1.msra.mxu0 0.0
        %3354 = vmatprep.subr.mxu0 0.0
        %3355 = vmatpush1.msra.mxu0 0.0
        %3356 = vmatprep.subr.mxu0 0.0
        %3357 = vmatpush1.msra.mxu0 0.0
        %3358 = vmatprep.subr.mxu0 0.0
        %3359 = vmatpush1.msra.mxu0 0.0
        %3360 = vmatprep.subr.mxu0 0.0
        %3361 = vmatpush1.msra.mxu0 0.0
        %3362 = vmatprep.subr.mxu0 0.0
        %3363 = vmatpush1.msra.mxu0 0.0
        %3364 = vmatprep.subr.mxu0 0.0
        %3365 = vmatpush1.msra.mxu0 0.0
        %3366 = vmatprep.subr.mxu0 0.0
        %3367 = vmatpush1.msra.mxu0 0.0
        %3368 = vmatprep.subr.mxu0 0.0
        %3369 = vmatpush1.msra.mxu0 0.0
        %3370 = vmatprep.subr.mxu0 0.0
        %3371 = vmatpush1.msra.mxu0 0.0
        %3372 = vmatprep.subr.mxu0 0.0
        %3373 = vmatpush1.msra.mxu0 0.0
        %3374 = vmatprep.subr.mxu0 0.0
        %3375 = vmatpush1.msra.mxu0 0.0
        %3376 = vmatprep.subr.mxu0 0.0
        %3377 = vmatpush1.msra.mxu0 0.0
        %3378 = vmatprep.subr.mxu0 0.0
        %3379 = vmatpush1.msra.mxu0 0.0
        %3380 = vmatprep.subr.mxu0 0.0
        %3381 = vmatpush1.msra.mxu0 0.0
        %3382 = vmatprep.subr.mxu0 0.0
        %3383 = vmatpush1.msra.mxu0 0.0
        %3384 = vmatprep.subr.mxu0 0.0
        %3385 = vmatpush1.msra.mxu0 0.0
        %3386 = vmatprep.subr.mxu0 0.0
        %3387 = vmatpush1.msra.mxu0 0.0
        %3388 = vmatprep.subr.mxu0 0.0
        %3389 = vmatpush1.msra.mxu0 0.0
        %3390 = vmatprep.subr.mxu0 0.0
        %3391 = vmatpush1.msra.mxu0 0.0
        %3392 = vmatprep.subr.mxu0 0.0
        %3393 = vmatpush1.msra.mxu0 0.0
        %3394 = vmatprep.subr.mxu0 0.0
        %3395 = vmatpush1.msra.mxu0 0.0
        %3396 = vmatprep.subr.mxu0 0.0
        %3397 = vmatpush1.msra.mxu0 0.0
        %3398 = vmatprep.mubr.f32.mxu0 0.0
        %3399 = vmatmul.mubr.f32.gmra.mrb[0].mxu0 %v749
        %v3400 = vpop.f32.mrb[0].mxu0
        %v3401 = vadd.f32 0.0, %v3400
        %v3402 = vpop.f32.mrb[0].mxu0
        %v3403 = vadd.f32 0.0, %v3402
        %3404 = vmatprep.mubr.f32.mxu0 0.0
        %3405 = vmatmul.mubr.f32.gmra.mrb[0].mxu0 %v752
        %v3406 = vpop.f32.mrb[0].mxu0
        %v3407 = vadd.f32 0.0, %v3406
        %v3408 = vpop.f32.mrb[0].mxu0
        %v3409 = vadd.f32 0.0, %v3408
        %3410 = vmatprep.mubr.f32.mxu0 0.0
        %3411 = vmatmul.mubr.f32.gmra.mrb[0].mxu0 %v755
        %v3412 = vpop.f32.mrb[0].mxu0
        %v3413 = vadd.f32 0.0, %v3412
        %v3414 = vpop.f32.mrb[0].mxu0
        %v3415 = vadd.f32 0.0, %v3414
        %3416 = vmatprep.mubr.f32.mxu0 0.0
        %3417 = vmatmul.mubr.f32.gmra.mrb[0].mxu0 %v758
        %v3418 = vpop.f32.mrb[0].mxu0
        %v3419 = vadd.f32 0.0, %v3418
        %v3420 = vpop.f32.mrb[0].mxu0
        %v3421 = vadd.f32 0.0, %v3420
        %3422 = vmatprep.mubr.f32.mxu0 0.0
        %3423 = vmatmul.mubr.f32.gmra.mrb[0].mxu0 %v761
        %v3424 = vpop.f32.mrb[0].mxu0
        %v3425 = vadd.f32 0.0, %v3424
        %v3426 = vpop.f32.mrb[0].mxu0
        %v3427 = vadd.f32 0.0, %v3426
        %3428 = vmatprep.mubr.f32.mxu0 0.0
        %3429 = vmatmul.mubr.f32.gmra.mrb[0].mxu0 %v764
        %v3430 = vpop.f32.mrb[0].mxu0
        %v3431 = vadd.f32 0.0, %v3430
        %v3432 = vpop.f32.mrb[0].mxu0
        %v3433 = vadd.f32 0.0, %v3432
        %3434 = vmatprep.mubr.f32.mxu0 0.0
        %3435 = vmatmul.mubr.f32.gmra.mrb[0].mxu0 %v767
        %v3436 = vpop.f32.mrb[0].mxu0
        %v3437 = vadd.f32 0.0, %v3436
        %v3438 = vpop.f32.mrb[0].mxu0
        %v3439 = vadd.f32 0.0, %v3438
        %3440 = vmatprep.mubr.f32.mxu0 0.0
        %3441 = vmatmul.mubr.f32.gmra.mrb[0].mxu0 %v770
        %v3442 = vpop.f32.mrb[0].mxu0
        %v3443 = vadd.f32 0.0, %v3442
        %v3444 = vpop.f32.mrb[0].mxu0
        %v3445 = vadd.f32 0.0, %v3444
        %3446 = vmatprep.mubr.f32.mxu0 0.0
        %3447 = vmatmul.mubr.f32.gmra.mrb[0].mxu0 %v773
        %v3448 = vpop.f32.mrb[0].mxu0
        %v3449 = vadd.f32 0.0, %v3448
        %v3450 = vpop.f32.mrb[0].mxu0
        %v3451 = vadd.f32 0.0, %v3450
        %3452 = vmatprep.mubr.f32.mxu0 0.0
        %3453 = vmatmul.mubr.f32.gmra.mrb[0].mxu0 %v776
        %v3454 = vpop.f32.mrb[0].mxu0
        %v3455 = vadd.f32 0.0, %v3454
        %v3456 = vpop.f32.mrb[0].mxu0
        %v3457 = vadd.f32 0.0, %v3456
        %3458 = vmatprep.mubr.f32.mxu0 0.0
        %3459 = vmatmul.mubr.f32.gmra.mrb[0].mxu0 %v779
        %v3460 = vpop.f32.mrb[0].mxu0
        %v3461 = vadd.f32 0.0, %v3460
        %v3462 = vpop.f32.mrb[0].mxu0
        %v3463 = vadd.f32 0.0, %v3462
        %3464 = vmatprep.mubr.f32.mxu0 0.0
        %3465 = vmatmul.mubr.f32.gmra.mrb[0].mxu0 %v782
        %v3466 = vpop.f32.mrb[0].mxu0
        %v3467 = vadd.f32 0.0, %v3466
        %v3468 = vpop.f32.mrb[0].mxu0
        %v3469 = vadd.f32 0.0, %v3468
        %3470 = vmatprep.mubr.f32.mxu0 0.0
        %3471 = vmatmul.mubr.f32.gmra.mrb[0].mxu0 %v785
        %v3472 = vpop.f32.mrb[0].mxu0
        %v3473 = vadd.f32 0.0, %v3472
        %v3474 = vpop.f32.mrb[0].mxu0
        %v3475 = vadd.f32 0.0, %v3474
        %3476 = vmatprep.mubr.f32.mxu0 0.0
        %3477 = vmatmul.mubr.f32.gmra.mrb[0].mxu0 %v788
        %v3478 = vpop.f32.mrb[0].mxu0
        %v3479 = vadd.f32 0.0, %v3478
        %v3480 = vpop.f32.mrb[0].mxu0
        %v3481 = vadd.f32 0.0, %v3480
        %3482 = vmatprep.mubr.f32.mxu0 0.0
        %3483 = vmatmul.mubr.f32.gmra.mrb[0].mxu0 %v791
        %v3484 = vpop.f32.mrb[0].mxu0
        %v3485 = vadd.f32 0.0, %v3484
        %v3486 = vpop.f32.mrb[0].mxu0
        %v3487 = vadd.f32 0.0, %v3486
        %3488 = vmatprep.mubr.f32.mxu0 0.0
        %3489 = vmatmul.mubr.f32.gmra.mrb[0].mxu0 %v794
        %v3490 = vpop.f32.mrb[0].mxu0
        %v3491 = vadd.f32 0.0, %v3490
        %v3492 = vpop.f32.mrb[0].mxu0
        %v3493 = vadd.f32 0.0, %v3492
        %3494 = vmatprep.mubr.f32.mxu0 0.0
        %3495 = vmatmul.mubr.f32.gmra.mrb[0].mxu0 %v797
        %v3496 = vpop.f32.mrb[0].mxu0
        %v3497 = vadd.f32 0.0, %v3496
        %v3498 = vpop.f32.mrb[0].mxu0
        %v3499 = vadd.f32 0.0, %v3498
        %3500 = vmatprep.mubr.f32.mxu0 0.0
        %3501 = vmatmul.mubr.f32.gmra.mrb[0].mxu0 %v800
        %v3502 = vpop.f32.mrb[0].mxu0
        %v3503 = vadd.f32 0.0, %v3502
        %v3504 = vpop.f32.mrb[0].mxu0
        %v3505 = vadd.f32 0.0, %v3504
        %3506 = vmatprep.mubr.f32.mxu0 0.0
        %3507 = vmatmul.mubr.f32.gmra.mrb[0].mxu0 %v803
        %v3508 = vpop.f32.mrb[0].mxu0
        %v3509 = vadd.f32 0.0, %v3508
        %v3510 = vpop.f32.mrb[0].mxu0
        %v3511 = vadd.f32 0.0, %v3510
        %3512 = vmatprep.mubr.f32.mxu0 0.0
        %3513 = vmatmul.mubr.f32.gmra.mrb[0].mxu0 %v806
        %v3514 = vpop.f32.mrb[0].mxu0
        %v3515 = vadd.f32 0.0, %v3514
        %v3516 = vpop.f32.mrb[0].mxu0
        %v3517 = vadd.f32 0.0, %v3516
        %3518 = vmatprep.mubr.f32.mxu0 0.0
        %3519 = vmatmul.mubr.f32.gmra.mrb[0].mxu0 %v809
        %v3520 = vpop.f32.mrb[0].mxu0
        %v3521 = vadd.f32 0.0, %v3520
        %v3522 = vpop.f32.mrb[0].mxu0
        %v3523 = vadd.f32 0.0, %v3522
        %3524 = vmatprep.mubr.f32.mxu0 0.0
        %3525 = vmatmul.mubr.f32.gmra.mrb[0].mxu0 %v812
        %v3526 = vpop.f32.mrb[0].mxu0
        %v3527 = vadd.f32 0.0, %v3526
        %v3528 = vpop.f32.mrb[0].mxu0
        %v3529 = vadd.f32 0.0, %v3528
        %3530 = vmatprep.mubr.f32.mxu0 0.0
        %3531 = vmatmul.mubr.f32.gmra.mrb[0].mxu0 %v815
        %v3532 = vpop.f32.mrb[0].mxu0
        %v3533 = vadd.f32 0.0, %v3532
        %v3534 = vpop.f32.mrb[0].mxu0
        %v3535 = vadd.f32 0.0, %v3534
        %3536 = vmatprep.mubr.f32.mxu0 0.0
        %3537 = vmatmul.mubr.f32.gmra.mrb[0].mxu0 %v818
        %v3538 = vpop.f32.mrb[0].mxu0
        %v3539 = vadd.f32 0.0, %v3538
        %v3540 = vpop.f32.mrb[0].mxu0
        %v3541 = vadd.f32 0.0, %v3540
        %3542 = vmatprep.mubr.f32.mxu0 0.0
        %3543 = vmatmul.mubr.f32.gmra.mrb[0].mxu0 %v821
        %v3544 = vpop.f32.mrb[0].mxu0
        %v3545 = vadd.f32 0.0, %v3544
        %v3546 = vpop.f32.mrb[0].mxu0
        %v3547 = vadd.f32 0.0, %v3546
        %3548 = vmatprep.mubr.f32.mxu0 0.0
        %3549 = vmatmul.mubr.f32.gmra.mrb[0].mxu0 %v824
        %v3550 = vpop.f32.mrb[0].mxu0
        %v3551 = vadd.f32 0.0, %v3550
        %v3552 = vpop.f32.mrb[0].mxu0
        %v3553 = vadd.f32 0.0, %v3552
        %3554 = vmatprep.mubr.f32.mxu0 0.0
        %3555 = vmatmul.mubr.f32.gmra.mrb[0].mxu0 %v827
        %v3556 = vpop.f32.mrb[0].mxu0
        %v3557 = vadd.f32 0.0, %v3556
        %v3558 = vpop.f32.mrb[0].mxu0
        %v3559 = vadd.f32 0.0, %v3558
        %3560 = vmatprep.mubr.f32.mxu0 0.0
        %3561 = vmatmul.mubr.f32.gmra.mrb[0].mxu0 %v830
        %v3562 = vpop.f32.mrb[0].mxu0
        %v3563 = vadd.f32 0.0, %v3562
        %v3564 = vpop.f32.mrb[0].mxu0
        %v3565 = vadd.f32 0.0, %v3564
        %3566 = vmatprep.mubr.f32.mxu0 0.0
        %3567 = vmatmul.mubr.f32.gmra.mrb[0].mxu0 %v833
        %v3568 = vpop.f32.mrb[0].mxu0
        %v3569 = vadd.f32 0.0, %v3568
        %v3570 = vpop.f32.mrb[0].mxu0
        %v3571 = vadd.f32 0.0, %v3570
        %3572 = vmatprep.mubr.f32.mxu0 0.0
        %3573 = vmatmul.mubr.f32.gmra.mrb[0].mxu0 %v836
        %v3574 = vpop.f32.mrb[0].mxu0
        %v3575 = vadd.f32 0.0, %v3574
        %v3576 = vpop.f32.mrb[0].mxu0
        %v3577 = vadd.f32 0.0, %v3576
        %3578 = vmatprep.mubr.f32.mxu0 0.0
        %3579 = vmatmul.mubr.f32.gmra.mrb[0].mxu0 %v839
        %v3580 = vpop.f32.mrb[0].mxu0
        %v3581 = vadd.f32 0.0, %v3580
        %v3582 = vpop.f32.mrb[0].mxu0
        %v3583 = vadd.f32 0.0, %v3582
        %3584 = vmatprep.mubr.f32.mxu0 0.0
        %3585 = vmatmul.mubr.f32.gmra.mrb[0].mxu0 %v842
        %v3586 = vpop.f32.mrb[0].mxu0
        %v3587 = vadd.f32 0.0, %v3586
        %v3588 = vpop.f32.mrb[0].mxu0
        %v3589 = vadd.f32 0.0, %v3588
        %3590 = vmatprep.mubr.f32.mxu0 0.0
        %3591 = vmatmul.mubr.f32.gmra.mrb[0].mxu0 %v845
        %v3592 = vpop.f32.mrb[0].mxu0
        %v3593 = vadd.f32 0.0, %v3592
        %v3594 = vpop.f32.mrb[0].mxu0
        %v3595 = vadd.f32 0.0, %v3594
        %3596 = vmatprep.mubr.f32.mxu0 0.0
        %3597 = vmatmul.mubr.f32.gmra.mrb[0].mxu0 %v848
        %v3598 = vpop.f32.mrb[0].mxu0
        %v3599 = vadd.f32 0.0, %v3598
        %v3600 = vpop.f32.mrb[0].mxu0
        %v3601 = vadd.f32 0.0, %v3600
        %3602 = vmatprep.mubr.f32.mxu0 0.0
        %3603 = vmatmul.mubr.f32.gmra.mrb[0].mxu0 %v851
        %v3604 = vpop.f32.mrb[0].mxu0
        %v3605 = vadd.f32 0.0, %v3604
        %v3606 = vpop.f32.mrb[0].mxu0
        %v3607 = vadd.f32 0.0, %v3606
        %3608 = vmatprep.mubr.f32.mxu0 0.0
        %3609 = vmatmul.mubr.f32.gmra.mrb[0].mxu0 %v854
        %v3610 = vpop.f32.mrb[0].mxu0
        %v3611 = vadd.f32 0.0, %v3610
        %v3612 = vpop.f32.mrb[0].mxu0
        %v3613 = vadd.f32 0.0, %v3612
        %3614 = vmatprep.mubr.f32.mxu0 0.0
        %3615 = vmatmul.mubr.f32.gmra.mrb[0].mxu0 %v857
        %v3616 = vpop.f32.mrb[0].mxu0
        %v3617 = vadd.f32 0.0, %v3616
        %v3618 = vpop.f32.mrb[0].mxu0
        %v3619 = vadd.f32 0.0, %v3618
        %3620 = vmatprep.mubr.f32.mxu0 0.0
        %3621 = vmatmul.mubr.f32.gmra.mrb[0].mxu0 %v860
        %v3622 = vpop.f32.mrb[0].mxu0
        %v3623 = vadd.f32 0.0, %v3622
        %v3624 = vpop.f32.mrb[0].mxu0
        %v3625 = vadd.f32 0.0, %v3624
        %3626 = vmatprep.mubr.f32.mxu0 0.0
        %3627 = vmatmul.mubr.f32.gmra.mrb[0].mxu0 %v863
        %v3628 = vpop.f32.mrb[0].mxu0
        %v3629 = vadd.f32 0.0, %v3628
        %v3630 = vpop.f32.mrb[0].mxu0
        %v3631 = vadd.f32 0.0, %v3630
        %3632 = vmatprep.mubr.f32.mxu0 0.0
        %3633 = vmatmul.mubr.f32.gmra.mrb[0].mxu0 %v866
        %v3634 = vpop.f32.mrb[0].mxu0
        %v3635 = vadd.f32 0.0, %v3634
        %v3636 = vpop.f32.mrb[0].mxu0
        %v3637 = vadd.f32 0.0, %v3636
        %3638 = vmatprep.mubr.f32.mxu0 0.0
        %3639 = vmatmul.mubr.f32.gmra.mrb[0].mxu0 %v869
        %v3640 = vpop.f32.mrb[0].mxu0
        %v3641 = vadd.f32 0.0, %v3640
        %v3642 = vpop.f32.mrb[0].mxu0
        %v3643 = vadd.f32 0.0, %v3642
        %3644 = vmatprep.mubr.f32.mxu0 0.0
        %3645 = vmatmul.mubr.f32.gmra.mrb[0].mxu0 %v872
        %v3646 = vpop.f32.mrb[0].mxu0
        %v3647 = vadd.f32 0.0, %v3646
        %v3648 = vpop.f32.mrb[0].mxu0
        %v3649 = vadd.f32 0.0, %v3648
        %3650 = vmatprep.mubr.f32.mxu0 0.0
        %3651 = vmatmul.mubr.f32.gmra.mrb[0].mxu0 %v875
        %v3652 = vpop.f32.mrb[0].mxu0
        %v3653 = vadd.f32 0.0, %v3652
        %v3654 = vpop.f32.mrb[0].mxu0
        %v3655 = vadd.f32 0.0, %v3654
        %3656 = vmatprep.mubr.f32.mxu0 0.0
        %3657 = vmatmul.mubr.f32.gmra.mrb[0].mxu0 %v878
        %v3658 = vpop.f32.mrb[0].mxu0
        %v3659 = vadd.f32 0.0, %v3658
        %v3660 = vpop.f32.mrb[0].mxu0
        %v3661 = vadd.f32 0.0, %v3660
        %3662 = vmatprep.mubr.f32.mxu0 0.0
        %3663 = vmatmul.mubr.f32.gmra.mrb[0].mxu0 %v881
        %v3664 = vpop.f32.mrb[0].mxu0
        %v3665 = vadd.f32 0.0, %v3664
        %v3666 = vpop.f32.mrb[0].mxu0
        %v3667 = vadd.f32 0.0, %v3666
        %3668 = vmatprep.mubr.f32.mxu0 0.0
        %3669 = vmatmul.mubr.f32.gmra.mrb[0].mxu0 %v884
        %v3670 = vpop.f32.mrb[0].mxu0
        %v3671 = vadd.f32 0.0, %v3670
        %v3672 = vpop.f32.mrb[0].mxu0
        %v3673 = vadd.f32 0.0, %v3672
        %3674 = vmatprep.mubr.f32.mxu0 0.0
        %3675 = vmatmul.mubr.f32.gmra.mrb[0].mxu0 %v887
        %v3676 = vpop.f32.mrb[0].mxu0
        %v3677 = vadd.f32 0.0, %v3676
        %v3678 = vpop.f32.mrb[0].mxu0
        %v3679 = vadd.f32 0.0, %v3678
        %3680 = vmatprep.mubr.f32.mxu0 0.0
        %3681 = vmatmul.mubr.f32.gmra.mrb[0].mxu0 %v890
        %v3682 = vpop.f32.mrb[0].mxu0
        %v3683 = vadd.f32 0.0, %v3682
        %v3684 = vpop.f32.mrb[0].mxu0
        %v3685 = vadd.f32 0.0, %v3684
        %3686 = vmatprep.mubr.f32.mxu0 0.0
        %3687 = vmatmul.mubr.f32.gmra.mrb[0].mxu0 %v893
        %v3688 = vpop.f32.mrb[0].mxu0
        %v3689 = vadd.f32 0.0, %v3688
        %v3690 = vpop.f32.mrb[0].mxu0
        %v3691 = vadd.f32 0.0, %v3690
        %3692 = vmatprep.mubr.f32.mxu0 0.0
        %3693 = vmatmul.mubr.f32.gmra.mrb[0].mxu0 %v896
        %v3694 = vpop.f32.mrb[0].mxu0
        %v3695 = vadd.f32 0.0, %v3694
        %v3696 = vpop.f32.mrb[0].mxu0
        %v3697 = vadd.f32 0.0, %v3696
        %3698 = vmatprep.mubr.f32.mxu0 0.0
        %3699 = vmatmul.mubr.f32.gmra.mrb[0].mxu0 %v899
        %v3700 = vpop.f32.mrb[0].mxu0
        %v3701 = vadd.f32 0.0, %v3700
        %v3702 = vpop.f32.mrb[0].mxu0
        %v3703 = vadd.f32 0.0, %v3702
        %3704 = vmatprep.mubr.f32.mxu0 0.0
        %3705 = vmatmul.mubr.f32.gmra.mrb[0].mxu0 %v902
        %v3706 = vpop.f32.mrb[0].mxu0
        %v3707 = vadd.f32 0.0, %v3706
        %v3708 = vpop.f32.mrb[0].mxu0
        %v3709 = vadd.f32 0.0, %v3708
        %3710 = vmatprep.mubr.f32.mxu0 0.0
        %3711 = vmatmul.mubr.f32.gmra.mrb[0].mxu0 %v905
        %v3712 = vpop.f32.mrb[0].mxu0
        %v3713 = vadd.f32 0.0, %v3712
        %v3714 = vpop.f32.mrb[0].mxu0
        %v3715 = vadd.f32 0.0, %v3714
        %3716 = vmatprep.mubr.f32.mxu0 0.0
        %3717 = vmatmul.mubr.f32.gmra.mrb[0].mxu0 %v908
        %v3718 = vpop.f32.mrb[0].mxu0
        %v3719 = vadd.f32 0.0, %v3718
        %v3720 = vpop.f32.mrb[0].mxu0
        %v3721 = vadd.f32 0.0, %v3720
        %3722 = vmatprep.mubr.f32.mxu0 0.0
        %3723 = vmatmul.mubr.f32.gmra.mrb[0].mxu0 %v911
        %v3724 = vpop.f32.mrb[0].mxu0
        %v3725 = vadd.f32 0.0, %v3724
        %v3726 = vpop.f32.mrb[0].mxu0
        %v3727 = vadd.f32 0.0, %v3726
        %3728 = vmatprep.mubr.f32.mxu0 0.0
        %3729 = vmatmul.mubr.f32.gmra.mrb[0].mxu0 %v914
        %v3730 = vpop.f32.mrb[0].mxu0
        %v3731 = vadd.f32 0.0, %v3730
        %v3732 = vpop.f32.mrb[0].mxu0
        %v3733 = vadd.f32 0.0, %v3732
        %3734 = vmatprep.mubr.f32.mxu0 0.0
        %3735 = vmatmul.mubr.f32.gmra.mrb[0].mxu0 %v917
        %v3736 = vpop.f32.mrb[0].mxu0
        %v3737 = vadd.f32 0.0, %v3736
        %v3738 = vpop.f32.mrb[0].mxu0
        %v3739 = vadd.f32 0.0, %v3738
        %3740 = vmatprep.mubr.f32.mxu0 0.0
        %3741 = vmatmul.mubr.f32.gmra.mrb[0].mxu0 %v920
        %v3742 = vpop.f32.mrb[0].mxu0
        %v3743 = vadd.f32 0.0, %v3742
        %v3744 = vpop.f32.mrb[0].mxu0
        %v3745 = vadd.f32 0.0, %v3744
        %3746 = vmatprep.mubr.f32.mxu0 0.0
        %3747 = vmatmul.mubr.f32.gmra.mrb[0].mxu0 %v923
        %v3748 = vpop.f32.mrb[0].mxu0
        %v3749 = vadd.f32 0.0, %v3748
        %v3750 = vpop.f32.mrb[0].mxu0
        %v3751 = vadd.f32 0.0, %v3750
        %3752 = vmatprep.mubr.f32.mxu0 0.0
        %3753 = vmatmul.mubr.f32.gmra.mrb[0].mxu0 %v926
        %v3754 = vpop.f32.mrb[0].mxu0
        %v3755 = vadd.f32 0.0, %v3754
        %v3756 = vpop.f32.mrb[0].mxu0
        %v3757 = vadd.f32 0.0, %v3756
        %3758 = vmatprep.mubr.f32.mxu0 0.0
        %3759 = vmatmul.mubr.f32.gmra.mrb[0].mxu0 %v929
        %v3760 = vpop.f32.mrb[0].mxu0
        %v3761 = vadd.f32 0.0, %v3760
        %v3762 = vpop.f32.mrb[0].mxu0
        %v3763 = vadd.f32 0.0, %v3762
        %3764 = vmatprep.mubr.f32.mxu0 0.0
        %3765 = vmatmul.mubr.f32.gmra.mrb[0].mxu0 %v932
        %v3766 = vpop.f32.mrb[0].mxu0
        %v3767 = vadd.f32 0.0, %v3766
        %v3768 = vpop.f32.mrb[0].mxu0
        %v3769 = vadd.f32 0.0, %v3768
        %3770 = vmatprep.mubr.f32.mxu0 0.0
        %3771 = vmatmul.mubr.f32.gmra.mrb[0].mxu0 %v935
        %v3772 = vpop.f32.mrb[0].mxu0
        %v3773 = vadd.f32 0.0, %v3772
        %v3774 = vpop.f32.mrb[0].mxu0
        %v3775 = vadd.f32 0.0, %v3774
        %3776 = vmatprep.mubr.f32.mxu0 0.0
        %3777 = vmatmul.mubr.f32.gmra.mrb[0].mxu0 %v2145
        %v3778 = vpop.f32.mrb[0].mxu0
        %v3779 = vadd.f32 0.0, %v3778
        %v3780 = vpop.f32.mrb[0].mxu0
        %v3781 = vadd.f32 0.0, %v3780
        %3782 = vdwg.mxu0
        %3783 = vmatprep.subr.mxu0 %v3305
        %3784 = vmatpush1.msra.mxu0 %v3304
        %3785 = vmatprep.subr.mxu0 %v3309
        %3786 = vmatpush1.msra.mxu0 %v3308
        %3787 = vmatprep.subr.mxu0 %v3313
        %3788 = vmatpush1.msra.mxu0 %v3312
        %3789 = vmatprep.subr.mxu0 %v3317
        %3790 = vmatpush1.msra.mxu0 %v3316
        %3791 = vmatprep.subr.mxu0 %v3321
        %3792 = vmatpush1.msra.mxu0 %v3320
        %3793 = vmatprep.subr.mxu0 %v3325
        %3794 = vmatpush1.msra.mxu0 %v3324
        %3795 = vmatprep.subr.mxu0 %v3329
        %3796 = vmatpush1.msra.mxu0 %v3328
        %3797 = vmatprep.subr.mxu0 %v3333
        %3798 = vmatpush1.msra.mxu0 %v3332
        %3799 = vmatprep.subr.mxu0 0.0
        %3800 = vmatpush1.msra.mxu0 0.0
        %3801 = vmatprep.subr.mxu0 0.0
        %3802 = vmatpush1.msra.mxu0 0.0
        %3803 = vmatprep.subr.mxu0 0.0
        %3804 = vmatpush1.msra.mxu0 0.0
        %3805 = vmatprep.subr.mxu0 0.0
        %3806 = vmatpush1.msra.mxu0 0.0
        %3807 = vmatprep.subr.mxu0 0.0
        %3808 = vmatpush1.msra.mxu0 0.0
        %3809 = vmatprep.subr.mxu0 0.0
        %3810 = vmatpush1.msra.mxu0 0.0
        %3811 = vmatprep.subr.mxu0 0.0
        %3812 = vmatpush1.msra.mxu0 0.0
        %3813 = vmatprep.subr.mxu0 0.0
        %3814 = vmatpush1.msra.mxu0 0.0
        %3815 = vmatprep.subr.mxu0 0.0
        %3816 = vmatpush1.msra.mxu0 0.0
        %3817 = vmatprep.subr.mxu0 0.0
        %3818 = vmatpush1.msra.mxu0 0.0
        %3819 = vmatprep.subr.mxu0 0.0
        %3820 = vmatpush1.msra.mxu0 0.0
        %3821 = vmatprep.subr.mxu0 0.0
        %3822 = vmatpush1.msra.mxu0 0.0
        %3823 = vmatprep.subr.mxu0 0.0
        %3824 = vmatpush1.msra.mxu0 0.0
        %3825 = vmatprep.subr.mxu0 0.0
        %3826 = vmatpush1.msra.mxu0 0.0
        %3827 = vmatprep.subr.mxu0 0.0
        %3828 = vmatpush1.msra.mxu0 0.0
        %3829 = vmatprep.subr.mxu0 0.0
        %3830 = vmatpush1.msra.mxu0 0.0
        %3831 = vmatprep.subr.mxu0 0.0
        %3832 = vmatpush1.msra.mxu0 0.0
        %3833 = vmatprep.subr.mxu0 0.0
        %3834 = vmatpush1.msra.mxu0 0.0
        %3835 = vmatprep.subr.mxu0 0.0
        %3836 = vmatpush1.msra.mxu0 0.0
        %3837 = vmatprep.subr.mxu0 0.0
        %3838 = vmatpush1.msra.mxu0 0.0
        %3839 = vmatprep.subr.mxu0 0.0
        %3840 = vmatpush1.msra.mxu0 0.0
        %3841 = vmatprep.subr.mxu0 0.0
        %3842 = vmatpush1.msra.mxu0 0.0
        %3843 = vmatprep.subr.mxu0 0.0
        %3844 = vmatpush1.msra.mxu0 0.0
        %3845 = vmatprep.subr.mxu0 0.0
        %3846 = vmatpush1.msra.mxu0 0.0
        %3847 = vmatprep.mubr.f32.mxu0 0.0
        %3848 = vmatmul.mubr.f32.gmra.mrb[0].mxu0 %v749
        %v3849 = vpop.f32.mrb[0].mxu0
        %v3850 = vadd.f32 0.0, %v3849
        %v3851 = vpop.f32.mrb[0].mxu0
        %v3852 = vadd.f32 0.0, %v3851
        %3853 = vmatprep.mubr.f32.mxu0 0.0
        %3854 = vmatmul.mubr.f32.gmra.mrb[0].mxu0 %v752
        %v3855 = vpop.f32.mrb[0].mxu0
        %v3856 = vadd.f32 0.0, %v3855
        %v3857 = vpop.f32.mrb[0].mxu0
        %v3858 = vadd.f32 0.0, %v3857
        %3859 = vmatprep.mubr.f32.mxu0 0.0
        %3860 = vmatmul.mubr.f32.gmra.mrb[0].mxu0 %v755
        %v3861 = vpop.f32.mrb[0].mxu0
        %v3862 = vadd.f32 0.0, %v3861
        %v3863 = vpop.f32.mrb[0].mxu0
        %v3864 = vadd.f32 0.0, %v3863
        %3865 = vmatprep.mubr.f32.mxu0 0.0
        %3866 = vmatmul.mubr.f32.gmra.mrb[0].mxu0 %v758
        %v3867 = vpop.f32.mrb[0].mxu0
        %v3868 = vadd.f32 0.0, %v3867
        %v3869 = vpop.f32.mrb[0].mxu0
        %v3870 = vadd.f32 0.0, %v3869
        %3871 = vmatprep.mubr.f32.mxu0 0.0
        %3872 = vmatmul.mubr.f32.gmra.mrb[0].mxu0 %v761
        %v3873 = vpop.f32.mrb[0].mxu0
        %v3874 = vadd.f32 0.0, %v3873
        %v3875 = vpop.f32.mrb[0].mxu0
        %v3876 = vadd.f32 0.0, %v3875
        %3877 = vmatprep.mubr.f32.mxu0 0.0
        %3878 = vmatmul.mubr.f32.gmra.mrb[0].mxu0 %v764
        %v3879 = vpop.f32.mrb[0].mxu0
        %v3880 = vadd.f32 0.0, %v3879
        %v3881 = vpop.f32.mrb[0].mxu0
        %v3882 = vadd.f32 0.0, %v3881
        %3883 = vmatprep.mubr.f32.mxu0 0.0
        %3884 = vmatmul.mubr.f32.gmra.mrb[0].mxu0 %v767
        %v3885 = vpop.f32.mrb[0].mxu0
        %v3886 = vadd.f32 0.0, %v3885
        %v3887 = vpop.f32.mrb[0].mxu0
        %v3888 = vadd.f32 0.0, %v3887
        %3889 = vmatprep.mubr.f32.mxu0 0.0
        %3890 = vmatmul.mubr.f32.gmra.mrb[0].mxu0 %v770
        %v3891 = vpop.f32.mrb[0].mxu0
        %v3892 = vadd.f32 0.0, %v3891
        %v3893 = vpop.f32.mrb[0].mxu0
        %v3894 = vadd.f32 0.0, %v3893
        %3895 = vmatprep.mubr.f32.mxu0 0.0
        %3896 = vmatmul.mubr.f32.gmra.mrb[0].mxu0 %v773
        %v3897 = vpop.f32.mrb[0].mxu0
        %v3898 = vadd.f32 0.0, %v3897
        %v3899 = vpop.f32.mrb[0].mxu0
        %v3900 = vadd.f32 0.0, %v3899
        %3901 = vmatprep.mubr.f32.mxu0 0.0
        %3902 = vmatmul.mubr.f32.gmra.mrb[0].mxu0 %v776
        %v3903 = vpop.f32.mrb[0].mxu0
        %v3904 = vadd.f32 0.0, %v3903
        %v3905 = vpop.f32.mrb[0].mxu0
        %v3906 = vadd.f32 0.0, %v3905
        %3907 = vmatprep.mubr.f32.mxu0 0.0
        %3908 = vmatmul.mubr.f32.gmra.mrb[0].mxu0 %v779
        %v3909 = vpop.f32.mrb[0].mxu0
        %v3910 = vadd.f32 0.0, %v3909
        %v3911 = vpop.f32.mrb[0].mxu0
        %v3912 = vadd.f32 0.0, %v3911
        %3913 = vmatprep.mubr.f32.mxu0 0.0
        %3914 = vmatmul.mubr.f32.gmra.mrb[0].mxu0 %v782
        %v3915 = vpop.f32.mrb[0].mxu0
        %v3916 = vadd.f32 0.0, %v3915
        %v3917 = vpop.f32.mrb[0].mxu0
        %v3918 = vadd.f32 0.0, %v3917
        %3919 = vmatprep.mubr.f32.mxu0 0.0
        %3920 = vmatmul.mubr.f32.gmra.mrb[0].mxu0 %v785
        %v3921 = vpop.f32.mrb[0].mxu0
        %v3922 = vadd.f32 0.0, %v3921
        %v3923 = vpop.f32.mrb[0].mxu0
        %v3924 = vadd.f32 0.0, %v3923
        %3925 = vmatprep.mubr.f32.mxu0 0.0
        %3926 = vmatmul.mubr.f32.gmra.mrb[0].mxu0 %v788
        %v3927 = vpop.f32.mrb[0].mxu0
        %v3928 = vadd.f32 0.0, %v3927
        %v3929 = vpop.f32.mrb[0].mxu0
        %v3930 = vadd.f32 0.0, %v3929
        %3931 = vmatprep.mubr.f32.mxu0 0.0
        %3932 = vmatmul.mubr.f32.gmra.mrb[0].mxu0 %v791
        %v3933 = vpop.f32.mrb[0].mxu0
        %v3934 = vadd.f32 0.0, %v3933
        %v3935 = vpop.f32.mrb[0].mxu0
        %v3936 = vadd.f32 0.0, %v3935
        %3937 = vmatprep.mubr.f32.mxu0 0.0
        %3938 = vmatmul.mubr.f32.gmra.mrb[0].mxu0 %v794
        %v3939 = vpop.f32.mrb[0].mxu0
        %v3940 = vadd.f32 0.0, %v3939
        %v3941 = vpop.f32.mrb[0].mxu0
        %v3942 = vadd.f32 0.0, %v3941
        %3943 = vmatprep.mubr.f32.mxu0 0.0
        %3944 = vmatmul.mubr.f32.gmra.mrb[0].mxu0 %v797
        %v3945 = vpop.f32.mrb[0].mxu0
        %v3946 = vadd.f32 0.0, %v3945
        %v3947 = vpop.f32.mrb[0].mxu0
        %v3948 = vadd.f32 0.0, %v3947
        %3949 = vmatprep.mubr.f32.mxu0 0.0
        %3950 = vmatmul.mubr.f32.gmra.mrb[0].mxu0 %v800
        %v3951 = vpop.f32.mrb[0].mxu0
        %v3952 = vadd.f32 0.0, %v3951
        %v3953 = vpop.f32.mrb[0].mxu0
        %v3954 = vadd.f32 0.0, %v3953
        %3955 = vmatprep.mubr.f32.mxu0 0.0
        %3956 = vmatmul.mubr.f32.gmra.mrb[0].mxu0 %v803
        %v3957 = vpop.f32.mrb[0].mxu0
        %v3958 = vadd.f32 0.0, %v3957
        %v3959 = vpop.f32.mrb[0].mxu0
        %v3960 = vadd.f32 0.0, %v3959
        %3961 = vmatprep.mubr.f32.mxu0 0.0
        %3962 = vmatmul.mubr.f32.gmra.mrb[0].mxu0 %v806
        %v3963 = vpop.f32.mrb[0].mxu0
        %v3964 = vadd.f32 0.0, %v3963
        %v3965 = vpop.f32.mrb[0].mxu0
        %v3966 = vadd.f32 0.0, %v3965
        %3967 = vmatprep.mubr.f32.mxu0 0.0
        %3968 = vmatmul.mubr.f32.gmra.mrb[0].mxu0 %v809
        %v3969 = vpop.f32.mrb[0].mxu0
        %v3970 = vadd.f32 0.0, %v3969
        %v3971 = vpop.f32.mrb[0].mxu0
        %v3972 = vadd.f32 0.0, %v3971
        %3973 = vmatprep.mubr.f32.mxu0 0.0
        %3974 = vmatmul.mubr.f32.gmra.mrb[0].mxu0 %v812
        %v3975 = vpop.f32.mrb[0].mxu0
        %v3976 = vadd.f32 0.0, %v3975
        %v3977 = vpop.f32.mrb[0].mxu0
        %v3978 = vadd.f32 0.0, %v3977
        %3979 = vmatprep.mubr.f32.mxu0 0.0
        %3980 = vmatmul.mubr.f32.gmra.mrb[0].mxu0 %v815
        %v3981 = vpop.f32.mrb[0].mxu0
        %v3982 = vadd.f32 0.0, %v3981
        %v3983 = vpop.f32.mrb[0].mxu0
        %v3984 = vadd.f32 0.0, %v3983
        %3985 = vmatprep.mubr.f32.mxu0 0.0
        %3986 = vmatmul.mubr.f32.gmra.mrb[0].mxu0 %v818
        %v3987 = vpop.f32.mrb[0].mxu0
        %v3988 = vadd.f32 0.0, %v3987
        %v3989 = vpop.f32.mrb[0].mxu0
        %v3990 = vadd.f32 0.0, %v3989
        %3991 = vmatprep.mubr.f32.mxu0 0.0
        %3992 = vmatmul.mubr.f32.gmra.mrb[0].mxu0 %v821
        %v3993 = vpop.f32.mrb[0].mxu0
        %v3994 = vadd.f32 0.0, %v3993
        %v3995 = vpop.f32.mrb[0].mxu0
        %v3996 = vadd.f32 0.0, %v3995
        %3997 = vmatprep.mubr.f32.mxu0 0.0
        %3998 = vmatmul.mubr.f32.gmra.mrb[0].mxu0 %v824
        %v3999 = vpop.f32.mrb[0].mxu0
        %v4000 = vadd.f32 0.0, %v3999
        %v4001 = vpop.f32.mrb[0].mxu0
        %v4002 = vadd.f32 0.0, %v4001
        %4003 = vmatprep.mubr.f32.mxu0 0.0
        %4004 = vmatmul.mubr.f32.gmra.mrb[0].mxu0 %v827
        %v4005 = vpop.f32.mrb[0].mxu0
        %v4006 = vadd.f32 0.0, %v4005
        %v4007 = vpop.f32.mrb[0].mxu0
        %v4008 = vadd.f32 0.0, %v4007
        %4009 = vmatprep.mubr.f32.mxu0 0.0
        %4010 = vmatmul.mubr.f32.gmra.mrb[0].mxu0 %v830
        %v4011 = vpop.f32.mrb[0].mxu0
        %v4012 = vadd.f32 0.0, %v4011
        %v4013 = vpop.f32.mrb[0].mxu0
        %v4014 = vadd.f32 0.0, %v4013
        %4015 = vmatprep.mubr.f32.mxu0 0.0
        %4016 = vmatmul.mubr.f32.gmra.mrb[0].mxu0 %v833
        %v4017 = vpop.f32.mrb[0].mxu0
        %v4018 = vadd.f32 0.0, %v4017
        %v4019 = vpop.f32.mrb[0].mxu0
        %v4020 = vadd.f32 0.0, %v4019
        %4021 = vmatprep.mubr.f32.mxu0 0.0
        %4022 = vmatmul.mubr.f32.gmra.mrb[0].mxu0 %v836
        %v4023 = vpop.f32.mrb[0].mxu0
        %v4024 = vadd.f32 0.0, %v4023
        %v4025 = vpop.f32.mrb[0].mxu0
        %v4026 = vadd.f32 0.0, %v4025
        %4027 = vmatprep.mubr.f32.mxu0 0.0
        %4028 = vmatmul.mubr.f32.gmra.mrb[0].mxu0 %v839
        %v4029 = vpop.f32.mrb[0].mxu0
        %v4030 = vadd.f32 0.0, %v4029
        %v4031 = vpop.f32.mrb[0].mxu0
        %v4032 = vadd.f32 0.0, %v4031
        %4033 = vmatprep.mubr.f32.mxu0 0.0
        %4034 = vmatmul.mubr.f32.gmra.mrb[0].mxu0 %v842
        %v4035 = vpop.f32.mrb[0].mxu0
        %v4036 = vadd.f32 0.0, %v4035
        %v4037 = vpop.f32.mrb[0].mxu0
        %v4038 = vadd.f32 0.0, %v4037
        %4039 = vmatprep.mubr.f32.mxu0 0.0
        %4040 = vmatmul.mubr.f32.gmra.mrb[0].mxu0 %v845
        %v4041 = vpop.f32.mrb[0].mxu0
        %v4042 = vadd.f32 0.0, %v4041
        %v4043 = vpop.f32.mrb[0].mxu0
        %v4044 = vadd.f32 0.0, %v4043
        %4045 = vmatprep.mubr.f32.mxu0 0.0
        %4046 = vmatmul.mubr.f32.gmra.mrb[0].mxu0 %v848
        %v4047 = vpop.f32.mrb[0].mxu0
        %v4048 = vadd.f32 0.0, %v4047
        %v4049 = vpop.f32.mrb[0].mxu0
        %v4050 = vadd.f32 0.0, %v4049
        %4051 = vmatprep.mubr.f32.mxu0 0.0
        %4052 = vmatmul.mubr.f32.gmra.mrb[0].mxu0 %v851
        %v4053 = vpop.f32.mrb[0].mxu0
        %v4054 = vadd.f32 0.0, %v4053
        %v4055 = vpop.f32.mrb[0].mxu0
        %v4056 = vadd.f32 0.0, %v4055
        %4057 = vmatprep.mubr.f32.mxu0 0.0
        %4058 = vmatmul.mubr.f32.gmra.mrb[0].mxu0 %v854
        %v4059 = vpop.f32.mrb[0].mxu0
        %v4060 = vadd.f32 0.0, %v4059
        %v4061 = vpop.f32.mrb[0].mxu0
        %v4062 = vadd.f32 0.0, %v4061
        %4063 = vmatprep.mubr.f32.mxu0 0.0
        %4064 = vmatmul.mubr.f32.gmra.mrb[0].mxu0 %v857
        %v4065 = vpop.f32.mrb[0].mxu0
        %v4066 = vadd.f32 0.0, %v4065
        %v4067 = vpop.f32.mrb[0].mxu0
        %v4068 = vadd.f32 0.0, %v4067
        %4069 = vmatprep.mubr.f32.mxu0 0.0
        %4070 = vmatmul.mubr.f32.gmra.mrb[0].mxu0 %v860
        %v4071 = vpop.f32.mrb[0].mxu0
        %v4072 = vadd.f32 0.0, %v4071
        %v4073 = vpop.f32.mrb[0].mxu0
        %v4074 = vadd.f32 0.0, %v4073
        %4075 = vmatprep.mubr.f32.mxu0 0.0
        %4076 = vmatmul.mubr.f32.gmra.mrb[0].mxu0 %v863
        %v4077 = vpop.f32.mrb[0].mxu0
        %v4078 = vadd.f32 0.0, %v4077
        %v4079 = vpop.f32.mrb[0].mxu0
        %v4080 = vadd.f32 0.0, %v4079
        %4081 = vmatprep.mubr.f32.mxu0 0.0
        %4082 = vmatmul.mubr.f32.gmra.mrb[0].mxu0 %v866
        %v4083 = vpop.f32.mrb[0].mxu0
        %v4084 = vadd.f32 0.0, %v4083
        %v4085 = vpop.f32.mrb[0].mxu0
        %v4086 = vadd.f32 0.0, %v4085
        %4087 = vmatprep.mubr.f32.mxu0 0.0
        %4088 = vmatmul.mubr.f32.gmra.mrb[0].mxu0 %v869
        %v4089 = vpop.f32.mrb[0].mxu0
        %v4090 = vadd.f32 0.0, %v4089
        %v4091 = vpop.f32.mrb[0].mxu0
        %v4092 = vadd.f32 0.0, %v4091
        %4093 = vmatprep.mubr.f32.mxu0 0.0
        %4094 = vmatmul.mubr.f32.gmra.mrb[0].mxu0 %v872
        %v4095 = vpop.f32.mrb[0].mxu0
        %v4096 = vadd.f32 0.0, %v4095
        %v4097 = vpop.f32.mrb[0].mxu0
        %v4098 = vadd.f32 0.0, %v4097
        %4099 = vmatprep.mubr.f32.mxu0 0.0
        %4100 = vmatmul.mubr.f32.gmra.mrb[0].mxu0 %v875
        %v4101 = vpop.f32.mrb[0].mxu0
        %v4102 = vadd.f32 0.0, %v4101
        %v4103 = vpop.f32.mrb[0].mxu0
        %v4104 = vadd.f32 0.0, %v4103
        %4105 = vmatprep.mubr.f32.mxu0 0.0
        %4106 = vmatmul.mubr.f32.gmra.mrb[0].mxu0 %v878
        %v4107 = vpop.f32.mrb[0].mxu0
        %v4108 = vadd.f32 0.0, %v4107
        %v4109 = vpop.f32.mrb[0].mxu0
        %v4110 = vadd.f32 0.0, %v4109
        %4111 = vmatprep.mubr.f32.mxu0 0.0
        %4112 = vmatmul.mubr.f32.gmra.mrb[0].mxu0 %v881
        %v4113 = vpop.f32.mrb[0].mxu0
        %v4114 = vadd.f32 0.0, %v4113
        %v4115 = vpop.f32.mrb[0].mxu0
        %v4116 = vadd.f32 0.0, %v4115
        %4117 = vmatprep.mubr.f32.mxu0 0.0
        %4118 = vmatmul.mubr.f32.gmra.mrb[0].mxu0 %v884
        %v4119 = vpop.f32.mrb[0].mxu0
        %v4120 = vadd.f32 0.0, %v4119
        %v4121 = vpop.f32.mrb[0].mxu0
        %v4122 = vadd.f32 0.0, %v4121
        %4123 = vmatprep.mubr.f32.mxu0 0.0
        %4124 = vmatmul.mubr.f32.gmra.mrb[0].mxu0 %v887
        %v4125 = vpop.f32.mrb[0].mxu0
        %v4126 = vadd.f32 0.0, %v4125
        %v4127 = vpop.f32.mrb[0].mxu0
        %v4128 = vadd.f32 0.0, %v4127
        %4129 = vmatprep.mubr.f32.mxu0 0.0
        %4130 = vmatmul.mubr.f32.gmra.mrb[0].mxu0 %v890
        %v4131 = vpop.f32.mrb[0].mxu0
        %v4132 = vadd.f32 0.0, %v4131
        %v4133 = vpop.f32.mrb[0].mxu0
        %v4134 = vadd.f32 0.0, %v4133
        %4135 = vmatprep.mubr.f32.mxu0 0.0
        %4136 = vmatmul.mubr.f32.gmra.mrb[0].mxu0 %v893
        %v4137 = vpop.f32.mrb[0].mxu0
        %v4138 = vadd.f32 0.0, %v4137
        %v4139 = vpop.f32.mrb[0].mxu0
        %v4140 = vadd.f32 0.0, %v4139
        %4141 = vmatprep.mubr.f32.mxu0 0.0
        %4142 = vmatmul.mubr.f32.gmra.mrb[0].mxu0 %v896
        %v4143 = vpop.f32.mrb[0].mxu0
        %v4144 = vadd.f32 0.0, %v4143
        %v4145 = vpop.f32.mrb[0].mxu0
        %v4146 = vadd.f32 0.0, %v4145
        %4147 = vmatprep.mubr.f32.mxu0 0.0
        %4148 = vmatmul.mubr.f32.gmra.mrb[0].mxu0 %v899
        %v4149 = vpop.f32.mrb[0].mxu0
        %v4150 = vadd.f32 0.0, %v4149
        %v4151 = vpop.f32.mrb[0].mxu0
        %v4152 = vadd.f32 0.0, %v4151
        %4153 = vmatprep.mubr.f32.mxu0 0.0
        %4154 = vmatmul.mubr.f32.gmra.mrb[0].mxu0 %v902
        %v4155 = vpop.f32.mrb[0].mxu0
        %v4156 = vadd.f32 0.0, %v4155
        %v4157 = vpop.f32.mrb[0].mxu0
        %v4158 = vadd.f32 0.0, %v4157
        %4159 = vmatprep.mubr.f32.mxu0 0.0
        %4160 = vmatmul.mubr.f32.gmra.mrb[0].mxu0 %v905
        %v4161 = vpop.f32.mrb[0].mxu0
        %v4162 = vadd.f32 0.0, %v4161
        %v4163 = vpop.f32.mrb[0].mxu0
        %v4164 = vadd.f32 0.0, %v4163
        %4165 = vmatprep.mubr.f32.mxu0 0.0
        %4166 = vmatmul.mubr.f32.gmra.mrb[0].mxu0 %v908
        %v4167 = vpop.f32.mrb[0].mxu0
        %v4168 = vadd.f32 0.0, %v4167
        %v4169 = vpop.f32.mrb[0].mxu0
        %v4170 = vadd.f32 0.0, %v4169
        %4171 = vmatprep.mubr.f32.mxu0 0.0
        %4172 = vmatmul.mubr.f32.gmra.mrb[0].mxu0 %v911
        %v4173 = vpop.f32.mrb[0].mxu0
        %v4174 = vadd.f32 0.0, %v4173
        %v4175 = vpop.f32.mrb[0].mxu0
        %v4176 = vadd.f32 0.0, %v4175
        %4177 = vmatprep.mubr.f32.mxu0 0.0
        %4178 = vmatmul.mubr.f32.gmra.mrb[0].mxu0 %v914
        %v4179 = vpop.f32.mrb[0].mxu0
        %v4180 = vadd.f32 0.0, %v4179
        %v4181 = vpop.f32.mrb[0].mxu0
        %v4182 = vadd.f32 0.0, %v4181
        %4183 = vmatprep.mubr.f32.mxu0 0.0
        %4184 = vmatmul.mubr.f32.gmra.mrb[0].mxu0 %v917
        %v4185 = vpop.f32.mrb[0].mxu0
        %v4186 = vadd.f32 0.0, %v4185
        %v4187 = vpop.f32.mrb[0].mxu0
        %v4188 = vadd.f32 0.0, %v4187
        %4189 = vmatprep.mubr.f32.mxu0 0.0
        %4190 = vmatmul.mubr.f32.gmra.mrb[0].mxu0 %v920
        %v4191 = vpop.f32.mrb[0].mxu0
        %v4192 = vadd.f32 0.0, %v4191
        %v4193 = vpop.f32.mrb[0].mxu0
        %v4194 = vadd.f32 0.0, %v4193
        %4195 = vmatprep.mubr.f32.mxu0 0.0
        %4196 = vmatmul.mubr.f32.gmra.mrb[0].mxu0 %v923
        %v4197 = vpop.f32.mrb[0].mxu0
        %v4198 = vadd.f32 0.0, %v4197
        %v4199 = vpop.f32.mrb[0].mxu0
        %v4200 = vadd.f32 0.0, %v4199
        %4201 = vmatprep.mubr.f32.mxu0 0.0
        %4202 = vmatmul.mubr.f32.gmra.mrb[0].mxu0 %v926
        %v4203 = vpop.f32.mrb[0].mxu0
        %v4204 = vadd.f32 0.0, %v4203
        %v4205 = vpop.f32.mrb[0].mxu0
        %v4206 = vadd.f32 0.0, %v4205
        %4207 = vmatprep.mubr.f32.mxu0 0.0
        %4208 = vmatmul.mubr.f32.gmra.mrb[0].mxu0 %v929
        %v4209 = vpop.f32.mrb[0].mxu0
        %v4210 = vadd.f32 0.0, %v4209
        %v4211 = vpop.f32.mrb[0].mxu0
        %v4212 = vadd.f32 0.0, %v4211
        %4213 = vmatprep.mubr.f32.mxu0 0.0
        %4214 = vmatmul.mubr.f32.gmra.mrb[0].mxu0 %v932
        %v4215 = vpop.f32.mrb[0].mxu0
        %v4216 = vadd.f32 0.0, %v4215
        %v4217 = vpop.f32.mrb[0].mxu0
        %v4218 = vadd.f32 0.0, %v4217
        %4219 = vmatprep.mubr.f32.mxu0 0.0
        %4220 = vmatmul.mubr.f32.gmra.mrb[0].mxu0 %v935
        %v4221 = vpop.f32.mrb[0].mxu0
        %v4222 = vadd.f32 0.0, %v4221
        %v4223 = vpop.f32.mrb[0].mxu0
        %v4224 = vadd.f32 0.0, %v4223
        %4225 = vmatprep.mubr.f32.mxu0 0.0
        %4226 = vmatmul.mubr.f32.gmra.mrb[0].mxu0 %v2145
        %v4227 = vpop.f32.mrb[0].mxu0
        %v4228 = vadd.f32 0.0, %v4227
        %v4229 = vpop.f32.mrb[0].mxu0
        %v4230 = vadd.f32 0.0, %v4229
        %4231 = vdwg.mxu0
        %v4232 = vadd.f32 %v3045, %v3401
        %v4233 = vadd.f32 %v3046, %v3403
        %v4234 = vadd.f32 %v3047, %v3850
        %v4235 = vadd.f32 %v3048, %v3852
        %v4236 = vadd.f32 %v3049, %v3407
        %v4237 = vadd.f32 %v3050, %v3409
        %v4238 = vadd.f32 %v3051, %v3856
        %v4239 = vadd.f32 %v3052, %v3858
        %v4240 = vadd.f32 %v3053, %v3413
        %v4241 = vadd.f32 %v3054, %v3415
        %v4242 = vadd.f32 %v3055, %v3862
        %v4243 = vadd.f32 %v3056, %v3864
        %v4244 = vadd.f32 %v3057, %v3419
        %v4245 = vadd.f32 %v3058, %v3421
        %v4246 = vadd.f32 %v3059, %v3868
        %v4247 = vadd.f32 %v3060, %v3870
        %v4248 = vadd.f32 %v3061, %v3425
        %v4249 = vadd.f32 %v3062, %v3427
        %v4250 = vadd.f32 %v3063, %v3874
        %v4251 = vadd.f32 %v3064, %v3876
        %v4252 = vadd.f32 %v3065, %v3431
        %v4253 = vadd.f32 %v3066, %v3433
        %v4254 = vadd.f32 %v3067, %v3880
        %v4255 = vadd.f32 %v3068, %v3882
        %v4256 = vadd.f32 %v3069, %v3437
        %v4257 = vadd.f32 %v3070, %v3439
        %v4258 = vadd.f32 %v3071, %v3886
        %v4259 = vadd.f32 %v3072, %v3888
        %v4260 = vadd.f32 %v3073, %v3443
        %v4261 = vadd.f32 %v3074, %v3445
        %v4262 = vadd.f32 %v3075, %v3892
        %v4263 = vadd.f32 %v3076, %v3894
        %v4264 = vadd.f32 %v3077, %v3449
        %v4265 = vadd.f32 %v3078, %v3451
        %v4266 = vadd.f32 %v3079, %v3898
        %v4267 = vadd.f32 %v3080, %v3900
        %v4268 = vadd.f32 %v3081, %v3455
        %v4269 = vadd.f32 %v3082, %v3457
        %v4270 = vadd.f32 %v3083, %v3904
        %v4271 = vadd.f32 %v3084, %v3906
        %v4272 = vadd.f32 %v3085, %v3461
        %v4273 = vadd.f32 %v3086, %v3463
        %v4274 = vadd.f32 %v3087, %v3910
        %v4275 = vadd.f32 %v3088, %v3912
        %v4276 = vadd.f32 %v3089, %v3467
        %v4277 = vadd.f32 %v3090, %v3469
        %v4278 = vadd.f32 %v3091, %v3916
        %v4279 = vadd.f32 %v3092, %v3918
        %v4280 = vadd.f32 %v3093, %v3473
        %v4281 = vadd.f32 %v3094, %v3475
        %v4282 = vadd.f32 %v3095, %v3922
        %v4283 = vadd.f32 %v3096, %v3924
        %v4284 = vadd.f32 %v3097, %v3479
        %v4285 = vadd.f32 %v3098, %v3481
        %v4286 = vadd.f32 %v3099, %v3928
        %v4287 = vadd.f32 %v3100, %v3930
        %v4288 = vadd.f32 %v3101, %v3485
        %v4289 = vadd.f32 %v3102, %v3487
        %v4290 = vadd.f32 %v3103, %v3934
        %v4291 = vadd.f32 %v3104, %v3936
        %v4292 = vadd.f32 %v3105, %v3491
        %v4293 = vadd.f32 %v3106, %v3493
        %v4294 = vadd.f32 %v3107, %v3940
        %v4295 = vadd.f32 %v3108, %v3942
        %v4296 = vadd.f32 %v3109, %v3497
        %v4297 = vadd.f32 %v3110, %v3499
        %v4298 = vadd.f32 %v3111, %v3946
        %v4299 = vadd.f32 %v3112, %v3948
        %v4300 = vadd.f32 %v3113, %v3503
        %v4301 = vadd.f32 %v3114, %v3505
        %v4302 = vadd.f32 %v3115, %v3952
        %v4303 = vadd.f32 %v3116, %v3954
        %v4304 = vadd.f32 %v3117, %v3509
        %v4305 = vadd.f32 %v3118, %v3511
        %v4306 = vadd.f32 %v3119, %v3958
        %v4307 = vadd.f32 %v3120, %v3960
        %v4308 = vadd.f32 %v3121, %v3515
        %v4309 = vadd.f32 %v3122, %v3517
        %v4310 = vadd.f32 %v3123, %v3964
        %v4311 = vadd.f32 %v3124, %v3966
        %v4312 = vadd.f32 %v3125, %v3521
        %v4313 = vadd.f32 %v3126, %v3523
        %v4314 = vadd.f32 %v3127, %v3970
        %v4315 = vadd.f32 %v3128, %v3972
        %v4316 = vadd.f32 %v3129, %v3527
        %v4317 = vadd.f32 %v3130, %v3529
        %v4318 = vadd.f32 %v3131, %v3976
        %v4319 = vadd.f32 %v3132, %v3978
        %v4320 = vadd.f32 %v3133, %v3533
        %v4321 = vadd.f32 %v3134, %v3535
        %v4322 = vadd.f32 %v3135, %v3982
        %v4323 = vadd.f32 %v3136, %v3984
        %v4324 = vadd.f32 %v3137, %v3539
        %v4325 = vadd.f32 %v3138, %v3541
        %v4326 = vadd.f32 %v3139, %v3988
        %v4327 = vadd.f32 %v3140, %v3990
        %v4328 = vadd.f32 %v3141, %v3545
        %v4329 = vadd.f32 %v3142, %v3547
        %v4330 = vadd.f32 %v3143, %v3994
        %v4331 = vadd.f32 %v3144, %v3996
        %v4332 = vadd.f32 %v3145, %v3551
        %v4333 = vadd.f32 %v3146, %v3553
        %v4334 = vadd.f32 %v3147, %v4000
        %v4335 = vadd.f32 %v3148, %v4002
        %v4336 = vadd.f32 %v3149, %v3557
        %v4337 = vadd.f32 %v3150, %v3559
        %v4338 = vadd.f32 %v3151, %v4006
        %v4339 = vadd.f32 %v3152, %v4008
        %v4340 = vadd.f32 %v3153, %v3563
        %v4341 = vadd.f32 %v3154, %v3565
        %v4342 = vadd.f32 %v3155, %v4012
        %v4343 = vadd.f32 %v3156, %v4014
        %v4344 = vadd.f32 %v3157, %v3569
        %v4345 = vadd.f32 %v3158, %v3571
        %v4346 = vadd.f32 %v3159, %v4018
        %v4347 = vadd.f32 %v3160, %v4020
        %v4348 = vadd.f32 %v3161, %v3575
        %v4349 = vadd.f32 %v3162, %v3577
        %v4350 = vadd.f32 %v3163, %v4024
        %v4351 = vadd.f32 %v3164, %v4026
        %v4352 = vadd.f32 %v3165, %v3581
        %v4353 = vadd.f32 %v3166, %v3583
        %v4354 = vadd.f32 %v3167, %v4030
        %v4355 = vadd.f32 %v3168, %v4032
        %v4356 = vadd.f32 %v3169, %v3587
        %v4357 = vadd.f32 %v3170, %v3589
        %v4358 = vadd.f32 %v3171, %v4036
        %v4359 = vadd.f32 %v3172, %v4038
        %v4360 = vadd.f32 %v3173, %v3593
        %v4361 = vadd.f32 %v3174, %v3595
        %v4362 = vadd.f32 %v3175, %v4042
        %v4363 = vadd.f32 %v3176, %v4044
        %v4364 = vadd.f32 %v3177, %v3599
        %v4365 = vadd.f32 %v3178, %v3601
        %v4366 = vadd.f32 %v3179, %v4048
        %v4367 = vadd.f32 %v3180, %v4050
        %v4368 = vadd.f32 %v3181, %v3605
        %v4369 = vadd.f32 %v3182, %v3607
        %v4370 = vadd.f32 %v3183, %v4054
        %v4371 = vadd.f32 %v3184, %v4056
        %v4372 = vadd.f32 %v3185, %v3611
        %v4373 = vadd.f32 %v3186, %v3613
        %v4374 = vadd.f32 %v3187, %v4060
        %v4375 = vadd.f32 %v3188, %v4062
        %v4376 = vadd.f32 %v3189, %v3617
        %v4377 = vadd.f32 %v3190, %v3619
        %v4378 = vadd.f32 %v3191, %v4066
        %v4379 = vadd.f32 %v3192, %v4068
        %v4380 = vadd.f32 %v3193, %v3623
        %v4381 = vadd.f32 %v3194, %v3625
        %v4382 = vadd.f32 %v3195, %v4072
        %v4383 = vadd.f32 %v3196, %v4074
        %v4384 = vadd.f32 %v3197, %v3629
        %v4385 = vadd.f32 %v3198, %v3631
        %v4386 = vadd.f32 %v3199, %v4078
        %v4387 = vadd.f32 %v3200, %v4080
        %v4388 = vadd.f32 %v3201, %v3635
        %v4389 = vadd.f32 %v3202, %v3637
        %v4390 = vadd.f32 %v3203, %v4084
        %v4391 = vadd.f32 %v3204, %v4086
        %v4392 = vadd.f32 %v3205, %v3641
        %v4393 = vadd.f32 %v3206, %v3643
        %v4394 = vadd.f32 %v3207, %v4090
        %v4395 = vadd.f32 %v3208, %v4092
        %v4396 = vadd.f32 %v3209, %v3647
        %v4397 = vadd.f32 %v3210, %v3649
        %v4398 = vadd.f32 %v3211, %v4096
        %v4399 = vadd.f32 %v3212, %v4098
        %v4400 = vadd.f32 %v3213, %v3653
        %v4401 = vadd.f32 %v3214, %v3655
        %v4402 = vadd.f32 %v3215, %v4102
        %v4403 = vadd.f32 %v3216, %v4104
        %v4404 = vadd.f32 %v3217, %v3659
        %v4405 = vadd.f32 %v3218, %v3661
        %v4406 = vadd.f32 %v3219, %v4108
        %v4407 = vadd.f32 %v3220, %v4110
        %v4408 = vadd.f32 %v3221, %v3665
        %v4409 = vadd.f32 %v3222, %v3667
        %v4410 = vadd.f32 %v3223, %v4114
        %v4411 = vadd.f32 %v3224, %v4116
        %v4412 = vadd.f32 %v3225, %v3671
        %v4413 = vadd.f32 %v3226, %v3673
        %v4414 = vadd.f32 %v3227, %v4120
        %v4415 = vadd.f32 %v3228, %v4122
        %v4416 = vadd.f32 %v3229, %v3677
        %v4417 = vadd.f32 %v3230, %v3679
        %v4418 = vadd.f32 %v3231, %v4126
        %v4419 = vadd.f32 %v3232, %v4128
        %v4420 = vadd.f32 %v3233, %v3683
        %v4421 = vadd.f32 %v3234, %v3685
        %v4422 = vadd.f32 %v3235, %v4132
        %v4423 = vadd.f32 %v3236, %v4134
        %v4424 = vadd.f32 %v3237, %v3689
        %v4425 = vadd.f32 %v3238, %v3691
        %v4426 = vadd.f32 %v3239, %v4138
        %v4427 = vadd.f32 %v3240, %v4140
        %v4428 = vadd.f32 %v3241, %v3695
        %v4429 = vadd.f32 %v3242, %v3697
        %v4430 = vadd.f32 %v3243, %v4144
        %v4431 = vadd.f32 %v3244, %v4146
        %v4432 = vadd.f32 %v3245, %v3701
        %v4433 = vadd.f32 %v3246, %v3703
        %v4434 = vadd.f32 %v3247, %v4150
        %v4435 = vadd.f32 %v3248, %v4152
        %v4436 = vadd.f32 %v3249, %v3707
        %v4437 = vadd.f32 %v3250, %v3709
        %v4438 = vadd.f32 %v3251, %v4156
        %v4439 = vadd.f32 %v3252, %v4158
        %v4440 = vadd.f32 %v3253, %v3713
        %v4441 = vadd.f32 %v3254, %v3715
        %v4442 = vadd.f32 %v3255, %v4162
        %v4443 = vadd.f32 %v3256, %v4164
        %v4444 = vadd.f32 %v3257, %v3719
        %v4445 = vadd.f32 %v3258, %v3721
        %v4446 = vadd.f32 %v3259, %v4168
        %v4447 = vadd.f32 %v3260, %v4170
        %v4448 = vadd.f32 %v3261, %v3725
        %v4449 = vadd.f32 %v3262, %v3727
        %v4450 = vadd.f32 %v3263, %v4174
        %v4451 = vadd.f32 %v3264, %v4176
        %v4452 = vadd.f32 %v3265, %v3731
        %v4453 = vadd.f32 %v3266, %v3733
        %v4454 = vadd.f32 %v3267, %v4180
        %v4455 = vadd.f32 %v3268, %v4182
        %v4456 = vadd.f32 %v3269, %v3737
        %v4457 = vadd.f32 %v3270, %v3739
        %v4458 = vadd.f32 %v3271, %v4186
        %v4459 = vadd.f32 %v3272, %v4188
        %v4460 = vadd.f32 %v3273, %v3743
        %v4461 = vadd.f32 %v3274, %v3745
        %v4462 = vadd.f32 %v3275, %v4192
        %v4463 = vadd.f32 %v3276, %v4194
        %v4464 = vadd.f32 %v3277, %v3749
        %v4465 = vadd.f32 %v3278, %v3751
        %v4466 = vadd.f32 %v3279, %v4198
        %v4467 = vadd.f32 %v3280, %v4200
        %v4468 = vadd.f32 %v3281, %v3755
        %v4469 = vadd.f32 %v3282, %v3757
        %v4470 = vadd.f32 %v3283, %v4204
        %v4471 = vadd.f32 %v3284, %v4206
        %v4472 = vadd.f32 %v3285, %v3761
        %v4473 = vadd.f32 %v3286, %v3763
        %v4474 = vadd.f32 %v3287, %v4210
        %v4475 = vadd.f32 %v3288, %v4212
        %v4476 = vadd.f32 %v3289, %v3767
        %v4477 = vadd.f32 %v3290, %v3769
        %v4478 = vadd.f32 %v3291, %v4216
        %v4479 = vadd.f32 %v3292, %v4218
        %v4480 = vadd.f32 %v3293, %v3773
        %v4481 = vadd.f32 %v3294, %v3775
        %v4482 = vadd.f32 %v3295, %v4222
        %v4483 = vadd.f32 %v3296, %v4224
        %v4484 = vadd.f32 %v3297, %v3779
        %v4485 = vadd.f32 %v3298, %v3781
        %v4486 = vadd.f32 %v3299, %v4228
        %v4487 = vadd.f32 %v3300, %v4230
        %v4488 = vmax.f32 %v4232, 0.0
        %v4489 = vmax.f32 %v4233, 0.0
        %v4490 = vmax.f32 %v4234, 0.0
        %v4491 = vmax.f32 %v4235, 0.0
        %v4492 = vmax.f32 %v4236, 0.0
        %v4493 = vmax.f32 %v4237, 0.0
        %v4494 = vmax.f32 %v4238, 0.0
        %v4495 = vmax.f32 %v4239, 0.0
        %v4496 = vmax.f32 %v4240, 0.0
        %v4497 = vmax.f32 %v4241, 0.0
        %v4498 = vmax.f32 %v4242, 0.0
        %v4499 = vmax.f32 %v4243, 0.0
        %v4500 = vmax.f32 %v4244, 0.0
        %v4501 = vmax.f32 %v4245, 0.0
        %v4502 = vmax.f32 %v4246, 0.0
        %v4503 = vmax.f32 %v4247, 0.0
        %v4504 = vmax.f32 %v4248, 0.0
        %v4505 = vmax.f32 %v4249, 0.0
        %v4506 = vmax.f32 %v4250, 0.0
        %v4507 = vmax.f32 %v4251, 0.0
        %v4508 = vmax.f32 %v4252, 0.0
        %v4509 = vmax.f32 %v4253, 0.0
        %v4510 = vmax.f32 %v4254, 0.0
        %v4511 = vmax.f32 %v4255, 0.0
        %v4512 = vmax.f32 %v4256, 0.0
        %v4513 = vmax.f32 %v4257, 0.0
        %v4514 = vmax.f32 %v4258, 0.0
        %v4515 = vmax.f32 %v4259, 0.0
        %v4516 = vmax.f32 %v4260, 0.0
        %v4517 = vmax.f32 %v4261, 0.0
        %v4518 = vmax.f32 %v4262, 0.0
        %v4519 = vmax.f32 %v4263, 0.0
        %v4520 = vmax.f32 %v4264, 0.0
        %v4521 = vmax.f32 %v4265, 0.0
        %v4522 = vmax.f32 %v4266, 0.0
        %v4523 = vmax.f32 %v4267, 0.0
        %v4524 = vmax.f32 %v4268, 0.0
        %v4525 = vmax.f32 %v4269, 0.0
        %v4526 = vmax.f32 %v4270, 0.0
        %v4527 = vmax.f32 %v4271, 0.0
        %v4528 = vmax.f32 %v4272, 0.0
        %v4529 = vmax.f32 %v4273, 0.0
        %v4530 = vmax.f32 %v4274, 0.0
        %v4531 = vmax.f32 %v4275, 0.0
        %v4532 = vmax.f32 %v4276, 0.0
        %v4533 = vmax.f32 %v4277, 0.0
        %v4534 = vmax.f32 %v4278, 0.0
        %v4535 = vmax.f32 %v4279, 0.0
        %v4536 = vmax.f32 %v4280, 0.0
        %v4537 = vmax.f32 %v4281, 0.0
        %v4538 = vmax.f32 %v4282, 0.0
        %v4539 = vmax.f32 %v4283, 0.0
        %v4540 = vmax.f32 %v4284, 0.0
        %v4541 = vmax.f32 %v4285, 0.0
        %v4542 = vmax.f32 %v4286, 0.0
        %v4543 = vmax.f32 %v4287, 0.0
        %v4544 = vmax.f32 %v4288, 0.0
        %v4545 = vmax.f32 %v4289, 0.0
        %v4546 = vmax.f32 %v4290, 0.0
        %v4547 = vmax.f32 %v4291, 0.0
        %v4548 = vmax.f32 %v4292, 0.0
        %v4549 = vmax.f32 %v4293, 0.0
        %v4550 = vmax.f32 %v4294, 0.0
        %v4551 = vmax.f32 %v4295, 0.0
        %v4552 = vmax.f32 %v4296, 0.0
        %v4553 = vmax.f32 %v4297, 0.0
        %v4554 = vmax.f32 %v4298, 0.0
        %v4555 = vmax.f32 %v4299, 0.0
        %v4556 = vmax.f32 %v4300, 0.0
        %v4557 = vmax.f32 %v4301, 0.0
        %v4558 = vmax.f32 %v4302, 0.0
        %v4559 = vmax.f32 %v4303, 0.0
        %v4560 = vmax.f32 %v4304, 0.0
        %v4561 = vmax.f32 %v4305, 0.0
        %v4562 = vmax.f32 %v4306, 0.0
        %v4563 = vmax.f32 %v4307, 0.0
        %v4564 = vmax.f32 %v4308, 0.0
        %v4565 = vmax.f32 %v4309, 0.0
        %v4566 = vmax.f32 %v4310, 0.0
        %v4567 = vmax.f32 %v4311, 0.0
        %v4568 = vmax.f32 %v4312, 0.0
        %v4569 = vmax.f32 %v4313, 0.0
        %v4570 = vmax.f32 %v4314, 0.0
        %v4571 = vmax.f32 %v4315, 0.0
        %v4572 = vmax.f32 %v4316, 0.0
        %v4573 = vmax.f32 %v4317, 0.0
        %v4574 = vmax.f32 %v4318, 0.0
        %v4575 = vmax.f32 %v4319, 0.0
        %v4576 = vmax.f32 %v4320, 0.0
        %v4577 = vmax.f32 %v4321, 0.0
        %v4578 = vmax.f32 %v4322, 0.0
        %v4579 = vmax.f32 %v4323, 0.0
        %v4580 = vmax.f32 %v4324, 0.0
        %v4581 = vmax.f32 %v4325, 0.0
        %v4582 = vmax.f32 %v4326, 0.0
        %v4583 = vmax.f32 %v4327, 0.0
        %v4584 = vmax.f32 %v4328, 0.0
        %v4585 = vmax.f32 %v4329, 0.0
        %v4586 = vmax.f32 %v4330, 0.0
        %v4587 = vmax.f32 %v4331, 0.0
        %v4588 = vmax.f32 %v4332, 0.0
        %v4589 = vmax.f32 %v4333, 0.0
        %v4590 = vmax.f32 %v4334, 0.0
        %v4591 = vmax.f32 %v4335, 0.0
        %v4592 = vmax.f32 %v4336, 0.0
        %v4593 = vmax.f32 %v4337, 0.0
        %v4594 = vmax.f32 %v4338, 0.0
        %v4595 = vmax.f32 %v4339, 0.0
        %v4596 = vmax.f32 %v4340, 0.0
        %v4597 = vmax.f32 %v4341, 0.0
        %v4598 = vmax.f32 %v4342, 0.0
        %v4599 = vmax.f32 %v4343, 0.0
        %v4600 = vmax.f32 %v4344, 0.0
        %v4601 = vmax.f32 %v4345, 0.0
        %v4602 = vmax.f32 %v4346, 0.0
        %v4603 = vmax.f32 %v4347, 0.0
        %v4604 = vmax.f32 %v4348, 0.0
        %v4605 = vmax.f32 %v4349, 0.0
        %v4606 = vmax.f32 %v4350, 0.0
        %v4607 = vmax.f32 %v4351, 0.0
        %v4608 = vmax.f32 %v4352, 0.0
        %v4609 = vmax.f32 %v4353, 0.0
        %v4610 = vmax.f32 %v4354, 0.0
        %v4611 = vmax.f32 %v4355, 0.0
        %v4612 = vmax.f32 %v4356, 0.0
        %v4613 = vmax.f32 %v4357, 0.0
        %v4614 = vmax.f32 %v4358, 0.0
        %v4615 = vmax.f32 %v4359, 0.0
        %v4616 = vmax.f32 %v4360, 0.0
        %v4617 = vmax.f32 %v4361, 0.0
        %v4618 = vmax.f32 %v4362, 0.0
        %v4619 = vmax.f32 %v4363, 0.0
        %v4620 = vmax.f32 %v4364, 0.0
        %v4621 = vmax.f32 %v4365, 0.0
        %v4622 = vmax.f32 %v4366, 0.0
        %v4623 = vmax.f32 %v4367, 0.0
        %v4624 = vmax.f32 %v4368, 0.0
        %v4625 = vmax.f32 %v4369, 0.0
        %v4626 = vmax.f32 %v4370, 0.0
        %v4627 = vmax.f32 %v4371, 0.0
        %v4628 = vmax.f32 %v4372, 0.0
        %v4629 = vmax.f32 %v4373, 0.0
        %v4630 = vmax.f32 %v4374, 0.0
        %v4631 = vmax.f32 %v4375, 0.0
        %v4632 = vmax.f32 %v4376, 0.0
        %v4633 = vmax.f32 %v4377, 0.0
        %v4634 = vmax.f32 %v4378, 0.0
        %v4635 = vmax.f32 %v4379, 0.0
        %v4636 = vmax.f32 %v4380, 0.0
        %v4637 = vmax.f32 %v4381, 0.0
        %v4638 = vmax.f32 %v4382, 0.0
        %v4639 = vmax.f32 %v4383, 0.0
        %v4640 = vmax.f32 %v4384, 0.0
        %v4641 = vmax.f32 %v4385, 0.0
        %v4642 = vmax.f32 %v4386, 0.0
        %v4643 = vmax.f32 %v4387, 0.0
        %v4644 = vmax.f32 %v4388, 0.0
        %v4645 = vmax.f32 %v4389, 0.0
        %v4646 = vmax.f32 %v4390, 0.0
        %v4647 = vmax.f32 %v4391, 0.0
        %v4648 = vmax.f32 %v4392, 0.0
        %v4649 = vmax.f32 %v4393, 0.0
        %v4650 = vmax.f32 %v4394, 0.0
        %v4651 = vmax.f32 %v4395, 0.0
        %v4652 = vmax.f32 %v4396, 0.0
        %v4653 = vmax.f32 %v4397, 0.0
        %v4654 = vmax.f32 %v4398, 0.0
        %v4655 = vmax.f32 %v4399, 0.0
        %v4656 = vmax.f32 %v4400, 0.0
        %v4657 = vmax.f32 %v4401, 0.0
        %v4658 = vmax.f32 %v4402, 0.0
        %v4659 = vmax.f32 %v4403, 0.0
        %v4660 = vmax.f32 %v4404, 0.0
        %v4661 = vmax.f32 %v4405, 0.0
        %v4662 = vmax.f32 %v4406, 0.0
        %v4663 = vmax.f32 %v4407, 0.0
        %v4664 = vmax.f32 %v4408, 0.0
        %v4665 = vmax.f32 %v4409, 0.0
        %v4666 = vmax.f32 %v4410, 0.0
        %v4667 = vmax.f32 %v4411, 0.0
        %v4668 = vmax.f32 %v4412, 0.0
        %v4669 = vmax.f32 %v4413, 0.0
        %v4670 = vmax.f32 %v4414, 0.0
        %v4671 = vmax.f32 %v4415, 0.0
        %v4672 = vmax.f32 %v4416, 0.0
        %v4673 = vmax.f32 %v4417, 0.0
        %v4674 = vmax.f32 %v4418, 0.0
        %v4675 = vmax.f32 %v4419, 0.0
        %v4676 = vmax.f32 %v4420, 0.0
        %v4677 = vmax.f32 %v4421, 0.0
        %v4678 = vmax.f32 %v4422, 0.0
        %v4679 = vmax.f32 %v4423, 0.0
        %v4680 = vmax.f32 %v4424, 0.0
        %v4681 = vmax.f32 %v4425, 0.0
        %v4682 = vmax.f32 %v4426, 0.0
        %v4683 = vmax.f32 %v4427, 0.0
        %v4684 = vmax.f32 %v4428, 0.0
        %v4685 = vmax.f32 %v4429, 0.0
        %v4686 = vmax.f32 %v4430, 0.0
        %v4687 = vmax.f32 %v4431, 0.0
        %v4688 = vmax.f32 %v4432, 0.0
        %v4689 = vmax.f32 %v4433, 0.0
        %v4690 = vmax.f32 %v4434, 0.0
        %v4691 = vmax.f32 %v4435, 0.0
        %v4692 = vmax.f32 %v4436, 0.0
        %v4693 = vmax.f32 %v4437, 0.0
        %v4694 = vmax.f32 %v4438, 0.0
        %v4695 = vmax.f32 %v4439, 0.0
        %v4696 = vmax.f32 %v4440, 0.0
        %v4697 = vmax.f32 %v4441, 0.0
        %v4698 = vmax.f32 %v4442, 0.0
        %v4699 = vmax.f32 %v4443, 0.0
        %v4700 = vmax.f32 %v4444, 0.0
        %v4701 = vmax.f32 %v4445, 0.0
        %v4702 = vmax.f32 %v4446, 0.0
        %v4703 = vmax.f32 %v4447, 0.0
        %v4704 = vmax.f32 %v4448, 0.0
        %v4705 = vmax.f32 %v4449, 0.0
        %v4706 = vmax.f32 %v4450, 0.0
        %v4707 = vmax.f32 %v4451, 0.0
        %v4708 = vmax.f32 %v4452, 0.0
        %v4709 = vmax.f32 %v4453, 0.0
        %v4710 = vmax.f32 %v4454, 0.0
        %v4711 = vmax.f32 %v4455, 0.0
        %v4712 = vmax.f32 %v4456, 0.0
        %v4713 = vmax.f32 %v4457, 0.0
        %v4714 = vmax.f32 %v4458, 0.0
        %v4715 = vmax.f32 %v4459, 0.0
        %v4716 = vmax.f32 %v4460, 0.0
        %v4717 = vmax.f32 %v4461, 0.0
        %v4718 = vmax.f32 %v4462, 0.0
        %v4719 = vmax.f32 %v4463, 0.0
        %v4720 = vmax.f32 %v4464, 0.0
        %v4721 = vmax.f32 %v4465, 0.0
        %v4722 = vmax.f32 %v4466, 0.0
        %v4723 = vmax.f32 %v4467, 0.0
        %v4724 = vmax.f32 %v4468, 0.0
        %v4725 = vmax.f32 %v4469, 0.0
        %v4726 = vmax.f32 %v4470, 0.0
        %v4727 = vmax.f32 %v4471, 0.0
        %v4728 = vmax.f32 %v4472, 0.0
        %v4729 = vmax.f32 %v4473, 0.0
        %v4730 = vmax.f32 %v4474, 0.0
        %v4731 = vmax.f32 %v4475, 0.0
        %v4732 = vmax.f32 %v4476, 0.0
        %v4733 = vmax.f32 %v4477, 0.0
        %v4734 = vmax.f32 %v4478, 0.0
        %v4735 = vmax.f32 %v4479, 0.0
        %v4736 = vmax.f32 %v4480, 0.0
        %v4737 = vmax.f32 %v4481, 0.0
        %v4738 = vmax.f32 %v4482, 0.0
        %v4739 = vmax.f32 %v4483, 0.0
        %v4740 = vmax.f32 %v4484, 0.0
        %v4741 = vmax.f32 %v4485, 0.0
        %v4742 = vmax.f32 %v4486, 0.0
        %v4743 = vmax.f32 %v4487, 0.0
        %v4744 = vmax.f32 %v4488, %v4490
        %v4745 = vmax.f32 %v4489, %v4491
        %v4746 = vmax.f32 %v4492, %v4494
        %v4747 = vmax.f32 %v4493, %v4495
        %v4748 = vmax.f32 %v4496, %v4498
        %v4749 = vmax.f32 %v4497, %v4499
        %v4750 = vmax.f32 %v4500, %v4502
        %v4751 = vmax.f32 %v4501, %v4503
        %v4752 = vmax.f32 %v4504, %v4506
        %v4753 = vmax.f32 %v4505, %v4507
        %v4754 = vmax.f32 %v4508, %v4510
        %v4755 = vmax.f32 %v4509, %v4511
        %v4756 = vmax.f32 %v4512, %v4514
        %v4757 = vmax.f32 %v4513, %v4515
        %v4758 = vmax.f32 %v4516, %v4518
        %v4759 = vmax.f32 %v4517, %v4519
        %v4760 = vmax.f32 %v4520, %v4522
        %v4761 = vmax.f32 %v4521, %v4523
        %v4762 = vmax.f32 %v4524, %v4526
        %v4763 = vmax.f32 %v4525, %v4527
        %v4764 = vmax.f32 %v4528, %v4530
        %v4765 = vmax.f32 %v4529, %v4531
        %v4766 = vmax.f32 %v4532, %v4534
        %v4767 = vmax.f32 %v4533, %v4535
        %v4768 = vmax.f32 %v4536, %v4538
        %v4769 = vmax.f32 %v4537, %v4539
        %v4770 = vmax.f32 %v4540, %v4542
        %v4771 = vmax.f32 %v4541, %v4543
        %v4772 = vmax.f32 %v4544, %v4546
        %v4773 = vmax.f32 %v4545, %v4547
        %v4774 = vmax.f32 %v4548, %v4550
        %v4775 = vmax.f32 %v4549, %v4551
        %v4776 = vmax.f32 %v4552, %v4554
        %v4777 = vmax.f32 %v4553, %v4555
        %v4778 = vmax.f32 %v4556, %v4558
        %v4779 = vmax.f32 %v4557, %v4559
        %v4780 = vmax.f32 %v4560, %v4562
        %v4781 = vmax.f32 %v4561, %v4563
        %v4782 = vmax.f32 %v4564, %v4566
        %v4783 = vmax.f32 %v4565, %v4567
        %v4784 = vmax.f32 %v4568, %v4570
        %v4785 = vmax.f32 %v4569, %v4571
        %v4786 = vmax.f32 %v4572, %v4574
        %v4787 = vmax.f32 %v4573, %v4575
        %v4788 = vmax.f32 %v4576, %v4578
        %v4789 = vmax.f32 %v4577, %v4579
        %v4790 = vmax.f32 %v4580, %v4582
        %v4791 = vmax.f32 %v4581, %v4583
        %v4792 = vmax.f32 %v4584, %v4586
        %v4793 = vmax.f32 %v4585, %v4587
        %v4794 = vmax.f32 %v4588, %v4590
        %v4795 = vmax.f32 %v4589, %v4591
        %v4796 = vmax.f32 %v4592, %v4594
        %v4797 = vmax.f32 %v4593, %v4595
        %v4798 = vmax.f32 %v4596, %v4598
        %v4799 = vmax.f32 %v4597, %v4599
        %v4800 = vmax.f32 %v4600, %v4602
        %v4801 = vmax.f32 %v4601, %v4603
        %v4802 = vmax.f32 %v4604, %v4606
        %v4803 = vmax.f32 %v4605, %v4607
        %v4804 = vmax.f32 %v4608, %v4610
        %v4805 = vmax.f32 %v4609, %v4611
        %v4806 = vmax.f32 %v4612, %v4614
        %v4807 = vmax.f32 %v4613, %v4615
        %v4808 = vmax.f32 %v4616, %v4618
        %v4809 = vmax.f32 %v4617, %v4619
        %v4810 = vmax.f32 %v4620, %v4622
        %v4811 = vmax.f32 %v4621, %v4623
        %v4812 = vmax.f32 %v4624, %v4626
        %v4813 = vmax.f32 %v4625, %v4627
        %v4814 = vmax.f32 %v4628, %v4630
        %v4815 = vmax.f32 %v4629, %v4631
        %v4816 = vmax.f32 %v4632, %v4634
        %v4817 = vmax.f32 %v4633, %v4635
        %v4818 = vmax.f32 %v4636, %v4638
        %v4819 = vmax.f32 %v4637, %v4639
        %v4820 = vmax.f32 %v4640, %v4642
        %v4821 = vmax.f32 %v4641, %v4643
        %v4822 = vmax.f32 %v4644, %v4646
        %v4823 = vmax.f32 %v4645, %v4647
        %v4824 = vmax.f32 %v4648, %v4650
        %v4825 = vmax.f32 %v4649, %v4651
        %v4826 = vmax.f32 %v4652, %v4654
        %v4827 = vmax.f32 %v4653, %v4655
        %v4828 = vmax.f32 %v4656, %v4658
        %v4829 = vmax.f32 %v4657, %v4659
        %v4830 = vmax.f32 %v4660, %v4662
        %v4831 = vmax.f32 %v4661, %v4663
        %v4832 = vmax.f32 %v4664, %v4666
        %v4833 = vmax.f32 %v4665, %v4667
        %v4834 = vmax.f32 %v4668, %v4670
        %v4835 = vmax.f32 %v4669, %v4671
        %v4836 = vmax.f32 %v4672, %v4674
        %v4837 = vmax.f32 %v4673, %v4675
        %v4838 = vmax.f32 %v4676, %v4678
        %v4839 = vmax.f32 %v4677, %v4679
        %v4840 = vmax.f32 %v4680, %v4682
        %v4841 = vmax.f32 %v4681, %v4683
        %v4842 = vmax.f32 %v4684, %v4686
        %v4843 = vmax.f32 %v4685, %v4687
        %v4844 = vmax.f32 %v4688, %v4690
        %v4845 = vmax.f32 %v4689, %v4691
        %v4846 = vmax.f32 %v4692, %v4694
        %v4847 = vmax.f32 %v4693, %v4695
        %v4848 = vmax.f32 %v4696, %v4698
        %v4849 = vmax.f32 %v4697, %v4699
        %v4850 = vmax.f32 %v4700, %v4702
        %v4851 = vmax.f32 %v4701, %v4703
        %v4852 = vmax.f32 %v4704, %v4706
        %v4853 = vmax.f32 %v4705, %v4707
        %v4854 = vmax.f32 %v4708, %v4710
        %v4855 = vmax.f32 %v4709, %v4711
        %v4856 = vmax.f32 %v4712, %v4714
        %v4857 = vmax.f32 %v4713, %v4715
        %v4858 = vmax.f32 %v4716, %v4718
        %v4859 = vmax.f32 %v4717, %v4719
        %v4860 = vmax.f32 %v4720, %v4722
        %v4861 = vmax.f32 %v4721, %v4723
        %v4862 = vmax.f32 %v4724, %v4726
        %v4863 = vmax.f32 %v4725, %v4727
        %v4864 = vmax.f32 %v4728, %v4730
        %v4865 = vmax.f32 %v4729, %v4731
        %v4866 = vmax.f32 %v4732, %v4734
        %v4867 = vmax.f32 %v4733, %v4735
        %v4868 = vmax.f32 %v4736, %v4738
        %v4869 = vmax.f32 %v4737, %v4739
        %v4870 = vmax.f32 %v4740, %v4742
        %v4871 = vmax.f32 %v4741, %v4743
        %v4872 = vmax.f32 %v4744, %v4746
        %v4873 = vmax.f32 %v4745, %v4747
        %v4874 = vmax.f32 %v4748, %v4750
        %v4875 = vmax.f32 %v4749, %v4751
        %v4876 = vmax.f32 %v4752, %v4754
        %v4877 = vmax.f32 %v4753, %v4755
        %v4878 = vmax.f32 %v4756, %v4758
        %v4879 = vmax.f32 %v4757, %v4759
        %v4880 = vmax.f32 %v4760, %v4762
        %v4881 = vmax.f32 %v4761, %v4763
        %v4882 = vmax.f32 %v4764, %v4766
        %v4883 = vmax.f32 %v4765, %v4767
        %v4884 = vmax.f32 %v4768, %v4770
        %v4885 = vmax.f32 %v4769, %v4771
        %v4886 = vmax.f32 %v4772, %v4774
        %v4887 = vmax.f32 %v4773, %v4775
        %v4888 = vmax.f32 %v4776, %v4778
        %v4889 = vmax.f32 %v4777, %v4779
        %v4890 = vmax.f32 %v4780, %v4782
        %v4891 = vmax.f32 %v4781, %v4783
        %v4892 = vmax.f32 %v4784, %v4786
        %v4893 = vmax.f32 %v4785, %v4787
        %v4894 = vmax.f32 %v4788, %v4790
        %v4895 = vmax.f32 %v4789, %v4791
        %v4896 = vmax.f32 %v4792, %v4794
        %v4897 = vmax.f32 %v4793, %v4795
        %v4898 = vmax.f32 %v4796, %v4798
        %v4899 = vmax.f32 %v4797, %v4799
        %v4900 = vmax.f32 %v4800, %v4802
        %v4901 = vmax.f32 %v4801, %v4803
        %v4902 = vmax.f32 %v4804, %v4806
        %v4903 = vmax.f32 %v4805, %v4807
        %v4904 = vmax.f32 %v4808, %v4810
        %v4905 = vmax.f32 %v4809, %v4811
        %v4906 = vmax.f32 %v4812, %v4814
        %v4907 = vmax.f32 %v4813, %v4815
        %v4908 = vmax.f32 %v4816, %v4818
        %v4909 = vmax.f32 %v4817, %v4819
        %v4910 = vmax.f32 %v4820, %v4822
        %v4911 = vmax.f32 %v4821, %v4823
        %v4912 = vmax.f32 %v4824, %v4826
        %v4913 = vmax.f32 %v4825, %v4827
        %v4914 = vmax.f32 %v4828, %v4830
        %v4915 = vmax.f32 %v4829, %v4831
        %v4916 = vmax.f32 %v4832, %v4834
        %v4917 = vmax.f32 %v4833, %v4835
        %v4918 = vmax.f32 %v4836, %v4838
        %v4919 = vmax.f32 %v4837, %v4839
        %v4920 = vmax.f32 %v4840, %v4842
        %v4921 = vmax.f32 %v4841, %v4843
        %v4922 = vmax.f32 %v4844, %v4846
        %v4923 = vmax.f32 %v4845, %v4847
        %v4924 = vmax.f32 %v4848, %v4850
        %v4925 = vmax.f32 %v4849, %v4851
        %v4926 = vmax.f32 %v4852, %v4854
        %v4927 = vmax.f32 %v4853, %v4855
        %v4928 = vmax.f32 %v4856, %v4858
        %v4929 = vmax.f32 %v4857, %v4859
        %v4930 = vmax.f32 %v4860, %v4862
        %v4931 = vmax.f32 %v4861, %v4863
        %v4932 = vmax.f32 %v4864, %v4866
        %v4933 = vmax.f32 %v4865, %v4867
        %v4934 = vmax.f32 %v4868, %v4870
        %v4935 = vmax.f32 %v4869, %v4871
        %v4936 = vld [vmem:[%s4] sm:$0xf]
        %s4937 = scalar_lea.vmem %s3, 1024
        %v4938 = vld [vmem:[%s4937] sm:$0xff]
        %v4939 = vld [vmem:[%s4937 + $0x8] sm:$0xff]
        %v4940 = vld [vmem:[%s4937 + $0x10] sm:$0xff]
        %v4941 = vld [vmem:[%s4937 + $0x18] sm:$0xff]
        %v4942 = vld [vmem:[%s4937 + $0x20] sm:$0xff]
        %v4943 = vld [vmem:[%s4937 + $0x28] sm:$0xff]
        %v4944 = vld [vmem:[%s4937 + $0x30] sm:$0xff]
        %v4945 = vld [vmem:[%s4937 + $0x38] sm:$0xff]
        %v4946 = vld [vmem:[%s4937 + $0x40] sm:$0xff]
        %v4947 = vld [vmem:[%s4937 + $0x48] sm:$0xff]
        %v4948 = vld [vmem:[%s4937 + $0x50] sm:$0xff]
        %v4949 = vld [vmem:[%s4937 + $0x58] sm:$0xff]
        %v4950 = vld [vmem:[%s4937 + $0x60] sm:$0xff]
        %v4951 = vld [vmem:[%s4937 + $0x68] sm:$0xff]
        %v4952 = vld [vmem:[%s4937 + $0x70] sm:$0xff]
        %v4953 = vld [vmem:[%s4937 + $0x78] sm:$0xff]
        %v4954 = vld [vmem:[%s4937 + $0x80] sm:$0xff]
        %v4955 = vld [vmem:[%s4937 + $0x88] sm:$0xff]
        %v4956 = vld [vmem:[%s4937 + $0x90] sm:$0xff]
        %v4957 = vld [vmem:[%s4937 + $0x98] sm:$0xff]
        %v4958 = vld [vmem:[%s4937 + $0xa0] sm:$0xff]
        %v4959 = vld [vmem:[%s4937 + $0xa8] sm:$0xff]
        %v4960 = vld [vmem:[%s4937 + $0xb0] sm:$0xff]
        %v4961 = vld [vmem:[%s4937 + $0xb8] sm:$0xff]
        %v4962 = vld [vmem:[%s4937 + $0xc0] sm:$0xff]
        %v4963 = vld [vmem:[%s4937 + $0xc8] sm:$0xff]
        %v4964 = vld [vmem:[%s4937 + $0xd0] sm:$0xff]
        %v4965 = vld [vmem:[%s4937 + $0xd8] sm:$0xff]
        %v4966 = vld [vmem:[%s4937 + $0xe0] sm:$0xff]
        %v4967 = vld [vmem:[%s4937 + $0xe8] sm:$0xff]
        %v4968 = vld [vmem:[%s4937 + $0xf0] sm:$0xff]
        %v4969 = vld [vmem:[%s4937 + $0xf8] sm:$0xff]
        %v4970 = vld [vmem:[%s4937 + $0x100] sm:$0xff]
        %v4971 = vld [vmem:[%s4937 + $0x108] sm:$0xff]
        %v4972 = vld [vmem:[%s4937 + $0x110] sm:$0xff]
        %v4973 = vld [vmem:[%s4937 + $0x118] sm:$0xff]
        %v4974 = vld [vmem:[%s4937 + $0x120] sm:$0xff]
        %v4975 = vld [vmem:[%s4937 + $0x128] sm:$0xff]
        %v4976 = vld [vmem:[%s4937 + $0x130] sm:$0xff]
        %v4977 = vld [vmem:[%s4937 + $0x138] sm:$0xff]
        %v4978 = vld [vmem:[%s4937 + $0x140] sm:$0xff]
        %v4979 = vld [vmem:[%s4937 + $0x148] sm:$0xff]
        %v4980 = vld [vmem:[%s4937 + $0x150] sm:$0xff]
        %v4981 = vld [vmem:[%s4937 + $0x158] sm:$0xff]
        %v4982 = vld [vmem:[%s4937 + $0x160] sm:$0xff]
        %v4983 = vld [vmem:[%s4937 + $0x168] sm:$0xff]
        %v4984 = vld [vmem:[%s4937 + $0x170] sm:$0xff]
        %v4985 = vld [vmem:[%s4937 + $0x178] sm:$0xff]
        %v4986 = vld [vmem:[%s4937 + $0x180] sm:$0xff]
        %v4987 = vld [vmem:[%s4937 + $0x188] sm:$0xff]
        %v4988 = vld [vmem:[%s4937 + $0x190] sm:$0xff]
        %v4989 = vld [vmem:[%s4937 + $0x198] sm:$0xff]
        %v4990 = vld [vmem:[%s4937 + $0x1a0] sm:$0xff]
        %v4991 = vld [vmem:[%s4937 + $0x1a8] sm:$0xff]
        %v4992 = vld [vmem:[%s4937 + $0x1b0] sm:$0xff]
        %v4993 = vld [vmem:[%s4937 + $0x1b8] sm:$0xff]
        %v4994 = vld [vmem:[%s4937 + $0x1c0] sm:$0xff]
        %v4995 = vld [vmem:[%s4937 + $0x1c8] sm:$0xff]
        %v4996 = vld [vmem:[%s4937 + $0x1d0] sm:$0xff]
        %v4997 = vld [vmem:[%s4937 + $0x1d8] sm:$0xff]
        %v4998 = vld [vmem:[%s4937 + $0x1e0] sm:$0xff]
        %v4999 = vld [vmem:[%s4937 + $0x1e8] sm:$0xff]
        %v5000 = vld [vmem:[%s4937 + $0x1f0] sm:$0xff]
        %v5001 = vld [vmem:[%s4937 + $0x1f8] sm:$0xff]
        %v5002 = vld [vmem:[%s4937 + $0x200] sm:$0xff]
        %v5003 = vld [vmem:[%s4937 + $0x208] sm:$0xff]
        %v5004 = vld [vmem:[%s4937 + $0x210] sm:$0xff]
        %v5005 = vld [vmem:[%s4937 + $0x218] sm:$0xff]
        %v5006 = vld [vmem:[%s4937 + $0x220] sm:$0xff]
        %v5007 = vld [vmem:[%s4937 + $0x228] sm:$0xff]
        %v5008 = vld [vmem:[%s4937 + $0x230] sm:$0xff]
        %v5009 = vld [vmem:[%s4937 + $0x238] sm:$0xff]
        %v5010 = vld [vmem:[%s4937 + $0x240] sm:$0xff]
        %v5011 = vld [vmem:[%s4937 + $0x248] sm:$0xff]
        %v5012 = vld [vmem:[%s4937 + $0x250] sm:$0xff]
        %v5013 = vld [vmem:[%s4937 + $0x258] sm:$0xff]
        %v5014 = vld [vmem:[%s4937 + $0x260] sm:$0xff]
        %v5015 = vld [vmem:[%s4937 + $0x268] sm:$0xff]
        %v5016 = vld [vmem:[%s4937 + $0x270] sm:$0xff]
        %v5017 = vld [vmem:[%s4937 + $0x278] sm:$0xff]
        %v5018 = vld [vmem:[%s4937 + $0x280] sm:$0xff]
        %v5019 = vld [vmem:[%s4937 + $0x288] sm:$0xff]
        %v5020 = vld [vmem:[%s4937 + $0x290] sm:$0xff]
        %v5021 = vld [vmem:[%s4937 + $0x298] sm:$0xff]
        %v5022 = vld [vmem:[%s4937 + $0x2a0] sm:$0xff]
        %v5023 = vld [vmem:[%s4937 + $0x2a8] sm:$0xff]
        %v5024 = vld [vmem:[%s4937 + $0x2b0] sm:$0xff]
        %v5025 = vld [vmem:[%s4937 + $0x2b8] sm:$0xff]
        %v5026 = vld [vmem:[%s4937 + $0x2c0] sm:$0xff]
        %v5027 = vld [vmem:[%s4937 + $0x2c8] sm:$0xff]
        %v5028 = vld [vmem:[%s4937 + $0x2d0] sm:$0xff]
        %v5029 = vld [vmem:[%s4937 + $0x2d8] sm:$0xff]
        %v5030 = vld [vmem:[%s4937 + $0x2e0] sm:$0xff]
        %v5031 = vld [vmem:[%s4937 + $0x2e8] sm:$0xff]
        %v5032 = vld [vmem:[%s4937 + $0x2f0] sm:$0xff]
        %v5033 = vld [vmem:[%s4937 + $0x2f8] sm:$0xff]
        %v5034 = vld [vmem:[%s4937 + $0x300] sm:$0xff]
        %v5035 = vld [vmem:[%s4937 + $0x308] sm:$0xff]
        %v5036 = vld [vmem:[%s4937 + $0x310] sm:$0xff]
        %v5037 = vld [vmem:[%s4937 + $0x318] sm:$0xff]
        %v5038 = vld [vmem:[%s4937 + $0x320] sm:$0xff]
        %v5039 = vld [vmem:[%s4937 + $0x328] sm:$0xff]
        %v5040 = vld [vmem:[%s4937 + $0x330] sm:$0xff]
        %v5041 = vld [vmem:[%s4937 + $0x338] sm:$0xff]
        %v5042 = vld [vmem:[%s4937 + $0x340] sm:$0xff]
        %v5043 = vld [vmem:[%s4937 + $0x348] sm:$0xff]
        %v5044 = vld [vmem:[%s4937 + $0x350] sm:$0xff]
        %v5045 = vld [vmem:[%s4937 + $0x358] sm:$0xff]
        %v5046 = vld [vmem:[%s4937 + $0x360] sm:$0xff]
        %v5047 = vld [vmem:[%s4937 + $0x368] sm:$0xff]
        %v5048 = vld [vmem:[%s4937 + $0x370] sm:$0xff]
        %v5049 = vld [vmem:[%s4937 + $0x378] sm:$0xff]
        %v5050 = vld [vmem:[%s4937 + $0x380] sm:$0xff]
        %v5051 = vld [vmem:[%s4937 + $0x388] sm:$0xff]
        %v5052 = vld [vmem:[%s4937 + $0x390] sm:$0xff]
        %v5053 = vld [vmem:[%s4937 + $0x398] sm:$0xff]
        %v5054 = vld [vmem:[%s4937 + $0x3a0] sm:$0xff]
        %v5055 = vld [vmem:[%s4937 + $0x3a8] sm:$0xff]
        %v5056 = vld [vmem:[%s4937 + $0x3b0] sm:$0xff]
        %v5057 = vld [vmem:[%s4937 + $0x3b8] sm:$0xff]
        %v5058 = vld [vmem:[%s4937 + $0x3c0] sm:$0xff]
        %v5059 = vld [vmem:[%s4937 + $0x3c8] sm:$0xff]
        %v5060 = vld [vmem:[%s4937 + $0x3d0] sm:$0xff]
        %v5061 = vld [vmem:[%s4937 + $0x3d8] sm:$0xff]
        %v5062 = vld [vmem:[%s4937 + $0x3e0] sm:$0xff]
        %v5063 = vld [vmem:[%s4937 + $0x3e8] sm:$0xff]
        %v5064 = vld [vmem:[%s4937 + $0x3f0] sm:$0xff]
        %v5065 = vld [vmem:[%s4937 + $0x3f8] sm:$0xff]
        %5066 = vmatprep.subr.mxu0 %v4939
        %5067 = vmatpush1.msra.mxu0 %v4938
        %5068 = vmatprep.subr.mxu0 %v4943
        %5069 = vmatpush1.msra.mxu0 %v4942
        %5070 = vmatprep.subr.mxu0 %v4947
        %5071 = vmatpush1.msra.mxu0 %v4946
        %5072 = vmatprep.subr.mxu0 %v4951
        %5073 = vmatpush1.msra.mxu0 %v4950
        %5074 = vmatprep.subr.mxu0 %v4955
        %5075 = vmatpush1.msra.mxu0 %v4954
        %5076 = vmatprep.subr.mxu0 %v4959
        %5077 = vmatpush1.msra.mxu0 %v4958
        %5078 = vmatprep.subr.mxu0 %v4963
        %5079 = vmatpush1.msra.mxu0 %v4962
        %5080 = vmatprep.subr.mxu0 %v4967
        %5081 = vmatpush1.msra.mxu0 %v4966
        %5082 = vmatprep.subr.mxu0 %v4971
        %5083 = vmatpush1.msra.mxu0 %v4970
        %5084 = vmatprep.subr.mxu0 %v4975
        %5085 = vmatpush1.msra.mxu0 %v4974
        %5086 = vmatprep.subr.mxu0 %v4979
        %5087 = vmatpush1.msra.mxu0 %v4978
        %5088 = vmatprep.subr.mxu0 %v4983
        %5089 = vmatpush1.msra.mxu0 %v4982
        %5090 = vmatprep.subr.mxu0 %v4987
        %5091 = vmatpush1.msra.mxu0 %v4986
        %5092 = vmatprep.subr.mxu0 %v4991
        %5093 = vmatpush1.msra.mxu0 %v4990
        %5094 = vmatprep.subr.mxu0 %v4995
        %5095 = vmatpush1.msra.mxu0 %v4994
        %5096 = vmatprep.subr.mxu0 %v4999
        %5097 = vmatpush1.msra.mxu0 %v4998
        %5098 = vmatprep.subr.mxu0 %v5003
        %5099 = vmatpush1.msra.mxu0 %v5002
        %5100 = vmatprep.subr.mxu0 %v5007
        %5101 = vmatpush1.msra.mxu0 %v5006
        %5102 = vmatprep.subr.mxu0 %v5011
        %5103 = vmatpush1.msra.mxu0 %v5010
        %5104 = vmatprep.subr.mxu0 %v5015
        %5105 = vmatpush1.msra.mxu0 %v5014
        %5106 = vmatprep.subr.mxu0 %v5019
        %5107 = vmatpush1.msra.mxu0 %v5018
        %5108 = vmatprep.subr.mxu0 %v5023
        %5109 = vmatpush1.msra.mxu0 %v5022
        %5110 = vmatprep.subr.mxu0 %v5027
        %5111 = vmatpush1.msra.mxu0 %v5026
        %5112 = vmatprep.subr.mxu0 %v5031
        %5113 = vmatpush1.msra.mxu0 %v5030
        %5114 = vmatprep.subr.mxu0 %v5035
        %5115 = vmatpush1.msra.mxu0 %v5034
        %5116 = vmatprep.subr.mxu0 %v5039
        %5117 = vmatpush1.msra.mxu0 %v5038
        %5118 = vmatprep.subr.mxu0 %v5043
        %5119 = vmatpush1.msra.mxu0 %v5042
        %5120 = vmatprep.subr.mxu0 %v5047
        %5121 = vmatpush1.msra.mxu0 %v5046
        %5122 = vmatprep.subr.mxu0 %v5051
        %5123 = vmatpush1.msra.mxu0 %v5050
        %5124 = vmatprep.subr.mxu0 %v5055
        %5125 = vmatpush1.msra.mxu0 %v5054
        %5126 = vmatprep.subr.mxu0 %v5059
        %5127 = vmatpush1.msra.mxu0 %v5058
        %5128 = vmatprep.subr.mxu0 %v5063
        %5129 = vmatpush1.msra.mxu0 %v5062
        %5130 = vmatprep.mubr.f32.mxu0 %v4873
        %5131 = vmatmul.mubr.f32.gmra.mrb[0].mxu0 %v4872
        %v5132 = vpop.f32.mrb[0].mxu0
        %v5133 = vadd.f32 0.0, %v5132
        %v5134 = vpop.f32.mrb[0].mxu0
        %v5135 = vadd.f32 0.0, %v5134
        %5136 = vmatprep.mubr.f32.mxu0 %v4875
        %5137 = vmatmul.mubr.f32.gmra.mrb[0].mxu0 %v4874
        %v5138 = vpop.f32.mrb[0].mxu0
        %v5139 = vadd.f32 0.0, %v5138
        %v5140 = vpop.f32.mrb[0].mxu0
        %v5141 = vadd.f32 0.0, %v5140
        %5142 = vmatprep.mubr.f32.mxu0 %v4877
        %5143 = vmatmul.mubr.f32.gmra.mrb[0].mxu0 %v4876
        %v5144 = vpop.f32.mrb[0].mxu0
        %v5145 = vadd.f32 0.0, %v5144
        %v5146 = vpop.f32.mrb[0].mxu0
        %v5147 = vadd.f32 0.0, %v5146
        %5148 = vmatprep.mubr.f32.mxu0 %v4879
        %5149 = vmatmul.mubr.f32.gmra.mrb[0].mxu0 %v4878
        %v5150 = vpop.f32.mrb[0].mxu0
        %v5151 = vadd.f32 0.0, %v5150
        %v5152 = vpop.f32.mrb[0].mxu0
        %v5153 = vadd.f32 0.0, %v5152
        %5154 = vmatprep.mubr.f32.mxu0 %v4881
        %5155 = vmatmul.mubr.f32.gmra.mrb[0].mxu0 %v4880
        %v5156 = vpop.f32.mrb[0].mxu0
        %v5157 = vadd.f32 0.0, %v5156
        %v5158 = vpop.f32.mrb[0].mxu0
        %v5159 = vadd.f32 0.0, %v5158
        %5160 = vmatprep.mubr.f32.mxu0 %v4883
        %5161 = vmatmul.mubr.f32.gmra.mrb[0].mxu0 %v4882
        %v5162 = vpop.f32.mrb[0].mxu0
        %v5163 = vadd.f32 0.0, %v5162
        %v5164 = vpop.f32.mrb[0].mxu0
        %v5165 = vadd.f32 0.0, %v5164
        %5166 = vmatprep.mubr.f32.mxu0 %v4885
        %5167 = vmatmul.mubr.f32.gmra.mrb[0].mxu0 %v4884
        %v5168 = vpop.f32.mrb[0].mxu0
        %v5169 = vadd.f32 0.0, %v5168
        %v5170 = vpop.f32.mrb[0].mxu0
        %v5171 = vadd.f32 0.0, %v5170
        %5172 = vmatprep.mubr.f32.mxu0 %v4887
        %5173 = vmatmul.mubr.f32.gmra.mrb[0].mxu0 %v4886
        %v5174 = vpop.f32.mrb[0].mxu0
        %v5175 = vadd.f32 0.0, %v5174
        %v5176 = vpop.f32.mrb[0].mxu0
        %v5177 = vadd.f32 0.0, %v5176
        %5178 = vmatprep.mubr.f32.mxu0 %v4889
        %5179 = vmatmul.mubr.f32.gmra.mrb[0].mxu0 %v4888
        %v5180 = vpop.f32.mrb[0].mxu0
        %v5181 = vadd.f32 0.0, %v5180
        %v5182 = vpop.f32.mrb[0].mxu0
        %v5183 = vadd.f32 0.0, %v5182
        %5184 = vmatprep.mubr.f32.mxu0 %v4891
        %5185 = vmatmul.mubr.f32.gmra.mrb[0].mxu0 %v4890
        %v5186 = vpop.f32.mrb[0].mxu0
        %v5187 = vadd.f32 0.0, %v5186
        %v5188 = vpop.f32.mrb[0].mxu0
        %v5189 = vadd.f32 0.0, %v5188
        %5190 = vmatprep.mubr.f32.mxu0 %v4893
        %5191 = vmatmul.mubr.f32.gmra.mrb[0].mxu0 %v4892
        %v5192 = vpop.f32.mrb[0].mxu0
        %v5193 = vadd.f32 0.0, %v5192
        %v5194 = vpop.f32.mrb[0].mxu0
        %v5195 = vadd.f32 0.0, %v5194
        %5196 = vmatprep.mubr.f32.mxu0 %v4895
        %5197 = vmatmul.mubr.f32.gmra.mrb[0].mxu0 %v4894
        %v5198 = vpop.f32.mrb[0].mxu0
        %v5199 = vadd.f32 0.0, %v5198
        %v5200 = vpop.f32.mrb[0].mxu0
        %v5201 = vadd.f32 0.0, %v5200
        %5202 = vmatprep.mubr.f32.mxu0 %v4897
        %5203 = vmatmul.mubr.f32.gmra.mrb[0].mxu0 %v4896
        %v5204 = vpop.f32.mrb[0].mxu0
        %v5205 = vadd.f32 0.0, %v5204
        %v5206 = vpop.f32.mrb[0].mxu0
        %v5207 = vadd.f32 0.0, %v5206
        %5208 = vmatprep.mubr.f32.mxu0 %v4899
        %5209 = vmatmul.mubr.f32.gmra.mrb[0].mxu0 %v4898
        %v5210 = vpop.f32.mrb[0].mxu0
        %v5211 = vadd.f32 0.0, %v5210
        %v5212 = vpop.f32.mrb[0].mxu0
        %v5213 = vadd.f32 0.0, %v5212
        %5214 = vmatprep.mubr.f32.mxu0 %v4901
        %5215 = vmatmul.mubr.f32.gmra.mrb[0].mxu0 %v4900
        %v5216 = vpop.f32.mrb[0].mxu0
        %v5217 = vadd.f32 0.0, %v5216
        %v5218 = vpop.f32.mrb[0].mxu0
        %v5219 = vadd.f32 0.0, %v5218
        %5220 = vmatprep.mubr.f32.mxu0 %v4903
        %5221 = vmatmul.mubr.f32.gmra.mrb[0].mxu0 %v4902
        %v5222 = vpop.f32.mrb[0].mxu0
        %v5223 = vadd.f32 0.0, %v5222
        %v5224 = vpop.f32.mrb[0].mxu0
        %v5225 = vadd.f32 0.0, %v5224
        %5226 = vmatprep.mubr.f32.mxu0 %v4905
        %5227 = vmatmul.mubr.f32.gmra.mrb[0].mxu0 %v4904
        %v5228 = vpop.f32.mrb[0].mxu0
        %v5229 = vadd.f32 0.0, %v5228
        %v5230 = vpop.f32.mrb[0].mxu0
        %v5231 = vadd.f32 0.0, %v5230
        %5232 = vmatprep.mubr.f32.mxu0 %v4907
        %5233 = vmatmul.mubr.f32.gmra.mrb[0].mxu0 %v4906
        %v5234 = vpop.f32.mrb[0].mxu0
        %v5235 = vadd.f32 0.0, %v5234
        %v5236 = vpop.f32.mrb[0].mxu0
        %v5237 = vadd.f32 0.0, %v5236
        %5238 = vmatprep.mubr.f32.mxu0 %v4909
        %5239 = vmatmul.mubr.f32.gmra.mrb[0].mxu0 %v4908
        %v5240 = vpop.f32.mrb[0].mxu0
        %v5241 = vadd.f32 0.0, %v5240
        %v5242 = vpop.f32.mrb[0].mxu0
        %v5243 = vadd.f32 0.0, %v5242
        %5244 = vmatprep.mubr.f32.mxu0 %v4911
        %5245 = vmatmul.mubr.f32.gmra.mrb[0].mxu0 %v4910
        %v5246 = vpop.f32.mrb[0].mxu0
        %v5247 = vadd.f32 0.0, %v5246
        %v5248 = vpop.f32.mrb[0].mxu0
        %v5249 = vadd.f32 0.0, %v5248
        %5250 = vmatprep.mubr.f32.mxu0 %v4913
        %5251 = vmatmul.mubr.f32.gmra.mrb[0].mxu0 %v4912
        %v5252 = vpop.f32.mrb[0].mxu0
        %v5253 = vadd.f32 0.0, %v5252
        %v5254 = vpop.f32.mrb[0].mxu0
        %v5255 = vadd.f32 0.0, %v5254
        %5256 = vmatprep.mubr.f32.mxu0 %v4915
        %5257 = vmatmul.mubr.f32.gmra.mrb[0].mxu0 %v4914
        %v5258 = vpop.f32.mrb[0].mxu0
        %v5259 = vadd.f32 0.0, %v5258
        %v5260 = vpop.f32.mrb[0].mxu0
        %v5261 = vadd.f32 0.0, %v5260
        %5262 = vmatprep.mubr.f32.mxu0 %v4917
        %5263 = vmatmul.mubr.f32.gmra.mrb[0].mxu0 %v4916
        %v5264 = vpop.f32.mrb[0].mxu0
        %v5265 = vadd.f32 0.0, %v5264
        %v5266 = vpop.f32.mrb[0].mxu0
        %v5267 = vadd.f32 0.0, %v5266
        %5268 = vmatprep.mubr.f32.mxu0 %v4919
        %5269 = vmatmul.mubr.f32.gmra.mrb[0].mxu0 %v4918
        %v5270 = vpop.f32.mrb[0].mxu0
        %v5271 = vadd.f32 0.0, %v5270
        %v5272 = vpop.f32.mrb[0].mxu0
        %v5273 = vadd.f32 0.0, %v5272
        %5274 = vmatprep.mubr.f32.mxu0 %v4921
        %5275 = vmatmul.mubr.f32.gmra.mrb[0].mxu0 %v4920
        %v5276 = vpop.f32.mrb[0].mxu0
        %v5277 = vadd.f32 0.0, %v5276
        %v5278 = vpop.f32.mrb[0].mxu0
        %v5279 = vadd.f32 0.0, %v5278
        %5280 = vmatprep.mubr.f32.mxu0 %v4923
        %5281 = vmatmul.mubr.f32.gmra.mrb[0].mxu0 %v4922
        %v5282 = vpop.f32.mrb[0].mxu0
        %v5283 = vadd.f32 0.0, %v5282
        %v5284 = vpop.f32.mrb[0].mxu0
        %v5285 = vadd.f32 0.0, %v5284
        %5286 = vmatprep.mubr.f32.mxu0 %v4925
        %5287 = vmatmul.mubr.f32.gmra.mrb[0].mxu0 %v4924
        %v5288 = vpop.f32.mrb[0].mxu0
        %v5289 = vadd.f32 0.0, %v5288
        %v5290 = vpop.f32.mrb[0].mxu0
        %v5291 = vadd.f32 0.0, %v5290
        %5292 = vmatprep.mubr.f32.mxu0 %v4927
        %5293 = vmatmul.mubr.f32.gmra.mrb[0].mxu0 %v4926
        %v5294 = vpop.f32.mrb[0].mxu0
        %v5295 = vadd.f32 0.0, %v5294
        %v5296 = vpop.f32.mrb[0].mxu0
        %v5297 = vadd.f32 0.0, %v5296
        %5298 = vmatprep.mubr.f32.mxu0 %v4929
        %5299 = vmatmul.mubr.f32.gmra.mrb[0].mxu0 %v4928
        %v5300 = vpop.f32.mrb[0].mxu0
        %v5301 = vadd.f32 0.0, %v5300
        %v5302 = vpop.f32.mrb[0].mxu0
        %v5303 = vadd.f32 0.0, %v5302
        %5304 = vmatprep.mubr.f32.mxu0 %v4931
        %5305 = vmatmul.mubr.f32.gmra.mrb[0].mxu0 %v4930
        %v5306 = vpop.f32.mrb[0].mxu0
        %v5307 = vadd.f32 0.0, %v5306
        %v5308 = vpop.f32.mrb[0].mxu0
        %v5309 = vadd.f32 0.0, %v5308
        %5310 = vmatprep.mubr.f32.mxu0 %v4933
        %5311 = vmatmul.mubr.f32.gmra.mrb[0].mxu0 %v4932
        %v5312 = vpop.f32.mrb[0].mxu0
        %v5313 = vadd.f32 0.0, %v5312
        %v5314 = vpop.f32.mrb[0].mxu0
        %v5315 = vadd.f32 0.0, %v5314
        %5316 = vmatprep.mubr.f32.mxu0 %v4935
        %5317 = vmatmul.mubr.f32.gmra.mrb[0].mxu0 %v4934
        %v5318 = vpop.f32.mrb[0].mxu0
        %v5319 = vadd.f32 0.0, %v5318
        %v5320 = vpop.f32.mrb[0].mxu0
        %v5321 = vadd.f32 0.0, %v5320
        %5322 = vdwg.mxu0
        %5323 = vmatprep.subr.mxu0 %v4941
        %5324 = vmatpush1.msra.mxu0 %v4940
        %5325 = vmatprep.subr.mxu0 %v4945
        %5326 = vmatpush1.msra.mxu0 %v4944
        %5327 = vmatprep.subr.mxu0 %v4949
        %5328 = vmatpush1.msra.mxu0 %v4948
        %5329 = vmatprep.subr.mxu0 %v4953
        %5330 = vmatpush1.msra.mxu0 %v4952
        %5331 = vmatprep.subr.mxu0 %v4957
        %5332 = vmatpush1.msra.mxu0 %v4956
        %5333 = vmatprep.subr.mxu0 %v4961
        %5334 = vmatpush1.msra.mxu0 %v4960
        %5335 = vmatprep.subr.mxu0 %v4965
        %5336 = vmatpush1.msra.mxu0 %v4964
        %5337 = vmatprep.subr.mxu0 %v4969
        %5338 = vmatpush1.msra.mxu0 %v4968
        %5339 = vmatprep.subr.mxu0 %v4973
        %5340 = vmatpush1.msra.mxu0 %v4972
        %5341 = vmatprep.subr.mxu0 %v4977
        %5342 = vmatpush1.msra.mxu0 %v4976
        %5343 = vmatprep.subr.mxu0 %v4981
        %5344 = vmatpush1.msra.mxu0 %v4980
        %5345 = vmatprep.subr.mxu0 %v4985
        %5346 = vmatpush1.msra.mxu0 %v4984
        %5347 = vmatprep.subr.mxu0 %v4989
        %5348 = vmatpush1.msra.mxu0 %v4988
        %5349 = vmatprep.subr.mxu0 %v4993
        %5350 = vmatpush1.msra.mxu0 %v4992
        %5351 = vmatprep.subr.mxu0 %v4997
        %5352 = vmatpush1.msra.mxu0 %v4996
        %5353 = vmatprep.subr.mxu0 %v5001
        %5354 = vmatpush1.msra.mxu0 %v5000
        %5355 = vmatprep.subr.mxu0 %v5005
        %5356 = vmatpush1.msra.mxu0 %v5004
        %5357 = vmatprep.subr.mxu0 %v5009
        %5358 = vmatpush1.msra.mxu0 %v5008
        %5359 = vmatprep.subr.mxu0 %v5013
        %5360 = vmatpush1.msra.mxu0 %v5012
        %5361 = vmatprep.subr.mxu0 %v5017
        %5362 = vmatpush1.msra.mxu0 %v5016
        %5363 = vmatprep.subr.mxu0 %v5021
        %5364 = vmatpush1.msra.mxu0 %v5020
        %5365 = vmatprep.subr.mxu0 %v5025
        %5366 = vmatpush1.msra.mxu0 %v5024
        %5367 = vmatprep.subr.mxu0 %v5029
        %5368 = vmatpush1.msra.mxu0 %v5028
        %5369 = vmatprep.subr.mxu0 %v5033
        %5370 = vmatpush1.msra.mxu0 %v5032
        %5371 = vmatprep.subr.mxu0 %v5037
        %5372 = vmatpush1.msra.mxu0 %v5036
        %5373 = vmatprep.subr.mxu0 %v5041
        %5374 = vmatpush1.msra.mxu0 %v5040
        %5375 = vmatprep.subr.mxu0 %v5045
        %5376 = vmatpush1.msra.mxu0 %v5044
        %5377 = vmatprep.subr.mxu0 %v5049
        %5378 = vmatpush1.msra.mxu0 %v5048
        %5379 = vmatprep.subr.mxu0 %v5053
        %5380 = vmatpush1.msra.mxu0 %v5052
        %5381 = vmatprep.subr.mxu0 %v5057
        %5382 = vmatpush1.msra.mxu0 %v5056
        %5383 = vmatprep.subr.mxu0 %v5061
        %5384 = vmatpush1.msra.mxu0 %v5060
        %5385 = vmatprep.subr.mxu0 %v5065
        %5386 = vmatpush1.msra.mxu0 %v5064
        %5387 = vmatprep.mubr.f32.mxu0 %v4873
        %5388 = vmatmul.mubr.f32.gmra.mrb[0].mxu0 %v4872
        %v5389 = vpop.f32.mrb[0].mxu0
        %v5390 = vadd.f32 0.0, %v5389
        %v5391 = vpop.f32.mrb[0].mxu0
        %v5392 = vadd.f32 0.0, %v5391
        %5393 = vmatprep.mubr.f32.mxu0 %v4875
        %5394 = vmatmul.mubr.f32.gmra.mrb[0].mxu0 %v4874
        %v5395 = vpop.f32.mrb[0].mxu0
        %v5396 = vadd.f32 0.0, %v5395
        %v5397 = vpop.f32.mrb[0].mxu0
        %v5398 = vadd.f32 0.0, %v5397
        %5399 = vmatprep.mubr.f32.mxu0 %v4877
        %5400 = vmatmul.mubr.f32.gmra.mrb[0].mxu0 %v4876
        %v5401 = vpop.f32.mrb[0].mxu0
        %v5402 = vadd.f32 0.0, %v5401
        %v5403 = vpop.f32.mrb[0].mxu0
        %v5404 = vadd.f32 0.0, %v5403
        %5405 = vmatprep.mubr.f32.mxu0 %v4879
        %5406 = vmatmul.mubr.f32.gmra.mrb[0].mxu0 %v4878
        %v5407 = vpop.f32.mrb[0].mxu0
        %v5408 = vadd.f32 0.0, %v5407
        %v5409 = vpop.f32.mrb[0].mxu0
        %v5410 = vadd.f32 0.0, %v5409
        %5411 = vmatprep.mubr.f32.mxu0 %v4881
        %5412 = vmatmul.mubr.f32.gmra.mrb[0].mxu0 %v4880
        %v5413 = vpop.f32.mrb[0].mxu0
        %v5414 = vadd.f32 0.0, %v5413
        %v5415 = vpop.f32.mrb[0].mxu0
        %v5416 = vadd.f32 0.0, %v5415
        %5417 = vmatprep.mubr.f32.mxu0 %v4883
        %5418 = vmatmul.mubr.f32.gmra.mrb[0].mxu0 %v4882
        %v5419 = vpop.f32.mrb[0].mxu0
        %v5420 = vadd.f32 0.0, %v5419
        %v5421 = vpop.f32.mrb[0].mxu0
        %v5422 = vadd.f32 0.0, %v5421
        %5423 = vmatprep.mubr.f32.mxu0 %v4885
        %5424 = vmatmul.mubr.f32.gmra.mrb[0].mxu0 %v4884
        %v5425 = vpop.f32.mrb[0].mxu0
        %v5426 = vadd.f32 0.0, %v5425
        %v5427 = vpop.f32.mrb[0].mxu0
        %v5428 = vadd.f32 0.0, %v5427
        %5429 = vmatprep.mubr.f32.mxu0 %v4887
        %5430 = vmatmul.mubr.f32.gmra.mrb[0].mxu0 %v4886
        %v5431 = vpop.f32.mrb[0].mxu0
        %v5432 = vadd.f32 0.0, %v5431
        %v5433 = vpop.f32.mrb[0].mxu0
        %v5434 = vadd.f32 0.0, %v5433
        %5435 = vmatprep.mubr.f32.mxu0 %v4889
        %5436 = vmatmul.mubr.f32.gmra.mrb[0].mxu0 %v4888
        %v5437 = vpop.f32.mrb[0].mxu0
        %v5438 = vadd.f32 0.0, %v5437
        %v5439 = vpop.f32.mrb[0].mxu0
        %v5440 = vadd.f32 0.0, %v5439
        %5441 = vmatprep.mubr.f32.mxu0 %v4891
        %5442 = vmatmul.mubr.f32.gmra.mrb[0].mxu0 %v4890
        %v5443 = vpop.f32.mrb[0].mxu0
        %v5444 = vadd.f32 0.0, %v5443
        %v5445 = vpop.f32.mrb[0].mxu0
        %v5446 = vadd.f32 0.0, %v5445
        %5447 = vmatprep.mubr.f32.mxu0 %v4893
        %5448 = vmatmul.mubr.f32.gmra.mrb[0].mxu0 %v4892
        %v5449 = vpop.f32.mrb[0].mxu0
        %v5450 = vadd.f32 0.0, %v5449
        %v5451 = vpop.f32.mrb[0].mxu0
        %v5452 = vadd.f32 0.0, %v5451
        %5453 = vmatprep.mubr.f32.mxu0 %v4895
        %5454 = vmatmul.mubr.f32.gmra.mrb[0].mxu0 %v4894
        %v5455 = vpop.f32.mrb[0].mxu0
        %v5456 = vadd.f32 0.0, %v5455
        %v5457 = vpop.f32.mrb[0].mxu0
        %v5458 = vadd.f32 0.0, %v5457
        %5459 = vmatprep.mubr.f32.mxu0 %v4897
        %5460 = vmatmul.mubr.f32.gmra.mrb[0].mxu0 %v4896
        %v5461 = vpop.f32.mrb[0].mxu0
        %v5462 = vadd.f32 0.0, %v5461
        %v5463 = vpop.f32.mrb[0].mxu0
        %v5464 = vadd.f32 0.0, %v5463
        %5465 = vmatprep.mubr.f32.mxu0 %v4899
        %5466 = vmatmul.mubr.f32.gmra.mrb[0].mxu0 %v4898
        %v5467 = vpop.f32.mrb[0].mxu0
        %v5468 = vadd.f32 0.0, %v5467
        %v5469 = vpop.f32.mrb[0].mxu0
        %v5470 = vadd.f32 0.0, %v5469
        %5471 = vmatprep.mubr.f32.mxu0 %v4901
        %5472 = vmatmul.mubr.f32.gmra.mrb[0].mxu0 %v4900
        %v5473 = vpop.f32.mrb[0].mxu0
        %v5474 = vadd.f32 0.0, %v5473
        %v5475 = vpop.f32.mrb[0].mxu0
        %v5476 = vadd.f32 0.0, %v5475
        %5477 = vmatprep.mubr.f32.mxu0 %v4903
        %5478 = vmatmul.mubr.f32.gmra.mrb[0].mxu0 %v4902
        %v5479 = vpop.f32.mrb[0].mxu0
        %v5480 = vadd.f32 0.0, %v5479
        %v5481 = vpop.f32.mrb[0].mxu0
        %v5482 = vadd.f32 0.0, %v5481
        %5483 = vmatprep.mubr.f32.mxu0 %v4905
        %5484 = vmatmul.mubr.f32.gmra.mrb[0].mxu0 %v4904
        %v5485 = vpop.f32.mrb[0].mxu0
        %v5486 = vadd.f32 0.0, %v5485
        %v5487 = vpop.f32.mrb[0].mxu0
        %v5488 = vadd.f32 0.0, %v5487
        %5489 = vmatprep.mubr.f32.mxu0 %v4907
        %5490 = vmatmul.mubr.f32.gmra.mrb[0].mxu0 %v4906
        %v5491 = vpop.f32.mrb[0].mxu0
        %v5492 = vadd.f32 0.0, %v5491
        %v5493 = vpop.f32.mrb[0].mxu0
        %v5494 = vadd.f32 0.0, %v5493
        %5495 = vmatprep.mubr.f32.mxu0 %v4909
        %5496 = vmatmul.mubr.f32.gmra.mrb[0].mxu0 %v4908
        %v5497 = vpop.f32.mrb[0].mxu0
        %v5498 = vadd.f32 0.0, %v5497
        %v5499 = vpop.f32.mrb[0].mxu0
        %v5500 = vadd.f32 0.0, %v5499
        %5501 = vmatprep.mubr.f32.mxu0 %v4911
        %5502 = vmatmul.mubr.f32.gmra.mrb[0].mxu0 %v4910
        %v5503 = vpop.f32.mrb[0].mxu0
        %v5504 = vadd.f32 0.0, %v5503
        %v5505 = vpop.f32.mrb[0].mxu0
        %v5506 = vadd.f32 0.0, %v5505
        %5507 = vmatprep.mubr.f32.mxu0 %v4913
        %5508 = vmatmul.mubr.f32.gmra.mrb[0].mxu0 %v4912
        %v5509 = vpop.f32.mrb[0].mxu0
        %v5510 = vadd.f32 0.0, %v5509
        %v5511 = vpop.f32.mrb[0].mxu0
        %v5512 = vadd.f32 0.0, %v5511
        %5513 = vmatprep.mubr.f32.mxu0 %v4915
        %5514 = vmatmul.mubr.f32.gmra.mrb[0].mxu0 %v4914
        %v5515 = vpop.f32.mrb[0].mxu0
        %v5516 = vadd.f32 0.0, %v5515
        %v5517 = vpop.f32.mrb[0].mxu0
        %v5518 = vadd.f32 0.0, %v5517
        %5519 = vmatprep.mubr.f32.mxu0 %v4917
        %5520 = vmatmul.mubr.f32.gmra.mrb[0].mxu0 %v4916
        %v5521 = vpop.f32.mrb[0].mxu0
        %v5522 = vadd.f32 0.0, %v5521
        %v5523 = vpop.f32.mrb[0].mxu0
        %v5524 = vadd.f32 0.0, %v5523
        %5525 = vmatprep.mubr.f32.mxu0 %v4919
        %5526 = vmatmul.mubr.f32.gmra.mrb[0].mxu0 %v4918
        %v5527 = vpop.f32.mrb[0].mxu0
        %v5528 = vadd.f32 0.0, %v5527
        %v5529 = vpop.f32.mrb[0].mxu0
        %v5530 = vadd.f32 0.0, %v5529
        %5531 = vmatprep.mubr.f32.mxu0 %v4921
        %5532 = vmatmul.mubr.f32.gmra.mrb[0].mxu0 %v4920
        %v5533 = vpop.f32.mrb[0].mxu0
        %v5534 = vadd.f32 0.0, %v5533
        %v5535 = vpop.f32.mrb[0].mxu0
        %v5536 = vadd.f32 0.0, %v5535
        %5537 = vmatprep.mubr.f32.mxu0 %v4923
        %5538 = vmatmul.mubr.f32.gmra.mrb[0].mxu0 %v4922
        %v5539 = vpop.f32.mrb[0].mxu0
        %v5540 = vadd.f32 0.0, %v5539
        %v5541 = vpop.f32.mrb[0].mxu0
        %v5542 = vadd.f32 0.0, %v5541
        %5543 = vmatprep.mubr.f32.mxu0 %v4925
        %5544 = vmatmul.mubr.f32.gmra.mrb[0].mxu0 %v4924
        %v5545 = vpop.f32.mrb[0].mxu0
        %v5546 = vadd.f32 0.0, %v5545
        %v5547 = vpop.f32.mrb[0].mxu0
        %v5548 = vadd.f32 0.0, %v5547
        %5549 = vmatprep.mubr.f32.mxu0 %v4927
        %5550 = vmatmul.mubr.f32.gmra.mrb[0].mxu0 %v4926
        %v5551 = vpop.f32.mrb[0].mxu0
        %v5552 = vadd.f32 0.0, %v5551
        %v5553 = vpop.f32.mrb[0].mxu0
        %v5554 = vadd.f32 0.0, %v5553
        %5555 = vmatprep.mubr.f32.mxu0 %v4929
        %5556 = vmatmul.mubr.f32.gmra.mrb[0].mxu0 %v4928
        %v5557 = vpop.f32.mrb[0].mxu0
        %v5558 = vadd.f32 0.0, %v5557
        %v5559 = vpop.f32.mrb[0].mxu0
        %v5560 = vadd.f32 0.0, %v5559
        %5561 = vmatprep.mubr.f32.mxu0 %v4931
        %5562 = vmatmul.mubr.f32.gmra.mrb[0].mxu0 %v4930
        %v5563 = vpop.f32.mrb[0].mxu0
        %v5564 = vadd.f32 0.0, %v5563
        %v5565 = vpop.f32.mrb[0].mxu0
        %v5566 = vadd.f32 0.0, %v5565
        %5567 = vmatprep.mubr.f32.mxu0 %v4933
        %5568 = vmatmul.mubr.f32.gmra.mrb[0].mxu0 %v4932
        %v5569 = vpop.f32.mrb[0].mxu0
        %v5570 = vadd.f32 0.0, %v5569
        %v5571 = vpop.f32.mrb[0].mxu0
        %v5572 = vadd.f32 0.0, %v5571
        %5573 = vmatprep.mubr.f32.mxu0 %v4935
        %5574 = vmatmul.mubr.f32.gmra.mrb[0].mxu0 %v4934
        %v5575 = vpop.f32.mrb[0].mxu0
        %v5576 = vadd.f32 0.0, %v5575
        %v5577 = vpop.f32.mrb[0].mxu0
        %v5578 = vadd.f32 0.0, %v5577
        %5579 = vdwg.mxu0
        %v5581 = vlaneseq
        %v5582 = vshrl.u32 %v5581, 7
        %v5583 = vsub.s32 0, %v5582
        %v5584 = vrot.slane %v4936, %v5583
        %v5585 = vlaneseq
        %v5586 = vshrl.u32 %v5585, 7
        %v5587 = vsub.s32 1, %v5586
        %v5588 = vrot.slane %v4936, %v5587
        %v5589 = vlaneseq
        %v5590 = vshrl.u32 %v5589, 7
        %v5591 = vsub.s32 2, %v5590
        %v5592 = vrot.slane %v4936, %v5591
        %v5593 = vlaneseq
        %v5594 = vshrl.u32 %v5593, 7
        %v5595 = vsub.s32 3, %v5594
        %v5596 = vrot.slane %v4936, %v5595
        %v5601 = vadd.f32 %v5584, %v5133
        %v5602 = vadd.f32 %v5588, %v5135
        %v5603 = vadd.f32 %v5592, %v5390
        %v5604 = vadd.f32 %v5596, %v5392
        %v5605 = vadd.f32 %v5584, %v5139
        %v5606 = vadd.f32 %v5588, %v5141
        %v5607 = vadd.f32 %v5592, %v5396
        %v5608 = vadd.f32 %v5596, %v5398
        %v5609 = vadd.f32 %v5584, %v5145
        %v5610 = vadd.f32 %v5588, %v5147
        %v5611 = vadd.f32 %v5592, %v5402
        %v5612 = vadd.f32 %v5596, %v5404
        %v5613 = vadd.f32 %v5584, %v5151
        %v5614 = vadd.f32 %v5588, %v5153
        %v5615 = vadd.f32 %v5592, %v5408
        %v5616 = vadd.f32 %v5596, %v5410
        %v5617 = vadd.f32 %v5584, %v5157
        %v5618 = vadd.f32 %v5588, %v5159
        %v5619 = vadd.f32 %v5592, %v5414
        %v5620 = vadd.f32 %v5596, %v5416
        %v5621 = vadd.f32 %v5584, %v5163
        %v5622 = vadd.f32 %v5588, %v5165
        %v5623 = vadd.f32 %v5592, %v5420
        %v5624 = vadd.f32 %v5596, %v5422
        %v5625 = vadd.f32 %v5584, %v5169
        %v5626 = vadd.f32 %v5588, %v5171
        %v5627 = vadd.f32 %v5592, %v5426
        %v5628 = vadd.f32 %v5596, %v5428
        %v5629 = vadd.f32 %v5584, %v5175
        %v5630 = vadd.f32 %v5588, %v5177
        %v5631 = vadd.f32 %v5592, %v5432
        %v5632 = vadd.f32 %v5596, %v5434
        %v5633 = vadd.f32 %v5584, %v5181
        %v5634 = vadd.f32 %v5588, %v5183
        %v5635 = vadd.f32 %v5592, %v5438
        %v5636 = vadd.f32 %v5596, %v5440
        %v5637 = vadd.f32 %v5584, %v5187
        %v5638 = vadd.f32 %v5588, %v5189
        %v5639 = vadd.f32 %v5592, %v5444
        %v5640 = vadd.f32 %v5596, %v5446
        %v5641 = vadd.f32 %v5584, %v5193
        %v5642 = vadd.f32 %v5588, %v5195
        %v5643 = vadd.f32 %v5592, %v5450
        %v5644 = vadd.f32 %v5596, %v5452
        %v5645 = vadd.f32 %v5584, %v5199
        %v5646 = vadd.f32 %v5588, %v5201
        %v5647 = vadd.f32 %v5592, %v5456
        %v5648 = vadd.f32 %v5596, %v5458
        %v5649 = vadd.f32 %v5584, %v5205
        %v5650 = vadd.f32 %v5588, %v5207
        %v5651 = vadd.f32 %v5592, %v5462
        %v5652 = vadd.f32 %v5596, %v5464
        %v5653 = vadd.f32 %v5584, %v5211
        %v5654 = vadd.f32 %v5588, %v5213
        %v5655 = vadd.f32 %v5592, %v5468
        %v5656 = vadd.f32 %v5596, %v5470
        %v5657 = vadd.f32 %v5584, %v5217
        %v5658 = vadd.f32 %v5588, %v5219
        %v5659 = vadd.f32 %v5592, %v5474
        %v5660 = vadd.f32 %v5596, %v5476
        %v5661 = vadd.f32 %v5584, %v5223
        %v5662 = vadd.f32 %v5588, %v5225
        %v5663 = vadd.f32 %v5592, %v5480
        %v5664 = vadd.f32 %v5596, %v5482
        %v5665 = vadd.f32 %v5584, %v5229
        %v5666 = vadd.f32 %v5588, %v5231
        %v5667 = vadd.f32 %v5592, %v5486
        %v5668 = vadd.f32 %v5596, %v5488
        %v5669 = vadd.f32 %v5584, %v5235
        %v5670 = vadd.f32 %v5588, %v5237
        %v5671 = vadd.f32 %v5592, %v5492
        %v5672 = vadd.f32 %v5596, %v5494
        %v5673 = vadd.f32 %v5584, %v5241
        %v5674 = vadd.f32 %v5588, %v5243
        %v5675 = vadd.f32 %v5592, %v5498
        %v5676 = vadd.f32 %v5596, %v5500
        %v5677 = vadd.f32 %v5584, %v5247
        %v5678 = vadd.f32 %v5588, %v5249
        %v5679 = vadd.f32 %v5592, %v5504
        %v5680 = vadd.f32 %v5596, %v5506
        %v5681 = vadd.f32 %v5584, %v5253
        %v5682 = vadd.f32 %v5588, %v5255
        %v5683 = vadd.f32 %v5592, %v5510
        %v5684 = vadd.f32 %v5596, %v5512
        %v5685 = vadd.f32 %v5584, %v5259
        %v5686 = vadd.f32 %v5588, %v5261
        %v5687 = vadd.f32 %v5592, %v5516
        %v5688 = vadd.f32 %v5596, %v5518
        %v5689 = vadd.f32 %v5584, %v5265
        %v5690 = vadd.f32 %v5588, %v5267
        %v5691 = vadd.f32 %v5592, %v5522
        %v5692 = vadd.f32 %v5596, %v5524
        %v5693 = vadd.f32 %v5584, %v5271
        %v5694 = vadd.f32 %v5588, %v5273
        %v5695 = vadd.f32 %v5592, %v5528
        %v5696 = vadd.f32 %v5596, %v5530
        %v5697 = vadd.f32 %v5584, %v5277
        %v5698 = vadd.f32 %v5588, %v5279
        %v5699 = vadd.f32 %v5592, %v5534
        %v5700 = vadd.f32 %v5596, %v5536
        %v5701 = vadd.f32 %v5584, %v5283
        %v5702 = vadd.f32 %v5588, %v5285
        %v5703 = vadd.f32 %v5592, %v5540
        %v5704 = vadd.f32 %v5596, %v5542
        %v5705 = vadd.f32 %v5584, %v5289
        %v5706 = vadd.f32 %v5588, %v5291
        %v5707 = vadd.f32 %v5592, %v5546
        %v5708 = vadd.f32 %v5596, %v5548
        %v5709 = vadd.f32 %v5584, %v5295
        %v5710 = vadd.f32 %v5588, %v5297
        %v5711 = vadd.f32 %v5592, %v5552
        %v5712 = vadd.f32 %v5596, %v5554
        %v5713 = vadd.f32 %v5584, %v5301
        %v5714 = vadd.f32 %v5588, %v5303
        %v5715 = vadd.f32 %v5592, %v5558
        %v5716 = vadd.f32 %v5596, %v5560
        %v5717 = vadd.f32 %v5584, %v5307
        %v5718 = vadd.f32 %v5588, %v5309
        %v5719 = vadd.f32 %v5592, %v5564
        %v5720 = vadd.f32 %v5596, %v5566
        %v5721 = vadd.f32 %v5584, %v5313
        %v5722 = vadd.f32 %v5588, %v5315
        %v5723 = vadd.f32 %v5592, %v5570
        %v5724 = vadd.f32 %v5596, %v5572
        %v5725 = vadd.f32 %v5584, %v5319
        %v5726 = vadd.f32 %v5588, %v5321
        %v5727 = vadd.f32 %v5592, %v5576
        %v5728 = vadd.f32 %v5596, %v5578
        %v5729 = vld [vmem:[%s3] sm:$0xff]
        %v5730 = vld [vmem:[%s3 + $0x8] sm:$0xff]
        %v5731 = vld [vmem:[%s3 + $0x10] sm:$0xff]
        %v5732 = vld [vmem:[%s3 + $0x18] sm:$0xff]
        %v5733 = vld [vmem:[%s3 + $0x20] sm:$0xff]
        %v5734 = vld [vmem:[%s3 + $0x28] sm:$0xff]
        %v5735 = vld [vmem:[%s3 + $0x30] sm:$0xff]
        %v5736 = vld [vmem:[%s3 + $0x38] sm:$0xff]
        %v5737 = vld [vmem:[%s3 + $0x40] sm:$0xff]
        %v5738 = vld [vmem:[%s3 + $0x48] sm:$0xff]
        %v5739 = vld [vmem:[%s3 + $0x50] sm:$0xff]
        %v5740 = vld [vmem:[%s3 + $0x58] sm:$0xff]
        %v5741 = vld [vmem:[%s3 + $0x60] sm:$0xff]
        %v5742 = vld [vmem:[%s3 + $0x68] sm:$0xff]
        %v5743 = vld [vmem:[%s3 + $0x70] sm:$0xff]
        %v5744 = vld [vmem:[%s3 + $0x78] sm:$0xff]
        %v5745 = vld [vmem:[%s3 + $0x80] sm:$0xff]
        %v5746 = vld [vmem:[%s3 + $0x88] sm:$0xff]
        %v5747 = vld [vmem:[%s3 + $0x90] sm:$0xff]
        %v5748 = vld [vmem:[%s3 + $0x98] sm:$0xff]
        %v5749 = vld [vmem:[%s3 + $0xa0] sm:$0xff]
        %v5750 = vld [vmem:[%s3 + $0xa8] sm:$0xff]
        %v5751 = vld [vmem:[%s3 + $0xb0] sm:$0xff]
        %v5752 = vld [vmem:[%s3 + $0xb8] sm:$0xff]
        %v5753 = vld [vmem:[%s3 + $0xc0] sm:$0xff]
        %v5754 = vld [vmem:[%s3 + $0xc8] sm:$0xff]
        %v5755 = vld [vmem:[%s3 + $0xd0] sm:$0xff]
        %v5756 = vld [vmem:[%s3 + $0xd8] sm:$0xff]
        %v5757 = vld [vmem:[%s3 + $0xe0] sm:$0xff]
        %v5758 = vld [vmem:[%s3 + $0xe8] sm:$0xff]
        %v5759 = vld [vmem:[%s3 + $0xf0] sm:$0xff]
        %v5760 = vld [vmem:[%s3 + $0xf8] sm:$0xff]
        %v5761 = vld [vmem:[%s3 + $0x100] sm:$0xff]
        %v5762 = vld [vmem:[%s3 + $0x108] sm:$0xff]
        %v5763 = vld [vmem:[%s3 + $0x110] sm:$0xff]
        %v5764 = vld [vmem:[%s3 + $0x118] sm:$0xff]
        %v5765 = vld [vmem:[%s3 + $0x120] sm:$0xff]
        %v5766 = vld [vmem:[%s3 + $0x128] sm:$0xff]
        %v5767 = vld [vmem:[%s3 + $0x130] sm:$0xff]
        %v5768 = vld [vmem:[%s3 + $0x138] sm:$0xff]
        %v5769 = vld [vmem:[%s3 + $0x140] sm:$0xff]
        %v5770 = vld [vmem:[%s3 + $0x148] sm:$0xff]
        %v5771 = vld [vmem:[%s3 + $0x150] sm:$0xff]
        %v5772 = vld [vmem:[%s3 + $0x158] sm:$0xff]
        %v5773 = vld [vmem:[%s3 + $0x160] sm:$0xff]
        %v5774 = vld [vmem:[%s3 + $0x168] sm:$0xff]
        %v5775 = vld [vmem:[%s3 + $0x170] sm:$0xff]
        %v5776 = vld [vmem:[%s3 + $0x178] sm:$0xff]
        %v5777 = vld [vmem:[%s3 + $0x180] sm:$0xff]
        %v5778 = vld [vmem:[%s3 + $0x188] sm:$0xff]
        %v5779 = vld [vmem:[%s3 + $0x190] sm:$0xff]
        %v5780 = vld [vmem:[%s3 + $0x198] sm:$0xff]
        %v5781 = vld [vmem:[%s3 + $0x1a0] sm:$0xff]
        %v5782 = vld [vmem:[%s3 + $0x1a8] sm:$0xff]
        %v5783 = vld [vmem:[%s3 + $0x1b0] sm:$0xff]
        %v5784 = vld [vmem:[%s3 + $0x1b8] sm:$0xff]
        %v5785 = vld [vmem:[%s3 + $0x1c0] sm:$0xff]
        %v5786 = vld [vmem:[%s3 + $0x1c8] sm:$0xff]
        %v5787 = vld [vmem:[%s3 + $0x1d0] sm:$0xff]
        %v5788 = vld [vmem:[%s3 + $0x1d8] sm:$0xff]
        %v5789 = vld [vmem:[%s3 + $0x1e0] sm:$0xff]
        %v5790 = vld [vmem:[%s3 + $0x1e8] sm:$0xff]
        %v5791 = vld [vmem:[%s3 + $0x1f0] sm:$0xff]
        %v5792 = vld [vmem:[%s3 + $0x1f8] sm:$0xff]
        %v5793 = vld [vmem:[%s3 + $0x200] sm:$0xff]
        %v5794 = vld [vmem:[%s3 + $0x208] sm:$0xff]
        %v5795 = vld [vmem:[%s3 + $0x210] sm:$0xff]
        %v5796 = vld [vmem:[%s3 + $0x218] sm:$0xff]
        %v5797 = vld [vmem:[%s3 + $0x220] sm:$0xff]
        %v5798 = vld [vmem:[%s3 + $0x228] sm:$0xff]
        %v5799 = vld [vmem:[%s3 + $0x230] sm:$0xff]
        %v5800 = vld [vmem:[%s3 + $0x238] sm:$0xff]
        %v5801 = vld [vmem:[%s3 + $0x240] sm:$0xff]
        %v5802 = vld [vmem:[%s3 + $0x248] sm:$0xff]
        %v5803 = vld [vmem:[%s3 + $0x250] sm:$0xff]
        %v5804 = vld [vmem:[%s3 + $0x258] sm:$0xff]
        %v5805 = vld [vmem:[%s3 + $0x260] sm:$0xff]
        %v5806 = vld [vmem:[%s3 + $0x268] sm:$0xff]
        %v5807 = vld [vmem:[%s3 + $0x270] sm:$0xff]
        %v5808 = vld [vmem:[%s3 + $0x278] sm:$0xff]
        %v5809 = vld [vmem:[%s3 + $0x280] sm:$0xff]
        %v5810 = vld [vmem:[%s3 + $0x288] sm:$0xff]
        %v5811 = vld [vmem:[%s3 + $0x290] sm:$0xff]
        %v5812 = vld [vmem:[%s3 + $0x298] sm:$0xff]
        %v5813 = vld [vmem:[%s3 + $0x2a0] sm:$0xff]
        %v5814 = vld [vmem:[%s3 + $0x2a8] sm:$0xff]
        %v5815 = vld [vmem:[%s3 + $0x2b0] sm:$0xff]
        %v5816 = vld [vmem:[%s3 + $0x2b8] sm:$0xff]
        %v5817 = vld [vmem:[%s3 + $0x2c0] sm:$0xff]
        %v5818 = vld [vmem:[%s3 + $0x2c8] sm:$0xff]
        %v5819 = vld [vmem:[%s3 + $0x2d0] sm:$0xff]
        %v5820 = vld [vmem:[%s3 + $0x2d8] sm:$0xff]
        %v5821 = vld [vmem:[%s3 + $0x2e0] sm:$0xff]
        %v5822 = vld [vmem:[%s3 + $0x2e8] sm:$0xff]
        %v5823 = vld [vmem:[%s3 + $0x2f0] sm:$0xff]
        %v5824 = vld [vmem:[%s3 + $0x2f8] sm:$0xff]
        %v5825 = vld [vmem:[%s3 + $0x300] sm:$0xff]
        %v5826 = vld [vmem:[%s3 + $0x308] sm:$0xff]
        %v5827 = vld [vmem:[%s3 + $0x310] sm:$0xff]
        %v5828 = vld [vmem:[%s3 + $0x318] sm:$0xff]
        %v5829 = vld [vmem:[%s3 + $0x320] sm:$0xff]
        %v5830 = vld [vmem:[%s3 + $0x328] sm:$0xff]
        %v5831 = vld [vmem:[%s3 + $0x330] sm:$0xff]
        %v5832 = vld [vmem:[%s3 + $0x338] sm:$0xff]
        %v5833 = vld [vmem:[%s3 + $0x340] sm:$0xff]
        %v5834 = vld [vmem:[%s3 + $0x348] sm:$0xff]
        %v5835 = vld [vmem:[%s3 + $0x350] sm:$0xff]
        %v5836 = vld [vmem:[%s3 + $0x358] sm:$0xff]
        %v5837 = vld [vmem:[%s3 + $0x360] sm:$0xff]
        %v5838 = vld [vmem:[%s3 + $0x368] sm:$0xff]
        %v5839 = vld [vmem:[%s3 + $0x370] sm:$0xff]
        %v5840 = vld [vmem:[%s3 + $0x378] sm:$0xff]
        %v5841 = vld [vmem:[%s3 + $0x380] sm:$0xff]
        %v5842 = vld [vmem:[%s3 + $0x388] sm:$0xff]
        %v5843 = vld [vmem:[%s3 + $0x390] sm:$0xff]
        %v5844 = vld [vmem:[%s3 + $0x398] sm:$0xff]
        %v5845 = vld [vmem:[%s3 + $0x3a0] sm:$0xff]
        %v5846 = vld [vmem:[%s3 + $0x3a8] sm:$0xff]
        %v5847 = vld [vmem:[%s3 + $0x3b0] sm:$0xff]
        %v5848 = vld [vmem:[%s3 + $0x3b8] sm:$0xff]
        %v5849 = vld [vmem:[%s3 + $0x3c0] sm:$0xff]
        %v5850 = vld [vmem:[%s3 + $0x3c8] sm:$0xff]
        %v5851 = vld [vmem:[%s3 + $0x3d0] sm:$0xff]
        %v5852 = vld [vmem:[%s3 + $0x3d8] sm:$0xff]
        %v5853 = vld [vmem:[%s3 + $0x3e0] sm:$0xff]
        %v5854 = vld [vmem:[%s3 + $0x3e8] sm:$0xff]
        %v5855 = vld [vmem:[%s3 + $0x3f0] sm:$0xff]
        %v5856 = vld [vmem:[%s3 + $0x3f8] sm:$0xff]
        %5857 = vmatprep.subr.mxu0 %v5730
        %5858 = vmatpush1.msra.mxu0 %v5729
        %5859 = vmatprep.subr.mxu0 %v5734
        %5860 = vmatpush1.msra.mxu0 %v5733
        %5861 = vmatprep.subr.mxu0 %v5738
        %5862 = vmatpush1.msra.mxu0 %v5737
        %5863 = vmatprep.subr.mxu0 %v5742
        %5864 = vmatpush1.msra.mxu0 %v5741
        %5865 = vmatprep.subr.mxu0 %v5746
        %5866 = vmatpush1.msra.mxu0 %v5745
        %5867 = vmatprep.subr.mxu0 %v5750
        %5868 = vmatpush1.msra.mxu0 %v5749
        %5869 = vmatprep.subr.mxu0 %v5754
        %5870 = vmatpush1.msra.mxu0 %v5753
        %5871 = vmatprep.subr.mxu0 %v5758
        %5872 = vmatpush1.msra.mxu0 %v5757
        %5873 = vmatprep.subr.mxu0 %v5762
        %5874 = vmatpush1.msra.mxu0 %v5761
        %5875 = vmatprep.subr.mxu0 %v5766
        %5876 = vmatpush1.msra.mxu0 %v5765
        %5877 = vmatprep.subr.mxu0 %v5770
        %5878 = vmatpush1.msra.mxu0 %v5769
        %5879 = vmatprep.subr.mxu0 %v5774
        %5880 = vmatpush1.msra.mxu0 %v5773
        %5881 = vmatprep.subr.mxu0 %v5778
        %5882 = vmatpush1.msra.mxu0 %v5777
        %5883 = vmatprep.subr.mxu0 %v5782
        %5884 = vmatpush1.msra.mxu0 %v5781
        %5885 = vmatprep.subr.mxu0 %v5786
        %5886 = vmatpush1.msra.mxu0 %v5785
        %5887 = vmatprep.subr.mxu0 %v5790
        %5888 = vmatpush1.msra.mxu0 %v5789
        %5889 = vmatprep.subr.mxu0 %v5794
        %5890 = vmatpush1.msra.mxu0 %v5793
        %5891 = vmatprep.subr.mxu0 %v5798
        %5892 = vmatpush1.msra.mxu0 %v5797
        %5893 = vmatprep.subr.mxu0 %v5802
        %5894 = vmatpush1.msra.mxu0 %v5801
        %5895 = vmatprep.subr.mxu0 %v5806
        %5896 = vmatpush1.msra.mxu0 %v5805
        %5897 = vmatprep.subr.mxu0 %v5810
        %5898 = vmatpush1.msra.mxu0 %v5809
        %5899 = vmatprep.subr.mxu0 %v5814
        %5900 = vmatpush1.msra.mxu0 %v5813
        %5901 = vmatprep.subr.mxu0 %v5818
        %5902 = vmatpush1.msra.mxu0 %v5817
        %5903 = vmatprep.subr.mxu0 %v5822
        %5904 = vmatpush1.msra.mxu0 %v5821
        %5905 = vmatprep.subr.mxu0 %v5826
        %5906 = vmatpush1.msra.mxu0 %v5825
        %5907 = vmatprep.subr.mxu0 %v5830
        %5908 = vmatpush1.msra.mxu0 %v5829
        %5909 = vmatprep.subr.mxu0 %v5834
        %5910 = vmatpush1.msra.mxu0 %v5833
        %5911 = vmatprep.subr.mxu0 %v5838
        %5912 = vmatpush1.msra.mxu0 %v5837
        %5913 = vmatprep.subr.mxu0 %v5842
        %5914 = vmatpush1.msra.mxu0 %v5841
        %5915 = vmatprep.subr.mxu0 %v5846
        %5916 = vmatpush1.msra.mxu0 %v5845
        %5917 = vmatprep.subr.mxu0 %v5850
        %5918 = vmatpush1.msra.mxu0 %v5849
        %5919 = vmatprep.subr.mxu0 %v5854
        %5920 = vmatpush1.msra.mxu0 %v5853
        %5921 = vmatprep.mubr.f32.mxu0 0.0
        %5922 = vmatmul.mubr.f32.gmra.mrb[0].mxu0 0.0
        %v5923 = vpop.f32.mrb[0].mxu0
        %v5924 = vadd.f32 0.0, %v5923
        %v5925 = vpop.f32.mrb[0].mxu0
        %v5926 = vadd.f32 0.0, %v5925
        %5927 = vmatprep.mubr.f32.mxu0 %v4873
        %5928 = vmatmul.mubr.f32.gmra.mrb[0].mxu0 %v4872
        %v5929 = vpop.f32.mrb[0].mxu0
        %v5930 = vadd.f32 0.0, %v5929
        %v5931 = vpop.f32.mrb[0].mxu0
        %v5932 = vadd.f32 0.0, %v5931
        %5933 = vmatprep.mubr.f32.mxu0 %v4875
        %5934 = vmatmul.mubr.f32.gmra.mrb[0].mxu0 %v4874
        %v5935 = vpop.f32.mrb[0].mxu0
        %v5936 = vadd.f32 0.0, %v5935
        %v5937 = vpop.f32.mrb[0].mxu0
        %v5938 = vadd.f32 0.0, %v5937
        %5939 = vmatprep.mubr.f32.mxu0 %v4877
        %5940 = vmatmul.mubr.f32.gmra.mrb[0].mxu0 %v4876
        %v5941 = vpop.f32.mrb[0].mxu0
        %v5942 = vadd.f32 0.0, %v5941
        %v5943 = vpop.f32.mrb[0].mxu0
        %v5944 = vadd.f32 0.0, %v5943
        %5945 = vmatprep.mubr.f32.mxu0 %v4879
        %5946 = vmatmul.mubr.f32.gmra.mrb[0].mxu0 %v4878
        %v5947 = vpop.f32.mrb[0].mxu0
        %v5948 = vadd.f32 0.0, %v5947
        %v5949 = vpop.f32.mrb[0].mxu0
        %v5950 = vadd.f32 0.0, %v5949
        %5951 = vmatprep.mubr.f32.mxu0 %v4881
        %5952 = vmatmul.mubr.f32.gmra.mrb[0].mxu0 %v4880
        %v5953 = vpop.f32.mrb[0].mxu0
        %v5954 = vadd.f32 0.0, %v5953
        %v5955 = vpop.f32.mrb[0].mxu0
        %v5956 = vadd.f32 0.0, %v5955
        %5957 = vmatprep.mubr.f32.mxu0 %v4883
        %5958 = vmatmul.mubr.f32.gmra.mrb[0].mxu0 %v4882
        %v5959 = vpop.f32.mrb[0].mxu0
        %v5960 = vadd.f32 0.0, %v5959
        %v5961 = vpop.f32.mrb[0].mxu0
        %v5962 = vadd.f32 0.0, %v5961
        %5963 = vmatprep.mubr.f32.mxu0 %v4885
        %5964 = vmatmul.mubr.f32.gmra.mrb[0].mxu0 %v4884
        %v5965 = vpop.f32.mrb[0].mxu0
        %v5966 = vadd.f32 0.0, %v5965
        %v5967 = vpop.f32.mrb[0].mxu0
        %v5968 = vadd.f32 0.0, %v5967
        %5969 = vmatprep.mubr.f32.mxu0 %v4887
        %5970 = vmatmul.mubr.f32.gmra.mrb[0].mxu0 %v4886
        %v5971 = vpop.f32.mrb[0].mxu0
        %v5972 = vadd.f32 0.0, %v5971
        %v5973 = vpop.f32.mrb[0].mxu0
        %v5974 = vadd.f32 0.0, %v5973
        %5975 = vmatprep.mubr.f32.mxu0 %v4889
        %5976 = vmatmul.mubr.f32.gmra.mrb[0].mxu0 %v4888
        %v5977 = vpop.f32.mrb[0].mxu0
        %v5978 = vadd.f32 0.0, %v5977
        %v5979 = vpop.f32.mrb[0].mxu0
        %v5980 = vadd.f32 0.0, %v5979
        %5981 = vmatprep.mubr.f32.mxu0 %v4891
        %5982 = vmatmul.mubr.f32.gmra.mrb[0].mxu0 %v4890
        %v5983 = vpop.f32.mrb[0].mxu0
        %v5984 = vadd.f32 0.0, %v5983
        %v5985 = vpop.f32.mrb[0].mxu0
        %v5986 = vadd.f32 0.0, %v5985
        %5987 = vmatprep.mubr.f32.mxu0 %v4893
        %5988 = vmatmul.mubr.f32.gmra.mrb[0].mxu0 %v4892
        %v5989 = vpop.f32.mrb[0].mxu0
        %v5990 = vadd.f32 0.0, %v5989
        %v5991 = vpop.f32.mrb[0].mxu0
        %v5992 = vadd.f32 0.0, %v5991
        %5993 = vmatprep.mubr.f32.mxu0 %v4895
        %5994 = vmatmul.mubr.f32.gmra.mrb[0].mxu0 %v4894
        %v5995 = vpop.f32.mrb[0].mxu0
        %v5996 = vadd.f32 0.0, %v5995
        %v5997 = vpop.f32.mrb[0].mxu0
        %v5998 = vadd.f32 0.0, %v5997
        %5999 = vmatprep.mubr.f32.mxu0 %v4897
        %6000 = vmatmul.mubr.f32.gmra.mrb[0].mxu0 %v4896
        %v6001 = vpop.f32.mrb[0].mxu0
        %v6002 = vadd.f32 0.0, %v6001
        %v6003 = vpop.f32.mrb[0].mxu0
        %v6004 = vadd.f32 0.0, %v6003
        %6005 = vmatprep.mubr.f32.mxu0 %v4899
        %6006 = vmatmul.mubr.f32.gmra.mrb[0].mxu0 %v4898
        %v6007 = vpop.f32.mrb[0].mxu0
        %v6008 = vadd.f32 0.0, %v6007
        %v6009 = vpop.f32.mrb[0].mxu0
        %v6010 = vadd.f32 0.0, %v6009
        %6011 = vmatprep.mubr.f32.mxu0 %v4901
        %6012 = vmatmul.mubr.f32.gmra.mrb[0].mxu0 %v4900
        %v6013 = vpop.f32.mrb[0].mxu0
        %v6014 = vadd.f32 0.0, %v6013
        %v6015 = vpop.f32.mrb[0].mxu0
        %v6016 = vadd.f32 0.0, %v6015
        %6017 = vmatprep.mubr.f32.mxu0 %v4903
        %6018 = vmatmul.mubr.f32.gmra.mrb[0].mxu0 %v4902
        %v6019 = vpop.f32.mrb[0].mxu0
        %v6020 = vadd.f32 0.0, %v6019
        %v6021 = vpop.f32.mrb[0].mxu0
        %v6022 = vadd.f32 0.0, %v6021
        %6023 = vmatprep.mubr.f32.mxu0 %v4905
        %6024 = vmatmul.mubr.f32.gmra.mrb[0].mxu0 %v4904
        %v6025 = vpop.f32.mrb[0].mxu0
        %v6026 = vadd.f32 0.0, %v6025
        %v6027 = vpop.f32.mrb[0].mxu0
        %v6028 = vadd.f32 0.0, %v6027
        %6029 = vmatprep.mubr.f32.mxu0 %v4907
        %6030 = vmatmul.mubr.f32.gmra.mrb[0].mxu0 %v4906
        %v6031 = vpop.f32.mrb[0].mxu0
        %v6032 = vadd.f32 0.0, %v6031
        %v6033 = vpop.f32.mrb[0].mxu0
        %v6034 = vadd.f32 0.0, %v6033
        %6035 = vmatprep.mubr.f32.mxu0 %v4909
        %6036 = vmatmul.mubr.f32.gmra.mrb[0].mxu0 %v4908
        %v6037 = vpop.f32.mrb[0].mxu0
        %v6038 = vadd.f32 0.0, %v6037
        %v6039 = vpop.f32.mrb[0].mxu0
        %v6040 = vadd.f32 0.0, %v6039
        %6041 = vmatprep.mubr.f32.mxu0 %v4911
        %6042 = vmatmul.mubr.f32.gmra.mrb[0].mxu0 %v4910
        %v6043 = vpop.f32.mrb[0].mxu0
        %v6044 = vadd.f32 0.0, %v6043
        %v6045 = vpop.f32.mrb[0].mxu0
        %v6046 = vadd.f32 0.0, %v6045
        %6047 = vmatprep.mubr.f32.mxu0 %v4913
        %6048 = vmatmul.mubr.f32.gmra.mrb[0].mxu0 %v4912
        %v6049 = vpop.f32.mrb[0].mxu0
        %v6050 = vadd.f32 0.0, %v6049
        %v6051 = vpop.f32.mrb[0].mxu0
        %v6052 = vadd.f32 0.0, %v6051
        %6053 = vmatprep.mubr.f32.mxu0 %v4915
        %6054 = vmatmul.mubr.f32.gmra.mrb[0].mxu0 %v4914
        %v6055 = vpop.f32.mrb[0].mxu0
        %v6056 = vadd.f32 0.0, %v6055
        %v6057 = vpop.f32.mrb[0].mxu0
        %v6058 = vadd.f32 0.0, %v6057
        %6059 = vmatprep.mubr.f32.mxu0 %v4917
        %6060 = vmatmul.mubr.f32.gmra.mrb[0].mxu0 %v4916
        %v6061 = vpop.f32.mrb[0].mxu0
        %v6062 = vadd.f32 0.0, %v6061
        %v6063 = vpop.f32.mrb[0].mxu0
        %v6064 = vadd.f32 0.0, %v6063
        %6065 = vmatprep.mubr.f32.mxu0 %v4919
        %6066 = vmatmul.mubr.f32.gmra.mrb[0].mxu0 %v4918
        %v6067 = vpop.f32.mrb[0].mxu0
        %v6068 = vadd.f32 0.0, %v6067
        %v6069 = vpop.f32.mrb[0].mxu0
        %v6070 = vadd.f32 0.0, %v6069
        %6071 = vmatprep.mubr.f32.mxu0 %v4921
        %6072 = vmatmul.mubr.f32.gmra.mrb[0].mxu0 %v4920
        %v6073 = vpop.f32.mrb[0].mxu0
        %v6074 = vadd.f32 0.0, %v6073
        %v6075 = vpop.f32.mrb[0].mxu0
        %v6076 = vadd.f32 0.0, %v6075
        %6077 = vmatprep.mubr.f32.mxu0 %v4923
        %6078 = vmatmul.mubr.f32.gmra.mrb[0].mxu0 %v4922
        %v6079 = vpop.f32.mrb[0].mxu0
        %v6080 = vadd.f32 0.0, %v6079
        %v6081 = vpop.f32.mrb[0].mxu0
        %v6082 = vadd.f32 0.0, %v6081
        %6083 = vmatprep.mubr.f32.mxu0 %v4925
        %6084 = vmatmul.mubr.f32.gmra.mrb[0].mxu0 %v4924
        %v6085 = vpop.f32.mrb[0].mxu0
        %v6086 = vadd.f32 0.0, %v6085
        %v6087 = vpop.f32.mrb[0].mxu0
        %v6088 = vadd.f32 0.0, %v6087
        %6089 = vmatprep.mubr.f32.mxu0 %v4927
        %6090 = vmatmul.mubr.f32.gmra.mrb[0].mxu0 %v4926
        %v6091 = vpop.f32.mrb[0].mxu0
        %v6092 = vadd.f32 0.0, %v6091
        %v6093 = vpop.f32.mrb[0].mxu0
        %v6094 = vadd.f32 0.0, %v6093
        %6095 = vmatprep.mubr.f32.mxu0 %v4929
        %6096 = vmatmul.mubr.f32.gmra.mrb[0].mxu0 %v4928
        %v6097 = vpop.f32.mrb[0].mxu0
        %v6098 = vadd.f32 0.0, %v6097
        %v6099 = vpop.f32.mrb[0].mxu0
        %v6100 = vadd.f32 0.0, %v6099
        %6101 = vmatprep.mubr.f32.mxu0 %v4931
        %6102 = vmatmul.mubr.f32.gmra.mrb[0].mxu0 %v4930
        %v6103 = vpop.f32.mrb[0].mxu0
        %v6104 = vadd.f32 0.0, %v6103
        %v6105 = vpop.f32.mrb[0].mxu0
        %v6106 = vadd.f32 0.0, %v6105
        %6107 = vmatprep.mubr.f32.mxu0 %v4933
        %6108 = vmatmul.mubr.f32.gmra.mrb[0].mxu0 %v4932
        %v6109 = vpop.f32.mrb[0].mxu0
        %v6110 = vadd.f32 0.0, %v6109
        %v6111 = vpop.f32.mrb[0].mxu0
        %v6112 = vadd.f32 0.0, %v6111
        %6113 = vdwg.mxu0
        %6114 = vmatprep.subr.mxu0 %v5732
        %6115 = vmatpush1.msra.mxu0 %v5731
        %6116 = vmatprep.subr.mxu0 %v5736
        %6117 = vmatpush1.msra.mxu0 %v5735
        %6118 = vmatprep.subr.mxu0 %v5740
        %6119 = vmatpush1.msra.mxu0 %v5739
        %6120 = vmatprep.subr.mxu0 %v5744
        %6121 = vmatpush1.msra.mxu0 %v5743
        %6122 = vmatprep.subr.mxu0 %v5748
        %6123 = vmatpush1.msra.mxu0 %v5747
        %6124 = vmatprep.subr.mxu0 %v5752
        %6125 = vmatpush1.msra.mxu0 %v5751
        %6126 = vmatprep.subr.mxu0 %v5756
        %6127 = vmatpush1.msra.mxu0 %v5755
        %6128 = vmatprep.subr.mxu0 %v5760
        %6129 = vmatpush1.msra.mxu0 %v5759
        %6130 = vmatprep.subr.mxu0 %v5764
        %6131 = vmatpush1.msra.mxu0 %v5763
        %6132 = vmatprep.subr.mxu0 %v5768
        %6133 = vmatpush1.msra.mxu0 %v5767
        %6134 = vmatprep.subr.mxu0 %v5772
        %6135 = vmatpush1.msra.mxu0 %v5771
        %6136 = vmatprep.subr.mxu0 %v5776
        %6137 = vmatpush1.msra.mxu0 %v5775
        %6138 = vmatprep.subr.mxu0 %v5780
        %6139 = vmatpush1.msra.mxu0 %v5779
        %6140 = vmatprep.subr.mxu0 %v5784
        %6141 = vmatpush1.msra.mxu0 %v5783
        %6142 = vmatprep.subr.mxu0 %v5788
        %6143 = vmatpush1.msra.mxu0 %v5787
        %6144 = vmatprep.subr.mxu0 %v5792
        %6145 = vmatpush1.msra.mxu0 %v5791
        %6146 = vmatprep.subr.mxu0 %v5796
        %6147 = vmatpush1.msra.mxu0 %v5795
        %6148 = vmatprep.subr.mxu0 %v5800
        %6149 = vmatpush1.msra.mxu0 %v5799
        %6150 = vmatprep.subr.mxu0 %v5804
        %6151 = vmatpush1.msra.mxu0 %v5803
        %6152 = vmatprep.subr.mxu0 %v5808
        %6153 = vmatpush1.msra.mxu0 %v5807
        %6154 = vmatprep.subr.mxu0 %v5812
        %6155 = vmatpush1.msra.mxu0 %v5811
        %6156 = vmatprep.subr.mxu0 %v5816
        %6157 = vmatpush1.msra.mxu0 %v5815
        %6158 = vmatprep.subr.mxu0 %v5820
        %6159 = vmatpush1.msra.mxu0 %v5819
        %6160 = vmatprep.subr.mxu0 %v5824
        %6161 = vmatpush1.msra.mxu0 %v5823
        %6162 = vmatprep.subr.mxu0 %v5828
        %6163 = vmatpush1.msra.mxu0 %v5827
        %6164 = vmatprep.subr.mxu0 %v5832
        %6165 = vmatpush1.msra.mxu0 %v5831
        %6166 = vmatprep.subr.mxu0 %v5836
        %6167 = vmatpush1.msra.mxu0 %v5835
        %6168 = vmatprep.subr.mxu0 %v5840
        %6169 = vmatpush1.msra.mxu0 %v5839
        %6170 = vmatprep.subr.mxu0 %v5844
        %6171 = vmatpush1.msra.mxu0 %v5843
        %6172 = vmatprep.subr.mxu0 %v5848
        %6173 = vmatpush1.msra.mxu0 %v5847
        %6174 = vmatprep.subr.mxu0 %v5852
        %6175 = vmatpush1.msra.mxu0 %v5851
        %6176 = vmatprep.subr.mxu0 %v5856
        %6177 = vmatpush1.msra.mxu0 %v5855
        %6178 = vmatprep.mubr.f32.mxu0 0.0
        %6179 = vmatmul.mubr.f32.gmra.mrb[0].mxu0 0.0
        %v6180 = vpop.f32.mrb[0].mxu0
        %v6181 = vadd.f32 0.0, %v6180
        %v6182 = vpop.f32.mrb[0].mxu0
        %v6183 = vadd.f32 0.0, %v6182
        %6184 = vmatprep.mubr.f32.mxu0 %v4873
        %6185 = vmatmul.mubr.f32.gmra.mrb[0].mxu0 %v4872
        %v6186 = vpop.f32.mrb[0].mxu0
        %v6187 = vadd.f32 0.0, %v6186
        %v6188 = vpop.f32.mrb[0].mxu0
        %v6189 = vadd.f32 0.0, %v6188
        %6190 = vmatprep.mubr.f32.mxu0 %v4875
        %6191 = vmatmul.mubr.f32.gmra.mrb[0].mxu0 %v4874
        %v6192 = vpop.f32.mrb[0].mxu0
        %v6193 = vadd.f32 0.0, %v6192
        %v6194 = vpop.f32.mrb[0].mxu0
        %v6195 = vadd.f32 0.0, %v6194
        %6196 = vmatprep.mubr.f32.mxu0 %v4877
        %6197 = vmatmul.mubr.f32.gmra.mrb[0].mxu0 %v4876
        %v6198 = vpop.f32.mrb[0].mxu0
        %v6199 = vadd.f32 0.0, %v6198
        %v6200 = vpop.f32.mrb[0].mxu0
        %v6201 = vadd.f32 0.0, %v6200
        %6202 = vmatprep.mubr.f32.mxu0 %v4879
        %6203 = vmatmul.mubr.f32.gmra.mrb[0].mxu0 %v4878
        %v6204 = vpop.f32.mrb[0].mxu0
        %v6205 = vadd.f32 0.0, %v6204
        %v6206 = vpop.f32.mrb[0].mxu0
        %v6207 = vadd.f32 0.0, %v6206
        %6208 = vmatprep.mubr.f32.mxu0 %v4881
        %6209 = vmatmul.mubr.f32.gmra.mrb[0].mxu0 %v4880
        %v6210 = vpop.f32.mrb[0].mxu0
        %v6211 = vadd.f32 0.0, %v6210
        %v6212 = vpop.f32.mrb[0].mxu0
        %v6213 = vadd.f32 0.0, %v6212
        %6214 = vmatprep.mubr.f32.mxu0 %v4883
        %6215 = vmatmul.mubr.f32.gmra.mrb[0].mxu0 %v4882
        %v6216 = vpop.f32.mrb[0].mxu0
        %v6217 = vadd.f32 0.0, %v6216
        %v6218 = vpop.f32.mrb[0].mxu0
        %v6219 = vadd.f32 0.0, %v6218
        %6220 = vmatprep.mubr.f32.mxu0 %v4885
        %6221 = vmatmul.mubr.f32.gmra.mrb[0].mxu0 %v4884
        %v6222 = vpop.f32.mrb[0].mxu0
        %v6223 = vadd.f32 0.0, %v6222
        %v6224 = vpop.f32.mrb[0].mxu0
        %v6225 = vadd.f32 0.0, %v6224
        %6226 = vmatprep.mubr.f32.mxu0 %v4887
        %6227 = vmatmul.mubr.f32.gmra.mrb[0].mxu0 %v4886
        %v6228 = vpop.f32.mrb[0].mxu0
        %v6229 = vadd.f32 0.0, %v6228
        %v6230 = vpop.f32.mrb[0].mxu0
        %v6231 = vadd.f32 0.0, %v6230
        %6232 = vmatprep.mubr.f32.mxu0 %v4889
        %6233 = vmatmul.mubr.f32.gmra.mrb[0].mxu0 %v4888
        %v6234 = vpop.f32.mrb[0].mxu0
        %v6235 = vadd.f32 0.0, %v6234
        %v6236 = vpop.f32.mrb[0].mxu0
        %v6237 = vadd.f32 0.0, %v6236
        %6238 = vmatprep.mubr.f32.mxu0 %v4891
        %6239 = vmatmul.mubr.f32.gmra.mrb[0].mxu0 %v4890
        %v6240 = vpop.f32.mrb[0].mxu0
        %v6241 = vadd.f32 0.0, %v6240
        %v6242 = vpop.f32.mrb[0].mxu0
        %v6243 = vadd.f32 0.0, %v6242
        %6244 = vmatprep.mubr.f32.mxu0 %v4893
        %6245 = vmatmul.mubr.f32.gmra.mrb[0].mxu0 %v4892
        %v6246 = vpop.f32.mrb[0].mxu0
        %v6247 = vadd.f32 0.0, %v6246
        %v6248 = vpop.f32.mrb[0].mxu0
        %v6249 = vadd.f32 0.0, %v6248
        %6250 = vmatprep.mubr.f32.mxu0 %v4895
        %6251 = vmatmul.mubr.f32.gmra.mrb[0].mxu0 %v4894
        %v6252 = vpop.f32.mrb[0].mxu0
        %v6253 = vadd.f32 0.0, %v6252
        %v6254 = vpop.f32.mrb[0].mxu0
        %v6255 = vadd.f32 0.0, %v6254
        %6256 = vmatprep.mubr.f32.mxu0 %v4897
        %6257 = vmatmul.mubr.f32.gmra.mrb[0].mxu0 %v4896
        %v6258 = vpop.f32.mrb[0].mxu0
        %v6259 = vadd.f32 0.0, %v6258
        %v6260 = vpop.f32.mrb[0].mxu0
        %v6261 = vadd.f32 0.0, %v6260
        %6262 = vmatprep.mubr.f32.mxu0 %v4899
        %6263 = vmatmul.mubr.f32.gmra.mrb[0].mxu0 %v4898
        %v6264 = vpop.f32.mrb[0].mxu0
        %v6265 = vadd.f32 0.0, %v6264
        %v6266 = vpop.f32.mrb[0].mxu0
        %v6267 = vadd.f32 0.0, %v6266
        %6268 = vmatprep.mubr.f32.mxu0 %v4901
        %6269 = vmatmul.mubr.f32.gmra.mrb[0].mxu0 %v4900
        %v6270 = vpop.f32.mrb[0].mxu0
        %v6271 = vadd.f32 0.0, %v6270
        %v6272 = vpop.f32.mrb[0].mxu0
        %v6273 = vadd.f32 0.0, %v6272
        %6274 = vmatprep.mubr.f32.mxu0 %v4903
        %6275 = vmatmul.mubr.f32.gmra.mrb[0].mxu0 %v4902
        %v6276 = vpop.f32.mrb[0].mxu0
        %v6277 = vadd.f32 0.0, %v6276
        %v6278 = vpop.f32.mrb[0].mxu0
        %v6279 = vadd.f32 0.0, %v6278
        %6280 = vmatprep.mubr.f32.mxu0 %v4905
        %6281 = vmatmul.mubr.f32.gmra.mrb[0].mxu0 %v4904
        %v6282 = vpop.f32.mrb[0].mxu0
        %v6283 = vadd.f32 0.0, %v6282
        %v6284 = vpop.f32.mrb[0].mxu0
        %v6285 = vadd.f32 0.0, %v6284
        %6286 = vmatprep.mubr.f32.mxu0 %v4907
        %6287 = vmatmul.mubr.f32.gmra.mrb[0].mxu0 %v4906
        %v6288 = vpop.f32.mrb[0].mxu0
        %v6289 = vadd.f32 0.0, %v6288
        %v6290 = vpop.f32.mrb[0].mxu0
        %v6291 = vadd.f32 0.0, %v6290
        %6292 = vmatprep.mubr.f32.mxu0 %v4909
        %6293 = vmatmul.mubr.f32.gmra.mrb[0].mxu0 %v4908
        %v6294 = vpop.f32.mrb[0].mxu0
        %v6295 = vadd.f32 0.0, %v6294
        %v6296 = vpop.f32.mrb[0].mxu0
        %v6297 = vadd.f32 0.0, %v6296
        %6298 = vmatprep.mubr.f32.mxu0 %v4911
        %6299 = vmatmul.mubr.f32.gmra.mrb[0].mxu0 %v4910
        %v6300 = vpop.f32.mrb[0].mxu0
        %v6301 = vadd.f32 0.0, %v6300
        %v6302 = vpop.f32.mrb[0].mxu0
        %v6303 = vadd.f32 0.0, %v6302
        %6304 = vmatprep.mubr.f32.mxu0 %v4913
        %6305 = vmatmul.mubr.f32.gmra.mrb[0].mxu0 %v4912
        %v6306 = vpop.f32.mrb[0].mxu0
        %v6307 = vadd.f32 0.0, %v6306
        %v6308 = vpop.f32.mrb[0].mxu0
        %v6309 = vadd.f32 0.0, %v6308
        %6310 = vmatprep.mubr.f32.mxu0 %v4915
        %6311 = vmatmul.mubr.f32.gmra.mrb[0].mxu0 %v4914
        %v6312 = vpop.f32.mrb[0].mxu0
        %v6313 = vadd.f32 0.0, %v6312
        %v6314 = vpop.f32.mrb[0].mxu0
        %v6315 = vadd.f32 0.0, %v6314
        %6316 = vmatprep.mubr.f32.mxu0 %v4917
        %6317 = vmatmul.mubr.f32.gmra.mrb[0].mxu0 %v4916
        %v6318 = vpop.f32.mrb[0].mxu0
        %v6319 = vadd.f32 0.0, %v6318
        %v6320 = vpop.f32.mrb[0].mxu0
        %v6321 = vadd.f32 0.0, %v6320
        %6322 = vmatprep.mubr.f32.mxu0 %v4919
        %6323 = vmatmul.mubr.f32.gmra.mrb[0].mxu0 %v4918
        %v6324 = vpop.f32.mrb[0].mxu0
        %v6325 = vadd.f32 0.0, %v6324
        %v6326 = vpop.f32.mrb[0].mxu0
        %v6327 = vadd.f32 0.0, %v6326
        %6328 = vmatprep.mubr.f32.mxu0 %v4921
        %6329 = vmatmul.mubr.f32.gmra.mrb[0].mxu0 %v4920
        %v6330 = vpop.f32.mrb[0].mxu0
        %v6331 = vadd.f32 0.0, %v6330
        %v6332 = vpop.f32.mrb[0].mxu0
        %v6333 = vadd.f32 0.0, %v6332
        %6334 = vmatprep.mubr.f32.mxu0 %v4923
        %6335 = vmatmul.mubr.f32.gmra.mrb[0].mxu0 %v4922
        %v6336 = vpop.f32.mrb[0].mxu0
        %v6337 = vadd.f32 0.0, %v6336
        %v6338 = vpop.f32.mrb[0].mxu0
        %v6339 = vadd.f32 0.0, %v6338
        %6340 = vmatprep.mubr.f32.mxu0 %v4925
        %6341 = vmatmul.mubr.f32.gmra.mrb[0].mxu0 %v4924
        %v6342 = vpop.f32.mrb[0].mxu0
        %v6343 = vadd.f32 0.0, %v6342
        %v6344 = vpop.f32.mrb[0].mxu0
        %v6345 = vadd.f32 0.0, %v6344
        %6346 = vmatprep.mubr.f32.mxu0 %v4927
        %6347 = vmatmul.mubr.f32.gmra.mrb[0].mxu0 %v4926
        %v6348 = vpop.f32.mrb[0].mxu0
        %v6349 = vadd.f32 0.0, %v6348
        %v6350 = vpop.f32.mrb[0].mxu0
        %v6351 = vadd.f32 0.0, %v6350
        %6352 = vmatprep.mubr.f32.mxu0 %v4929
        %6353 = vmatmul.mubr.f32.gmra.mrb[0].mxu0 %v4928
        %v6354 = vpop.f32.mrb[0].mxu0
        %v6355 = vadd.f32 0.0, %v6354
        %v6356 = vpop.f32.mrb[0].mxu0
        %v6357 = vadd.f32 0.0, %v6356
        %6358 = vmatprep.mubr.f32.mxu0 %v4931
        %6359 = vmatmul.mubr.f32.gmra.mrb[0].mxu0 %v4930
        %v6360 = vpop.f32.mrb[0].mxu0
        %v6361 = vadd.f32 0.0, %v6360
        %v6362 = vpop.f32.mrb[0].mxu0
        %v6363 = vadd.f32 0.0, %v6362
        %6364 = vmatprep.mubr.f32.mxu0 %v4933
        %6365 = vmatmul.mubr.f32.gmra.mrb[0].mxu0 %v4932
        %v6366 = vpop.f32.mrb[0].mxu0
        %v6367 = vadd.f32 0.0, %v6366
        %v6368 = vpop.f32.mrb[0].mxu0
        %v6369 = vadd.f32 0.0, %v6368
        %6370 = vdwg.mxu0
        %v6371 = vadd.f32 %v5601, %v5924
        %v6372 = vadd.f32 %v5602, %v5926
        %v6373 = vadd.f32 %v5603, %v6181
        %v6374 = vadd.f32 %v5604, %v6183
        %v6375 = vadd.f32 %v5605, %v5930
        %v6376 = vadd.f32 %v5606, %v5932
        %v6377 = vadd.f32 %v5607, %v6187
        %v6378 = vadd.f32 %v5608, %v6189
        %v6379 = vadd.f32 %v5609, %v5936
        %v6380 = vadd.f32 %v5610, %v5938
        %v6381 = vadd.f32 %v5611, %v6193
        %v6382 = vadd.f32 %v5612, %v6195
        %v6383 = vadd.f32 %v5613, %v5942
        %v6384 = vadd.f32 %v5614, %v5944
        %v6385 = vadd.f32 %v5615, %v6199
        %v6386 = vadd.f32 %v5616, %v6201
        %v6387 = vadd.f32 %v5617, %v5948
        %v6388 = vadd.f32 %v5618, %v5950
        %v6389 = vadd.f32 %v5619, %v6205
        %v6390 = vadd.f32 %v5620, %v6207
        %v6391 = vadd.f32 %v5621, %v5954
        %v6392 = vadd.f32 %v5622, %v5956
        %v6393 = vadd.f32 %v5623, %v6211
        %v6394 = vadd.f32 %v5624, %v6213
        %v6395 = vadd.f32 %v5625, %v5960
        %v6396 = vadd.f32 %v5626, %v5962
        %v6397 = vadd.f32 %v5627, %v6217
        %v6398 = vadd.f32 %v5628, %v6219
        %v6399 = vadd.f32 %v5629, %v5966
        %v6400 = vadd.f32 %v5630, %v5968
        %v6401 = vadd.f32 %v5631, %v6223
        %v6402 = vadd.f32 %v5632, %v6225
        %v6403 = vadd.f32 %v5633, %v5972
        %v6404 = vadd.f32 %v5634, %v5974
        %v6405 = vadd.f32 %v5635, %v6229
        %v6406 = vadd.f32 %v5636, %v6231
        %v6407 = vadd.f32 %v5637, %v5978
        %v6408 = vadd.f32 %v5638, %v5980
        %v6409 = vadd.f32 %v5639, %v6235
        %v6410 = vadd.f32 %v5640, %v6237
        %v6411 = vadd.f32 %v5641, %v5984
        %v6412 = vadd.f32 %v5642, %v5986
        %v6413 = vadd.f32 %v5643, %v6241
        %v6414 = vadd.f32 %v5644, %v6243
        %v6415 = vadd.f32 %v5645, %v5990
        %v6416 = vadd.f32 %v5646, %v5992
        %v6417 = vadd.f32 %v5647, %v6247
        %v6418 = vadd.f32 %v5648, %v6249
        %v6419 = vadd.f32 %v5649, %v5996
        %v6420 = vadd.f32 %v5650, %v5998
        %v6421 = vadd.f32 %v5651, %v6253
        %v6422 = vadd.f32 %v5652, %v6255
        %v6423 = vadd.f32 %v5653, %v6002
        %v6424 = vadd.f32 %v5654, %v6004
        %v6425 = vadd.f32 %v5655, %v6259
        %v6426 = vadd.f32 %v5656, %v6261
        %v6427 = vadd.f32 %v5657, %v6008
        %v6428 = vadd.f32 %v5658, %v6010
        %v6429 = vadd.f32 %v5659, %v6265
        %v6430 = vadd.f32 %v5660, %v6267
        %v6431 = vadd.f32 %v5661, %v6014
        %v6432 = vadd.f32 %v5662, %v6016
        %v6433 = vadd.f32 %v5663, %v6271
        %v6434 = vadd.f32 %v5664, %v6273
        %v6435 = vadd.f32 %v5665, %v6020
        %v6436 = vadd.f32 %v5666, %v6022
        %v6437 = vadd.f32 %v5667, %v6277
        %v6438 = vadd.f32 %v5668, %v6279
        %v6439 = vadd.f32 %v5669, %v6026
        %v6440 = vadd.f32 %v5670, %v6028
        %v6441 = vadd.f32 %v5671, %v6283
        %v6442 = vadd.f32 %v5672, %v6285
        %v6443 = vadd.f32 %v5673, %v6032
        %v6444 = vadd.f32 %v5674, %v6034
        %v6445 = vadd.f32 %v5675, %v6289
        %v6446 = vadd.f32 %v5676, %v6291
        %v6447 = vadd.f32 %v5677, %v6038
        %v6448 = vadd.f32 %v5678, %v6040
        %v6449 = vadd.f32 %v5679, %v6295
        %v6450 = vadd.f32 %v5680, %v6297
        %v6451 = vadd.f32 %v5681, %v6044
        %v6452 = vadd.f32 %v5682, %v6046
        %v6453 = vadd.f32 %v5683, %v6301
        %v6454 = vadd.f32 %v5684, %v6303
        %v6455 = vadd.f32 %v5685, %v6050
        %v6456 = vadd.f32 %v5686, %v6052
        %v6457 = vadd.f32 %v5687, %v6307
        %v6458 = vadd.f32 %v5688, %v6309
        %v6459 = vadd.f32 %v5689, %v6056
        %v6460 = vadd.f32 %v5690, %v6058
        %v6461 = vadd.f32 %v5691, %v6313
        %v6462 = vadd.f32 %v5692, %v6315
        %v6463 = vadd.f32 %v5693, %v6062
        %v6464 = vadd.f32 %v5694, %v6064
        %v6465 = vadd.f32 %v5695, %v6319
        %v6466 = vadd.f32 %v5696, %v6321
        %v6467 = vadd.f32 %v5697, %v6068
        %v6468 = vadd.f32 %v5698, %v6070
        %v6469 = vadd.f32 %v5699, %v6325
        %v6470 = vadd.f32 %v5700, %v6327
        %v6471 = vadd.f32 %v5701, %v6074
        %v6472 = vadd.f32 %v5702, %v6076
        %v6473 = vadd.f32 %v5703, %v6331
        %v6474 = vadd.f32 %v5704, %v6333
        %v6475 = vadd.f32 %v5705, %v6080
        %v6476 = vadd.f32 %v5706, %v6082
        %v6477 = vadd.f32 %v5707, %v6337
        %v6478 = vadd.f32 %v5708, %v6339
        %v6479 = vadd.f32 %v5709, %v6086
        %v6480 = vadd.f32 %v5710, %v6088
        %v6481 = vadd.f32 %v5711, %v6343
        %v6482 = vadd.f32 %v5712, %v6345
        %v6483 = vadd.f32 %v5713, %v6092
        %v6484 = vadd.f32 %v5714, %v6094
        %v6485 = vadd.f32 %v5715, %v6349
        %v6486 = vadd.f32 %v5716, %v6351
        %v6487 = vadd.f32 %v5717, %v6098
        %v6488 = vadd.f32 %v5718, %v6100
        %v6489 = vadd.f32 %v5719, %v6355
        %v6490 = vadd.f32 %v5720, %v6357
        %v6491 = vadd.f32 %v5721, %v6104
        %v6492 = vadd.f32 %v5722, %v6106
        %v6493 = vadd.f32 %v5723, %v6361
        %v6494 = vadd.f32 %v5724, %v6363
        %v6495 = vadd.f32 %v5725, %v6110
        %v6496 = vadd.f32 %v5726, %v6112
        %v6497 = vadd.f32 %v5727, %v6367
        %v6498 = vadd.f32 %v5728, %v6369
        %s6499 = scalar_lea.vmem %s3, 2048
        %v6500 = vld [vmem:[%s6499] sm:$0xff]
        %v6501 = vld [vmem:[%s6499 + $0x8] sm:$0xff]
        %v6502 = vld [vmem:[%s6499 + $0x10] sm:$0xff]
        %v6503 = vld [vmem:[%s6499 + $0x18] sm:$0xff]
        %v6504 = vld [vmem:[%s6499 + $0x20] sm:$0xff]
        %v6505 = vld [vmem:[%s6499 + $0x28] sm:$0xff]
        %v6506 = vld [vmem:[%s6499 + $0x30] sm:$0xff]
        %v6507 = vld [vmem:[%s6499 + $0x38] sm:$0xff]
        %v6508 = vld [vmem:[%s6499 + $0x40] sm:$0xff]
        %v6509 = vld [vmem:[%s6499 + $0x48] sm:$0xff]
        %v6510 = vld [vmem:[%s6499 + $0x50] sm:$0xff]
        %v6511 = vld [vmem:[%s6499 + $0x58] sm:$0xff]
        %v6512 = vld [vmem:[%s6499 + $0x60] sm:$0xff]
        %v6513 = vld [vmem:[%s6499 + $0x68] sm:$0xff]
        %v6514 = vld [vmem:[%s6499 + $0x70] sm:$0xff]
        %v6515 = vld [vmem:[%s6499 + $0x78] sm:$0xff]
        %v6516 = vld [vmem:[%s6499 + $0x80] sm:$0xff]
        %v6517 = vld [vmem:[%s6499 + $0x88] sm:$0xff]
        %v6518 = vld [vmem:[%s6499 + $0x90] sm:$0xff]
        %v6519 = vld [vmem:[%s6499 + $0x98] sm:$0xff]
        %v6520 = vld [vmem:[%s6499 + $0xa0] sm:$0xff]
        %v6521 = vld [vmem:[%s6499 + $0xa8] sm:$0xff]
        %v6522 = vld [vmem:[%s6499 + $0xb0] sm:$0xff]
        %v6523 = vld [vmem:[%s6499 + $0xb8] sm:$0xff]
        %v6524 = vld [vmem:[%s6499 + $0xc0] sm:$0xff]
        %v6525 = vld [vmem:[%s6499 + $0xc8] sm:$0xff]
        %v6526 = vld [vmem:[%s6499 + $0xd0] sm:$0xff]
        %v6527 = vld [vmem:[%s6499 + $0xd8] sm:$0xff]
        %v6528 = vld [vmem:[%s6499 + $0xe0] sm:$0xff]
        %v6529 = vld [vmem:[%s6499 + $0xe8] sm:$0xff]
        %v6530 = vld [vmem:[%s6499 + $0xf0] sm:$0xff]
        %v6531 = vld [vmem:[%s6499 + $0xf8] sm:$0xff]
        %v6532 = vld [vmem:[%s6499 + $0x100] sm:$0xff]
        %v6533 = vld [vmem:[%s6499 + $0x108] sm:$0xff]
        %v6534 = vld [vmem:[%s6499 + $0x110] sm:$0xff]
        %v6535 = vld [vmem:[%s6499 + $0x118] sm:$0xff]
        %v6536 = vld [vmem:[%s6499 + $0x120] sm:$0xff]
        %v6537 = vld [vmem:[%s6499 + $0x128] sm:$0xff]
        %v6538 = vld [vmem:[%s6499 + $0x130] sm:$0xff]
        %v6539 = vld [vmem:[%s6499 + $0x138] sm:$0xff]
        %v6540 = vld [vmem:[%s6499 + $0x140] sm:$0xff]
        %v6541 = vld [vmem:[%s6499 + $0x148] sm:$0xff]
        %v6542 = vld [vmem:[%s6499 + $0x150] sm:$0xff]
        %v6543 = vld [vmem:[%s6499 + $0x158] sm:$0xff]
        %v6544 = vld [vmem:[%s6499 + $0x160] sm:$0xff]
        %v6545 = vld [vmem:[%s6499 + $0x168] sm:$0xff]
        %v6546 = vld [vmem:[%s6499 + $0x170] sm:$0xff]
        %v6547 = vld [vmem:[%s6499 + $0x178] sm:$0xff]
        %v6548 = vld [vmem:[%s6499 + $0x180] sm:$0xff]
        %v6549 = vld [vmem:[%s6499 + $0x188] sm:$0xff]
        %v6550 = vld [vmem:[%s6499 + $0x190] sm:$0xff]
        %v6551 = vld [vmem:[%s6499 + $0x198] sm:$0xff]
        %v6552 = vld [vmem:[%s6499 + $0x1a0] sm:$0xff]
        %v6553 = vld [vmem:[%s6499 + $0x1a8] sm:$0xff]
        %v6554 = vld [vmem:[%s6499 + $0x1b0] sm:$0xff]
        %v6555 = vld [vmem:[%s6499 + $0x1b8] sm:$0xff]
        %v6556 = vld [vmem:[%s6499 + $0x1c0] sm:$0xff]
        %v6557 = vld [vmem:[%s6499 + $0x1c8] sm:$0xff]
        %v6558 = vld [vmem:[%s6499 + $0x1d0] sm:$0xff]
        %v6559 = vld [vmem:[%s6499 + $0x1d8] sm:$0xff]
        %v6560 = vld [vmem:[%s6499 + $0x1e0] sm:$0xff]
        %v6561 = vld [vmem:[%s6499 + $0x1e8] sm:$0xff]
        %v6562 = vld [vmem:[%s6499 + $0x1f0] sm:$0xff]
        %v6563 = vld [vmem:[%s6499 + $0x1f8] sm:$0xff]
        %v6564 = vld [vmem:[%s6499 + $0x200] sm:$0xff]
        %v6565 = vld [vmem:[%s6499 + $0x208] sm:$0xff]
        %v6566 = vld [vmem:[%s6499 + $0x210] sm:$0xff]
        %v6567 = vld [vmem:[%s6499 + $0x218] sm:$0xff]
        %v6568 = vld [vmem:[%s6499 + $0x220] sm:$0xff]
        %v6569 = vld [vmem:[%s6499 + $0x228] sm:$0xff]
        %v6570 = vld [vmem:[%s6499 + $0x230] sm:$0xff]
        %v6571 = vld [vmem:[%s6499 + $0x238] sm:$0xff]
        %v6572 = vld [vmem:[%s6499 + $0x240] sm:$0xff]
        %v6573 = vld [vmem:[%s6499 + $0x248] sm:$0xff]
        %v6574 = vld [vmem:[%s6499 + $0x250] sm:$0xff]
        %v6575 = vld [vmem:[%s6499 + $0x258] sm:$0xff]
        %v6576 = vld [vmem:[%s6499 + $0x260] sm:$0xff]
        %v6577 = vld [vmem:[%s6499 + $0x268] sm:$0xff]
        %v6578 = vld [vmem:[%s6499 + $0x270] sm:$0xff]
        %v6579 = vld [vmem:[%s6499 + $0x278] sm:$0xff]
        %v6580 = vld [vmem:[%s6499 + $0x280] sm:$0xff]
        %v6581 = vld [vmem:[%s6499 + $0x288] sm:$0xff]
        %v6582 = vld [vmem:[%s6499 + $0x290] sm:$0xff]
        %v6583 = vld [vmem:[%s6499 + $0x298] sm:$0xff]
        %v6584 = vld [vmem:[%s6499 + $0x2a0] sm:$0xff]
        %v6585 = vld [vmem:[%s6499 + $0x2a8] sm:$0xff]
        %v6586 = vld [vmem:[%s6499 + $0x2b0] sm:$0xff]
        %v6587 = vld [vmem:[%s6499 + $0x2b8] sm:$0xff]
        %v6588 = vld [vmem:[%s6499 + $0x2c0] sm:$0xff]
        %v6589 = vld [vmem:[%s6499 + $0x2c8] sm:$0xff]
        %v6590 = vld [vmem:[%s6499 + $0x2d0] sm:$0xff]
        %v6591 = vld [vmem:[%s6499 + $0x2d8] sm:$0xff]
        %v6592 = vld [vmem:[%s6499 + $0x2e0] sm:$0xff]
        %v6593 = vld [vmem:[%s6499 + $0x2e8] sm:$0xff]
        %v6594 = vld [vmem:[%s6499 + $0x2f0] sm:$0xff]
        %v6595 = vld [vmem:[%s6499 + $0x2f8] sm:$0xff]
        %v6596 = vld [vmem:[%s6499 + $0x300] sm:$0xff]
        %v6597 = vld [vmem:[%s6499 + $0x308] sm:$0xff]
        %v6598 = vld [vmem:[%s6499 + $0x310] sm:$0xff]
        %v6599 = vld [vmem:[%s6499 + $0x318] sm:$0xff]
        %v6600 = vld [vmem:[%s6499 + $0x320] sm:$0xff]
        %v6601 = vld [vmem:[%s6499 + $0x328] sm:$0xff]
        %v6602 = vld [vmem:[%s6499 + $0x330] sm:$0xff]
        %v6603 = vld [vmem:[%s6499 + $0x338] sm:$0xff]
        %v6604 = vld [vmem:[%s6499 + $0x340] sm:$0xff]
        %v6605 = vld [vmem:[%s6499 + $0x348] sm:$0xff]
        %v6606 = vld [vmem:[%s6499 + $0x350] sm:$0xff]
        %v6607 = vld [vmem:[%s6499 + $0x358] sm:$0xff]
        %v6608 = vld [vmem:[%s6499 + $0x360] sm:$0xff]
        %v6609 = vld [vmem:[%s6499 + $0x368] sm:$0xff]
        %v6610 = vld [vmem:[%s6499 + $0x370] sm:$0xff]
        %v6611 = vld [vmem:[%s6499 + $0x378] sm:$0xff]
        %v6612 = vld [vmem:[%s6499 + $0x380] sm:$0xff]
        %v6613 = vld [vmem:[%s6499 + $0x388] sm:$0xff]
        %v6614 = vld [vmem:[%s6499 + $0x390] sm:$0xff]
        %v6615 = vld [vmem:[%s6499 + $0x398] sm:$0xff]
        %v6616 = vld [vmem:[%s6499 + $0x3a0] sm:$0xff]
        %v6617 = vld [vmem:[%s6499 + $0x3a8] sm:$0xff]
        %v6618 = vld [vmem:[%s6499 + $0x3b0] sm:$0xff]
        %v6619 = vld [vmem:[%s6499 + $0x3b8] sm:$0xff]
        %v6620 = vld [vmem:[%s6499 + $0x3c0] sm:$0xff]
        %v6621 = vld [vmem:[%s6499 + $0x3c8] sm:$0xff]
        %v6622 = vld [vmem:[%s6499 + $0x3d0] sm:$0xff]
        %v6623 = vld [vmem:[%s6499 + $0x3d8] sm:$0xff]
        %v6624 = vld [vmem:[%s6499 + $0x3e0] sm:$0xff]
        %v6625 = vld [vmem:[%s6499 + $0x3e8] sm:$0xff]
        %v6626 = vld [vmem:[%s6499 + $0x3f0] sm:$0xff]
        %v6627 = vld [vmem:[%s6499 + $0x3f8] sm:$0xff]
        %6628 = vmatprep.subr.mxu0 %v6501
        %6629 = vmatpush1.msra.mxu0 %v6500
        %6630 = vmatprep.subr.mxu0 %v6505
        %6631 = vmatpush1.msra.mxu0 %v6504
        %6632 = vmatprep.subr.mxu0 %v6509
        %6633 = vmatpush1.msra.mxu0 %v6508
        %6634 = vmatprep.subr.mxu0 %v6513
        %6635 = vmatpush1.msra.mxu0 %v6512
        %6636 = vmatprep.subr.mxu0 %v6517
        %6637 = vmatpush1.msra.mxu0 %v6516
        %6638 = vmatprep.subr.mxu0 %v6521
        %6639 = vmatpush1.msra.mxu0 %v6520
        %6640 = vmatprep.subr.mxu0 %v6525
        %6641 = vmatpush1.msra.mxu0 %v6524
        %6642 = vmatprep.subr.mxu0 %v6529
        %6643 = vmatpush1.msra.mxu0 %v6528
        %6644 = vmatprep.subr.mxu0 %v6533
        %6645 = vmatpush1.msra.mxu0 %v6532
        %6646 = vmatprep.subr.mxu0 %v6537
        %6647 = vmatpush1.msra.mxu0 %v6536
        %6648 = vmatprep.subr.mxu0 %v6541
        %6649 = vmatpush1.msra.mxu0 %v6540
        %6650 = vmatprep.subr.mxu0 %v6545
        %6651 = vmatpush1.msra.mxu0 %v6544
        %6652 = vmatprep.subr.mxu0 %v6549
        %6653 = vmatpush1.msra.mxu0 %v6548
        %6654 = vmatprep.subr.mxu0 %v6553
        %6655 = vmatpush1.msra.mxu0 %v6552
        %6656 = vmatprep.subr.mxu0 %v6557
        %6657 = vmatpush1.msra.mxu0 %v6556
        %6658 = vmatprep.subr.mxu0 %v6561
        %6659 = vmatpush1.msra.mxu0 %v6560
        %6660 = vmatprep.subr.mxu0 %v6565
        %6661 = vmatpush1.msra.mxu0 %v6564
        %6662 = vmatprep.subr.mxu0 %v6569
        %6663 = vmatpush1.msra.mxu0 %v6568
        %6664 = vmatprep.subr.mxu0 %v6573
        %6665 = vmatpush1.msra.mxu0 %v6572
        %6666 = vmatprep.subr.mxu0 %v6577
        %6667 = vmatpush1.msra.mxu0 %v6576
        %6668 = vmatprep.subr.mxu0 %v6581
        %6669 = vmatpush1.msra.mxu0 %v6580
        %6670 = vmatprep.subr.mxu0 %v6585
        %6671 = vmatpush1.msra.mxu0 %v6584
        %6672 = vmatprep.subr.mxu0 %v6589
        %6673 = vmatpush1.msra.mxu0 %v6588
        %6674 = vmatprep.subr.mxu0 %v6593
        %6675 = vmatpush1.msra.mxu0 %v6592
        %6676 = vmatprep.subr.mxu0 %v6597
        %6677 = vmatpush1.msra.mxu0 %v6596
        %6678 = vmatprep.subr.mxu0 %v6601
        %6679 = vmatpush1.msra.mxu0 %v6600
        %6680 = vmatprep.subr.mxu0 %v6605
        %6681 = vmatpush1.msra.mxu0 %v6604
        %6682 = vmatprep.subr.mxu0 %v6609
        %6683 = vmatpush1.msra.mxu0 %v6608
        %6684 = vmatprep.subr.mxu0 %v6613
        %6685 = vmatpush1.msra.mxu0 %v6612
        %6686 = vmatprep.subr.mxu0 %v6617
        %6687 = vmatpush1.msra.mxu0 %v6616
        %6688 = vmatprep.subr.mxu0 %v6621
        %6689 = vmatpush1.msra.mxu0 %v6620
        %6690 = vmatprep.subr.mxu0 %v6625
        %6691 = vmatpush1.msra.mxu0 %v6624
        %6692 = vmatprep.mubr.f32.mxu0 %v4875
        %6693 = vmatmul.mubr.f32.gmra.mrb[0].mxu0 %v4874
        %v6694 = vpop.f32.mrb[0].mxu0
        %v6695 = vadd.f32 0.0, %v6694
        %v6696 = vpop.f32.mrb[0].mxu0
        %v6697 = vadd.f32 0.0, %v6696
        %6698 = vmatprep.mubr.f32.mxu0 %v4877
        %6699 = vmatmul.mubr.f32.gmra.mrb[0].mxu0 %v4876
        %v6700 = vpop.f32.mrb[0].mxu0
        %v6701 = vadd.f32 0.0, %v6700
        %v6702 = vpop.f32.mrb[0].mxu0
        %v6703 = vadd.f32 0.0, %v6702
        %6704 = vmatprep.mubr.f32.mxu0 %v4879
        %6705 = vmatmul.mubr.f32.gmra.mrb[0].mxu0 %v4878
        %v6706 = vpop.f32.mrb[0].mxu0
        %v6707 = vadd.f32 0.0, %v6706
        %v6708 = vpop.f32.mrb[0].mxu0
        %v6709 = vadd.f32 0.0, %v6708
        %6710 = vmatprep.mubr.f32.mxu0 %v4881
        %6711 = vmatmul.mubr.f32.gmra.mrb[0].mxu0 %v4880
        %v6712 = vpop.f32.mrb[0].mxu0
        %v6713 = vadd.f32 0.0, %v6712
        %v6714 = vpop.f32.mrb[0].mxu0
        %v6715 = vadd.f32 0.0, %v6714
        %6716 = vmatprep.mubr.f32.mxu0 %v4883
        %6717 = vmatmul.mubr.f32.gmra.mrb[0].mxu0 %v4882
        %v6718 = vpop.f32.mrb[0].mxu0
        %v6719 = vadd.f32 0.0, %v6718
        %v6720 = vpop.f32.mrb[0].mxu0
        %v6721 = vadd.f32 0.0, %v6720
        %6722 = vmatprep.mubr.f32.mxu0 %v4885
        %6723 = vmatmul.mubr.f32.gmra.mrb[0].mxu0 %v4884
        %v6724 = vpop.f32.mrb[0].mxu0
        %v6725 = vadd.f32 0.0, %v6724
        %v6726 = vpop.f32.mrb[0].mxu0
        %v6727 = vadd.f32 0.0, %v6726
        %6728 = vmatprep.mubr.f32.mxu0 %v4887
        %6729 = vmatmul.mubr.f32.gmra.mrb[0].mxu0 %v4886
        %v6730 = vpop.f32.mrb[0].mxu0
        %v6731 = vadd.f32 0.0, %v6730
        %v6732 = vpop.f32.mrb[0].mxu0
        %v6733 = vadd.f32 0.0, %v6732
        %6734 = vmatprep.mubr.f32.mxu0 %v4889
        %6735 = vmatmul.mubr.f32.gmra.mrb[0].mxu0 %v4888
        %v6736 = vpop.f32.mrb[0].mxu0
        %v6737 = vadd.f32 0.0, %v6736
        %v6738 = vpop.f32.mrb[0].mxu0
        %v6739 = vadd.f32 0.0, %v6738
        %6740 = vmatprep.mubr.f32.mxu0 %v4891
        %6741 = vmatmul.mubr.f32.gmra.mrb[0].mxu0 %v4890
        %v6742 = vpop.f32.mrb[0].mxu0
        %v6743 = vadd.f32 0.0, %v6742
        %v6744 = vpop.f32.mrb[0].mxu0
        %v6745 = vadd.f32 0.0, %v6744
        %6746 = vmatprep.mubr.f32.mxu0 %v4893
        %6747 = vmatmul.mubr.f32.gmra.mrb[0].mxu0 %v4892
        %v6748 = vpop.f32.mrb[0].mxu0
        %v6749 = vadd.f32 0.0, %v6748
        %v6750 = vpop.f32.mrb[0].mxu0
        %v6751 = vadd.f32 0.0, %v6750
        %6752 = vmatprep.mubr.f32.mxu0 %v4895
        %6753 = vmatmul.mubr.f32.gmra.mrb[0].mxu0 %v4894
        %v6754 = vpop.f32.mrb[0].mxu0
        %v6755 = vadd.f32 0.0, %v6754
        %v6756 = vpop.f32.mrb[0].mxu0
        %v6757 = vadd.f32 0.0, %v6756
        %6758 = vmatprep.mubr.f32.mxu0 %v4897
        %6759 = vmatmul.mubr.f32.gmra.mrb[0].mxu0 %v4896
        %v6760 = vpop.f32.mrb[0].mxu0
        %v6761 = vadd.f32 0.0, %v6760
        %v6762 = vpop.f32.mrb[0].mxu0
        %v6763 = vadd.f32 0.0, %v6762
        %6764 = vmatprep.mubr.f32.mxu0 %v4899
        %6765 = vmatmul.mubr.f32.gmra.mrb[0].mxu0 %v4898
        %v6766 = vpop.f32.mrb[0].mxu0
        %v6767 = vadd.f32 0.0, %v6766
        %v6768 = vpop.f32.mrb[0].mxu0
        %v6769 = vadd.f32 0.0, %v6768
        %6770 = vmatprep.mubr.f32.mxu0 %v4901
        %6771 = vmatmul.mubr.f32.gmra.mrb[0].mxu0 %v4900
        %v6772 = vpop.f32.mrb[0].mxu0
        %v6773 = vadd.f32 0.0, %v6772
        %v6774 = vpop.f32.mrb[0].mxu0
        %v6775 = vadd.f32 0.0, %v6774
        %6776 = vmatprep.mubr.f32.mxu0 %v4903
        %6777 = vmatmul.mubr.f32.gmra.mrb[0].mxu0 %v4902
        %v6778 = vpop.f32.mrb[0].mxu0
        %v6779 = vadd.f32 0.0, %v6778
        %v6780 = vpop.f32.mrb[0].mxu0
        %v6781 = vadd.f32 0.0, %v6780
        %6782 = vmatprep.mubr.f32.mxu0 %v4905
        %6783 = vmatmul.mubr.f32.gmra.mrb[0].mxu0 %v4904
        %v6784 = vpop.f32.mrb[0].mxu0
        %v6785 = vadd.f32 0.0, %v6784
        %v6786 = vpop.f32.mrb[0].mxu0
        %v6787 = vadd.f32 0.0, %v6786
        %6788 = vmatprep.mubr.f32.mxu0 %v4907
        %6789 = vmatmul.mubr.f32.gmra.mrb[0].mxu0 %v4906
        %v6790 = vpop.f32.mrb[0].mxu0
        %v6791 = vadd.f32 0.0, %v6790
        %v6792 = vpop.f32.mrb[0].mxu0
        %v6793 = vadd.f32 0.0, %v6792
        %6794 = vmatprep.mubr.f32.mxu0 %v4909
        %6795 = vmatmul.mubr.f32.gmra.mrb[0].mxu0 %v4908
        %v6796 = vpop.f32.mrb[0].mxu0
        %v6797 = vadd.f32 0.0, %v6796
        %v6798 = vpop.f32.mrb[0].mxu0
        %v6799 = vadd.f32 0.0, %v6798
        %6800 = vmatprep.mubr.f32.mxu0 %v4911
        %6801 = vmatmul.mubr.f32.gmra.mrb[0].mxu0 %v4910
        %v6802 = vpop.f32.mrb[0].mxu0
        %v6803 = vadd.f32 0.0, %v6802
        %v6804 = vpop.f32.mrb[0].mxu0
        %v6805 = vadd.f32 0.0, %v6804
        %6806 = vmatprep.mubr.f32.mxu0 %v4913
        %6807 = vmatmul.mubr.f32.gmra.mrb[0].mxu0 %v4912
        %v6808 = vpop.f32.mrb[0].mxu0
        %v6809 = vadd.f32 0.0, %v6808
        %v6810 = vpop.f32.mrb[0].mxu0
        %v6811 = vadd.f32 0.0, %v6810
        %6812 = vmatprep.mubr.f32.mxu0 %v4915
        %6813 = vmatmul.mubr.f32.gmra.mrb[0].mxu0 %v4914
        %v6814 = vpop.f32.mrb[0].mxu0
        %v6815 = vadd.f32 0.0, %v6814
        %v6816 = vpop.f32.mrb[0].mxu0
        %v6817 = vadd.f32 0.0, %v6816
        %6818 = vmatprep.mubr.f32.mxu0 %v4917
        %6819 = vmatmul.mubr.f32.gmra.mrb[0].mxu0 %v4916
        %v6820 = vpop.f32.mrb[0].mxu0
        %v6821 = vadd.f32 0.0, %v6820
        %v6822 = vpop.f32.mrb[0].mxu0
        %v6823 = vadd.f32 0.0, %v6822
        %6824 = vmatprep.mubr.f32.mxu0 %v4919
        %6825 = vmatmul.mubr.f32.gmra.mrb[0].mxu0 %v4918
        %v6826 = vpop.f32.mrb[0].mxu0
        %v6827 = vadd.f32 0.0, %v6826
        %v6828 = vpop.f32.mrb[0].mxu0
        %v6829 = vadd.f32 0.0, %v6828
        %6830 = vmatprep.mubr.f32.mxu0 %v4921
        %6831 = vmatmul.mubr.f32.gmra.mrb[0].mxu0 %v4920
        %v6832 = vpop.f32.mrb[0].mxu0
        %v6833 = vadd.f32 0.0, %v6832
        %v6834 = vpop.f32.mrb[0].mxu0
        %v6835 = vadd.f32 0.0, %v6834
        %6836 = vmatprep.mubr.f32.mxu0 %v4923
        %6837 = vmatmul.mubr.f32.gmra.mrb[0].mxu0 %v4922
        %v6838 = vpop.f32.mrb[0].mxu0
        %v6839 = vadd.f32 0.0, %v6838
        %v6840 = vpop.f32.mrb[0].mxu0
        %v6841 = vadd.f32 0.0, %v6840
        %6842 = vmatprep.mubr.f32.mxu0 %v4925
        %6843 = vmatmul.mubr.f32.gmra.mrb[0].mxu0 %v4924
        %v6844 = vpop.f32.mrb[0].mxu0
        %v6845 = vadd.f32 0.0, %v6844
        %v6846 = vpop.f32.mrb[0].mxu0
        %v6847 = vadd.f32 0.0, %v6846
        %6848 = vmatprep.mubr.f32.mxu0 %v4927
        %6849 = vmatmul.mubr.f32.gmra.mrb[0].mxu0 %v4926
        %v6850 = vpop.f32.mrb[0].mxu0
        %v6851 = vadd.f32 0.0, %v6850
        %v6852 = vpop.f32.mrb[0].mxu0
        %v6853 = vadd.f32 0.0, %v6852
        %6854 = vmatprep.mubr.f32.mxu0 %v4929
        %6855 = vmatmul.mubr.f32.gmra.mrb[0].mxu0 %v4928
        %v6856 = vpop.f32.mrb[0].mxu0
        %v6857 = vadd.f32 0.0, %v6856
        %v6858 = vpop.f32.mrb[0].mxu0
        %v6859 = vadd.f32 0.0, %v6858
        %6860 = vmatprep.mubr.f32.mxu0 %v4931
        %6861 = vmatmul.mubr.f32.gmra.mrb[0].mxu0 %v4930
        %v6862 = vpop.f32.mrb[0].mxu0
        %v6863 = vadd.f32 0.0, %v6862
        %v6864 = vpop.f32.mrb[0].mxu0
        %v6865 = vadd.f32 0.0, %v6864
        %6866 = vmatprep.mubr.f32.mxu0 %v4933
        %6867 = vmatmul.mubr.f32.gmra.mrb[0].mxu0 %v4932
        %v6868 = vpop.f32.mrb[0].mxu0
        %v6869 = vadd.f32 0.0, %v6868
        %v6870 = vpop.f32.mrb[0].mxu0
        %v6871 = vadd.f32 0.0, %v6870
        %6872 = vmatprep.mubr.f32.mxu0 %v4935
        %6873 = vmatmul.mubr.f32.gmra.mrb[0].mxu0 %v4934
        %v6874 = vpop.f32.mrb[0].mxu0
        %v6875 = vadd.f32 0.0, %v6874
        %v6876 = vpop.f32.mrb[0].mxu0
        %v6877 = vadd.f32 0.0, %v6876
        %6878 = vmatprep.mubr.f32.mxu0 0.0
        %6879 = vmatmul.mubr.f32.gmra.mrb[0].mxu0 0.0
        %v6880 = vpop.f32.mrb[0].mxu0
        %v6881 = vadd.f32 0.0, %v6880
        %v6882 = vpop.f32.mrb[0].mxu0
        %v6883 = vadd.f32 0.0, %v6882
        %6884 = vdwg.mxu0
        %6885 = vmatprep.subr.mxu0 %v6503
        %6886 = vmatpush1.msra.mxu0 %v6502
        %6887 = vmatprep.subr.mxu0 %v6507
        %6888 = vmatpush1.msra.mxu0 %v6506
        %6889 = vmatprep.subr.mxu0 %v6511
        %6890 = vmatpush1.msra.mxu0 %v6510
        %6891 = vmatprep.subr.mxu0 %v6515
        %6892 = vmatpush1.msra.mxu0 %v6514
        %6893 = vmatprep.subr.mxu0 %v6519
        %6894 = vmatpush1.msra.mxu0 %v6518
        %6895 = vmatprep.subr.mxu0 %v6523
        %6896 = vmatpush1.msra.mxu0 %v6522
        %6897 = vmatprep.subr.mxu0 %v6527
        %6898 = vmatpush1.msra.mxu0 %v6526
        %6899 = vmatprep.subr.mxu0 %v6531
        %6900 = vmatpush1.msra.mxu0 %v6530
        %6901 = vmatprep.subr.mxu0 %v6535
        %6902 = vmatpush1.msra.mxu0 %v6534
        %6903 = vmatprep.subr.mxu0 %v6539
        %6904 = vmatpush1.msra.mxu0 %v6538
        %6905 = vmatprep.subr.mxu0 %v6543
        %6906 = vmatpush1.msra.mxu0 %v6542
        %6907 = vmatprep.subr.mxu0 %v6547
        %6908 = vmatpush1.msra.mxu0 %v6546
        %6909 = vmatprep.subr.mxu0 %v6551
        %6910 = vmatpush1.msra.mxu0 %v6550
        %6911 = vmatprep.subr.mxu0 %v6555
        %6912 = vmatpush1.msra.mxu0 %v6554
        %6913 = vmatprep.subr.mxu0 %v6559
        %6914 = vmatpush1.msra.mxu0 %v6558
        %6915 = vmatprep.subr.mxu0 %v6563
        %6916 = vmatpush1.msra.mxu0 %v6562
        %6917 = vmatprep.subr.mxu0 %v6567
        %6918 = vmatpush1.msra.mxu0 %v6566
        %6919 = vmatprep.subr.mxu0 %v6571
        %6920 = vmatpush1.msra.mxu0 %v6570
        %6921 = vmatprep.subr.mxu0 %v6575
        %6922 = vmatpush1.msra.mxu0 %v6574
        %6923 = vmatprep.subr.mxu0 %v6579
        %6924 = vmatpush1.msra.mxu0 %v6578
        %6925 = vmatprep.subr.mxu0 %v6583
        %6926 = vmatpush1.msra.mxu0 %v6582
        %6927 = vmatprep.subr.mxu0 %v6587
        %6928 = vmatpush1.msra.mxu0 %v6586
        %6929 = vmatprep.subr.mxu0 %v6591
        %6930 = vmatpush1.msra.mxu0 %v6590
        %6931 = vmatprep.subr.mxu0 %v6595
        %6932 = vmatpush1.msra.mxu0 %v6594
        %6933 = vmatprep.subr.mxu0 %v6599
        %6934 = vmatpush1.msra.mxu0 %v6598
        %6935 = vmatprep.subr.mxu0 %v6603
        %6936 = vmatpush1.msra.mxu0 %v6602
        %6937 = vmatprep.subr.mxu0 %v6607
        %6938 = vmatpush1.msra.mxu0 %v6606
        %6939 = vmatprep.subr.mxu0 %v6611
        %6940 = vmatpush1.msra.mxu0 %v6610
        %6941 = vmatprep.subr.mxu0 %v6615
        %6942 = vmatpush1.msra.mxu0 %v6614
        %6943 = vmatprep.subr.mxu0 %v6619
        %6944 = vmatpush1.msra.mxu0 %v6618
        %6945 = vmatprep.subr.mxu0 %v6623
        %6946 = vmatpush1.msra.mxu0 %v6622
        %6947 = vmatprep.subr.mxu0 %v6627
        %6948 = vmatpush1.msra.mxu0 %v6626
        %6949 = vmatprep.mubr.f32.mxu0 %v4875
        %6950 = vmatmul.mubr.f32.gmra.mrb[0].mxu0 %v4874
        %v6951 = vpop.f32.mrb[0].mxu0
        %v6952 = vadd.f32 0.0, %v6951
        %v6953 = vpop.f32.mrb[0].mxu0
        %v6954 = vadd.f32 0.0, %v6953
        %6955 = vmatprep.mubr.f32.mxu0 %v4877
        %6956 = vmatmul.mubr.f32.gmra.mrb[0].mxu0 %v4876
        %v6957 = vpop.f32.mrb[0].mxu0
        %v6958 = vadd.f32 0.0, %v6957
        %v6959 = vpop.f32.mrb[0].mxu0
        %v6960 = vadd.f32 0.0, %v6959
        %6961 = vmatprep.mubr.f32.mxu0 %v4879
        %6962 = vmatmul.mubr.f32.gmra.mrb[0].mxu0 %v4878
        %v6963 = vpop.f32.mrb[0].mxu0
        %v6964 = vadd.f32 0.0, %v6963
        %v6965 = vpop.f32.mrb[0].mxu0
        %v6966 = vadd.f32 0.0, %v6965
        %6967 = vmatprep.mubr.f32.mxu0 %v4881
        %6968 = vmatmul.mubr.f32.gmra.mrb[0].mxu0 %v4880
        %v6969 = vpop.f32.mrb[0].mxu0
        %v6970 = vadd.f32 0.0, %v6969
        %v6971 = vpop.f32.mrb[0].mxu0
        %v6972 = vadd.f32 0.0, %v6971
        %6973 = vmatprep.mubr.f32.mxu0 %v4883
        %6974 = vmatmul.mubr.f32.gmra.mrb[0].mxu0 %v4882
        %v6975 = vpop.f32.mrb[0].mxu0
        %v6976 = vadd.f32 0.0, %v6975
        %v6977 = vpop.f32.mrb[0].mxu0
        %v6978 = vadd.f32 0.0, %v6977
        %6979 = vmatprep.mubr.f32.mxu0 %v4885
        %6980 = vmatmul.mubr.f32.gmra.mrb[0].mxu0 %v4884
        %v6981 = vpop.f32.mrb[0].mxu0
        %v6982 = vadd.f32 0.0, %v6981
        %v6983 = vpop.f32.mrb[0].mxu0
        %v6984 = vadd.f32 0.0, %v6983
        %6985 = vmatprep.mubr.f32.mxu0 %v4887
        %6986 = vmatmul.mubr.f32.gmra.mrb[0].mxu0 %v4886
        %v6987 = vpop.f32.mrb[0].mxu0
        %v6988 = vadd.f32 0.0, %v6987
        %v6989 = vpop.f32.mrb[0].mxu0
        %v6990 = vadd.f32 0.0, %v6989
        %6991 = vmatprep.mubr.f32.mxu0 %v4889
        %6992 = vmatmul.mubr.f32.gmra.mrb[0].mxu0 %v4888
        %v6993 = vpop.f32.mrb[0].mxu0
        %v6994 = vadd.f32 0.0, %v6993
        %v6995 = vpop.f32.mrb[0].mxu0
        %v6996 = vadd.f32 0.0, %v6995
        %6997 = vmatprep.mubr.f32.mxu0 %v4891
        %6998 = vmatmul.mubr.f32.gmra.mrb[0].mxu0 %v4890
        %v6999 = vpop.f32.mrb[0].mxu0
        %v7000 = vadd.f32 0.0, %v6999
        %v7001 = vpop.f32.mrb[0].mxu0
        %v7002 = vadd.f32 0.0, %v7001
        %7003 = vmatprep.mubr.f32.mxu0 %v4893
        %7004 = vmatmul.mubr.f32.gmra.mrb[0].mxu0 %v4892
        %v7005 = vpop.f32.mrb[0].mxu0
        %v7006 = vadd.f32 0.0, %v7005
        %v7007 = vpop.f32.mrb[0].mxu0
        %v7008 = vadd.f32 0.0, %v7007
        %7009 = vmatprep.mubr.f32.mxu0 %v4895
        %7010 = vmatmul.mubr.f32.gmra.mrb[0].mxu0 %v4894
        %v7011 = vpop.f32.mrb[0].mxu0
        %v7012 = vadd.f32 0.0, %v7011
        %v7013 = vpop.f32.mrb[0].mxu0
        %v7014 = vadd.f32 0.0, %v7013
        %7015 = vmatprep.mubr.f32.mxu0 %v4897
        %7016 = vmatmul.mubr.f32.gmra.mrb[0].mxu0 %v4896
        %v7017 = vpop.f32.mrb[0].mxu0
        %v7018 = vadd.f32 0.0, %v7017
        %v7019 = vpop.f32.mrb[0].mxu0
        %v7020 = vadd.f32 0.0, %v7019
        %7021 = vmatprep.mubr.f32.mxu0 %v4899
        %7022 = vmatmul.mubr.f32.gmra.mrb[0].mxu0 %v4898
        %v7023 = vpop.f32.mrb[0].mxu0
        %v7024 = vadd.f32 0.0, %v7023
        %v7025 = vpop.f32.mrb[0].mxu0
        %v7026 = vadd.f32 0.0, %v7025
        %7027 = vmatprep.mubr.f32.mxu0 %v4901
        %7028 = vmatmul.mubr.f32.gmra.mrb[0].mxu0 %v4900
        %v7029 = vpop.f32.mrb[0].mxu0
        %v7030 = vadd.f32 0.0, %v7029
        %v7031 = vpop.f32.mrb[0].mxu0
        %v7032 = vadd.f32 0.0, %v7031
        %7033 = vmatprep.mubr.f32.mxu0 %v4903
        %7034 = vmatmul.mubr.f32.gmra.mrb[0].mxu0 %v4902
        %v7035 = vpop.f32.mrb[0].mxu0
        %v7036 = vadd.f32 0.0, %v7035
        %v7037 = vpop.f32.mrb[0].mxu0
        %v7038 = vadd.f32 0.0, %v7037
        %7039 = vmatprep.mubr.f32.mxu0 %v4905
        %7040 = vmatmul.mubr.f32.gmra.mrb[0].mxu0 %v4904
        %v7041 = vpop.f32.mrb[0].mxu0
        %v7042 = vadd.f32 0.0, %v7041
        %v7043 = vpop.f32.mrb[0].mxu0
        %v7044 = vadd.f32 0.0, %v7043
        %7045 = vmatprep.mubr.f32.mxu0 %v4907
        %7046 = vmatmul.mubr.f32.gmra.mrb[0].mxu0 %v4906
        %v7047 = vpop.f32.mrb[0].mxu0
        %v7048 = vadd.f32 0.0, %v7047
        %v7049 = vpop.f32.mrb[0].mxu0
        %v7050 = vadd.f32 0.0, %v7049
        %7051 = vmatprep.mubr.f32.mxu0 %v4909
        %7052 = vmatmul.mubr.f32.gmra.mrb[0].mxu0 %v4908
        %v7053 = vpop.f32.mrb[0].mxu0
        %v7054 = vadd.f32 0.0, %v7053
        %v7055 = vpop.f32.mrb[0].mxu0
        %v7056 = vadd.f32 0.0, %v7055
        %7057 = vmatprep.mubr.f32.mxu0 %v4911
        %7058 = vmatmul.mubr.f32.gmra.mrb[0].mxu0 %v4910
        %v7059 = vpop.f32.mrb[0].mxu0
        %v7060 = vadd.f32 0.0, %v7059
        %v7061 = vpop.f32.mrb[0].mxu0
        %v7062 = vadd.f32 0.0, %v7061
        %7063 = vmatprep.mubr.f32.mxu0 %v4913
        %7064 = vmatmul.mubr.f32.gmra.mrb[0].mxu0 %v4912
        %v7065 = vpop.f32.mrb[0].mxu0
        %v7066 = vadd.f32 0.0, %v7065
        %v7067 = vpop.f32.mrb[0].mxu0
        %v7068 = vadd.f32 0.0, %v7067
        %7069 = vmatprep.mubr.f32.mxu0 %v4915
        %7070 = vmatmul.mubr.f32.gmra.mrb[0].mxu0 %v4914
        %v7071 = vpop.f32.mrb[0].mxu0
        %v7072 = vadd.f32 0.0, %v7071
        %v7073 = vpop.f32.mrb[0].mxu0
        %v7074 = vadd.f32 0.0, %v7073
        %7075 = vmatprep.mubr.f32.mxu0 %v4917
        %7076 = vmatmul.mubr.f32.gmra.mrb[0].mxu0 %v4916
        %v7077 = vpop.f32.mrb[0].mxu0
        %v7078 = vadd.f32 0.0, %v7077
        %v7079 = vpop.f32.mrb[0].mxu0
        %v7080 = vadd.f32 0.0, %v7079
        %7081 = vmatprep.mubr.f32.mxu0 %v4919
        %7082 = vmatmul.mubr.f32.gmra.mrb[0].mxu0 %v4918
        %v7083 = vpop.f32.mrb[0].mxu0
        %v7084 = vadd.f32 0.0, %v7083
        %v7085 = vpop.f32.mrb[0].mxu0
        %v7086 = vadd.f32 0.0, %v7085
        %7087 = vmatprep.mubr.f32.mxu0 %v4921
        %7088 = vmatmul.mubr.f32.gmra.mrb[0].mxu0 %v4920
        %v7089 = vpop.f32.mrb[0].mxu0
        %v7090 = vadd.f32 0.0, %v7089
        %v7091 = vpop.f32.mrb[0].mxu0
        %v7092 = vadd.f32 0.0, %v7091
        %7093 = vmatprep.mubr.f32.mxu0 %v4923
        %7094 = vmatmul.mubr.f32.gmra.mrb[0].mxu0 %v4922
        %v7095 = vpop.f32.mrb[0].mxu0
        %v7096 = vadd.f32 0.0, %v7095
        %v7097 = vpop.f32.mrb[0].mxu0
        %v7098 = vadd.f32 0.0, %v7097
        %7099 = vmatprep.mubr.f32.mxu0 %v4925
        %7100 = vmatmul.mubr.f32.gmra.mrb[0].mxu0 %v4924
        %v7101 = vpop.f32.mrb[0].mxu0
        %v7102 = vadd.f32 0.0, %v7101
        %v7103 = vpop.f32.mrb[0].mxu0
        %v7104 = vadd.f32 0.0, %v7103
        %7105 = vmatprep.mubr.f32.mxu0 %v4927
        %7106 = vmatmul.mubr.f32.gmra.mrb[0].mxu0 %v4926
        %v7107 = vpop.f32.mrb[0].mxu0
        %v7108 = vadd.f32 0.0, %v7107
        %v7109 = vpop.f32.mrb[0].mxu0
        %v7110 = vadd.f32 0.0, %v7109
        %7111 = vmatprep.mubr.f32.mxu0 %v4929
        %7112 = vmatmul.mubr.f32.gmra.mrb[0].mxu0 %v4928
        %v7113 = vpop.f32.mrb[0].mxu0
        %v7114 = vadd.f32 0.0, %v7113
        %v7115 = vpop.f32.mrb[0].mxu0
        %v7116 = vadd.f32 0.0, %v7115
        %7117 = vmatprep.mubr.f32.mxu0 %v4931
        %7118 = vmatmul.mubr.f32.gmra.mrb[0].mxu0 %v4930
        %v7119 = vpop.f32.mrb[0].mxu0
        %v7120 = vadd.f32 0.0, %v7119
        %v7121 = vpop.f32.mrb[0].mxu0
        %v7122 = vadd.f32 0.0, %v7121
        %7123 = vmatprep.mubr.f32.mxu0 %v4933
        %7124 = vmatmul.mubr.f32.gmra.mrb[0].mxu0 %v4932
        %v7125 = vpop.f32.mrb[0].mxu0
        %v7126 = vadd.f32 0.0, %v7125
        %v7127 = vpop.f32.mrb[0].mxu0
        %v7128 = vadd.f32 0.0, %v7127
        %7129 = vmatprep.mubr.f32.mxu0 %v4935
        %7130 = vmatmul.mubr.f32.gmra.mrb[0].mxu0 %v4934
        %v7131 = vpop.f32.mrb[0].mxu0
        %v7132 = vadd.f32 0.0, %v7131
        %v7133 = vpop.f32.mrb[0].mxu0
        %v7134 = vadd.f32 0.0, %v7133
        %7135 = vmatprep.mubr.f32.mxu0 0.0
        %7136 = vmatmul.mubr.f32.gmra.mrb[0].mxu0 0.0
        %v7137 = vpop.f32.mrb[0].mxu0
        %v7138 = vadd.f32 0.0, %v7137
        %v7139 = vpop.f32.mrb[0].mxu0
        %v7140 = vadd.f32 0.0, %v7139
        %7141 = vdwg.mxu0
        %v7142 = vadd.f32 %v6371, %v6695
        %v7143 = vadd.f32 %v6372, %v6697
        %v7144 = vadd.f32 %v6373, %v6952
        %v7145 = vadd.f32 %v6374, %v6954
        %v7146 = vadd.f32 %v6375, %v6701
        %v7147 = vadd.f32 %v6376, %v6703
        %v7148 = vadd.f32 %v6377, %v6958
        %v7149 = vadd.f32 %v6378, %v6960
        %v7150 = vadd.f32 %v6379, %v6707
        %v7151 = vadd.f32 %v6380, %v6709
        %v7152 = vadd.f32 %v6381, %v6964
        %v7153 = vadd.f32 %v6382, %v6966
        %v7154 = vadd.f32 %v6383, %v6713
        %v7155 = vadd.f32 %v6384, %v6715
        %v7156 = vadd.f32 %v6385, %v6970
        %v7157 = vadd.f32 %v6386, %v6972
        %v7158 = vadd.f32 %v6387, %v6719
        %v7159 = vadd.f32 %v6388, %v6721
        %v7160 = vadd.f32 %v6389, %v6976
        %v7161 = vadd.f32 %v6390, %v6978
        %v7162 = vadd.f32 %v6391, %v6725
        %v7163 = vadd.f32 %v6392, %v6727
        %v7164 = vadd.f32 %v6393, %v6982
        %v7165 = vadd.f32 %v6394, %v6984
        %v7166 = vadd.f32 %v6395, %v6731
        %v7167 = vadd.f32 %v6396, %v6733
        %v7168 = vadd.f32 %v6397, %v6988
        %v7169 = vadd.f32 %v6398, %v6990
        %v7170 = vadd.f32 %v6399, %v6737
        %v7171 = vadd.f32 %v6400, %v6739
        %v7172 = vadd.f32 %v6401, %v6994
        %v7173 = vadd.f32 %v6402, %v6996
        %v7174 = vadd.f32 %v6403, %v6743
        %v7175 = vadd.f32 %v6404, %v6745
        %v7176 = vadd.f32 %v6405, %v7000
        %v7177 = vadd.f32 %v6406, %v7002
        %v7178 = vadd.f32 %v6407, %v6749
        %v7179 = vadd.f32 %v6408, %v6751
        %v7180 = vadd.f32 %v6409, %v7006
        %v7181 = vadd.f32 %v6410, %v7008
        %v7182 = vadd.f32 %v6411, %v6755
        %v7183 = vadd.f32 %v6412, %v6757
        %v7184 = vadd.f32 %v6413, %v7012
        %v7185 = vadd.f32 %v6414, %v7014
        %v7186 = vadd.f32 %v6415, %v6761
        %v7187 = vadd.f32 %v6416, %v6763
        %v7188 = vadd.f32 %v6417, %v7018
        %v7189 = vadd.f32 %v6418, %v7020
        %v7190 = vadd.f32 %v6419, %v6767
        %v7191 = vadd.f32 %v6420, %v6769
        %v7192 = vadd.f32 %v6421, %v7024
        %v7193 = vadd.f32 %v6422, %v7026
        %v7194 = vadd.f32 %v6423, %v6773
        %v7195 = vadd.f32 %v6424, %v6775
        %v7196 = vadd.f32 %v6425, %v7030
        %v7197 = vadd.f32 %v6426, %v7032
        %v7198 = vadd.f32 %v6427, %v6779
        %v7199 = vadd.f32 %v6428, %v6781
        %v7200 = vadd.f32 %v6429, %v7036
        %v7201 = vadd.f32 %v6430, %v7038
        %v7202 = vadd.f32 %v6431, %v6785
        %v7203 = vadd.f32 %v6432, %v6787
        %v7204 = vadd.f32 %v6433, %v7042
        %v7205 = vadd.f32 %v6434, %v7044
        %v7206 = vadd.f32 %v6435, %v6791
        %v7207 = vadd.f32 %v6436, %v6793
        %v7208 = vadd.f32 %v6437, %v7048
        %v7209 = vadd.f32 %v6438, %v7050
        %v7210 = vadd.f32 %v6439, %v6797
        %v7211 = vadd.f32 %v6440, %v6799
        %v7212 = vadd.f32 %v6441, %v7054
        %v7213 = vadd.f32 %v6442, %v7056
        %v7214 = vadd.f32 %v6443, %v6803
        %v7215 = vadd.f32 %v6444, %v6805
        %v7216 = vadd.f32 %v6445, %v7060
        %v7217 = vadd.f32 %v6446, %v7062
        %v7218 = vadd.f32 %v6447, %v6809
        %v7219 = vadd.f32 %v6448, %v6811
        %v7220 = vadd.f32 %v6449, %v7066
        %v7221 = vadd.f32 %v6450, %v7068
        %v7222 = vadd.f32 %v6451, %v6815
        %v7223 = vadd.f32 %v6452, %v6817
        %v7224 = vadd.f32 %v6453, %v7072
        %v7225 = vadd.f32 %v6454, %v7074
        %v7226 = vadd.f32 %v6455, %v6821
        %v7227 = vadd.f32 %v6456, %v6823
        %v7228 = vadd.f32 %v6457, %v7078
        %v7229 = vadd.f32 %v6458, %v7080
        %v7230 = vadd.f32 %v6459, %v6827
        %v7231 = vadd.f32 %v6460, %v6829
        %v7232 = vadd.f32 %v6461, %v7084
        %v7233 = vadd.f32 %v6462, %v7086
        %v7234 = vadd.f32 %v6463, %v6833
        %v7235 = vadd.f32 %v6464, %v6835
        %v7236 = vadd.f32 %v6465, %v7090
        %v7237 = vadd.f32 %v6466, %v7092
        %v7238 = vadd.f32 %v6467, %v6839
        %v7239 = vadd.f32 %v6468, %v6841
        %v7240 = vadd.f32 %v6469, %v7096
        %v7241 = vadd.f32 %v6470, %v7098
        %v7242 = vadd.f32 %v6471, %v6845
        %v7243 = vadd.f32 %v6472, %v6847
        %v7244 = vadd.f32 %v6473, %v7102
        %v7245 = vadd.f32 %v6474, %v7104
        %v7246 = vadd.f32 %v6475, %v6851
        %v7247 = vadd.f32 %v6476, %v6853
        %v7248 = vadd.f32 %v6477, %v7108
        %v7249 = vadd.f32 %v6478, %v7110
        %v7250 = vadd.f32 %v6479, %v6857
        %v7251 = vadd.f32 %v6480, %v6859
        %v7252 = vadd.f32 %v6481, %v7114
        %v7253 = vadd.f32 %v6482, %v7116
        %v7254 = vadd.f32 %v6483, %v6863
        %v7255 = vadd.f32 %v6484, %v6865
        %v7256 = vadd.f32 %v6485, %v7120
        %v7257 = vadd.f32 %v6486, %v7122
        %v7258 = vadd.f32 %v6487, %v6869
        %v7259 = vadd.f32 %v6488, %v6871
        %v7260 = vadd.f32 %v6489, %v7126
        %v7261 = vadd.f32 %v6490, %v7128
        %v7262 = vadd.f32 %v6491, %v6875
        %v7263 = vadd.f32 %v6492, %v6877
        %v7264 = vadd.f32 %v6493, %v7132
        %v7265 = vadd.f32 %v6494, %v7134
        %v7266 = vadd.f32 %v6495, %v6881
        %v7267 = vadd.f32 %v6496, %v6883
        %v7268 = vadd.f32 %v6497, %v7138
        %v7269 = vadd.f32 %v6498, %v7140
        %v7270 = vmax.f32 %v7142, 0.0
        %v7271 = vmax.f32 %v7143, 0.0
        %v7272 = vmax.f32 %v7144, 0.0
        %v7273 = vmax.f32 %v7145, 0.0
        %v7274 = vmax.f32 %v7146, 0.0
        %v7275 = vmax.f32 %v7147, 0.0
        %v7276 = vmax.f32 %v7148, 0.0
        %v7277 = vmax.f32 %v7149, 0.0
        %v7278 = vmax.f32 %v7150, 0.0
        %v7279 = vmax.f32 %v7151, 0.0
        %v7280 = vmax.f32 %v7152, 0.0
        %v7281 = vmax.f32 %v7153, 0.0
        %v7282 = vmax.f32 %v7154, 0.0
        %v7283 = vmax.f32 %v7155, 0.0
        %v7284 = vmax.f32 %v7156, 0.0
        %v7285 = vmax.f32 %v7157, 0.0
        %v7286 = vmax.f32 %v7158, 0.0
        %v7287 = vmax.f32 %v7159, 0.0
        %v7288 = vmax.f32 %v7160, 0.0
        %v7289 = vmax.f32 %v7161, 0.0
        %v7290 = vmax.f32 %v7162, 0.0
        %v7291 = vmax.f32 %v7163, 0.0
        %v7292 = vmax.f32 %v7164, 0.0
        %v7293 = vmax.f32 %v7165, 0.0
        %v7294 = vmax.f32 %v7166, 0.0
        %v7295 = vmax.f32 %v7167, 0.0
        %v7296 = vmax.f32 %v7168, 0.0
        %v7297 = vmax.f32 %v7169, 0.0
        %v7298 = vmax.f32 %v7170, 0.0
        %v7299 = vmax.f32 %v7171, 0.0
        %v7300 = vmax.f32 %v7172, 0.0
        %v7301 = vmax.f32 %v7173, 0.0
        %v7302 = vmax.f32 %v7174, 0.0
        %v7303 = vmax.f32 %v7175, 0.0
        %v7304 = vmax.f32 %v7176, 0.0
        %v7305 = vmax.f32 %v7177, 0.0
        %v7306 = vmax.f32 %v7178, 0.0
        %v7307 = vmax.f32 %v7179, 0.0
        %v7308 = vmax.f32 %v7180, 0.0
        %v7309 = vmax.f32 %v7181, 0.0
        %v7310 = vmax.f32 %v7182, 0.0
        %v7311 = vmax.f32 %v7183, 0.0
        %v7312 = vmax.f32 %v7184, 0.0
        %v7313 = vmax.f32 %v7185, 0.0
        %v7314 = vmax.f32 %v7186, 0.0
        %v7315 = vmax.f32 %v7187, 0.0
        %v7316 = vmax.f32 %v7188, 0.0
        %v7317 = vmax.f32 %v7189, 0.0
        %v7318 = vmax.f32 %v7190, 0.0
        %v7319 = vmax.f32 %v7191, 0.0
        %v7320 = vmax.f32 %v7192, 0.0
        %v7321 = vmax.f32 %v7193, 0.0
        %v7322 = vmax.f32 %v7194, 0.0
        %v7323 = vmax.f32 %v7195, 0.0
        %v7324 = vmax.f32 %v7196, 0.0
        %v7325 = vmax.f32 %v7197, 0.0
        %v7326 = vmax.f32 %v7198, 0.0
        %v7327 = vmax.f32 %v7199, 0.0
        %v7328 = vmax.f32 %v7200, 0.0
        %v7329 = vmax.f32 %v7201, 0.0
        %v7330 = vmax.f32 %v7202, 0.0
        %v7331 = vmax.f32 %v7203, 0.0
        %v7332 = vmax.f32 %v7204, 0.0
        %v7333 = vmax.f32 %v7205, 0.0
        %v7334 = vmax.f32 %v7206, 0.0
        %v7335 = vmax.f32 %v7207, 0.0
        %v7336 = vmax.f32 %v7208, 0.0
        %v7337 = vmax.f32 %v7209, 0.0
        %v7338 = vmax.f32 %v7210, 0.0
        %v7339 = vmax.f32 %v7211, 0.0
        %v7340 = vmax.f32 %v7212, 0.0
        %v7341 = vmax.f32 %v7213, 0.0
        %v7342 = vmax.f32 %v7214, 0.0
        %v7343 = vmax.f32 %v7215, 0.0
        %v7344 = vmax.f32 %v7216, 0.0
        %v7345 = vmax.f32 %v7217, 0.0
        %v7346 = vmax.f32 %v7218, 0.0
        %v7347 = vmax.f32 %v7219, 0.0
        %v7348 = vmax.f32 %v7220, 0.0
        %v7349 = vmax.f32 %v7221, 0.0
        %v7350 = vmax.f32 %v7222, 0.0
        %v7351 = vmax.f32 %v7223, 0.0
        %v7352 = vmax.f32 %v7224, 0.0
        %v7353 = vmax.f32 %v7225, 0.0
        %v7354 = vmax.f32 %v7226, 0.0
        %v7355 = vmax.f32 %v7227, 0.0
        %v7356 = vmax.f32 %v7228, 0.0
        %v7357 = vmax.f32 %v7229, 0.0
        %v7358 = vmax.f32 %v7230, 0.0
        %v7359 = vmax.f32 %v7231, 0.0
        %v7360 = vmax.f32 %v7232, 0.0
        %v7361 = vmax.f32 %v7233, 0.0
        %v7362 = vmax.f32 %v7234, 0.0
        %v7363 = vmax.f32 %v7235, 0.0
        %v7364 = vmax.f32 %v7236, 0.0
        %v7365 = vmax.f32 %v7237, 0.0
        %v7366 = vmax.f32 %v7238, 0.0
        %v7367 = vmax.f32 %v7239, 0.0
        %v7368 = vmax.f32 %v7240, 0.0
        %v7369 = vmax.f32 %v7241, 0.0
        %v7370 = vmax.f32 %v7242, 0.0
        %v7371 = vmax.f32 %v7243, 0.0
        %v7372 = vmax.f32 %v7244, 0.0
        %v7373 = vmax.f32 %v7245, 0.0
        %v7374 = vmax.f32 %v7246, 0.0
        %v7375 = vmax.f32 %v7247, 0.0
        %v7376 = vmax.f32 %v7248, 0.0
        %v7377 = vmax.f32 %v7249, 0.0
        %v7378 = vmax.f32 %v7250, 0.0
        %v7379 = vmax.f32 %v7251, 0.0
        %v7380 = vmax.f32 %v7252, 0.0
        %v7381 = vmax.f32 %v7253, 0.0
        %v7382 = vmax.f32 %v7254, 0.0
        %v7383 = vmax.f32 %v7255, 0.0
        %v7384 = vmax.f32 %v7256, 0.0
        %v7385 = vmax.f32 %v7257, 0.0
        %v7386 = vmax.f32 %v7258, 0.0
        %v7387 = vmax.f32 %v7259, 0.0
        %v7388 = vmax.f32 %v7260, 0.0
        %v7389 = vmax.f32 %v7261, 0.0
        %v7390 = vmax.f32 %v7262, 0.0
        %v7391 = vmax.f32 %v7263, 0.0
        %v7392 = vmax.f32 %v7264, 0.0
        %v7393 = vmax.f32 %v7265, 0.0
        %v7394 = vmax.f32 %v7266, 0.0
        %v7395 = vmax.f32 %v7267, 0.0
        %v7396 = vmax.f32 %v7268, 0.0
        %v7397 = vmax.f32 %v7269, 0.0
        %v7398 = vmax.f32 %v7270, %v7272
        %v7399 = vmax.f32 %v7271, %v7273
        %v7400 = vmax.f32 %v7274, %v7276
        %v7401 = vmax.f32 %v7275, %v7277
        %v7402 = vmax.f32 %v7278, %v7280
        %v7403 = vmax.f32 %v7279, %v7281
        %v7404 = vmax.f32 %v7282, %v7284
        %v7405 = vmax.f32 %v7283, %v7285
        %v7406 = vmax.f32 %v7286, %v7288
        %v7407 = vmax.f32 %v7287, %v7289
        %v7408 = vmax.f32 %v7290, %v7292
        %v7409 = vmax.f32 %v7291, %v7293
        %v7410 = vmax.f32 %v7294, %v7296
        %v7411 = vmax.f32 %v7295, %v7297
        %v7412 = vmax.f32 %v7298, %v7300
        %v7413 = vmax.f32 %v7299, %v7301
        %v7414 = vmax.f32 %v7302, %v7304
        %v7415 = vmax.f32 %v7303, %v7305
        %v7416 = vmax.f32 %v7306, %v7308
        %v7417 = vmax.f32 %v7307, %v7309
        %v7418 = vmax.f32 %v7310, %v7312
        %v7419 = vmax.f32 %v7311, %v7313
        %v7420 = vmax.f32 %v7314, %v7316
        %v7421 = vmax.f32 %v7315, %v7317
        %v7422 = vmax.f32 %v7318, %v7320
        %v7423 = vmax.f32 %v7319, %v7321
        %v7424 = vmax.f32 %v7322, %v7324
        %v7425 = vmax.f32 %v7323, %v7325
        %v7426 = vmax.f32 %v7326, %v7328
        %v7427 = vmax.f32 %v7327, %v7329
        %v7428 = vmax.f32 %v7330, %v7332
        %v7429 = vmax.f32 %v7331, %v7333
        %v7430 = vmax.f32 %v7334, %v7336
        %v7431 = vmax.f32 %v7335, %v7337
        %v7432 = vmax.f32 %v7338, %v7340
        %v7433 = vmax.f32 %v7339, %v7341
        %v7434 = vmax.f32 %v7342, %v7344
        %v7435 = vmax.f32 %v7343, %v7345
        %v7436 = vmax.f32 %v7346, %v7348
        %v7437 = vmax.f32 %v7347, %v7349
        %v7438 = vmax.f32 %v7350, %v7352
        %v7439 = vmax.f32 %v7351, %v7353
        %v7440 = vmax.f32 %v7354, %v7356
        %v7441 = vmax.f32 %v7355, %v7357
        %v7442 = vmax.f32 %v7358, %v7360
        %v7443 = vmax.f32 %v7359, %v7361
        %v7444 = vmax.f32 %v7362, %v7364
        %v7445 = vmax.f32 %v7363, %v7365
        %v7446 = vmax.f32 %v7366, %v7368
        %v7447 = vmax.f32 %v7367, %v7369
        %v7448 = vmax.f32 %v7370, %v7372
        %v7449 = vmax.f32 %v7371, %v7373
        %v7450 = vmax.f32 %v7374, %v7376
        %v7451 = vmax.f32 %v7375, %v7377
        %v7452 = vmax.f32 %v7378, %v7380
        %v7453 = vmax.f32 %v7379, %v7381
        %v7454 = vmax.f32 %v7382, %v7384
        %v7455 = vmax.f32 %v7383, %v7385
        %v7456 = vmax.f32 %v7386, %v7388
        %v7457 = vmax.f32 %v7387, %v7389
        %v7458 = vmax.f32 %v7390, %v7392
        %v7459 = vmax.f32 %v7391, %v7393
        %v7460 = vmax.f32 %v7394, %v7396
        %v7461 = vmax.f32 %v7395, %v7397
        %v7462 = vmax.f32 %v7398, %v7400
        %v7463 = vmax.f32 %v7399, %v7401
        %v7464 = vmax.f32 %v7402, %v7404
        %v7465 = vmax.f32 %v7403, %v7405
        %v7466 = vmax.f32 %v7406, %v7408
        %v7467 = vmax.f32 %v7407, %v7409
        %v7468 = vmax.f32 %v7410, %v7412
        %v7469 = vmax.f32 %v7411, %v7413
        %v7470 = vmax.f32 %v7414, %v7416
        %v7471 = vmax.f32 %v7415, %v7417
        %v7472 = vmax.f32 %v7418, %v7420
        %v7473 = vmax.f32 %v7419, %v7421
        %v7474 = vmax.f32 %v7422, %v7424
        %v7475 = vmax.f32 %v7423, %v7425
        %v7476 = vmax.f32 %v7426, %v7428
        %v7477 = vmax.f32 %v7427, %v7429
        %v7478 = vmax.f32 %v7430, %v7432
        %v7479 = vmax.f32 %v7431, %v7433
        %v7480 = vmax.f32 %v7434, %v7436
        %v7481 = vmax.f32 %v7435, %v7437
        %v7482 = vmax.f32 %v7438, %v7440
        %v7483 = vmax.f32 %v7439, %v7441
        %v7484 = vmax.f32 %v7442, %v7444
        %v7485 = vmax.f32 %v7443, %v7445
        %v7486 = vmax.f32 %v7446, %v7448
        %v7487 = vmax.f32 %v7447, %v7449
        %v7488 = vmax.f32 %v7450, %v7452
        %v7489 = vmax.f32 %v7451, %v7453
        %v7490 = vmax.f32 %v7454, %v7456
        %v7491 = vmax.f32 %v7455, %v7457
        %v7492 = vmax.f32 %v7458, %v7460
        %v7493 = vmax.f32 %v7459, %v7461
        %v7494 = vld [vmem:[%s6] sm:$0xf]
        %s7495 = scalar_lea.vmem %s5, 1024
        %v7496 = vld [vmem:[%s7495] sm:$0xff]
        %v7497 = vld [vmem:[%s7495 + $0x8] sm:$0xff]
        %v7498 = vld [vmem:[%s7495 + $0x10] sm:$0xff]
        %v7499 = vld [vmem:[%s7495 + $0x18] sm:$0xff]
        %v7500 = vld [vmem:[%s7495 + $0x20] sm:$0xff]
        %v7501 = vld [vmem:[%s7495 + $0x28] sm:$0xff]
        %v7502 = vld [vmem:[%s7495 + $0x30] sm:$0xff]
        %v7503 = vld [vmem:[%s7495 + $0x38] sm:$0xff]
        %v7504 = vld [vmem:[%s7495 + $0x40] sm:$0xff]
        %v7505 = vld [vmem:[%s7495 + $0x48] sm:$0xff]
        %v7506 = vld [vmem:[%s7495 + $0x50] sm:$0xff]
        %v7507 = vld [vmem:[%s7495 + $0x58] sm:$0xff]
        %v7508 = vld [vmem:[%s7495 + $0x60] sm:$0xff]
        %v7509 = vld [vmem:[%s7495 + $0x68] sm:$0xff]
        %v7510 = vld [vmem:[%s7495 + $0x70] sm:$0xff]
        %v7511 = vld [vmem:[%s7495 + $0x78] sm:$0xff]
        %v7512 = vld [vmem:[%s7495 + $0x80] sm:$0xff]
        %v7513 = vld [vmem:[%s7495 + $0x88] sm:$0xff]
        %v7514 = vld [vmem:[%s7495 + $0x90] sm:$0xff]
        %v7515 = vld [vmem:[%s7495 + $0x98] sm:$0xff]
        %v7516 = vld [vmem:[%s7495 + $0xa0] sm:$0xff]
        %v7517 = vld [vmem:[%s7495 + $0xa8] sm:$0xff]
        %v7518 = vld [vmem:[%s7495 + $0xb0] sm:$0xff]
        %v7519 = vld [vmem:[%s7495 + $0xb8] sm:$0xff]
        %v7520 = vld [vmem:[%s7495 + $0xc0] sm:$0xff]
        %v7521 = vld [vmem:[%s7495 + $0xc8] sm:$0xff]
        %v7522 = vld [vmem:[%s7495 + $0xd0] sm:$0xff]
        %v7523 = vld [vmem:[%s7495 + $0xd8] sm:$0xff]
        %v7524 = vld [vmem:[%s7495 + $0xe0] sm:$0xff]
        %v7525 = vld [vmem:[%s7495 + $0xe8] sm:$0xff]
        %v7526 = vld [vmem:[%s7495 + $0xf0] sm:$0xff]
        %v7527 = vld [vmem:[%s7495 + $0xf8] sm:$0xff]
        %v7528 = vld [vmem:[%s7495 + $0x100] sm:$0xff]
        %v7529 = vld [vmem:[%s7495 + $0x108] sm:$0xff]
        %v7530 = vld [vmem:[%s7495 + $0x110] sm:$0xff]
        %v7531 = vld [vmem:[%s7495 + $0x118] sm:$0xff]
        %v7532 = vld [vmem:[%s7495 + $0x120] sm:$0xff]
        %v7533 = vld [vmem:[%s7495 + $0x128] sm:$0xff]
        %v7534 = vld [vmem:[%s7495 + $0x130] sm:$0xff]
        %v7535 = vld [vmem:[%s7495 + $0x138] sm:$0xff]
        %v7536 = vld [vmem:[%s7495 + $0x140] sm:$0xff]
        %v7537 = vld [vmem:[%s7495 + $0x148] sm:$0xff]
        %v7538 = vld [vmem:[%s7495 + $0x150] sm:$0xff]
        %v7539 = vld [vmem:[%s7495 + $0x158] sm:$0xff]
        %v7540 = vld [vmem:[%s7495 + $0x160] sm:$0xff]
        %v7541 = vld [vmem:[%s7495 + $0x168] sm:$0xff]
        %v7542 = vld [vmem:[%s7495 + $0x170] sm:$0xff]
        %v7543 = vld [vmem:[%s7495 + $0x178] sm:$0xff]
        %v7544 = vld [vmem:[%s7495 + $0x180] sm:$0xff]
        %v7545 = vld [vmem:[%s7495 + $0x188] sm:$0xff]
        %v7546 = vld [vmem:[%s7495 + $0x190] sm:$0xff]
        %v7547 = vld [vmem:[%s7495 + $0x198] sm:$0xff]
        %v7548 = vld [vmem:[%s7495 + $0x1a0] sm:$0xff]
        %v7549 = vld [vmem:[%s7495 + $0x1a8] sm:$0xff]
        %v7550 = vld [vmem:[%s7495 + $0x1b0] sm:$0xff]
        %v7551 = vld [vmem:[%s7495 + $0x1b8] sm:$0xff]
        %v7552 = vld [vmem:[%s7495 + $0x1c0] sm:$0xff]
        %v7553 = vld [vmem:[%s7495 + $0x1c8] sm:$0xff]
        %v7554 = vld [vmem:[%s7495 + $0x1d0] sm:$0xff]
        %v7555 = vld [vmem:[%s7495 + $0x1d8] sm:$0xff]
        %v7556 = vld [vmem:[%s7495 + $0x1e0] sm:$0xff]
        %v7557 = vld [vmem:[%s7495 + $0x1e8] sm:$0xff]
        %v7558 = vld [vmem:[%s7495 + $0x1f0] sm:$0xff]
        %v7559 = vld [vmem:[%s7495 + $0x1f8] sm:$0xff]
        %v7560 = vld [vmem:[%s7495 + $0x200] sm:$0xff]
        %v7561 = vld [vmem:[%s7495 + $0x208] sm:$0xff]
        %v7562 = vld [vmem:[%s7495 + $0x210] sm:$0xff]
        %v7563 = vld [vmem:[%s7495 + $0x218] sm:$0xff]
        %v7564 = vld [vmem:[%s7495 + $0x220] sm:$0xff]
        %v7565 = vld [vmem:[%s7495 + $0x228] sm:$0xff]
        %v7566 = vld [vmem:[%s7495 + $0x230] sm:$0xff]
        %v7567 = vld [vmem:[%s7495 + $0x238] sm:$0xff]
        %v7568 = vld [vmem:[%s7495 + $0x240] sm:$0xff]
        %v7569 = vld [vmem:[%s7495 + $0x248] sm:$0xff]
        %v7570 = vld [vmem:[%s7495 + $0x250] sm:$0xff]
        %v7571 = vld [vmem:[%s7495 + $0x258] sm:$0xff]
        %v7572 = vld [vmem:[%s7495 + $0x260] sm:$0xff]
        %v7573 = vld [vmem:[%s7495 + $0x268] sm:$0xff]
        %v7574 = vld [vmem:[%s7495 + $0x270] sm:$0xff]
        %v7575 = vld [vmem:[%s7495 + $0x278] sm:$0xff]
        %v7576 = vld [vmem:[%s7495 + $0x280] sm:$0xff]
        %v7577 = vld [vmem:[%s7495 + $0x288] sm:$0xff]
        %v7578 = vld [vmem:[%s7495 + $0x290] sm:$0xff]
        %v7579 = vld [vmem:[%s7495 + $0x298] sm:$0xff]
        %v7580 = vld [vmem:[%s7495 + $0x2a0] sm:$0xff]
        %v7581 = vld [vmem:[%s7495 + $0x2a8] sm:$0xff]
        %v7582 = vld [vmem:[%s7495 + $0x2b0] sm:$0xff]
        %v7583 = vld [vmem:[%s7495 + $0x2b8] sm:$0xff]
        %v7584 = vld [vmem:[%s7495 + $0x2c0] sm:$0xff]
        %v7585 = vld [vmem:[%s7495 + $0x2c8] sm:$0xff]
        %v7586 = vld [vmem:[%s7495 + $0x2d0] sm:$0xff]
        %v7587 = vld [vmem:[%s7495 + $0x2d8] sm:$0xff]
        %v7588 = vld [vmem:[%s7495 + $0x2e0] sm:$0xff]
        %v7589 = vld [vmem:[%s7495 + $0x2e8] sm:$0xff]
        %v7590 = vld [vmem:[%s7495 + $0x2f0] sm:$0xff]
        %v7591 = vld [vmem:[%s7495 + $0x2f8] sm:$0xff]
        %v7592 = vld [vmem:[%s7495 + $0x300] sm:$0xff]
        %v7593 = vld [vmem:[%s7495 + $0x308] sm:$0xff]
        %v7594 = vld [vmem:[%s7495 + $0x310] sm:$0xff]
        %v7595 = vld [vmem:[%s7495 + $0x318] sm:$0xff]
        %v7596 = vld [vmem:[%s7495 + $0x320] sm:$0xff]
        %v7597 = vld [vmem:[%s7495 + $0x328] sm:$0xff]
        %v7598 = vld [vmem:[%s7495 + $0x330] sm:$0xff]
        %v7599 = vld [vmem:[%s7495 + $0x338] sm:$0xff]
        %v7600 = vld [vmem:[%s7495 + $0x340] sm:$0xff]
        %v7601 = vld [vmem:[%s7495 + $0x348] sm:$0xff]
        %v7602 = vld [vmem:[%s7495 + $0x350] sm:$0xff]
        %v7603 = vld [vmem:[%s7495 + $0x358] sm:$0xff]
        %v7604 = vld [vmem:[%s7495 + $0x360] sm:$0xff]
        %v7605 = vld [vmem:[%s7495 + $0x368] sm:$0xff]
        %v7606 = vld [vmem:[%s7495 + $0x370] sm:$0xff]
        %v7607 = vld [vmem:[%s7495 + $0x378] sm:$0xff]
        %v7608 = vld [vmem:[%s7495 + $0x380] sm:$0xff]
        %v7609 = vld [vmem:[%s7495 + $0x388] sm:$0xff]
        %v7610 = vld [vmem:[%s7495 + $0x390] sm:$0xff]
        %v7611 = vld [vmem:[%s7495 + $0x398] sm:$0xff]
        %v7612 = vld [vmem:[%s7495 + $0x3a0] sm:$0xff]
        %v7613 = vld [vmem:[%s7495 + $0x3a8] sm:$0xff]
        %v7614 = vld [vmem:[%s7495 + $0x3b0] sm:$0xff]
        %v7615 = vld [vmem:[%s7495 + $0x3b8] sm:$0xff]
        %v7616 = vld [vmem:[%s7495 + $0x3c0] sm:$0xff]
        %v7617 = vld [vmem:[%s7495 + $0x3c8] sm:$0xff]
        %v7618 = vld [vmem:[%s7495 + $0x3d0] sm:$0xff]
        %v7619 = vld [vmem:[%s7495 + $0x3d8] sm:$0xff]
        %v7620 = vld [vmem:[%s7495 + $0x3e0] sm:$0xff]
        %v7621 = vld [vmem:[%s7495 + $0x3e8] sm:$0xff]
        %v7622 = vld [vmem:[%s7495 + $0x3f0] sm:$0xff]
        %v7623 = vld [vmem:[%s7495 + $0x3f8] sm:$0xff]
        %7624 = vmatprep.subr.mxu0 %v7497
        %7625 = vmatpush1.msra.mxu0 %v7496
        %7626 = vmatprep.subr.mxu0 %v7501
        %7627 = vmatpush1.msra.mxu0 %v7500
        %7628 = vmatprep.subr.mxu0 %v7505
        %7629 = vmatpush1.msra.mxu0 %v7504
        %7630 = vmatprep.subr.mxu0 %v7509
        %7631 = vmatpush1.msra.mxu0 %v7508
        %7632 = vmatprep.subr.mxu0 %v7513
        %7633 = vmatpush1.msra.mxu0 %v7512
        %7634 = vmatprep.subr.mxu0 %v7517
        %7635 = vmatpush1.msra.mxu0 %v7516
        %7636 = vmatprep.subr.mxu0 %v7521
        %7637 = vmatpush1.msra.mxu0 %v7520
        %7638 = vmatprep.subr.mxu0 %v7525
        %7639 = vmatpush1.msra.mxu0 %v7524
        %7640 = vmatprep.subr.mxu0 %v7529
        %7641 = vmatpush1.msra.mxu0 %v7528
        %7642 = vmatprep.subr.mxu0 %v7533
        %7643 = vmatpush1.msra.mxu0 %v7532
        %7644 = vmatprep.subr.mxu0 %v7537
        %7645 = vmatpush1.msra.mxu0 %v7536
        %7646 = vmatprep.subr.mxu0 %v7541
        %7647 = vmatpush1.msra.mxu0 %v7540
        %7648 = vmatprep.subr.mxu0 %v7545
        %7649 = vmatpush1.msra.mxu0 %v7544
        %7650 = vmatprep.subr.mxu0 %v7549
        %7651 = vmatpush1.msra.mxu0 %v7548
        %7652 = vmatprep.subr.mxu0 %v7553
        %7653 = vmatpush1.msra.mxu0 %v7552
        %7654 = vmatprep.subr.mxu0 %v7557
        %7655 = vmatpush1.msra.mxu0 %v7556
        %7656 = vmatprep.subr.mxu0 %v7561
        %7657 = vmatpush1.msra.mxu0 %v7560
        %7658 = vmatprep.subr.mxu0 %v7565
        %7659 = vmatpush1.msra.mxu0 %v7564
        %7660 = vmatprep.subr.mxu0 %v7569
        %7661 = vmatpush1.msra.mxu0 %v7568
        %7662 = vmatprep.subr.mxu0 %v7573
        %7663 = vmatpush1.msra.mxu0 %v7572
        %7664 = vmatprep.subr.mxu0 %v7577
        %7665 = vmatpush1.msra.mxu0 %v7576
        %7666 = vmatprep.subr.mxu0 %v7581
        %7667 = vmatpush1.msra.mxu0 %v7580
        %7668 = vmatprep.subr.mxu0 %v7585
        %7669 = vmatpush1.msra.mxu0 %v7584
        %7670 = vmatprep.subr.mxu0 %v7589
        %7671 = vmatpush1.msra.mxu0 %v7588
        %7672 = vmatprep.subr.mxu0 %v7593
        %7673 = vmatpush1.msra.mxu0 %v7592
        %7674 = vmatprep.subr.mxu0 %v7597
        %7675 = vmatpush1.msra.mxu0 %v7596
        %7676 = vmatprep.subr.mxu0 %v7601
        %7677 = vmatpush1.msra.mxu0 %v7600
        %7678 = vmatprep.subr.mxu0 %v7605
        %7679 = vmatpush1.msra.mxu0 %v7604
        %7680 = vmatprep.subr.mxu0 %v7609
        %7681 = vmatpush1.msra.mxu0 %v7608
        %7682 = vmatprep.subr.mxu0 %v7613
        %7683 = vmatpush1.msra.mxu0 %v7612
        %7684 = vmatprep.subr.mxu0 %v7617
        %7685 = vmatpush1.msra.mxu0 %v7616
        %7686 = vmatprep.subr.mxu0 %v7621
        %7687 = vmatpush1.msra.mxu0 %v7620
        %7688 = vmatprep.mubr.f32.mxu0 %v7463
        %7689 = vmatmul.mubr.f32.gmra.mrb[0].mxu0 %v7462
        %v7690 = vpop.f32.mrb[0].mxu0
        %v7691 = vadd.f32 0.0, %v7690
        %v7692 = vpop.f32.mrb[0].mxu0
        %v7693 = vadd.f32 0.0, %v7692
        %7694 = vmatprep.mubr.f32.mxu0 %v7465
        %7695 = vmatmul.mubr.f32.gmra.mrb[0].mxu0 %v7464
        %v7696 = vpop.f32.mrb[0].mxu0
        %v7697 = vadd.f32 0.0, %v7696
        %v7698 = vpop.f32.mrb[0].mxu0
        %v7699 = vadd.f32 0.0, %v7698
        %7700 = vmatprep.mubr.f32.mxu0 %v7467
        %7701 = vmatmul.mubr.f32.gmra.mrb[0].mxu0 %v7466
        %v7702 = vpop.f32.mrb[0].mxu0
        %v7703 = vadd.f32 0.0, %v7702
        %v7704 = vpop.f32.mrb[0].mxu0
        %v7705 = vadd.f32 0.0, %v7704
        %7706 = vmatprep.mubr.f32.mxu0 %v7469
        %7707 = vmatmul.mubr.f32.gmra.mrb[0].mxu0 %v7468
        %v7708 = vpop.f32.mrb[0].mxu0
        %v7709 = vadd.f32 0.0, %v7708
        %v7710 = vpop.f32.mrb[0].mxu0
        %v7711 = vadd.f32 0.0, %v7710
        %7712 = vmatprep.mubr.f32.mxu0 %v7471
        %7713 = vmatmul.mubr.f32.gmra.mrb[0].mxu0 %v7470
        %v7714 = vpop.f32.mrb[0].mxu0
        %v7715 = vadd.f32 0.0, %v7714
        %v7716 = vpop.f32.mrb[0].mxu0
        %v7717 = vadd.f32 0.0, %v7716
        %7718 = vmatprep.mubr.f32.mxu0 %v7473
        %7719 = vmatmul.mubr.f32.gmra.mrb[0].mxu0 %v7472
        %v7720 = vpop.f32.mrb[0].mxu0
        %v7721 = vadd.f32 0.0, %v7720
        %v7722 = vpop.f32.mrb[0].mxu0
        %v7723 = vadd.f32 0.0, %v7722
        %7724 = vmatprep.mubr.f32.mxu0 %v7475
        %7725 = vmatmul.mubr.f32.gmra.mrb[0].mxu0 %v7474
        %v7726 = vpop.f32.mrb[0].mxu0
        %v7727 = vadd.f32 0.0, %v7726
        %v7728 = vpop.f32.mrb[0].mxu0
        %v7729 = vadd.f32 0.0, %v7728
        %7730 = vmatprep.mubr.f32.mxu0 %v7477
        %7731 = vmatmul.mubr.f32.gmra.mrb[0].mxu0 %v7476
        %v7732 = vpop.f32.mrb[0].mxu0
        %v7733 = vadd.f32 0.0, %v7732
        %v7734 = vpop.f32.mrb[0].mxu0
        %v7735 = vadd.f32 0.0, %v7734
        %7736 = vmatprep.mubr.f32.mxu0 %v7479
        %7737 = vmatmul.mubr.f32.gmra.mrb[0].mxu0 %v7478
        %v7738 = vpop.f32.mrb[0].mxu0
        %v7739 = vadd.f32 0.0, %v7738
        %v7740 = vpop.f32.mrb[0].mxu0
        %v7741 = vadd.f32 0.0, %v7740
        %7742 = vmatprep.mubr.f32.mxu0 %v7481
        %7743 = vmatmul.mubr.f32.gmra.mrb[0].mxu0 %v7480
        %v7744 = vpop.f32.mrb[0].mxu0
        %v7745 = vadd.f32 0.0, %v7744
        %v7746 = vpop.f32.mrb[0].mxu0
        %v7747 = vadd.f32 0.0, %v7746
        %7748 = vmatprep.mubr.f32.mxu0 %v7483
        %7749 = vmatmul.mubr.f32.gmra.mrb[0].mxu0 %v7482
        %v7750 = vpop.f32.mrb[0].mxu0
        %v7751 = vadd.f32 0.0, %v7750
        %v7752 = vpop.f32.mrb[0].mxu0
        %v7753 = vadd.f32 0.0, %v7752
        %7754 = vmatprep.mubr.f32.mxu0 %v7485
        %7755 = vmatmul.mubr.f32.gmra.mrb[0].mxu0 %v7484
        %v7756 = vpop.f32.mrb[0].mxu0
        %v7757 = vadd.f32 0.0, %v7756
        %v7758 = vpop.f32.mrb[0].mxu0
        %v7759 = vadd.f32 0.0, %v7758
        %7760 = vmatprep.mubr.f32.mxu0 %v7487
        %7761 = vmatmul.mubr.f32.gmra.mrb[0].mxu0 %v7486
        %v7762 = vpop.f32.mrb[0].mxu0
        %v7763 = vadd.f32 0.0, %v7762
        %v7764 = vpop.f32.mrb[0].mxu0
        %v7765 = vadd.f32 0.0, %v7764
        %7766 = vmatprep.mubr.f32.mxu0 %v7489
        %7767 = vmatmul.mubr.f32.gmra.mrb[0].mxu0 %v7488
        %v7768 = vpop.f32.mrb[0].mxu0
        %v7769 = vadd.f32 0.0, %v7768
        %v7770 = vpop.f32.mrb[0].mxu0
        %v7771 = vadd.f32 0.0, %v7770
        %7772 = vmatprep.mubr.f32.mxu0 %v7491
        %7773 = vmatmul.mubr.f32.gmra.mrb[0].mxu0 %v7490
        %v7774 = vpop.f32.mrb[0].mxu0
        %v7775 = vadd.f32 0.0, %v7774
        %v7776 = vpop.f32.mrb[0].mxu0
        %v7777 = vadd.f32 0.0, %v7776
        %7778 = vmatprep.mubr.f32.mxu0 %v7493
        %7779 = vmatmul.mubr.f32.gmra.mrb[0].mxu0 %v7492
        %v7780 = vpop.f32.mrb[0].mxu0
        %v7781 = vadd.f32 0.0, %v7780
        %v7782 = vpop.f32.mrb[0].mxu0
        %v7783 = vadd.f32 0.0, %v7782
        %7784 = vdwg.mxu0
        %7785 = vmatprep.subr.mxu0 %v7499
        %7786 = vmatpush1.msra.mxu0 %v7498
        %7787 = vmatprep.subr.mxu0 %v7503
        %7788 = vmatpush1.msra.mxu0 %v7502
        %7789 = vmatprep.subr.mxu0 %v7507
        %7790 = vmatpush1.msra.mxu0 %v7506
        %7791 = vmatprep.subr.mxu0 %v7511
        %7792 = vmatpush1.msra.mxu0 %v7510
        %7793 = vmatprep.subr.mxu0 %v7515
        %7794 = vmatpush1.msra.mxu0 %v7514
        %7795 = vmatprep.subr.mxu0 %v7519
        %7796 = vmatpush1.msra.mxu0 %v7518
        %7797 = vmatprep.subr.mxu0 %v7523
        %7798 = vmatpush1.msra.mxu0 %v7522
        %7799 = vmatprep.subr.mxu0 %v7527
        %7800 = vmatpush1.msra.mxu0 %v7526
        %7801 = vmatprep.subr.mxu0 %v7531
        %7802 = vmatpush1.msra.mxu0 %v7530
        %7803 = vmatprep.subr.mxu0 %v7535
        %7804 = vmatpush1.msra.mxu0 %v7534
        %7805 = vmatprep.subr.mxu0 %v7539
        %7806 = vmatpush1.msra.mxu0 %v7538
        %7807 = vmatprep.subr.mxu0 %v7543
        %7808 = vmatpush1.msra.mxu0 %v7542
        %7809 = vmatprep.subr.mxu0 %v7547
        %7810 = vmatpush1.msra.mxu0 %v7546
        %7811 = vmatprep.subr.mxu0 %v7551
        %7812 = vmatpush1.msra.mxu0 %v7550
        %7813 = vmatprep.subr.mxu0 %v7555
        %7814 = vmatpush1.msra.mxu0 %v7554
        %7815 = vmatprep.subr.mxu0 %v7559
        %7816 = vmatpush1.msra.mxu0 %v7558
        %7817 = vmatprep.subr.mxu0 %v7563
        %7818 = vmatpush1.msra.mxu0 %v7562
        %7819 = vmatprep.subr.mxu0 %v7567
        %7820 = vmatpush1.msra.mxu0 %v7566
        %7821 = vmatprep.subr.mxu0 %v7571
        %7822 = vmatpush1.msra.mxu0 %v7570
        %7823 = vmatprep.subr.mxu0 %v7575
        %7824 = vmatpush1.msra.mxu0 %v7574
        %7825 = vmatprep.subr.mxu0 %v7579
        %7826 = vmatpush1.msra.mxu0 %v7578
        %7827 = vmatprep.subr.mxu0 %v7583
        %7828 = vmatpush1.msra.mxu0 %v7582
        %7829 = vmatprep.subr.mxu0 %v7587
        %7830 = vmatpush1.msra.mxu0 %v7586
        %7831 = vmatprep.subr.mxu0 %v7591
        %7832 = vmatpush1.msra.mxu0 %v7590
        %7833 = vmatprep.subr.mxu0 %v7595
        %7834 = vmatpush1.msra.mxu0 %v7594
        %7835 = vmatprep.subr.mxu0 %v7599
        %7836 = vmatpush1.msra.mxu0 %v7598
        %7837 = vmatprep.subr.mxu0 %v7603
        %7838 = vmatpush1.msra.mxu0 %v7602
        %7839 = vmatprep.subr.mxu0 %v7607
        %7840 = vmatpush1.msra.mxu0 %v7606
        %7841 = vmatprep.subr.mxu0 %v7611
        %7842 = vmatpush1.msra.mxu0 %v7610
        %7843 = vmatprep.subr.mxu0 %v7615
        %7844 = vmatpush1.msra.mxu0 %v7614
        %7845 = vmatprep.subr.mxu0 %v7619
        %7846 = vmatpush1.msra.mxu0 %v7618
        %7847 = vmatprep.subr.mxu0 %v7623
        %7848 = vmatpush1.msra.mxu0 %v7622
        %7849 = vmatprep.mubr.f32.mxu0 %v7463
        %7850 = vmatmul.mubr.f32.gmra.mrb[0].mxu0 %v7462
        %v7851 = vpop.f32.mrb[0].mxu0
        %v7852 = vadd.f32 0.0, %v7851
        %v7853 = vpop.f32.mrb[0].mxu0
        %v7854 = vadd.f32 0.0, %v7853
        %7855 = vmatprep.mubr.f32.mxu0 %v7465
        %7856 = vmatmul.mubr.f32.gmra.mrb[0].mxu0 %v7464
        %v7857 = vpop.f32.mrb[0].mxu0
        %v7858 = vadd.f32 0.0, %v7857
        %v7859 = vpop.f32.mrb[0].mxu0
        %v7860 = vadd.f32 0.0, %v7859
        %7861 = vmatprep.mubr.f32.mxu0 %v7467
        %7862 = vmatmul.mubr.f32.gmra.mrb[0].mxu0 %v7466
        %v7863 = vpop.f32.mrb[0].mxu0
        %v7864 = vadd.f32 0.0, %v7863
        %v7865 = vpop.f32.mrb[0].mxu0
        %v7866 = vadd.f32 0.0, %v7865
        %7867 = vmatprep.mubr.f32.mxu0 %v7469
        %7868 = vmatmul.mubr.f32.gmra.mrb[0].mxu0 %v7468
        %v7869 = vpop.f32.mrb[0].mxu0
        %v7870 = vadd.f32 0.0, %v7869
        %v7871 = vpop.f32.mrb[0].mxu0
        %v7872 = vadd.f32 0.0, %v7871
        %7873 = vmatprep.mubr.f32.mxu0 %v7471
        %7874 = vmatmul.mubr.f32.gmra.mrb[0].mxu0 %v7470
        %v7875 = vpop.f32.mrb[0].mxu0
        %v7876 = vadd.f32 0.0, %v7875
        %v7877 = vpop.f32.mrb[0].mxu0
        %v7878 = vadd.f32 0.0, %v7877
        %7879 = vmatprep.mubr.f32.mxu0 %v7473
        %7880 = vmatmul.mubr.f32.gmra.mrb[0].mxu0 %v7472
        %v7881 = vpop.f32.mrb[0].mxu0
        %v7882 = vadd.f32 0.0, %v7881
        %v7883 = vpop.f32.mrb[0].mxu0
        %v7884 = vadd.f32 0.0, %v7883
        %7885 = vmatprep.mubr.f32.mxu0 %v7475
        %7886 = vmatmul.mubr.f32.gmra.mrb[0].mxu0 %v7474
        %v7887 = vpop.f32.mrb[0].mxu0
        %v7888 = vadd.f32 0.0, %v7887
        %v7889 = vpop.f32.mrb[0].mxu0
        %v7890 = vadd.f32 0.0, %v7889
        %7891 = vmatprep.mubr.f32.mxu0 %v7477
        %7892 = vmatmul.mubr.f32.gmra.mrb[0].mxu0 %v7476
        %v7893 = vpop.f32.mrb[0].mxu0
        %v7894 = vadd.f32 0.0, %v7893
        %v7895 = vpop.f32.mrb[0].mxu0
        %v7896 = vadd.f32 0.0, %v7895
        %7897 = vmatprep.mubr.f32.mxu0 %v7479
        %7898 = vmatmul.mubr.f32.gmra.mrb[0].mxu0 %v7478
        %v7899 = vpop.f32.mrb[0].mxu0
        %v7900 = vadd.f32 0.0, %v7899
        %v7901 = vpop.f32.mrb[0].mxu0
        %v7902 = vadd.f32 0.0, %v7901
        %7903 = vmatprep.mubr.f32.mxu0 %v7481
        %7904 = vmatmul.mubr.f32.gmra.mrb[0].mxu0 %v7480
        %v7905 = vpop.f32.mrb[0].mxu0
        %v7906 = vadd.f32 0.0, %v7905
        %v7907 = vpop.f32.mrb[0].mxu0
        %v7908 = vadd.f32 0.0, %v7907
        %7909 = vmatprep.mubr.f32.mxu0 %v7483
        %7910 = vmatmul.mubr.f32.gmra.mrb[0].mxu0 %v7482
        %v7911 = vpop.f32.mrb[0].mxu0
        %v7912 = vadd.f32 0.0, %v7911
        %v7913 = vpop.f32.mrb[0].mxu0
        %v7914 = vadd.f32 0.0, %v7913
        %7915 = vmatprep.mubr.f32.mxu0 %v7485
        %7916 = vmatmul.mubr.f32.gmra.mrb[0].mxu0 %v7484
        %v7917 = vpop.f32.mrb[0].mxu0
        %v7918 = vadd.f32 0.0, %v7917
        %v7919 = vpop.f32.mrb[0].mxu0
        %v7920 = vadd.f32 0.0, %v7919
        %7921 = vmatprep.mubr.f32.mxu0 %v7487
        %7922 = vmatmul.mubr.f32.gmra.mrb[0].mxu0 %v7486
        %v7923 = vpop.f32.mrb[0].mxu0
        %v7924 = vadd.f32 0.0, %v7923
        %v7925 = vpop.f32.mrb[0].mxu0
        %v7926 = vadd.f32 0.0, %v7925
        %7927 = vmatprep.mubr.f32.mxu0 %v7489
        %7928 = vmatmul.mubr.f32.gmra.mrb[0].mxu0 %v7488
        %v7929 = vpop.f32.mrb[0].mxu0
        %v7930 = vadd.f32 0.0, %v7929
        %v7931 = vpop.f32.mrb[0].mxu0
        %v7932 = vadd.f32 0.0, %v7931
        %7933 = vmatprep.mubr.f32.mxu0 %v7491
        %7934 = vmatmul.mubr.f32.gmra.mrb[0].mxu0 %v7490
        %v7935 = vpop.f32.mrb[0].mxu0
        %v7936 = vadd.f32 0.0, %v7935
        %v7937 = vpop.f32.mrb[0].mxu0
        %v7938 = vadd.f32 0.0, %v7937
        %7939 = vmatprep.mubr.f32.mxu0 %v7493
        %7940 = vmatmul.mubr.f32.gmra.mrb[0].mxu0 %v7492
        %v7941 = vpop.f32.mrb[0].mxu0
        %v7942 = vadd.f32 0.0, %v7941
        %v7943 = vpop.f32.mrb[0].mxu0
        %v7944 = vadd.f32 0.0, %v7943
        %7945 = vdwg.mxu0
        %v7947 = vlaneseq
        %v7948 = vshrl.u32 %v7947, 7
        %v7949 = vsub.s32 0, %v7948
        %v7950 = vrot.slane %v7494, %v7949
        %v7951 = vlaneseq
        %v7952 = vshrl.u32 %v7951, 7
        %v7953 = vsub.s32 1, %v7952
        %v7954 = vrot.slane %v7494, %v7953
        %v7955 = vlaneseq
        %v7956 = vshrl.u32 %v7955, 7
        %v7957 = vsub.s32 2, %v7956
        %v7958 = vrot.slane %v7494, %v7957
        %v7959 = vlaneseq
        %v7960 = vshrl.u32 %v7959, 7
        %v7961 = vsub.s32 3, %v7960
        %v7962 = vrot.slane %v7494, %v7961
        %v7967 = vadd.f32 %v7950, %v7691
        %v7968 = vadd.f32 %v7954, %v7693
        %v7969 = vadd.f32 %v7958, %v7852
        %v7970 = vadd.f32 %v7962, %v7854
        %v7971 = vadd.f32 %v7950, %v7697
        %v7972 = vadd.f32 %v7954, %v7699
        %v7973 = vadd.f32 %v7958, %v7858
        %v7974 = vadd.f32 %v7962, %v7860
        %v7975 = vadd.f32 %v7950, %v7703
        %v7976 = vadd.f32 %v7954, %v7705
        %v7977 = vadd.f32 %v7958, %v7864
        %v7978 = vadd.f32 %v7962, %v7866
        %v7979 = vadd.f32 %v7950, %v7709
        %v7980 = vadd.f32 %v7954, %v7711
        %v7981 = vadd.f32 %v7958, %v7870
        %v7982 = vadd.f32 %v7962, %v7872
        %v7983 = vadd.f32 %v7950, %v7715
        %v7984 = vadd.f32 %v7954, %v7717
        %v7985 = vadd.f32 %v7958, %v7876
        %v7986 = vadd.f32 %v7962, %v7878
        %v7987 = vadd.f32 %v7950, %v7721
        %v7988 = vadd.f32 %v7954, %v7723
        %v7989 = vadd.f32 %v7958, %v7882
        %v7990 = vadd.f32 %v7962, %v7884
        %v7991 = vadd.f32 %v7950, %v7727
        %v7992 = vadd.f32 %v7954, %v7729
        %v7993 = vadd.f32 %v7958, %v7888
        %v7994 = vadd.f32 %v7962, %v7890
        %v7995 = vadd.f32 %v7950, %v7733
        %v7996 = vadd.f32 %v7954, %v7735
        %v7997 = vadd.f32 %v7958, %v7894
        %v7998 = vadd.f32 %v7962, %v7896
        %v7999 = vadd.f32 %v7950, %v7739
        %v8000 = vadd.f32 %v7954, %v7741
        %v8001 = vadd.f32 %v7958, %v7900
        %v8002 = vadd.f32 %v7962, %v7902
        %v8003 = vadd.f32 %v7950, %v7745
        %v8004 = vadd.f32 %v7954, %v7747
        %v8005 = vadd.f32 %v7958, %v7906
        %v8006 = vadd.f32 %v7962, %v7908
        %v8007 = vadd.f32 %v7950, %v7751
        %v8008 = vadd.f32 %v7954, %v7753
        %v8009 = vadd.f32 %v7958, %v7912
        %v8010 = vadd.f32 %v7962, %v7914
        %v8011 = vadd.f32 %v7950, %v7757
        %v8012 = vadd.f32 %v7954, %v7759
        %v8013 = vadd.f32 %v7958, %v7918
        %v8014 = vadd.f32 %v7962, %v7920
        %v8015 = vadd.f32 %v7950, %v7763
        %v8016 = vadd.f32 %v7954, %v7765
        %v8017 = vadd.f32 %v7958, %v7924
        %v8018 = vadd.f32 %v7962, %v7926
        %v8019 = vadd.f32 %v7950, %v7769
        %v8020 = vadd.f32 %v7954, %v7771
        %v8021 = vadd.f32 %v7958, %v7930
        %v8022 = vadd.f32 %v7962, %v7932
        %v8023 = vadd.f32 %v7950, %v7775
        %v8024 = vadd.f32 %v7954, %v7777
        %v8025 = vadd.f32 %v7958, %v7936
        %v8026 = vadd.f32 %v7962, %v7938
        %v8027 = vadd.f32 %v7950, %v7781
        %v8028 = vadd.f32 %v7954, %v7783
        %v8029 = vadd.f32 %v7958, %v7942
        %v8030 = vadd.f32 %v7962, %v7944
        %v8031 = vld [vmem:[%s5] sm:$0xff]
        %v8032 = vld [vmem:[%s5 + $0x8] sm:$0xff]
        %v8033 = vld [vmem:[%s5 + $0x10] sm:$0xff]
        %v8034 = vld [vmem:[%s5 + $0x18] sm:$0xff]
        %v8035 = vld [vmem:[%s5 + $0x20] sm:$0xff]
        %v8036 = vld [vmem:[%s5 + $0x28] sm:$0xff]
        %v8037 = vld [vmem:[%s5 + $0x30] sm:$0xff]
        %v8038 = vld [vmem:[%s5 + $0x38] sm:$0xff]
        %v8039 = vld [vmem:[%s5 + $0x40] sm:$0xff]
        %v8040 = vld [vmem:[%s5 + $0x48] sm:$0xff]
        %v8041 = vld [vmem:[%s5 + $0x50] sm:$0xff]
        %v8042 = vld [vmem:[%s5 + $0x58] sm:$0xff]
        %v8043 = vld [vmem:[%s5 + $0x60] sm:$0xff]
        %v8044 = vld [vmem:[%s5 + $0x68] sm:$0xff]
        %v8045 = vld [vmem:[%s5 + $0x70] sm:$0xff]
        %v8046 = vld [vmem:[%s5 + $0x78] sm:$0xff]
        %v8047 = vld [vmem:[%s5 + $0x80] sm:$0xff]
        %v8048 = vld [vmem:[%s5 + $0x88] sm:$0xff]
        %v8049 = vld [vmem:[%s5 + $0x90] sm:$0xff]
        %v8050 = vld [vmem:[%s5 + $0x98] sm:$0xff]
        %v8051 = vld [vmem:[%s5 + $0xa0] sm:$0xff]
        %v8052 = vld [vmem:[%s5 + $0xa8] sm:$0xff]
        %v8053 = vld [vmem:[%s5 + $0xb0] sm:$0xff]
        %v8054 = vld [vmem:[%s5 + $0xb8] sm:$0xff]
        %v8055 = vld [vmem:[%s5 + $0xc0] sm:$0xff]
        %v8056 = vld [vmem:[%s5 + $0xc8] sm:$0xff]
        %v8057 = vld [vmem:[%s5 + $0xd0] sm:$0xff]
        %v8058 = vld [vmem:[%s5 + $0xd8] sm:$0xff]
        %v8059 = vld [vmem:[%s5 + $0xe0] sm:$0xff]
        %v8060 = vld [vmem:[%s5 + $0xe8] sm:$0xff]
        %v8061 = vld [vmem:[%s5 + $0xf0] sm:$0xff]
        %v8062 = vld [vmem:[%s5 + $0xf8] sm:$0xff]
        %v8063 = vld [vmem:[%s5 + $0x100] sm:$0xff]
        %v8064 = vld [vmem:[%s5 + $0x108] sm:$0xff]
        %v8065 = vld [vmem:[%s5 + $0x110] sm:$0xff]
        %v8066 = vld [vmem:[%s5 + $0x118] sm:$0xff]
        %v8067 = vld [vmem:[%s5 + $0x120] sm:$0xff]
        %v8068 = vld [vmem:[%s5 + $0x128] sm:$0xff]
        %v8069 = vld [vmem:[%s5 + $0x130] sm:$0xff]
        %v8070 = vld [vmem:[%s5 + $0x138] sm:$0xff]
        %v8071 = vld [vmem:[%s5 + $0x140] sm:$0xff]
        %v8072 = vld [vmem:[%s5 + $0x148] sm:$0xff]
        %v8073 = vld [vmem:[%s5 + $0x150] sm:$0xff]
        %v8074 = vld [vmem:[%s5 + $0x158] sm:$0xff]
        %v8075 = vld [vmem:[%s5 + $0x160] sm:$0xff]
        %v8076 = vld [vmem:[%s5 + $0x168] sm:$0xff]
        %v8077 = vld [vmem:[%s5 + $0x170] sm:$0xff]
        %v8078 = vld [vmem:[%s5 + $0x178] sm:$0xff]
        %v8079 = vld [vmem:[%s5 + $0x180] sm:$0xff]
        %v8080 = vld [vmem:[%s5 + $0x188] sm:$0xff]
        %v8081 = vld [vmem:[%s5 + $0x190] sm:$0xff]
        %v8082 = vld [vmem:[%s5 + $0x198] sm:$0xff]
        %v8083 = vld [vmem:[%s5 + $0x1a0] sm:$0xff]
        %v8084 = vld [vmem:[%s5 + $0x1a8] sm:$0xff]
        %v8085 = vld [vmem:[%s5 + $0x1b0] sm:$0xff]
        %v8086 = vld [vmem:[%s5 + $0x1b8] sm:$0xff]
        %v8087 = vld [vmem:[%s5 + $0x1c0] sm:$0xff]
        %v8088 = vld [vmem:[%s5 + $0x1c8] sm:$0xff]
        %v8089 = vld [vmem:[%s5 + $0x1d0] sm:$0xff]
        %v8090 = vld [vmem:[%s5 + $0x1d8] sm:$0xff]
        %v8091 = vld [vmem:[%s5 + $0x1e0] sm:$0xff]
        %v8092 = vld [vmem:[%s5 + $0x1e8] sm:$0xff]
        %v8093 = vld [vmem:[%s5 + $0x1f0] sm:$0xff]
        %v8094 = vld [vmem:[%s5 + $0x1f8] sm:$0xff]
        %v8095 = vld [vmem:[%s5 + $0x200] sm:$0xff]
        %v8096 = vld [vmem:[%s5 + $0x208] sm:$0xff]
        %v8097 = vld [vmem:[%s5 + $0x210] sm:$0xff]
        %v8098 = vld [vmem:[%s5 + $0x218] sm:$0xff]
        %v8099 = vld [vmem:[%s5 + $0x220] sm:$0xff]
        %v8100 = vld [vmem:[%s5 + $0x228] sm:$0xff]
        %v8101 = vld [vmem:[%s5 + $0x230] sm:$0xff]
        %v8102 = vld [vmem:[%s5 + $0x238] sm:$0xff]
        %v8103 = vld [vmem:[%s5 + $0x240] sm:$0xff]
        %v8104 = vld [vmem:[%s5 + $0x248] sm:$0xff]
        %v8105 = vld [vmem:[%s5 + $0x250] sm:$0xff]
        %v8106 = vld [vmem:[%s5 + $0x258] sm:$0xff]
        %v8107 = vld [vmem:[%s5 + $0x260] sm:$0xff]
        %v8108 = vld [vmem:[%s5 + $0x268] sm:$0xff]
        %v8109 = vld [vmem:[%s5 + $0x270] sm:$0xff]
        %v8110 = vld [vmem:[%s5 + $0x278] sm:$0xff]
        %v8111 = vld [vmem:[%s5 + $0x280] sm:$0xff]
        %v8112 = vld [vmem:[%s5 + $0x288] sm:$0xff]
        %v8113 = vld [vmem:[%s5 + $0x290] sm:$0xff]
        %v8114 = vld [vmem:[%s5 + $0x298] sm:$0xff]
        %v8115 = vld [vmem:[%s5 + $0x2a0] sm:$0xff]
        %v8116 = vld [vmem:[%s5 + $0x2a8] sm:$0xff]
        %v8117 = vld [vmem:[%s5 + $0x2b0] sm:$0xff]
        %v8118 = vld [vmem:[%s5 + $0x2b8] sm:$0xff]
        %v8119 = vld [vmem:[%s5 + $0x2c0] sm:$0xff]
        %v8120 = vld [vmem:[%s5 + $0x2c8] sm:$0xff]
        %v8121 = vld [vmem:[%s5 + $0x2d0] sm:$0xff]
        %v8122 = vld [vmem:[%s5 + $0x2d8] sm:$0xff]
        %v8123 = vld [vmem:[%s5 + $0x2e0] sm:$0xff]
        %v8124 = vld [vmem:[%s5 + $0x2e8] sm:$0xff]
        %v8125 = vld [vmem:[%s5 + $0x2f0] sm:$0xff]
        %v8126 = vld [vmem:[%s5 + $0x2f8] sm:$0xff]
        %v8127 = vld [vmem:[%s5 + $0x300] sm:$0xff]
        %v8128 = vld [vmem:[%s5 + $0x308] sm:$0xff]
        %v8129 = vld [vmem:[%s5 + $0x310] sm:$0xff]
        %v8130 = vld [vmem:[%s5 + $0x318] sm:$0xff]
        %v8131 = vld [vmem:[%s5 + $0x320] sm:$0xff]
        %v8132 = vld [vmem:[%s5 + $0x328] sm:$0xff]
        %v8133 = vld [vmem:[%s5 + $0x330] sm:$0xff]
        %v8134 = vld [vmem:[%s5 + $0x338] sm:$0xff]
        %v8135 = vld [vmem:[%s5 + $0x340] sm:$0xff]
        %v8136 = vld [vmem:[%s5 + $0x348] sm:$0xff]
        %v8137 = vld [vmem:[%s5 + $0x350] sm:$0xff]
        %v8138 = vld [vmem:[%s5 + $0x358] sm:$0xff]
        %v8139 = vld [vmem:[%s5 + $0x360] sm:$0xff]
        %v8140 = vld [vmem:[%s5 + $0x368] sm:$0xff]
        %v8141 = vld [vmem:[%s5 + $0x370] sm:$0xff]
        %v8142 = vld [vmem:[%s5 + $0x378] sm:$0xff]
        %v8143 = vld [vmem:[%s5 + $0x380] sm:$0xff]
        %v8144 = vld [vmem:[%s5 + $0x388] sm:$0xff]
        %v8145 = vld [vmem:[%s5 + $0x390] sm:$0xff]
        %v8146 = vld [vmem:[%s5 + $0x398] sm:$0xff]
        %v8147 = vld [vmem:[%s5 + $0x3a0] sm:$0xff]
        %v8148 = vld [vmem:[%s5 + $0x3a8] sm:$0xff]
        %v8149 = vld [vmem:[%s5 + $0x3b0] sm:$0xff]
        %v8150 = vld [vmem:[%s5 + $0x3b8] sm:$0xff]
        %v8151 = vld [vmem:[%s5 + $0x3c0] sm:$0xff]
        %v8152 = vld [vmem:[%s5 + $0x3c8] sm:$0xff]
        %v8153 = vld [vmem:[%s5 + $0x3d0] sm:$0xff]
        %v8154 = vld [vmem:[%s5 + $0x3d8] sm:$0xff]
        %v8155 = vld [vmem:[%s5 + $0x3e0] sm:$0xff]
        %v8156 = vld [vmem:[%s5 + $0x3e8] sm:$0xff]
        %v8157 = vld [vmem:[%s5 + $0x3f0] sm:$0xff]
        %v8158 = vld [vmem:[%s5 + $0x3f8] sm:$0xff]
        %8159 = vmatprep.subr.mxu0 %v8032
        %8160 = vmatpush1.msra.mxu0 %v8031
        %8161 = vmatprep.subr.mxu0 %v8036
        %8162 = vmatpush1.msra.mxu0 %v8035
        %8163 = vmatprep.subr.mxu0 %v8040
        %8164 = vmatpush1.msra.mxu0 %v8039
        %8165 = vmatprep.subr.mxu0 %v8044
        %8166 = vmatpush1.msra.mxu0 %v8043
        %8167 = vmatprep.subr.mxu0 %v8048
        %8168 = vmatpush1.msra.mxu0 %v8047
        %8169 = vmatprep.subr.mxu0 %v8052
        %8170 = vmatpush1.msra.mxu0 %v8051
        %8171 = vmatprep.subr.mxu0 %v8056
        %8172 = vmatpush1.msra.mxu0 %v8055
        %8173 = vmatprep.subr.mxu0 %v8060
        %8174 = vmatpush1.msra.mxu0 %v8059
        %8175 = vmatprep.subr.mxu0 %v8064
        %8176 = vmatpush1.msra.mxu0 %v8063
        %8177 = vmatprep.subr.mxu0 %v8068
        %8178 = vmatpush1.msra.mxu0 %v8067
        %8179 = vmatprep.subr.mxu0 %v8072
        %8180 = vmatpush1.msra.mxu0 %v8071
        %8181 = vmatprep.subr.mxu0 %v8076
        %8182 = vmatpush1.msra.mxu0 %v8075
        %8183 = vmatprep.subr.mxu0 %v8080
        %8184 = vmatpush1.msra.mxu0 %v8079
        %8185 = vmatprep.subr.mxu0 %v8084
        %8186 = vmatpush1.msra.mxu0 %v8083
        %8187 = vmatprep.subr.mxu0 %v8088
        %8188 = vmatpush1.msra.mxu0 %v8087
        %8189 = vmatprep.subr.mxu0 %v8092
        %8190 = vmatpush1.msra.mxu0 %v8091
        %8191 = vmatprep.subr.mxu0 %v8096
        %8192 = vmatpush1.msra.mxu0 %v8095
        %8193 = vmatprep.subr.mxu0 %v8100
        %8194 = vmatpush1.msra.mxu0 %v8099
        %8195 = vmatprep.subr.mxu0 %v8104
        %8196 = vmatpush1.msra.mxu0 %v8103
        %8197 = vmatprep.subr.mxu0 %v8108
        %8198 = vmatpush1.msra.mxu0 %v8107
        %8199 = vmatprep.subr.mxu0 %v8112
        %8200 = vmatpush1.msra.mxu0 %v8111
        %8201 = vmatprep.subr.mxu0 %v8116
        %8202 = vmatpush1.msra.mxu0 %v8115
        %8203 = vmatprep.subr.mxu0 %v8120
        %8204 = vmatpush1.msra.mxu0 %v8119
        %8205 = vmatprep.subr.mxu0 %v8124
        %8206 = vmatpush1.msra.mxu0 %v8123
        %8207 = vmatprep.subr.mxu0 %v8128
        %8208 = vmatpush1.msra.mxu0 %v8127
        %8209 = vmatprep.subr.mxu0 %v8132
        %8210 = vmatpush1.msra.mxu0 %v8131
        %8211 = vmatprep.subr.mxu0 %v8136
        %8212 = vmatpush1.msra.mxu0 %v8135
        %8213 = vmatprep.subr.mxu0 %v8140
        %8214 = vmatpush1.msra.mxu0 %v8139
        %8215 = vmatprep.subr.mxu0 %v8144
        %8216 = vmatpush1.msra.mxu0 %v8143
        %8217 = vmatprep.subr.mxu0 %v8148
        %8218 = vmatpush1.msra.mxu0 %v8147
        %8219 = vmatprep.subr.mxu0 %v8152
        %8220 = vmatpush1.msra.mxu0 %v8151
        %8221 = vmatprep.subr.mxu0 %v8156
        %8222 = vmatpush1.msra.mxu0 %v8155
        %8223 = vmatprep.mubr.f32.mxu0 0.0
        %8224 = vmatmul.mubr.f32.gmra.mrb[0].mxu0 0.0
        %v8225 = vpop.f32.mrb[0].mxu0
        %v8226 = vadd.f32 0.0, %v8225
        %v8227 = vpop.f32.mrb[0].mxu0
        %v8228 = vadd.f32 0.0, %v8227
        %8229 = vmatprep.mubr.f32.mxu0 %v7463
        %8230 = vmatmul.mubr.f32.gmra.mrb[0].mxu0 %v7462
        %v8231 = vpop.f32.mrb[0].mxu0
        %v8232 = vadd.f32 0.0, %v8231
        %v8233 = vpop.f32.mrb[0].mxu0
        %v8234 = vadd.f32 0.0, %v8233
        %8235 = vmatprep.mubr.f32.mxu0 %v7465
        %8236 = vmatmul.mubr.f32.gmra.mrb[0].mxu0 %v7464
        %v8237 = vpop.f32.mrb[0].mxu0
        %v8238 = vadd.f32 0.0, %v8237
        %v8239 = vpop.f32.mrb[0].mxu0
        %v8240 = vadd.f32 0.0, %v8239
        %8241 = vmatprep.mubr.f32.mxu0 %v7467
        %8242 = vmatmul.mubr.f32.gmra.mrb[0].mxu0 %v7466
        %v8243 = vpop.f32.mrb[0].mxu0
        %v8244 = vadd.f32 0.0, %v8243
        %v8245 = vpop.f32.mrb[0].mxu0
        %v8246 = vadd.f32 0.0, %v8245
        %8247 = vmatprep.mubr.f32.mxu0 %v7469
        %8248 = vmatmul.mubr.f32.gmra.mrb[0].mxu0 %v7468
        %v8249 = vpop.f32.mrb[0].mxu0
        %v8250 = vadd.f32 0.0, %v8249
        %v8251 = vpop.f32.mrb[0].mxu0
        %v8252 = vadd.f32 0.0, %v8251
        %8253 = vmatprep.mubr.f32.mxu0 %v7471
        %8254 = vmatmul.mubr.f32.gmra.mrb[0].mxu0 %v7470
        %v8255 = vpop.f32.mrb[0].mxu0
        %v8256 = vadd.f32 0.0, %v8255
        %v8257 = vpop.f32.mrb[0].mxu0
        %v8258 = vadd.f32 0.0, %v8257
        %8259 = vmatprep.mubr.f32.mxu0 %v7473
        %8260 = vmatmul.mubr.f32.gmra.mrb[0].mxu0 %v7472
        %v8261 = vpop.f32.mrb[0].mxu0
        %v8262 = vadd.f32 0.0, %v8261
        %v8263 = vpop.f32.mrb[0].mxu0
        %v8264 = vadd.f32 0.0, %v8263
        %8265 = vmatprep.mubr.f32.mxu0 %v7475
        %8266 = vmatmul.mubr.f32.gmra.mrb[0].mxu0 %v7474
        %v8267 = vpop.f32.mrb[0].mxu0
        %v8268 = vadd.f32 0.0, %v8267
        %v8269 = vpop.f32.mrb[0].mxu0
        %v8270 = vadd.f32 0.0, %v8269
        %8271 = vmatprep.mubr.f32.mxu0 %v7477
        %8272 = vmatmul.mubr.f32.gmra.mrb[0].mxu0 %v7476
        %v8273 = vpop.f32.mrb[0].mxu0
        %v8274 = vadd.f32 0.0, %v8273
        %v8275 = vpop.f32.mrb[0].mxu0
        %v8276 = vadd.f32 0.0, %v8275
        %8277 = vmatprep.mubr.f32.mxu0 %v7479
        %8278 = vmatmul.mubr.f32.gmra.mrb[0].mxu0 %v7478
        %v8279 = vpop.f32.mrb[0].mxu0
        %v8280 = vadd.f32 0.0, %v8279
        %v8281 = vpop.f32.mrb[0].mxu0
        %v8282 = vadd.f32 0.0, %v8281
        %8283 = vmatprep.mubr.f32.mxu0 %v7481
        %8284 = vmatmul.mubr.f32.gmra.mrb[0].mxu0 %v7480
        %v8285 = vpop.f32.mrb[0].mxu0
        %v8286 = vadd.f32 0.0, %v8285
        %v8287 = vpop.f32.mrb[0].mxu0
        %v8288 = vadd.f32 0.0, %v8287
        %8289 = vmatprep.mubr.f32.mxu0 %v7483
        %8290 = vmatmul.mubr.f32.gmra.mrb[0].mxu0 %v7482
        %v8291 = vpop.f32.mrb[0].mxu0
        %v8292 = vadd.f32 0.0, %v8291
        %v8293 = vpop.f32.mrb[0].mxu0
        %v8294 = vadd.f32 0.0, %v8293
        %8295 = vmatprep.mubr.f32.mxu0 %v7485
        %8296 = vmatmul.mubr.f32.gmra.mrb[0].mxu0 %v7484
        %v8297 = vpop.f32.mrb[0].mxu0
        %v8298 = vadd.f32 0.0, %v8297
        %v8299 = vpop.f32.mrb[0].mxu0
        %v8300 = vadd.f32 0.0, %v8299
        %8301 = vmatprep.mubr.f32.mxu0 %v7487
        %8302 = vmatmul.mubr.f32.gmra.mrb[0].mxu0 %v7486
        %v8303 = vpop.f32.mrb[0].mxu0
        %v8304 = vadd.f32 0.0, %v8303
        %v8305 = vpop.f32.mrb[0].mxu0
        %v8306 = vadd.f32 0.0, %v8305
        %8307 = vmatprep.mubr.f32.mxu0 %v7489
        %8308 = vmatmul.mubr.f32.gmra.mrb[0].mxu0 %v7488
        %v8309 = vpop.f32.mrb[0].mxu0
        %v8310 = vadd.f32 0.0, %v8309
        %v8311 = vpop.f32.mrb[0].mxu0
        %v8312 = vadd.f32 0.0, %v8311
        %8313 = vmatprep.mubr.f32.mxu0 %v7491
        %8314 = vmatmul.mubr.f32.gmra.mrb[0].mxu0 %v7490
        %v8315 = vpop.f32.mrb[0].mxu0
        %v8316 = vadd.f32 0.0, %v8315
        %v8317 = vpop.f32.mrb[0].mxu0
        %v8318 = vadd.f32 0.0, %v8317
        %8319 = vdwg.mxu0
        %8320 = vmatprep.subr.mxu0 %v8034
        %8321 = vmatpush1.msra.mxu0 %v8033
        %8322 = vmatprep.subr.mxu0 %v8038
        %8323 = vmatpush1.msra.mxu0 %v8037
        %8324 = vmatprep.subr.mxu0 %v8042
        %8325 = vmatpush1.msra.mxu0 %v8041
        %8326 = vmatprep.subr.mxu0 %v8046
        %8327 = vmatpush1.msra.mxu0 %v8045
        %8328 = vmatprep.subr.mxu0 %v8050
        %8329 = vmatpush1.msra.mxu0 %v8049
        %8330 = vmatprep.subr.mxu0 %v8054
        %8331 = vmatpush1.msra.mxu0 %v8053
        %8332 = vmatprep.subr.mxu0 %v8058
        %8333 = vmatpush1.msra.mxu0 %v8057
        %8334 = vmatprep.subr.mxu0 %v8062
        %8335 = vmatpush1.msra.mxu0 %v8061
        %8336 = vmatprep.subr.mxu0 %v8066
        %8337 = vmatpush1.msra.mxu0 %v8065
        %8338 = vmatprep.subr.mxu0 %v8070
        %8339 = vmatpush1.msra.mxu0 %v8069
        %8340 = vmatprep.subr.mxu0 %v8074
        %8341 = vmatpush1.msra.mxu0 %v8073
        %8342 = vmatprep.subr.mxu0 %v8078
        %8343 = vmatpush1.msra.mxu0 %v8077
        %8344 = vmatprep.subr.mxu0 %v8082
        %8345 = vmatpush1.msra.mxu0 %v8081
        %8346 = vmatprep.subr.mxu0 %v8086
        %8347 = vmatpush1.msra.mxu0 %v8085
        %8348 = vmatprep.subr.mxu0 %v8090
        %8349 = vmatpush1.msra.mxu0 %v8089
        %8350 = vmatprep.subr.mxu0 %v8094
        %8351 = vmatpush1.msra.mxu0 %v8093
        %8352 = vmatprep.subr.mxu0 %v8098
        %8353 = vmatpush1.msra.mxu0 %v8097
        %8354 = vmatprep.subr.mxu0 %v8102
        %8355 = vmatpush1.msra.mxu0 %v8101
        %8356 = vmatprep.subr.mxu0 %v8106
        %8357 = vmatpush1.msra.mxu0 %v8105
        %8358 = vmatprep.subr.mxu0 %v8110
        %8359 = vmatpush1.msra.mxu0 %v8109
        %8360 = vmatprep.subr.mxu0 %v8114
        %8361 = vmatpush1.msra.mxu0 %v8113
        %8362 = vmatprep.subr.mxu0 %v8118
        %8363 = vmatpush1.msra.mxu0 %v8117
        %8364 = vmatprep.subr.mxu0 %v8122
        %8365 = vmatpush1.msra.mxu0 %v8121
        %8366 = vmatprep.subr.mxu0 %v8126
        %8367 = vmatpush1.msra.mxu0 %v8125
        %8368 = vmatprep.subr.mxu0 %v8130
        %8369 = vmatpush1.msra.mxu0 %v8129
        %8370 = vmatprep.subr.mxu0 %v8134
        %8371 = vmatpush1.msra.mxu0 %v8133
        %8372 = vmatprep.subr.mxu0 %v8138
        %8373 = vmatpush1.msra.mxu0 %v8137
        %8374 = vmatprep.subr.mxu0 %v8142
        %8375 = vmatpush1.msra.mxu0 %v8141
        %8376 = vmatprep.subr.mxu0 %v8146
        %8377 = vmatpush1.msra.mxu0 %v8145
        %8378 = vmatprep.subr.mxu0 %v8150
        %8379 = vmatpush1.msra.mxu0 %v8149
        %8380 = vmatprep.subr.mxu0 %v8154
        %8381 = vmatpush1.msra.mxu0 %v8153
        %8382 = vmatprep.subr.mxu0 %v8158
        %8383 = vmatpush1.msra.mxu0 %v8157
        %8384 = vmatprep.mubr.f32.mxu0 0.0
        %8385 = vmatmul.mubr.f32.gmra.mrb[0].mxu0 0.0
        %v8386 = vpop.f32.mrb[0].mxu0
        %v8387 = vadd.f32 0.0, %v8386
        %v8388 = vpop.f32.mrb[0].mxu0
        %v8389 = vadd.f32 0.0, %v8388
        %8390 = vmatprep.mubr.f32.mxu0 %v7463
        %8391 = vmatmul.mubr.f32.gmra.mrb[0].mxu0 %v7462
        %v8392 = vpop.f32.mrb[0].mxu0
        %v8393 = vadd.f32 0.0, %v8392
        %v8394 = vpop.f32.mrb[0].mxu0
        %v8395 = vadd.f32 0.0, %v8394
        %8396 = vmatprep.mubr.f32.mxu0 %v7465
        %8397 = vmatmul.mubr.f32.gmra.mrb[0].mxu0 %v7464
        %v8398 = vpop.f32.mrb[0].mxu0
        %v8399 = vadd.f32 0.0, %v8398
        %v8400 = vpop.f32.mrb[0].mxu0
        %v8401 = vadd.f32 0.0, %v8400
        %8402 = vmatprep.mubr.f32.mxu0 %v7467
        %8403 = vmatmul.mubr.f32.gmra.mrb[0].mxu0 %v7466
        %v8404 = vpop.f32.mrb[0].mxu0
        %v8405 = vadd.f32 0.0, %v8404
        %v8406 = vpop.f32.mrb[0].mxu0
        %v8407 = vadd.f32 0.0, %v8406
        %8408 = vmatprep.mubr.f32.mxu0 %v7469
        %8409 = vmatmul.mubr.f32.gmra.mrb[0].mxu0 %v7468
        %v8410 = vpop.f32.mrb[0].mxu0
        %v8411 = vadd.f32 0.0, %v8410
        %v8412 = vpop.f32.mrb[0].mxu0
        %v8413 = vadd.f32 0.0, %v8412
        %8414 = vmatprep.mubr.f32.mxu0 %v7471
        %8415 = vmatmul.mubr.f32.gmra.mrb[0].mxu0 %v7470
        %v8416 = vpop.f32.mrb[0].mxu0
        %v8417 = vadd.f32 0.0, %v8416
        %v8418 = vpop.f32.mrb[0].mxu0
        %v8419 = vadd.f32 0.0, %v8418
        %8420 = vmatprep.mubr.f32.mxu0 %v7473
        %8421 = vmatmul.mubr.f32.gmra.mrb[0].mxu0 %v7472
        %v8422 = vpop.f32.mrb[0].mxu0
        %v8423 = vadd.f32 0.0, %v8422
        %v8424 = vpop.f32.mrb[0].mxu0
        %v8425 = vadd.f32 0.0, %v8424
        %8426 = vmatprep.mubr.f32.mxu0 %v7475
        %8427 = vmatmul.mubr.f32.gmra.mrb[0].mxu0 %v7474
        %v8428 = vpop.f32.mrb[0].mxu0
        %v8429 = vadd.f32 0.0, %v8428
        %v8430 = vpop.f32.mrb[0].mxu0
        %v8431 = vadd.f32 0.0, %v8430
        %8432 = vmatprep.mubr.f32.mxu0 %v7477
        %8433 = vmatmul.mubr.f32.gmra.mrb[0].mxu0 %v7476
        %v8434 = vpop.f32.mrb[0].mxu0
        %v8435 = vadd.f32 0.0, %v8434
        %v8436 = vpop.f32.mrb[0].mxu0
        %v8437 = vadd.f32 0.0, %v8436
        %8438 = vmatprep.mubr.f32.mxu0 %v7479
        %8439 = vmatmul.mubr.f32.gmra.mrb[0].mxu0 %v7478
        %v8440 = vpop.f32.mrb[0].mxu0
        %v8441 = vadd.f32 0.0, %v8440
        %v8442 = vpop.f32.mrb[0].mxu0
        %v8443 = vadd.f32 0.0, %v8442
        %8444 = vmatprep.mubr.f32.mxu0 %v7481
        %8445 = vmatmul.mubr.f32.gmra.mrb[0].mxu0 %v7480
        %v8446 = vpop.f32.mrb[0].mxu0
        %v8447 = vadd.f32 0.0, %v8446
        %v8448 = vpop.f32.mrb[0].mxu0
        %v8449 = vadd.f32 0.0, %v8448
        %8450 = vmatprep.mubr.f32.mxu0 %v7483
        %8451 = vmatmul.mubr.f32.gmra.mrb[0].mxu0 %v7482
        %v8452 = vpop.f32.mrb[0].mxu0
        %v8453 = vadd.f32 0.0, %v8452
        %v8454 = vpop.f32.mrb[0].mxu0
        %v8455 = vadd.f32 0.0, %v8454
        %8456 = vmatprep.mubr.f32.mxu0 %v7485
        %8457 = vmatmul.mubr.f32.gmra.mrb[0].mxu0 %v7484
        %v8458 = vpop.f32.mrb[0].mxu0
        %v8459 = vadd.f32 0.0, %v8458
        %v8460 = vpop.f32.mrb[0].mxu0
        %v8461 = vadd.f32 0.0, %v8460
        %8462 = vmatprep.mubr.f32.mxu0 %v7487
        %8463 = vmatmul.mubr.f32.gmra.mrb[0].mxu0 %v7486
        %v8464 = vpop.f32.mrb[0].mxu0
        %v8465 = vadd.f32 0.0, %v8464
        %v8466 = vpop.f32.mrb[0].mxu0
        %v8467 = vadd.f32 0.0, %v8466
        %8468 = vmatprep.mubr.f32.mxu0 %v7489
        %8469 = vmatmul.mubr.f32.gmra.mrb[0].mxu0 %v7488
        %v8470 = vpop.f32.mrb[0].mxu0
        %v8471 = vadd.f32 0.0, %v8470
        %v8472 = vpop.f32.mrb[0].mxu0
        %v8473 = vadd.f32 0.0, %v8472
        %8474 = vmatprep.mubr.f32.mxu0 %v7491
        %8475 = vmatmul.mubr.f32.gmra.mrb[0].mxu0 %v7490
        %v8476 = vpop.f32.mrb[0].mxu0
        %v8477 = vadd.f32 0.0, %v8476
        %v8478 = vpop.f32.mrb[0].mxu0
        %v8479 = vadd.f32 0.0, %v8478
        %8480 = vdwg.mxu0
        %v8481 = vadd.f32 %v7967, %v8226
        %v8482 = vadd.f32 %v7968, %v8228
        %v8483 = vadd.f32 %v7969, %v8387
        %v8484 = vadd.f32 %v7970, %v8389
        %v8485 = vadd.f32 %v7971, %v8232
        %v8486 = vadd.f32 %v7972, %v8234
        %v8487 = vadd.f32 %v7973, %v8393
        %v8488 = vadd.f32 %v7974, %v8395
        %v8489 = vadd.f32 %v7975, %v8238
        %v8490 = vadd.f32 %v7976, %v8240
        %v8491 = vadd.f32 %v7977, %v8399
        %v8492 = vadd.f32 %v7978, %v8401
        %v8493 = vadd.f32 %v7979, %v8244
        %v8494 = vadd.f32 %v7980, %v8246
        %v8495 = vadd.f32 %v7981, %v8405
        %v8496 = vadd.f32 %v7982, %v8407
        %v8497 = vadd.f32 %v7983, %v8250
        %v8498 = vadd.f32 %v7984, %v8252
        %v8499 = vadd.f32 %v7985, %v8411
        %v8500 = vadd.f32 %v7986, %v8413
        %v8501 = vadd.f32 %v7987, %v8256
        %v8502 = vadd.f32 %v7988, %v8258
        %v8503 = vadd.f32 %v7989, %v8417
        %v8504 = vadd.f32 %v7990, %v8419
        %v8505 = vadd.f32 %v7991, %v8262
        %v8506 = vadd.f32 %v7992, %v8264
        %v8507 = vadd.f32 %v7993, %v8423
        %v8508 = vadd.f32 %v7994, %v8425
        %v8509 = vadd.f32 %v7995, %v8268
        %v8510 = vadd.f32 %v7996, %v8270
        %v8511 = vadd.f32 %v7997, %v8429
        %v8512 = vadd.f32 %v7998, %v8431
        %v8513 = vadd.f32 %v7999, %v8274
        %v8514 = vadd.f32 %v8000, %v8276
        %v8515 = vadd.f32 %v8001, %v8435
        %v8516 = vadd.f32 %v8002, %v8437
        %v8517 = vadd.f32 %v8003, %v8280
        %v8518 = vadd.f32 %v8004, %v8282
        %v8519 = vadd.f32 %v8005, %v8441
        %v8520 = vadd.f32 %v8006, %v8443
        %v8521 = vadd.f32 %v8007, %v8286
        %v8522 = vadd.f32 %v8008, %v8288
        %v8523 = vadd.f32 %v8009, %v8447
        %v8524 = vadd.f32 %v8010, %v8449
        %v8525 = vadd.f32 %v8011, %v8292
        %v8526 = vadd.f32 %v8012, %v8294
        %v8527 = vadd.f32 %v8013, %v8453
        %v8528 = vadd.f32 %v8014, %v8455
        %v8529 = vadd.f32 %v8015, %v8298
        %v8530 = vadd.f32 %v8016, %v8300
        %v8531 = vadd.f32 %v8017, %v8459
        %v8532 = vadd.f32 %v8018, %v8461
        %v8533 = vadd.f32 %v8019, %v8304
        %v8534 = vadd.f32 %v8020, %v8306
        %v8535 = vadd.f32 %v8021, %v8465
        %v8536 = vadd.f32 %v8022, %v8467
        %v8537 = vadd.f32 %v8023, %v8310
        %v8538 = vadd.f32 %v8024, %v8312
        %v8539 = vadd.f32 %v8025, %v8471
        %v8540 = vadd.f32 %v8026, %v8473
        %v8541 = vadd.f32 %v8027, %v8316
        %v8542 = vadd.f32 %v8028, %v8318
        %v8543 = vadd.f32 %v8029, %v8477
        %v8544 = vadd.f32 %v8030, %v8479
        %s8545 = scalar_lea.vmem %s5, 2048
        %v8546 = vld [vmem:[%s8545] sm:$0xff]
        %v8547 = vld [vmem:[%s8545 + $0x8] sm:$0xff]
        %v8548 = vld [vmem:[%s8545 + $0x10] sm:$0xff]
        %v8549 = vld [vmem:[%s8545 + $0x18] sm:$0xff]
        %v8550 = vld [vmem:[%s8545 + $0x20] sm:$0xff]
        %v8551 = vld [vmem:[%s8545 + $0x28] sm:$0xff]
        %v8552 = vld [vmem:[%s8545 + $0x30] sm:$0xff]
        %v8553 = vld [vmem:[%s8545 + $0x38] sm:$0xff]
        %v8554 = vld [vmem:[%s8545 + $0x40] sm:$0xff]
        %v8555 = vld [vmem:[%s8545 + $0x48] sm:$0xff]
        %v8556 = vld [vmem:[%s8545 + $0x50] sm:$0xff]
        %v8557 = vld [vmem:[%s8545 + $0x58] sm:$0xff]
        %v8558 = vld [vmem:[%s8545 + $0x60] sm:$0xff]
        %v8559 = vld [vmem:[%s8545 + $0x68] sm:$0xff]
        %v8560 = vld [vmem:[%s8545 + $0x70] sm:$0xff]
        %v8561 = vld [vmem:[%s8545 + $0x78] sm:$0xff]
        %v8562 = vld [vmem:[%s8545 + $0x80] sm:$0xff]
        %v8563 = vld [vmem:[%s8545 + $0x88] sm:$0xff]
        %v8564 = vld [vmem:[%s8545 + $0x90] sm:$0xff]
        %v8565 = vld [vmem:[%s8545 + $0x98] sm:$0xff]
        %v8566 = vld [vmem:[%s8545 + $0xa0] sm:$0xff]
        %v8567 = vld [vmem:[%s8545 + $0xa8] sm:$0xff]
        %v8568 = vld [vmem:[%s8545 + $0xb0] sm:$0xff]
        %v8569 = vld [vmem:[%s8545 + $0xb8] sm:$0xff]
        %v8570 = vld [vmem:[%s8545 + $0xc0] sm:$0xff]
        %v8571 = vld [vmem:[%s8545 + $0xc8] sm:$0xff]
        %v8572 = vld [vmem:[%s8545 + $0xd0] sm:$0xff]
        %v8573 = vld [vmem:[%s8545 + $0xd8] sm:$0xff]
        %v8574 = vld [vmem:[%s8545 + $0xe0] sm:$0xff]
        %v8575 = vld [vmem:[%s8545 + $0xe8] sm:$0xff]
        %v8576 = vld [vmem:[%s8545 + $0xf0] sm:$0xff]
        %v8577 = vld [vmem:[%s8545 + $0xf8] sm:$0xff]
        %v8578 = vld [vmem:[%s8545 + $0x100] sm:$0xff]
        %v8579 = vld [vmem:[%s8545 + $0x108] sm:$0xff]
        %v8580 = vld [vmem:[%s8545 + $0x110] sm:$0xff]
        %v8581 = vld [vmem:[%s8545 + $0x118] sm:$0xff]
        %v8582 = vld [vmem:[%s8545 + $0x120] sm:$0xff]
        %v8583 = vld [vmem:[%s8545 + $0x128] sm:$0xff]
        %v8584 = vld [vmem:[%s8545 + $0x130] sm:$0xff]
        %v8585 = vld [vmem:[%s8545 + $0x138] sm:$0xff]
        %v8586 = vld [vmem:[%s8545 + $0x140] sm:$0xff]
        %v8587 = vld [vmem:[%s8545 + $0x148] sm:$0xff]
        %v8588 = vld [vmem:[%s8545 + $0x150] sm:$0xff]
        %v8589 = vld [vmem:[%s8545 + $0x158] sm:$0xff]
        %v8590 = vld [vmem:[%s8545 + $0x160] sm:$0xff]
        %v8591 = vld [vmem:[%s8545 + $0x168] sm:$0xff]
        %v8592 = vld [vmem:[%s8545 + $0x170] sm:$0xff]
        %v8593 = vld [vmem:[%s8545 + $0x178] sm:$0xff]
        %v8594 = vld [vmem:[%s8545 + $0x180] sm:$0xff]
        %v8595 = vld [vmem:[%s8545 + $0x188] sm:$0xff]
        %v8596 = vld [vmem:[%s8545 + $0x190] sm:$0xff]
        %v8597 = vld [vmem:[%s8545 + $0x198] sm:$0xff]
        %v8598 = vld [vmem:[%s8545 + $0x1a0] sm:$0xff]
        %v8599 = vld [vmem:[%s8545 + $0x1a8] sm:$0xff]
        %v8600 = vld [vmem:[%s8545 + $0x1b0] sm:$0xff]
        %v8601 = vld [vmem:[%s8545 + $0x1b8] sm:$0xff]
        %v8602 = vld [vmem:[%s8545 + $0x1c0] sm:$0xff]
        %v8603 = vld [vmem:[%s8545 + $0x1c8] sm:$0xff]
        %v8604 = vld [vmem:[%s8545 + $0x1d0] sm:$0xff]
        %v8605 = vld [vmem:[%s8545 + $0x1d8] sm:$0xff]
        %v8606 = vld [vmem:[%s8545 + $0x1e0] sm:$0xff]
        %v8607 = vld [vmem:[%s8545 + $0x1e8] sm:$0xff]
        %v8608 = vld [vmem:[%s8545 + $0x1f0] sm:$0xff]
        %v8609 = vld [vmem:[%s8545 + $0x1f8] sm:$0xff]
        %v8610 = vld [vmem:[%s8545 + $0x200] sm:$0xff]
        %v8611 = vld [vmem:[%s8545 + $0x208] sm:$0xff]
        %v8612 = vld [vmem:[%s8545 + $0x210] sm:$0xff]
        %v8613 = vld [vmem:[%s8545 + $0x218] sm:$0xff]
        %v8614 = vld [vmem:[%s8545 + $0x220] sm:$0xff]
        %v8615 = vld [vmem:[%s8545 + $0x228] sm:$0xff]
        %v8616 = vld [vmem:[%s8545 + $0x230] sm:$0xff]
        %v8617 = vld [vmem:[%s8545 + $0x238] sm:$0xff]
        %v8618 = vld [vmem:[%s8545 + $0x240] sm:$0xff]
        %v8619 = vld [vmem:[%s8545 + $0x248] sm:$0xff]
        %v8620 = vld [vmem:[%s8545 + $0x250] sm:$0xff]
        %v8621 = vld [vmem:[%s8545 + $0x258] sm:$0xff]
        %v8622 = vld [vmem:[%s8545 + $0x260] sm:$0xff]
        %v8623 = vld [vmem:[%s8545 + $0x268] sm:$0xff]
        %v8624 = vld [vmem:[%s8545 + $0x270] sm:$0xff]
        %v8625 = vld [vmem:[%s8545 + $0x278] sm:$0xff]
        %v8626 = vld [vmem:[%s8545 + $0x280] sm:$0xff]
        %v8627 = vld [vmem:[%s8545 + $0x288] sm:$0xff]
        %v8628 = vld [vmem:[%s8545 + $0x290] sm:$0xff]
        %v8629 = vld [vmem:[%s8545 + $0x298] sm:$0xff]
        %v8630 = vld [vmem:[%s8545 + $0x2a0] sm:$0xff]
        %v8631 = vld [vmem:[%s8545 + $0x2a8] sm:$0xff]
        %v8632 = vld [vmem:[%s8545 + $0x2b0] sm:$0xff]
        %v8633 = vld [vmem:[%s8545 + $0x2b8] sm:$0xff]
        %v8634 = vld [vmem:[%s8545 + $0x2c0] sm:$0xff]
        %v8635 = vld [vmem:[%s8545 + $0x2c8] sm:$0xff]
        %v8636 = vld [vmem:[%s8545 + $0x2d0] sm:$0xff]
        %v8637 = vld [vmem:[%s8545 + $0x2d8] sm:$0xff]
        %v8638 = vld [vmem:[%s8545 + $0x2e0] sm:$0xff]
        %v8639 = vld [vmem:[%s8545 + $0x2e8] sm:$0xff]
        %v8640 = vld [vmem:[%s8545 + $0x2f0] sm:$0xff]
        %v8641 = vld [vmem:[%s8545 + $0x2f8] sm:$0xff]
        %v8642 = vld [vmem:[%s8545 + $0x300] sm:$0xff]
        %v8643 = vld [vmem:[%s8545 + $0x308] sm:$0xff]
        %v8644 = vld [vmem:[%s8545 + $0x310] sm:$0xff]
        %v8645 = vld [vmem:[%s8545 + $0x318] sm:$0xff]
        %v8646 = vld [vmem:[%s8545 + $0x320] sm:$0xff]
        %v8647 = vld [vmem:[%s8545 + $0x328] sm:$0xff]
        %v8648 = vld [vmem:[%s8545 + $0x330] sm:$0xff]
        %v8649 = vld [vmem:[%s8545 + $0x338] sm:$0xff]
        %v8650 = vld [vmem:[%s8545 + $0x340] sm:$0xff]
        %v8651 = vld [vmem:[%s8545 + $0x348] sm:$0xff]
        %v8652 = vld [vmem:[%s8545 + $0x350] sm:$0xff]
        %v8653 = vld [vmem:[%s8545 + $0x358] sm:$0xff]
        %v8654 = vld [vmem:[%s8545 + $0x360] sm:$0xff]
        %v8655 = vld [vmem:[%s8545 + $0x368] sm:$0xff]
        %v8656 = vld [vmem:[%s8545 + $0x370] sm:$0xff]
        %v8657 = vld [vmem:[%s8545 + $0x378] sm:$0xff]
        %v8658 = vld [vmem:[%s8545 + $0x380] sm:$0xff]
        %v8659 = vld [vmem:[%s8545 + $0x388] sm:$0xff]
        %v8660 = vld [vmem:[%s8545 + $0x390] sm:$0xff]
        %v8661 = vld [vmem:[%s8545 + $0x398] sm:$0xff]
        %v8662 = vld [vmem:[%s8545 + $0x3a0] sm:$0xff]
        %v8663 = vld [vmem:[%s8545 + $0x3a8] sm:$0xff]
        %v8664 = vld [vmem:[%s8545 + $0x3b0] sm:$0xff]
        %v8665 = vld [vmem:[%s8545 + $0x3b8] sm:$0xff]
        %v8666 = vld [vmem:[%s8545 + $0x3c0] sm:$0xff]
        %v8667 = vld [vmem:[%s8545 + $0x3c8] sm:$0xff]
        %v8668 = vld [vmem:[%s8545 + $0x3d0] sm:$0xff]
        %v8669 = vld [vmem:[%s8545 + $0x3d8] sm:$0xff]
        %v8670 = vld [vmem:[%s8545 + $0x3e0] sm:$0xff]
        %v8671 = vld [vmem:[%s8545 + $0x3e8] sm:$0xff]
        %v8672 = vld [vmem:[%s8545 + $0x3f0] sm:$0xff]
        %v8673 = vld [vmem:[%s8545 + $0x3f8] sm:$0xff]
        %8674 = vmatprep.subr.mxu0 %v8547
        %8675 = vmatpush1.msra.mxu0 %v8546
        %8676 = vmatprep.subr.mxu0 %v8551
        %8677 = vmatpush1.msra.mxu0 %v8550
        %8678 = vmatprep.subr.mxu0 %v8555
        %8679 = vmatpush1.msra.mxu0 %v8554
        %8680 = vmatprep.subr.mxu0 %v8559
        %8681 = vmatpush1.msra.mxu0 %v8558
        %8682 = vmatprep.subr.mxu0 %v8563
        %8683 = vmatpush1.msra.mxu0 %v8562
        %8684 = vmatprep.subr.mxu0 %v8567
        %8685 = vmatpush1.msra.mxu0 %v8566
        %8686 = vmatprep.subr.mxu0 %v8571
        %8687 = vmatpush1.msra.mxu0 %v8570
        %8688 = vmatprep.subr.mxu0 %v8575
        %8689 = vmatpush1.msra.mxu0 %v8574
        %8690 = vmatprep.subr.mxu0 %v8579
        %8691 = vmatpush1.msra.mxu0 %v8578
        %8692 = vmatprep.subr.mxu0 %v8583
        %8693 = vmatpush1.msra.mxu0 %v8582
        %8694 = vmatprep.subr.mxu0 %v8587
        %8695 = vmatpush1.msra.mxu0 %v8586
        %8696 = vmatprep.subr.mxu0 %v8591
        %8697 = vmatpush1.msra.mxu0 %v8590
        %8698 = vmatprep.subr.mxu0 %v8595
        %8699 = vmatpush1.msra.mxu0 %v8594
        %8700 = vmatprep.subr.mxu0 %v8599
        %8701 = vmatpush1.msra.mxu0 %v8598
        %8702 = vmatprep.subr.mxu0 %v8603
        %8703 = vmatpush1.msra.mxu0 %v8602
        %8704 = vmatprep.subr.mxu0 %v8607
        %8705 = vmatpush1.msra.mxu0 %v8606
        %8706 = vmatprep.subr.mxu0 %v8611
        %8707 = vmatpush1.msra.mxu0 %v8610
        %8708 = vmatprep.subr.mxu0 %v8615
        %8709 = vmatpush1.msra.mxu0 %v8614
        %8710 = vmatprep.subr.mxu0 %v8619
        %8711 = vmatpush1.msra.mxu0 %v8618
        %8712 = vmatprep.subr.mxu0 %v8623
        %8713 = vmatpush1.msra.mxu0 %v8622
        %8714 = vmatprep.subr.mxu0 %v8627
        %8715 = vmatpush1.msra.mxu0 %v8626
        %8716 = vmatprep.subr.mxu0 %v8631
        %8717 = vmatpush1.msra.mxu0 %v8630
        %8718 = vmatprep.subr.mxu0 %v8635
        %8719 = vmatpush1.msra.mxu0 %v8634
        %8720 = vmatprep.subr.mxu0 %v8639
        %8721 = vmatpush1.msra.mxu0 %v8638
        %8722 = vmatprep.subr.mxu0 %v8643
        %8723 = vmatpush1.msra.mxu0 %v8642
        %8724 = vmatprep.subr.mxu0 %v8647
        %8725 = vmatpush1.msra.mxu0 %v8646
        %8726 = vmatprep.subr.mxu0 %v8651
        %8727 = vmatpush1.msra.mxu0 %v8650
        %8728 = vmatprep.subr.mxu0 %v8655
        %8729 = vmatpush1.msra.mxu0 %v8654
        %8730 = vmatprep.subr.mxu0 %v8659
        %8731 = vmatpush1.msra.mxu0 %v8658
        %8732 = vmatprep.subr.mxu0 %v8663
        %8733 = vmatpush1.msra.mxu0 %v8662
        %8734 = vmatprep.subr.mxu0 %v8667
        %8735 = vmatpush1.msra.mxu0 %v8666
        %8736 = vmatprep.subr.mxu0 %v8671
        %8737 = vmatpush1.msra.mxu0 %v8670
        %8738 = vmatprep.mubr.f32.mxu0 %v7465
        %8739 = vmatmul.mubr.f32.gmra.mrb[0].mxu0 %v7464
        %v8740 = vpop.f32.mrb[0].mxu0
        %v8741 = vadd.f32 0.0, %v8740
        %v8742 = vpop.f32.mrb[0].mxu0
        %v8743 = vadd.f32 0.0, %v8742
        %8744 = vmatprep.mubr.f32.mxu0 %v7467
        %8745 = vmatmul.mubr.f32.gmra.mrb[0].mxu0 %v7466
        %v8746 = vpop.f32.mrb[0].mxu0
        %v8747 = vadd.f32 0.0, %v8746
        %v8748 = vpop.f32.mrb[0].mxu0
        %v8749 = vadd.f32 0.0, %v8748
        %8750 = vmatprep.mubr.f32.mxu0 %v7469
        %8751 = vmatmul.mubr.f32.gmra.mrb[0].mxu0 %v7468
        %v8752 = vpop.f32.mrb[0].mxu0
        %v8753 = vadd.f32 0.0, %v8752
        %v8754 = vpop.f32.mrb[0].mxu0
        %v8755 = vadd.f32 0.0, %v8754
        %8756 = vmatprep.mubr.f32.mxu0 %v7471
        %8757 = vmatmul.mubr.f32.gmra.mrb[0].mxu0 %v7470
        %v8758 = vpop.f32.mrb[0].mxu0
        %v8759 = vadd.f32 0.0, %v8758
        %v8760 = vpop.f32.mrb[0].mxu0
        %v8761 = vadd.f32 0.0, %v8760
        %8762 = vmatprep.mubr.f32.mxu0 %v7473
        %8763 = vmatmul.mubr.f32.gmra.mrb[0].mxu0 %v7472
        %v8764 = vpop.f32.mrb[0].mxu0
        %v8765 = vadd.f32 0.0, %v8764
        %v8766 = vpop.f32.mrb[0].mxu0
        %v8767 = vadd.f32 0.0, %v8766
        %8768 = vmatprep.mubr.f32.mxu0 %v7475
        %8769 = vmatmul.mubr.f32.gmra.mrb[0].mxu0 %v7474
        %v8770 = vpop.f32.mrb[0].mxu0
        %v8771 = vadd.f32 0.0, %v8770
        %v8772 = vpop.f32.mrb[0].mxu0
        %v8773 = vadd.f32 0.0, %v8772
        %8774 = vmatprep.mubr.f32.mxu0 %v7477
        %8775 = vmatmul.mubr.f32.gmra.mrb[0].mxu0 %v7476
        %v8776 = vpop.f32.mrb[0].mxu0
        %v8777 = vadd.f32 0.0, %v8776
        %v8778 = vpop.f32.mrb[0].mxu0
        %v8779 = vadd.f32 0.0, %v8778
        %8780 = vmatprep.mubr.f32.mxu0 %v7479
        %8781 = vmatmul.mubr.f32.gmra.mrb[0].mxu0 %v7478
        %v8782 = vpop.f32.mrb[0].mxu0
        %v8783 = vadd.f32 0.0, %v8782
        %v8784 = vpop.f32.mrb[0].mxu0
        %v8785 = vadd.f32 0.0, %v8784
        %8786 = vmatprep.mubr.f32.mxu0 %v7481
        %8787 = vmatmul.mubr.f32.gmra.mrb[0].mxu0 %v7480
        %v8788 = vpop.f32.mrb[0].mxu0
        %v8789 = vadd.f32 0.0, %v8788
        %v8790 = vpop.f32.mrb[0].mxu0
        %v8791 = vadd.f32 0.0, %v8790
        %8792 = vmatprep.mubr.f32.mxu0 %v7483
        %8793 = vmatmul.mubr.f32.gmra.mrb[0].mxu0 %v7482
        %v8794 = vpop.f32.mrb[0].mxu0
        %v8795 = vadd.f32 0.0, %v8794
        %v8796 = vpop.f32.mrb[0].mxu0
        %v8797 = vadd.f32 0.0, %v8796
        %8798 = vmatprep.mubr.f32.mxu0 %v7485
        %8799 = vmatmul.mubr.f32.gmra.mrb[0].mxu0 %v7484
        %v8800 = vpop.f32.mrb[0].mxu0
        %v8801 = vadd.f32 0.0, %v8800
        %v8802 = vpop.f32.mrb[0].mxu0
        %v8803 = vadd.f32 0.0, %v8802
        %8804 = vmatprep.mubr.f32.mxu0 %v7487
        %8805 = vmatmul.mubr.f32.gmra.mrb[0].mxu0 %v7486
        %v8806 = vpop.f32.mrb[0].mxu0
        %v8807 = vadd.f32 0.0, %v8806
        %v8808 = vpop.f32.mrb[0].mxu0
        %v8809 = vadd.f32 0.0, %v8808
        %8810 = vmatprep.mubr.f32.mxu0 %v7489
        %8811 = vmatmul.mubr.f32.gmra.mrb[0].mxu0 %v7488
        %v8812 = vpop.f32.mrb[0].mxu0
        %v8813 = vadd.f32 0.0, %v8812
        %v8814 = vpop.f32.mrb[0].mxu0
        %v8815 = vadd.f32 0.0, %v8814
        %8816 = vmatprep.mubr.f32.mxu0 %v7491
        %8817 = vmatmul.mubr.f32.gmra.mrb[0].mxu0 %v7490
        %v8818 = vpop.f32.mrb[0].mxu0
        %v8819 = vadd.f32 0.0, %v8818
        %v8820 = vpop.f32.mrb[0].mxu0
        %v8821 = vadd.f32 0.0, %v8820
        %8822 = vmatprep.mubr.f32.mxu0 %v7493
        %8823 = vmatmul.mubr.f32.gmra.mrb[0].mxu0 %v7492
        %v8824 = vpop.f32.mrb[0].mxu0
        %v8825 = vadd.f32 0.0, %v8824
        %v8826 = vpop.f32.mrb[0].mxu0
        %v8827 = vadd.f32 0.0, %v8826
        %8828 = vmatprep.mubr.f32.mxu0 0.0
        %8829 = vmatmul.mubr.f32.gmra.mrb[0].mxu0 0.0
        %v8830 = vpop.f32.mrb[0].mxu0
        %v8831 = vadd.f32 0.0, %v8830
        %v8832 = vpop.f32.mrb[0].mxu0
        %v8833 = vadd.f32 0.0, %v8832
        %8834 = vdwg.mxu0
        %8835 = vmatprep.subr.mxu0 %v8549
        %8836 = vmatpush1.msra.mxu0 %v8548
        %8837 = vmatprep.subr.mxu0 %v8553
        %8838 = vmatpush1.msra.mxu0 %v8552
        %8839 = vmatprep.subr.mxu0 %v8557
        %8840 = vmatpush1.msra.mxu0 %v8556
        %8841 = vmatprep.subr.mxu0 %v8561
        %8842 = vmatpush1.msra.mxu0 %v8560
        %8843 = vmatprep.subr.mxu0 %v8565
        %8844 = vmatpush1.msra.mxu0 %v8564
        %8845 = vmatprep.subr.mxu0 %v8569
        %8846 = vmatpush1.msra.mxu0 %v8568
        %8847 = vmatprep.subr.mxu0 %v8573
        %8848 = vmatpush1.msra.mxu0 %v8572
        %8849 = vmatprep.subr.mxu0 %v8577
        %8850 = vmatpush1.msra.mxu0 %v8576
        %8851 = vmatprep.subr.mxu0 %v8581
        %8852 = vmatpush1.msra.mxu0 %v8580
        %8853 = vmatprep.subr.mxu0 %v8585
        %8854 = vmatpush1.msra.mxu0 %v8584
        %8855 = vmatprep.subr.mxu0 %v8589
        %8856 = vmatpush1.msra.mxu0 %v8588
        %8857 = vmatprep.subr.mxu0 %v8593
        %8858 = vmatpush1.msra.mxu0 %v8592
        %8859 = vmatprep.subr.mxu0 %v8597
        %8860 = vmatpush1.msra.mxu0 %v8596
        %8861 = vmatprep.subr.mxu0 %v8601
        %8862 = vmatpush1.msra.mxu0 %v8600
        %8863 = vmatprep.subr.mxu0 %v8605
        %8864 = vmatpush1.msra.mxu0 %v8604
        %8865 = vmatprep.subr.mxu0 %v8609
        %8866 = vmatpush1.msra.mxu0 %v8608
        %8867 = vmatprep.subr.mxu0 %v8613
        %8868 = vmatpush1.msra.mxu0 %v8612
        %8869 = vmatprep.subr.mxu0 %v8617
        %8870 = vmatpush1.msra.mxu0 %v8616
        %8871 = vmatprep.subr.mxu0 %v8621
        %8872 = vmatpush1.msra.mxu0 %v8620
        %8873 = vmatprep.subr.mxu0 %v8625
        %8874 = vmatpush1.msra.mxu0 %v8624
        %8875 = vmatprep.subr.mxu0 %v8629
        %8876 = vmatpush1.msra.mxu0 %v8628
        %8877 = vmatprep.subr.mxu0 %v8633
        %8878 = vmatpush1.msra.mxu0 %v8632
        %8879 = vmatprep.subr.mxu0 %v8637
        %8880 = vmatpush1.msra.mxu0 %v8636
        %8881 = vmatprep.subr.mxu0 %v8641
        %8882 = vmatpush1.msra.mxu0 %v8640
        %8883 = vmatprep.subr.mxu0 %v8645
        %8884 = vmatpush1.msra.mxu0 %v8644
        %8885 = vmatprep.subr.mxu0 %v8649
        %8886 = vmatpush1.msra.mxu0 %v8648
        %8887 = vmatprep.subr.mxu0 %v8653
        %8888 = vmatpush1.msra.mxu0 %v8652
        %8889 = vmatprep.subr.mxu0 %v8657
        %8890 = vmatpush1.msra.mxu0 %v8656
        %8891 = vmatprep.subr.mxu0 %v8661
        %8892 = vmatpush1.msra.mxu0 %v8660
        %8893 = vmatprep.subr.mxu0 %v8665
        %8894 = vmatpush1.msra.mxu0 %v8664
        %8895 = vmatprep.subr.mxu0 %v8669
        %8896 = vmatpush1.msra.mxu0 %v8668
        %8897 = vmatprep.subr.mxu0 %v8673
        %8898 = vmatpush1.msra.mxu0 %v8672
        %8899 = vmatprep.mubr.f32.mxu0 %v7465
        %8900 = vmatmul.mubr.f32.gmra.mrb[0].mxu0 %v7464
        %v8901 = vpop.f32.mrb[0].mxu0
        %v8902 = vadd.f32 0.0, %v8901
        %v8903 = vpop.f32.mrb[0].mxu0
        %v8904 = vadd.f32 0.0, %v8903
        %8905 = vmatprep.mubr.f32.mxu0 %v7467
        %8906 = vmatmul.mubr.f32.gmra.mrb[0].mxu0 %v7466
        %v8907 = vpop.f32.mrb[0].mxu0
        %v8908 = vadd.f32 0.0, %v8907
        %v8909 = vpop.f32.mrb[0].mxu0
        %v8910 = vadd.f32 0.0, %v8909
        %8911 = vmatprep.mubr.f32.mxu0 %v7469
        %8912 = vmatmul.mubr.f32.gmra.mrb[0].mxu0 %v7468
        %v8913 = vpop.f32.mrb[0].mxu0
        %v8914 = vadd.f32 0.0, %v8913
        %v8915 = vpop.f32.mrb[0].mxu0
        %v8916 = vadd.f32 0.0, %v8915
        %8917 = vmatprep.mubr.f32.mxu0 %v7471
        %8918 = vmatmul.mubr.f32.gmra.mrb[0].mxu0 %v7470
        %v8919 = vpop.f32.mrb[0].mxu0
        %v8920 = vadd.f32 0.0, %v8919
        %v8921 = vpop.f32.mrb[0].mxu0
        %v8922 = vadd.f32 0.0, %v8921
        %8923 = vmatprep.mubr.f32.mxu0 %v7473
        %8924 = vmatmul.mubr.f32.gmra.mrb[0].mxu0 %v7472
        %v8925 = vpop.f32.mrb[0].mxu0
        %v8926 = vadd.f32 0.0, %v8925
        %v8927 = vpop.f32.mrb[0].mxu0
        %v8928 = vadd.f32 0.0, %v8927
        %8929 = vmatprep.mubr.f32.mxu0 %v7475
        %8930 = vmatmul.mubr.f32.gmra.mrb[0].mxu0 %v7474
        %v8931 = vpop.f32.mrb[0].mxu0
        %v8932 = vadd.f32 0.0, %v8931
        %v8933 = vpop.f32.mrb[0].mxu0
        %v8934 = vadd.f32 0.0, %v8933
        %8935 = vmatprep.mubr.f32.mxu0 %v7477
        %8936 = vmatmul.mubr.f32.gmra.mrb[0].mxu0 %v7476
        %v8937 = vpop.f32.mrb[0].mxu0
        %v8938 = vadd.f32 0.0, %v8937
        %v8939 = vpop.f32.mrb[0].mxu0
        %v8940 = vadd.f32 0.0, %v8939
        %8941 = vmatprep.mubr.f32.mxu0 %v7479
        %8942 = vmatmul.mubr.f32.gmra.mrb[0].mxu0 %v7478
        %v8943 = vpop.f32.mrb[0].mxu0
        %v8944 = vadd.f32 0.0, %v8943
        %v8945 = vpop.f32.mrb[0].mxu0
        %v8946 = vadd.f32 0.0, %v8945
        %8947 = vmatprep.mubr.f32.mxu0 %v7481
        %8948 = vmatmul.mubr.f32.gmra.mrb[0].mxu0 %v7480
        %v8949 = vpop.f32.mrb[0].mxu0
        %v8950 = vadd.f32 0.0, %v8949
        %v8951 = vpop.f32.mrb[0].mxu0
        %v8952 = vadd.f32 0.0, %v8951
        %8953 = vmatprep.mubr.f32.mxu0 %v7483
        %8954 = vmatmul.mubr.f32.gmra.mrb[0].mxu0 %v7482
        %v8955 = vpop.f32.mrb[0].mxu0
        %v8956 = vadd.f32 0.0, %v8955
        %v8957 = vpop.f32.mrb[0].mxu0
        %v8958 = vadd.f32 0.0, %v8957
        %8959 = vmatprep.mubr.f32.mxu0 %v7485
        %8960 = vmatmul.mubr.f32.gmra.mrb[0].mxu0 %v7484
        %v8961 = vpop.f32.mrb[0].mxu0
        %v8962 = vadd.f32 0.0, %v8961
        %v8963 = vpop.f32.mrb[0].mxu0
        %v8964 = vadd.f32 0.0, %v8963
        %8965 = vmatprep.mubr.f32.mxu0 %v7487
        %8966 = vmatmul.mubr.f32.gmra.mrb[0].mxu0 %v7486
        %v8967 = vpop.f32.mrb[0].mxu0
        %v8968 = vadd.f32 0.0, %v8967
        %v8969 = vpop.f32.mrb[0].mxu0
        %v8970 = vadd.f32 0.0, %v8969
        %8971 = vmatprep.mubr.f32.mxu0 %v7489
        %8972 = vmatmul.mubr.f32.gmra.mrb[0].mxu0 %v7488
        %v8973 = vpop.f32.mrb[0].mxu0
        %v8974 = vadd.f32 0.0, %v8973
        %v8975 = vpop.f32.mrb[0].mxu0
        %v8976 = vadd.f32 0.0, %v8975
        %8977 = vmatprep.mubr.f32.mxu0 %v7491
        %8978 = vmatmul.mubr.f32.gmra.mrb[0].mxu0 %v7490
        %v8979 = vpop.f32.mrb[0].mxu0
        %v8980 = vadd.f32 0.0, %v8979
        %v8981 = vpop.f32.mrb[0].mxu0
        %v8982 = vadd.f32 0.0, %v8981
        %8983 = vmatprep.mubr.f32.mxu0 %v7493
        %8984 = vmatmul.mubr.f32.gmra.mrb[0].mxu0 %v7492
        %v8985 = vpop.f32.mrb[0].mxu0
        %v8986 = vadd.f32 0.0, %v8985
        %v8987 = vpop.f32.mrb[0].mxu0
        %v8988 = vadd.f32 0.0, %v8987
        %8989 = vmatprep.mubr.f32.mxu0 0.0
        %8990 = vmatmul.mubr.f32.gmra.mrb[0].mxu0 0.0
        %v8991 = vpop.f32.mrb[0].mxu0
        %v8992 = vadd.f32 0.0, %v8991
        %v8993 = vpop.f32.mrb[0].mxu0
        %v8994 = vadd.f32 0.0, %v8993
        %8995 = vdwg.mxu0
        %v8996 = vadd.f32 %v8481, %v8741
        %v8997 = vadd.f32 %v8482, %v8743
        %v8998 = vadd.f32 %v8483, %v8902
        %v8999 = vadd.f32 %v8484, %v8904
        %v9000 = vadd.f32 %v8485, %v8747
        %v9001 = vadd.f32 %v8486, %v8749
        %v9002 = vadd.f32 %v8487, %v8908
        %v9003 = vadd.f32 %v8488, %v8910
        %v9004 = vadd.f32 %v8489, %v8753
        %v9005 = vadd.f32 %v8490, %v8755
        %v9006 = vadd.f32 %v8491, %v8914
        %v9007 = vadd.f32 %v8492, %v8916
        %v9008 = vadd.f32 %v8493, %v8759
        %v9009 = vadd.f32 %v8494, %v8761
        %v9010 = vadd.f32 %v8495, %v8920
        %v9011 = vadd.f32 %v8496, %v8922
        %v9012 = vadd.f32 %v8497, %v8765
        %v9013 = vadd.f32 %v8498, %v8767
        %v9014 = vadd.f32 %v8499, %v8926
        %v9015 = vadd.f32 %v8500, %v8928
        %v9016 = vadd.f32 %v8501, %v8771
        %v9017 = vadd.f32 %v8502, %v8773
        %v9018 = vadd.f32 %v8503, %v8932
        %v9019 = vadd.f32 %v8504, %v8934
        %v9020 = vadd.f32 %v8505, %v8777
        %v9021 = vadd.f32 %v8506, %v8779
        %v9022 = vadd.f32 %v8507, %v8938
        %v9023 = vadd.f32 %v8508, %v8940
        %v9024 = vadd.f32 %v8509, %v8783
        %v9025 = vadd.f32 %v8510, %v8785
        %v9026 = vadd.f32 %v8511, %v8944
        %v9027 = vadd.f32 %v8512, %v8946
        %v9028 = vadd.f32 %v8513, %v8789
        %v9029 = vadd.f32 %v8514, %v8791
        %v9030 = vadd.f32 %v8515, %v8950
        %v9031 = vadd.f32 %v8516, %v8952
        %v9032 = vadd.f32 %v8517, %v8795
        %v9033 = vadd.f32 %v8518, %v8797
        %v9034 = vadd.f32 %v8519, %v8956
        %v9035 = vadd.f32 %v8520, %v8958
        %v9036 = vadd.f32 %v8521, %v8801
        %v9037 = vadd.f32 %v8522, %v8803
        %v9038 = vadd.f32 %v8523, %v8962
        %v9039 = vadd.f32 %v8524, %v8964
        %v9040 = vadd.f32 %v8525, %v8807
        %v9041 = vadd.f32 %v8526, %v8809
        %v9042 = vadd.f32 %v8527, %v8968
        %v9043 = vadd.f32 %v8528, %v8970
        %v9044 = vadd.f32 %v8529, %v8813
        %v9045 = vadd.f32 %v8530, %v8815
        %v9046 = vadd.f32 %v8531, %v8974
        %v9047 = vadd.f32 %v8532, %v8976
        %v9048 = vadd.f32 %v8533, %v8819
        %v9049 = vadd.f32 %v8534, %v8821
        %v9050 = vadd.f32 %v8535, %v8980
        %v9051 = vadd.f32 %v8536, %v8982
        %v9052 = vadd.f32 %v8537, %v8825
        %v9053 = vadd.f32 %v8538, %v8827
        %v9054 = vadd.f32 %v8539, %v8986
        %v9055 = vadd.f32 %v8540, %v8988
        %v9056 = vadd.f32 %v8541, %v8831
        %v9057 = vadd.f32 %v8542, %v8833
        %v9058 = vadd.f32 %v8543, %v8992
        %v9059 = vadd.f32 %v8544, %v8994
        %v9060 = vmax.f32 %v8996, 0.0
        %v9061 = vmax.f32 %v8997, 0.0
        %v9062 = vmax.f32 %v8998, 0.0
        %v9063 = vmax.f32 %v8999, 0.0
        %v9064 = vmax.f32 %v9000, 0.0
        %v9065 = vmax.f32 %v9001, 0.0
        %v9066 = vmax.f32 %v9002, 0.0
        %v9067 = vmax.f32 %v9003, 0.0
        %v9068 = vmax.f32 %v9004, 0.0
        %v9069 = vmax.f32 %v9005, 0.0
        %v9070 = vmax.f32 %v9006, 0.0
        %v9071 = vmax.f32 %v9007, 0.0
        %v9072 = vmax.f32 %v9008, 0.0
        %v9073 = vmax.f32 %v9009, 0.0
        %v9074 = vmax.f32 %v9010, 0.0
        %v9075 = vmax.f32 %v9011, 0.0
        %v9076 = vmax.f32 %v9012, 0.0
        %v9077 = vmax.f32 %v9013, 0.0
        %v9078 = vmax.f32 %v9014, 0.0
        %v9079 = vmax.f32 %v9015, 0.0
        %v9080 = vmax.f32 %v9016, 0.0
        %v9081 = vmax.f32 %v9017, 0.0
        %v9082 = vmax.f32 %v9018, 0.0
        %v9083 = vmax.f32 %v9019, 0.0
        %v9084 = vmax.f32 %v9020, 0.0
        %v9085 = vmax.f32 %v9021, 0.0
        %v9086 = vmax.f32 %v9022, 0.0
        %v9087 = vmax.f32 %v9023, 0.0
        %v9088 = vmax.f32 %v9024, 0.0
        %v9089 = vmax.f32 %v9025, 0.0
        %v9090 = vmax.f32 %v9026, 0.0
        %v9091 = vmax.f32 %v9027, 0.0
        %v9092 = vmax.f32 %v9028, 0.0
        %v9093 = vmax.f32 %v9029, 0.0
        %v9094 = vmax.f32 %v9030, 0.0
        %v9095 = vmax.f32 %v9031, 0.0
        %v9096 = vmax.f32 %v9032, 0.0
        %v9097 = vmax.f32 %v9033, 0.0
        %v9098 = vmax.f32 %v9034, 0.0
        %v9099 = vmax.f32 %v9035, 0.0
        %v9100 = vmax.f32 %v9036, 0.0
        %v9101 = vmax.f32 %v9037, 0.0
        %v9102 = vmax.f32 %v9038, 0.0
        %v9103 = vmax.f32 %v9039, 0.0
        %v9104 = vmax.f32 %v9040, 0.0
        %v9105 = vmax.f32 %v9041, 0.0
        %v9106 = vmax.f32 %v9042, 0.0
        %v9107 = vmax.f32 %v9043, 0.0
        %v9108 = vmax.f32 %v9044, 0.0
        %v9109 = vmax.f32 %v9045, 0.0
        %v9110 = vmax.f32 %v9046, 0.0
        %v9111 = vmax.f32 %v9047, 0.0
        %v9112 = vmax.f32 %v9048, 0.0
        %v9113 = vmax.f32 %v9049, 0.0
        %v9114 = vmax.f32 %v9050, 0.0
        %v9115 = vmax.f32 %v9051, 0.0
        %v9116 = vmax.f32 %v9052, 0.0
        %v9117 = vmax.f32 %v9053, 0.0
        %v9118 = vmax.f32 %v9054, 0.0
        %v9119 = vmax.f32 %v9055, 0.0
        %v9120 = vmax.f32 %v9056, 0.0
        %v9121 = vmax.f32 %v9057, 0.0
        %v9122 = vmax.f32 %v9058, 0.0
        %v9123 = vmax.f32 %v9059, 0.0
        %v9124 = vmax.f32 %v9060, %v9062
        %v9125 = vmax.f32 %v9061, %v9063
        %v9126 = vmax.f32 %v9064, %v9066
        %v9127 = vmax.f32 %v9065, %v9067
        %v9128 = vmax.f32 %v9068, %v9070
        %v9129 = vmax.f32 %v9069, %v9071
        %v9130 = vmax.f32 %v9072, %v9074
        %v9131 = vmax.f32 %v9073, %v9075
        %v9132 = vmax.f32 %v9076, %v9078
        %v9133 = vmax.f32 %v9077, %v9079
        %v9134 = vmax.f32 %v9080, %v9082
        %v9135 = vmax.f32 %v9081, %v9083
        %v9136 = vmax.f32 %v9084, %v9086
        %v9137 = vmax.f32 %v9085, %v9087
        %v9138 = vmax.f32 %v9088, %v9090
        %v9139 = vmax.f32 %v9089, %v9091
        %v9140 = vmax.f32 %v9092, %v9094
        %v9141 = vmax.f32 %v9093, %v9095
        %v9142 = vmax.f32 %v9096, %v9098
        %v9143 = vmax.f32 %v9097, %v9099
        %v9144 = vmax.f32 %v9100, %v9102
        %v9145 = vmax.f32 %v9101, %v9103
        %v9146 = vmax.f32 %v9104, %v9106
        %v9147 = vmax.f32 %v9105, %v9107
        %v9148 = vmax.f32 %v9108, %v9110
        %v9149 = vmax.f32 %v9109, %v9111
        %v9150 = vmax.f32 %v9112, %v9114
        %v9151 = vmax.f32 %v9113, %v9115
        %v9152 = vmax.f32 %v9116, %v9118
        %v9153 = vmax.f32 %v9117, %v9119
        %v9154 = vmax.f32 %v9120, %v9122
        %v9155 = vmax.f32 %v9121, %v9123
        %v9156 = vmax.f32 %v9124, %v9126
        %v9157 = vmax.f32 %v9125, %v9127
        %v9158 = vmax.f32 %v9128, %v9130
        %v9159 = vmax.f32 %v9129, %v9131
        %v9160 = vmax.f32 %v9132, %v9134
        %v9161 = vmax.f32 %v9133, %v9135
        %v9162 = vmax.f32 %v9136, %v9138
        %v9163 = vmax.f32 %v9137, %v9139
        %v9164 = vmax.f32 %v9140, %v9142
        %v9165 = vmax.f32 %v9141, %v9143
        %v9166 = vmax.f32 %v9144, %v9146
        %v9167 = vmax.f32 %v9145, %v9147
        %v9168 = vmax.f32 %v9148, %v9150
        %v9169 = vmax.f32 %v9149, %v9151
        %v9170 = vmax.f32 %v9152, %v9154
        %v9171 = vmax.f32 %v9153, %v9155
        %v9172 = vld [vmem:[%s7] sm:$0xff]
        %v9173 = vld [vmem:[%s7 + $0x8] sm:$0xff]
        %v9174 = vld [vmem:[%s7 + $0x10] sm:$0xff]
        %v9175 = vld [vmem:[%s7 + $0x18] sm:$0xff]
        %v9176 = vld [vmem:[%s7 + $0x20] sm:$0xff]
        %v9177 = vld [vmem:[%s7 + $0x28] sm:$0xff]
        %v9178 = vld [vmem:[%s7 + $0x30] sm:$0xff]
        %v9179 = vld [vmem:[%s7 + $0x38] sm:$0xff]
        %v9180 = vld [vmem:[%s7 + $0x40] sm:$0xff]
        %v9181 = vld [vmem:[%s7 + $0x48] sm:$0xff]
        %v9182 = vld [vmem:[%s7 + $0x50] sm:$0xff]
        %v9183 = vld [vmem:[%s7 + $0x58] sm:$0xff]
        %v9184 = vld [vmem:[%s7 + $0x60] sm:$0xff]
        %v9185 = vld [vmem:[%s7 + $0x68] sm:$0xff]
        %v9186 = vld [vmem:[%s7 + $0x70] sm:$0xff]
        %v9187 = vld [vmem:[%s7 + $0x78] sm:$0xff]
        %v9188 = vmul.f32 %v9156, %v9172
        %v9189 = vmul.f32 %v9157, %v9173
        %v9190 = vmul.f32 %v9158, %v9174
        %v9191 = vmul.f32 %v9159, %v9175
        %v9192 = vmul.f32 %v9160, %v9176
        %v9193 = vmul.f32 %v9161, %v9177
        %v9194 = vmul.f32 %v9162, %v9178
        %v9195 = vmul.f32 %v9163, %v9179
        %v9196 = vmul.f32 %v9164, %v9180
        %v9197 = vmul.f32 %v9165, %v9181
        %v9198 = vmul.f32 %v9166, %v9182
        %v9199 = vmul.f32 %v9167, %v9183
        %v9200 = vmul.f32 %v9168, %v9184
        %v9201 = vmul.f32 %v9169, %v9185
        %v9202 = vmul.f32 %v9170, %v9186
        %v9203 = vmul.f32 %v9171, %v9187
        %v9204 = vld [vmem:[%s8] sm:$0xff]
        %v9206 = vsel %vm744, %v9204, 0
        %9208 = vmatprep.subr.mxu0 %v9189
        %9209 = vmatpush1.msra.mxu0 %v9188
        %9210 = vmatprep.subr.mxu0 %v9191
        %9211 = vmatpush1.msra.mxu0 %v9190
        %9212 = vmatprep.subr.mxu0 %v9193
        %9213 = vmatpush1.msra.mxu0 %v9192
        %9214 = vmatprep.subr.mxu0 %v9195
        %9215 = vmatpush1.msra.mxu0 %v9194
        %9216 = vmatprep.subr.mxu0 %v9197
        %9217 = vmatpush1.msra.mxu0 %v9196
        %9218 = vmatprep.subr.mxu0 %v9199
        %9219 = vmatpush1.msra.mxu0 %v9198
        %9220 = vmatprep.subr.mxu0 %v9201
        %9221 = vmatpush1.msra.mxu0 %v9200
        %9222 = vmatprep.subr.mxu0 %v9203
        %9223 = vmatpush1.msra.mxu0 %v9202
        %9224 = vmatprep.subr.mxu0 0.0
        %9225 = vmatpush1.msra.mxu0 0.0
        %9226 = vmatprep.subr.mxu0 0.0
        %9227 = vmatpush1.msra.mxu0 0.0
        %9228 = vmatprep.subr.mxu0 0.0
        %9229 = vmatpush1.msra.mxu0 0.0
        %9230 = vmatprep.subr.mxu0 0.0
        %9231 = vmatpush1.msra.mxu0 0.0
        %9232 = vmatprep.subr.mxu0 0.0
        %9233 = vmatpush1.msra.mxu0 0.0
        %9234 = vmatprep.subr.mxu0 0.0
        %9235 = vmatpush1.msra.mxu0 0.0
        %9236 = vmatprep.subr.mxu0 0.0
        %9237 = vmatpush1.msra.mxu0 0.0
        %9238 = vmatprep.subr.mxu0 0.0
        %9239 = vmatpush1.msra.mxu0 0.0
        %9240 = vmatprep.subr.mxu0 0.0
        %9241 = vmatpush1.msra.mxu0 0.0
        %9242 = vmatprep.subr.mxu0 0.0
        %9243 = vmatpush1.msra.mxu0 0.0
        %9244 = vmatprep.subr.mxu0 0.0
        %9245 = vmatpush1.msra.mxu0 0.0
        %9246 = vmatprep.subr.mxu0 0.0
        %9247 = vmatpush1.msra.mxu0 0.0
        %9248 = vmatprep.subr.mxu0 0.0
        %9249 = vmatpush1.msra.mxu0 0.0
        %9250 = vmatprep.subr.mxu0 0.0
        %9251 = vmatpush1.msra.mxu0 0.0
        %9252 = vmatprep.subr.mxu0 0.0
        %9253 = vmatpush1.msra.mxu0 0.0
        %9254 = vmatprep.subr.mxu0 0.0
        %9255 = vmatpush1.msra.mxu0 0.0
        %9256 = vmatprep.subr.mxu0 0.0
        %9257 = vmatpush1.msra.mxu0 0.0
        %9258 = vmatprep.subr.mxu0 0.0
        %9259 = vmatpush1.msra.mxu0 0.0
        %9260 = vmatprep.subr.mxu0 0.0
        %9261 = vmatpush1.msra.mxu0 0.0
        %9262 = vmatprep.subr.mxu0 0.0
        %9263 = vmatpush1.msra.mxu0 0.0
        %9264 = vmatprep.subr.mxu0 0.0
        %9265 = vmatpush1.msra.mxu0 0.0
        %9266 = vmatprep.subr.mxu0 0.0
        %9267 = vmatpush1.msra.mxu0 0.0
        %9268 = vmatprep.subr.mxu0 0.0
        %9269 = vmatpush1.msra.mxu0 0.0
        %9270 = vmatprep.subr.mxu0 0.0
        %9271 = vmatpush1.msra.mxu0 0.0
        %9272 = vmatprep.mubr.f32.mxu0 0.0
        %9273 = vmatmul.mubr.f32.gmra.mrb[0].mxu0 %v9206
        %v9274 = vpop.f32.mrb[0].mxu0
        %v9275 = vadd.f32 0.0, %v9274
        %v9276 = vpop.f32.mrb[0].mxu0
        %v9277 = vadd.f32 0.0, %v9276
        %9278 = vdwg.mxu0
        %v9279 = vadd.f32 %v9275, %v9277
        %9280 = vadd.xlane.f32.xlu0 %v9279
        %v9281 = vpop.xlane.xlu0 %9280
        %v9282 = vld [vmem:[#allocation2] sm:$0x1]
        %s9283 = vtos %v9282
        %v9284 = vstv %s9283
        %v9285 = vadd.f32 %v9281, %v9284
        %vm9286 = vcmask 7168
        %9287 = vst.msk [vmem:[%s645] sm:$0xff] %vm9286, %v9285
        %p9288 = scmp.lt.s32.totalorder %s23, 1
        %s9289 = scalar_select %p9288, %s23, 1
        %s9290 = smul.addr %s9289, 8
        %s9291 = scalar_lea.vmem %s10, %s9290
        // Predicated region
        $region99: #{fid_forward.1} parent=93 // pred_check
          %p9292 = pneg %p256
        $region100: #{fid_forward.1} parent=93 // pred_check_branch
          %9294 = sbr.rel (%p9292) target = $region102
        $region101: #{fid_forward.1} parent=93 // pred_region
          _
        $region102: #{fid_forward.1} parent=93 // pred_fallthru
          _
      $region94: #{fid_forward.1} parent=5 // pred_fallthru
        _
      %p9295 = scmp.le.s32.totalorder 2, %s18
      // Predicated region
      $region103: #{fid_forward.1} parent=5 // pred_check
        %p9296 = pneg %p9295
      $region104: #{fid_forward.1} parent=5 // pred_check_branch
        %9298 = sbr.rel (%p9296) target = $region106
      $region105: #{fid_forward.1} parent=5 // pred_region
        %s9299 = ssub.s32 %s18, 2
        // Predicated region
        $region107: #{fid_forward.1} parent=105 // pred_check
          %p9300 = pneg %p262
        $region108: #{fid_forward.1} parent=105 // pred_check_branch
          %9302 = sbr.rel (%p9300) target = $region110
        $region109: #{fid_forward.1} parent=105 // pred_region
          %p9303 = scmp.lt.s32.totalorder %s24, 1
          %s9304 = scalar_select %p9303, %s24, 1
          %s9305 = smul.addr %s9304, 8
          %s9306 = scalar_lea.vmem %s10, %s9305
        $region110: #{fid_forward.1} parent=105 // pred_fallthru
          _
      $region106: #{fid_forward.1} parent=5 // pred_fallthru
        _
    $region6: #{fid_forward.1} parent=1 // loop_footer
      %s22 = sadd.s32 1, %s18
    $region7: #{fid_forward.1} parent=1 // loop_footer_branch
      %17 = sbr.rel target = $region3
    $region8: #{fid_forward.1} parent=1 // loop_exit
      _

</llo_original>
